<compile_context>
chip_gen: v7x
topology: tpu7x:2x2x1
jax: 0.10.0
libtpu: 0.0.40
codegen_flags: <defaults>
</compile_context>

<pallas_src>
import jax
import jax.numpy as jnp
from jax.experimental import pallas as pl
from jax.experimental.pallas import tpu as pltpu


def _round_up(x, m):
    return (x + m - 1) // m * m


def bilinear_fusion_kernel(x_ref, w1_ref, w2_ref, rep_ref, sel_ref,
                           b1_ref, b2_ref, wfa_ref, wfbc_ref,
                           bf_ref, gamma_ref, beta_ref, out_ref):
    f32 = jnp.float32
    bf16 = jnp.bfloat16
    H = b1_ref.shape[-1]
    N = 3 * H

    x = x_ref[...]                                    # (TB, Npack) f32: [text|quad|attn|0]
    text = x[:, 0:H]                                  # kept f32 (exact VPU multiply path)
    quad16 = x[:, H:2 * H].astype(bf16)               # bf16 MXU operands
    attn16 = x[:, 2 * H:3 * H].astype(bf16)
    tq16 = x[:, 0:2 * H].astype(bf16)                 # [text|quad] for the fusion matmul

    rep = rep_ref[...]                                # (H, H*H) f32 0/1: lane replication
    sel = sel_ref[...]                                # (H*H, H) f32 0/1: segmented lane sum

    # --- bilinear1(text, quad): inter1[b,k] = sum_ij text[b,i] W1[k,i,j] quad[b,j] + b1
    # t1[b, k*H+i] = sum_j W1[k,i,j] quad[b,j]   (bf16 MXU, f32 accumulate)
    t1 = jnp.dot(quad16, w1_ref[...], preferred_element_type=f32)        # (TB, H*H)
    # text_t[b, k*H+i] = text[b,i]  (exact f32 matmul against 0/1 matrix, no relayout)
    text_t = jnp.dot(text, rep, preferred_element_type=f32)              # (TB, H*H)
    # segmented sum over i via 0/1 matrix (exact f32)
    inter1 = jnp.dot(t1 * text_t, sel, preferred_element_type=f32) + b1_ref[...]

    # --- bilinear2(inter1, attn)
    t2 = jnp.dot(attn16, w2_ref[...], preferred_element_type=f32)        # (TB, H*H)
    i1_t = jnp.dot(inter1, rep, preferred_element_type=f32)              # (TB, H*H)
    inter2 = jnp.dot(t2 * i1_t, sel, preferred_element_type=f32) + b2_ref[...]

    # --- fusion Linear(3H -> 3H), concat eliminated, weights pre-split MXU-native.
    h = (jnp.dot(inter2.astype(bf16), wfa_ref[...], preferred_element_type=f32)
         + jnp.dot(tq16, wfbc_ref[...], preferred_element_type=f32)
         + bf_ref[...])                                                  # (TB, Npad)

    # --- LayerNorm over the first N lanes (pad lanes of h are exactly zero, so no mask
    #     is needed: sum/N and E[h^2]/N only see valid lanes; gamma/beta pad lanes are 0).
    inv_n = 1.0 / N
    mean = jnp.sum(h, axis=-1, keepdims=True) * inv_n
    var = jnp.sum(h * h, axis=-1, keepdims=True) * inv_n - mean * mean
    ln = (h - mean) * jax.lax.rsqrt(var + 1e-5) * gamma_ref[...] + beta_ref[...]

    # --- ReLU.  Dropout is identity in eval mode.  Pad lanes stay exactly 0.
    out_ref[...] = jnp.maximum(ln, 0.0)


def bilinear_fusion(text, quad, attn, params, *, block_b=None):
    """Fused BilinearFusion forward (eval mode) as one Pallas TPU kernel.

    block_b=None -> single grid step (best on 1-TC v5e/v6e).
    On v7x pass block_b = ceil(B/2) so the 2 TensorCores each take one parallel step.
    """
    B, H = text.shape
    N = 3 * H
    Npad = _round_up(N, 128)
    f32 = jnp.float32
    bf16 = jnp.bfloat16

    # Batch tiling: pad B to a sublane multiple instead of a silent tb=B fallback.
    if block_b is None:
        tb = _round_up(B, 8)
    else:
        tb = _round_up(min(block_b, B), 8)
    Bpad = _round_up(B, tb)
    grid = (Bpad // tb,)

    # One packed, lane-dense activation input: [text | quad | attn | 0pad], (Bpad, Npad).
    packed = jnp.concatenate([text, quad, attn], axis=-1).astype(f32)
    packed = jnp.pad(packed, ((0, Bpad - B), (0, Npad - N)))

    # nn.Bilinear weight (K, I, J) -> MXU-native (J, K*H + I): one-time wrapper transpose
    # of constants; avoids any in-kernel trans_b / transpose path.  Stored bf16.
    w1d = params["w1"].astype(bf16).transpose(2, 0, 1).reshape(H, H * H)
    w2d = params["w2"].astype(bf16).transpose(2, 0, 1).reshape(H, H * H)

    # 0/1 helper matrices (exact in f32): replication rep[i, k*H+i'] = (i == i'),
    # segmented-sum sel[k*H+i, k'] = (k == k').
    rep = jnp.tile(jnp.eye(H, dtype=f32), (1, H))          # (H, H*H)
    sel = jnp.repeat(jnp.eye(H, dtype=f32), H, axis=0)      # (H*H, H)

    # nn.Linear weight (3H, 3H) -> pre-split, MXU-native (in, out), output dim padded to
    # a lane-dense multiple of 128 with zero columns.
    wfT = params["wf"].astype(bf16).T                        # (in=3H, out=3H)
    wf_a = jnp.pad(wfT[0:H, :], ((0, 0), (0, Npad - N)))     # (H, Npad)   inter2 block
    wf_bc = jnp.pad(wfT[H:3 * H, :], ((0, 0), (0, Npad - N)))  # (2H, Npad) text|quad block

    b1 = params["b1"].astype(f32).reshape(1, H)
    b2 = params["b2"].astype(f32).reshape(1, H)
    bf_pad = jnp.pad(params["bf"].astype(f32), (0, Npad - N)).reshape(1, Npad)
    gamma_pad = jnp.pad(params["gamma"].astype(f32), (0, Npad - N)).reshape(1, Npad)
    beta_pad = jnp.pad(params["beta"].astype(f32), (0, Npad - N)).reshape(1, Npad)

    args = (packed, w1d, w2d, rep, sel, b1, b2, wf_a, wf_bc,
            bf_pad, gamma_pad, beta_pad)

    def resident(shape):
        # Same block index every grid step -> stays VMEM-resident (no re-DMA).
        return pl.BlockSpec(shape, lambda i: (0, 0))

    in_specs = [
        pl.BlockSpec((tb, Npad), lambda i: (i, 0)),   # packed activations
        resident((H, H * H)),                         # w1d (bf16)
        resident((H, H * H)),                         # w2d (bf16)
        resident((H, H * H)),                         # rep (f32)
        resident((H * H, H)),                         # sel (f32)
        resident((1, H)), resident((1, H)),           # b1, b2
        resident((H, Npad)), resident((2 * H, Npad)),  # wf_a, wf_bc (bf16)
        resident((1, Npad)), resident((1, Npad)), resident((1, Npad)),  # bf, gamma, beta
    ]
    out_spec = pl.BlockSpec((tb, Npad), lambda i: (i, 0))

    macs = Bpad * (6 * H ** 3 + 3 * H * Npad)
    cost = pl.CostEstimate(
        flops=int(2 * macs + 8 * Bpad * H * H),
        transcendentals=int(Bpad),
        bytes_accessed=int(sum(int(a.size) * a.dtype.itemsize for a in args)
                           + Bpad * Npad * 4),
    )

    out_padded = pl.pallas_call(
        bilinear_fusion_kernel,
        out_shape=jax.ShapeDtypeStruct((Bpad, Npad), jnp.float32),
        grid=grid,
        in_specs=in_specs,
        out_specs=out_spec,
        compiler_params=pltpu.CompilerParams(
            dimension_semantics=("parallel",),
            vmem_limit_bytes=32 * 1024 * 1024,
        ),
        cost_estimate=cost,
    )(*args)

    return out_padded[:B, :N]


def make_params(key, hidden_size, *, weight_dtype=jnp.bfloat16):
    """Deterministic synthetic parameters matching the PyTorch module's shapes.

    Matrix weights are stored bf16 (the kernel feeds them to the MXU as bf16);
    biases / LayerNorm affine stay f32.
    """
    H = hidden_size
    ks = jax.random.split(key, 6)
    s = 1.0 / jnp.sqrt(jnp.float32(H))
    s3 = 1.0 / jnp.sqrt(jnp.float32(3 * H))
    return {
        "w1": jax.random.uniform(ks[0], (H, H, H), jnp.float32, -s, s).astype(weight_dtype),
        "b1": jax.random.uniform(ks[1], (H,), jnp.float32, -s, s),
        "w2": jax.random.uniform(ks[2], (H, H, H), jnp.float32, -s, s).astype(weight_dtype),
        "b2": jax.random.uniform(ks[3], (H,), jnp.float32, -s, s),
        "wf": jax.random.uniform(ks[4], (3 * H, 3 * H), jnp.float32, -s3, s3).astype(weight_dtype),
        "bf": jax.random.uniform(ks[5], (3 * H,), jnp.float32, -s3, s3),
        "gamma": jnp.ones((3 * H,), jnp.float32),
        "beta": jnp.zeros((3 * H,), jnp.float32),
    }


def reference_f32(text, quad, attn, params):
    """Pure-f32 reference of the PyTorch forward (eval mode, bf16-stored weights)."""
    hi = jax.lax.Precision.HIGHEST

    def bilinear(x1, x2, w, b):
        return jnp.einsum("bi,kij,bj->bk", x1, w.astype(jnp.float32), x2,
                          precision=hi) + b

    i1 = bilinear(text, quad, params["w1"], params["b1"])
    i2 = bilinear(i1, attn, params["w2"], params["b2"])
    fused = jnp.concatenate([i2, text, quad], axis=-1)
    h = jnp.einsum("bn,mn->bm", fused, params["wf"].astype(jnp.float32),
                   precision=hi) + params["bf"]
    mean = jnp.mean(h, axis=-1, keepdims=True)
    var = jnp.mean((h - mean) ** 2, axis=-1, keepdims=True)
    ln = (h - mean) * jax.lax.rsqrt(var + 1e-5) * params["gamma"] + params["beta"]
    return jnp.maximum(ln, 0.0)


def reference_mixed(text, quad, attn, params):
    """Same math with the kernel's mixed precision: bf16 MXU operands, f32 accumulation."""
    hi = jax.lax.Precision.HIGHEST
    f32 = jnp.float32

    def r16(x):  # emulate the bf16 cast applied to MXU activation operands
        return x.astype(jnp.bfloat16).astype(f32)

    w1 = params["w1"].astype(f32)
    w2 = params["w2"].astype(f32)
    wf = params["wf"].astype(f32)
    i1 = jnp.einsum("bi,kij,bj->bk", text, w1, r16(quad), precision=hi) + params["b1"]
    i2 = jnp.einsum("bi,kij,bj->bk", i1, w2, r16(attn), precision=hi) + params["b2"]
    fused = jnp.concatenate([r16(i2), r16(text), r16(quad)], axis=-1)
    h = jnp.einsum("bn,mn->bm", fused, wf, precision=hi) + params["bf"]
    mean = jnp.mean(h, axis=-1, keepdims=True)
    var = jnp.mean((h - mean) ** 2, axis=-1, keepdims=True)
    ln = (h - mean) * jax.lax.rsqrt(var + 1e-5) * params["gamma"] + params["beta"]
    return jnp.maximum(ln, 0.0)


if __name__ == "__main__":
    B, H = 256, 32
    key = jax.random.PRNGKey(0)
    k_text, k_quad, k_attn, k_param = jax.random.split(key, 4)

    text = jax.random.normal(k_text, (B, H), jnp.float32)
    quad = jax.random.normal(k_quad, (B, H), jnp.float32)
    attn = jax.random.normal(k_attn, (B, H), jnp.float32)
    params = make_params(k_param, H)

    out = bilinear_fusion(text, quad, attn, params)
    out = jax.block_until_ready(out)
    assert out.shape == (B, 3 * H)

    # Tight structural check against a reference that uses the same mixed precision.
    ref_m = reference_mixed(text, quad, attn, params)
    err_m = float(jnp.max(jnp.abs(out - ref_m)))
    assert bool(jnp.allclose(out, ref_m, atol=2e-3, rtol=2e-3)), err_m

    # Loose global check against the full-f32 PyTorch-semantics reference
    # (bounded deviation comes only from bf16 MXU activation operands).
    ref_f = reference_f32(text, quad, attn, params)
    rel = float(jnp.linalg.norm(out - ref_f) / jnp.linalg.norm(ref_f))
    assert rel < 2e-2, rel

    print("KERNEL_OK")
</pallas_src>

<mosaic_0001>
module attributes {stable_mosaic.version = 11 : i64} {
  func.func @bilinear_fusion_kernel(%arg0: i32, %arg1: memref<256x128xf32, #tpu.memory_space<vmem>>, %arg2: memref<32x1024xbf16, #tpu.memory_space<vmem>>, %arg3: memref<32x1024xbf16, #tpu.memory_space<vmem>>, %arg4: memref<32x1024xf32, #tpu.memory_space<vmem>>, %arg5: memref<1024x32xf32, #tpu.memory_space<vmem>>, %arg6: memref<1x32xf32, #tpu.memory_space<vmem>>, %arg7: memref<1x32xf32, #tpu.memory_space<vmem>>, %arg8: memref<32x128xbf16, #tpu.memory_space<vmem>>, %arg9: memref<64x128xbf16, #tpu.memory_space<vmem>>, %arg10: memref<1x128xf32, #tpu.memory_space<vmem>>, %arg11: memref<1x128xf32, #tpu.memory_space<vmem>>, %arg12: memref<1x128xf32, #tpu.memory_space<vmem>>, %arg13: memref<256x128xf32, #tpu.memory_space<vmem>>) attributes {dimension_semantics = [#tpu.dimension_semantics<parallel>], iteration_bounds = array<i64: 1>, scalar_prefetch = 0 : i64, scratch_operands = 0 : i64, tpu.core_type = #tpu.core_type<tc>, window_params = [{transform_indices = @transform_0, window_bounds = array<i64: 256, 128>}, {pipeline_mode = #tpu.pipeline_mode<synchronous>, transform_indices = @transform_1, window_bounds = array<i64: 32, 1024>}, {pipeline_mode = #tpu.pipeline_mode<synchronous>, transform_indices = @transform_2, window_bounds = array<i64: 32, 1024>}, {pipeline_mode = #tpu.pipeline_mode<synchronous>, transform_indices = @transform_3, window_bounds = array<i64: 32, 1024>}, {pipeline_mode = #tpu.pipeline_mode<synchronous>, transform_indices = @transform_4, window_bounds = array<i64: 1024, 32>}, {pipeline_mode = #tpu.pipeline_mode<synchronous>, transform_indices = @transform_5, window_bounds = array<i64: 1, 32>}, {pipeline_mode = #tpu.pipeline_mode<synchronous>, transform_indices = @transform_6, window_bounds = array<i64: 1, 32>}, {pipeline_mode = #tpu.pipeline_mode<synchronous>, transform_indices = @transform_7, window_bounds = array<i64: 32, 128>}, {pipeline_mode = #tpu.pipeline_mode<synchronous>, transform_indices = @transform_8, window_bounds = array<i64: 64, 128>}, {pipeline_mode = #tpu.pipeline_mode<synchronous>, transform_indices = @transform_9, window_bounds = array<i64: 1, 128>}, {pipeline_mode = #tpu.pipeline_mode<synchronous>, transform_indices = @transform_10, window_bounds = array<i64: 1, 128>}, {pipeline_mode = #tpu.pipeline_mode<synchronous>, transform_indices = @transform_11, window_bounds = array<i64: 1, 128>}, {transform_indices = @transform_12, window_bounds = array<i64: 256, 128>}]} {
    %c0 = arith.constant 0 : index
    %c0_0 = arith.constant 0 : index
    %0 = vector.load %arg1[%c0, %c0_0] : memref<256x128xf32, #tpu.memory_space<vmem>>, vector<256x128xf32>
    %1 = vector.extract_strided_slice %0 {offsets = [0, 0], sizes = [256, 32], strides = [1, 1]} : vector<256x128xf32> to vector<256x32xf32>
    %2 = vector.extract_strided_slice %0 {offsets = [0, 32], sizes = [256, 32], strides = [1, 1]} : vector<256x128xf32> to vector<256x32xf32>
    %3 = arith.truncf %2 : vector<256x32xf32> to vector<256x32xbf16>
    %4 = vector.extract_strided_slice %0 {offsets = [0, 64], sizes = [256, 32], strides = [1, 1]} : vector<256x128xf32> to vector<256x32xf32>
    %5 = arith.truncf %4 : vector<256x32xf32> to vector<256x32xbf16>
    %6 = vector.extract_strided_slice %0 {offsets = [0, 0], sizes = [256, 64], strides = [1, 1]} : vector<256x128xf32> to vector<256x64xf32>
    %7 = arith.truncf %6 : vector<256x64xf32> to vector<256x64xbf16>
    %c0_1 = arith.constant 0 : index
    %c0_2 = arith.constant 0 : index
    %8 = vector.load %arg4[%c0_1, %c0_2] : memref<32x1024xf32, #tpu.memory_space<vmem>>, vector<32x1024xf32>
    %c0_3 = arith.constant 0 : index
    %c0_4 = arith.constant 0 : index
    %9 = vector.load %arg5[%c0_3, %c0_4] : memref<1024x32xf32, #tpu.memory_space<vmem>>, vector<1024x32xf32>
    %c0_5 = arith.constant 0 : index
    %c0_6 = arith.constant 0 : index
    %10 = vector.load %arg2[%c0_5, %c0_6] : memref<32x1024xbf16, #tpu.memory_space<vmem>>, vector<32x1024xbf16>
    %cst = arith.constant dense<0.000000e+00> : vector<256x1024xf32>
    %11 = tpu.matmul %3, %10, %cst {dimension_numbers = #tpu.dot_dimension_numbers<[1], [0], [0], [1], [0, 0, 1, 1], [], []>} : vector<256x32xbf16>, vector<32x1024xbf16>, vector<256x1024xf32> -> vector<256x1024xf32>
    %cst_7 = arith.constant dense<0.000000e+00> : vector<256x1024xf32>
    %12 = tpu.matmul %1, %8, %cst_7 {dimension_numbers = #tpu.dot_dimension_numbers<[1], [0], [0], [1], [0, 0, 1, 1], [], []>} : vector<256x32xf32>, vector<32x1024xf32>, vector<256x1024xf32> -> vector<256x1024xf32>
    %13 = arith.mulf %11, %12 : vector<256x1024xf32>
    %cst_8 = arith.constant dense<0.000000e+00> : vector<256x32xf32>
    %14 = tpu.matmul %13, %9, %cst_8 {dimension_numbers = #tpu.dot_dimension_numbers<[1], [0], [0], [1], [0, 0, 1, 1], [], []>} : vector<256x1024xf32>, vector<1024x32xf32>, vector<256x32xf32> -> vector<256x32xf32>
    %c0_9 = arith.constant 0 : index
    %c0_10 = arith.constant 0 : index
    %15 = vector.load %arg6[%c0_9, %c0_10] : memref<1x32xf32, #tpu.memory_space<vmem>>, vector<1x32xf32>
    %16 = vector.broadcast %15 : vector<1x32xf32> to vector<256x32xf32>
    %17 = arith.addf %14, %16 : vector<256x32xf32>
    %c0_11 = arith.constant 0 : index
    %c0_12 = arith.constant 0 : index
    %18 = vector.load %arg3[%c0_11, %c0_12] : memref<32x1024xbf16, #tpu.memory_space<vmem>>, vector<32x1024xbf16>
    %cst_13 = arith.constant dense<0.000000e+00> : vector<256x1024xf32>
    %19 = tpu.matmul %5, %18, %cst_13 {dimension_numbers = #tpu.dot_dimension_numbers<[1], [0], [0], [1], [0, 0, 1, 1], [], []>} : vector<256x32xbf16>, vector<32x1024xbf16>, vector<256x1024xf32> -> vector<256x1024xf32>
    %cst_14 = arith.constant dense<0.000000e+00> : vector<256x1024xf32>
    %20 = tpu.matmul %17, %8, %cst_14 {dimension_numbers = #tpu.dot_dimension_numbers<[1], [0], [0], [1], [0, 0, 1, 1], [], []>} : vector<256x32xf32>, vector<32x1024xf32>, vector<256x1024xf32> -> vector<256x1024xf32>
    %21 = arith.mulf %19, %20 : vector<256x1024xf32>
    %cst_15 = arith.constant dense<0.000000e+00> : vector<256x32xf32>
    %22 = tpu.matmul %21, %9, %cst_15 {dimension_numbers = #tpu.dot_dimension_numbers<[1], [0], [0], [1], [0, 0, 1, 1], [], []>} : vector<256x1024xf32>, vector<1024x32xf32>, vector<256x32xf32> -> vector<256x32xf32>
    %c0_16 = arith.constant 0 : index
    %c0_17 = arith.constant 0 : index
    %23 = vector.load %arg7[%c0_16, %c0_17] : memref<1x32xf32, #tpu.memory_space<vmem>>, vector<1x32xf32>
    %24 = vector.broadcast %23 : vector<1x32xf32> to vector<256x32xf32>
    %25 = arith.addf %22, %24 : vector<256x32xf32>
    %26 = arith.truncf %25 : vector<256x32xf32> to vector<256x32xbf16>
    %c0_18 = arith.constant 0 : index
    %c0_19 = arith.constant 0 : index
    %27 = vector.load %arg8[%c0_18, %c0_19] : memref<32x128xbf16, #tpu.memory_space<vmem>>, vector<32x128xbf16>
    %cst_20 = arith.constant dense<0.000000e+00> : vector<256x128xf32>
    %28 = tpu.matmul %26, %27, %cst_20 {dimension_numbers = #tpu.dot_dimension_numbers<[1], [0], [0], [1], [0, 0, 1, 1], [], []>} : vector<256x32xbf16>, vector<32x128xbf16>, vector<256x128xf32> -> vector<256x128xf32>
    %c0_21 = arith.constant 0 : index
    %c0_22 = arith.constant 0 : index
    %29 = vector.load %arg9[%c0_21, %c0_22] : memref<64x128xbf16, #tpu.memory_space<vmem>>, vector<64x128xbf16>
    %cst_23 = arith.constant dense<0.000000e+00> : vector<256x128xf32>
    %30 = tpu.matmul %7, %29, %cst_23 {dimension_numbers = #tpu.dot_dimension_numbers<[1], [0], [0], [1], [0, 0, 1, 1], [], []>} : vector<256x64xbf16>, vector<64x128xbf16>, vector<256x128xf32> -> vector<256x128xf32>
    %31 = arith.addf %28, %30 : vector<256x128xf32>
    %c0_24 = arith.constant 0 : index
    %c0_25 = arith.constant 0 : index
    %32 = vector.load %arg10[%c0_24, %c0_25] : memref<1x128xf32, #tpu.memory_space<vmem>>, vector<1x128xf32>
    %33 = vector.broadcast %32 : vector<1x128xf32> to vector<256x128xf32>
    %34 = arith.addf %31, %33 : vector<256x128xf32>
    %cst_26 = arith.constant dense<0.000000e+00> : vector<256xf32>
    %35 = vector.multi_reduction <add>, %34, %cst_26 [1] : vector<256x128xf32> to vector<256xf32>
    %36 = vector.shape_cast %35 : vector<256xf32> to vector<256x1xf32>
    %cst_27 = arith.constant 0.010416667 : f32
    %37 = vector.broadcast %cst_27 : f32 to vector<256x1xf32>
    %38 = arith.mulf %36, %37 : vector<256x1xf32>
    %39 = arith.mulf %34, %34 : vector<256x128xf32>
    %cst_28 = arith.constant dense<0.000000e+00> : vector<256xf32>
    %40 = vector.multi_reduction <add>, %39, %cst_28 [1] : vector<256x128xf32> to vector<256xf32>
    %41 = vector.shape_cast %40 : vector<256xf32> to vector<256x1xf32>
    %cst_29 = arith.constant 0.010416667 : f32
    %42 = vector.broadcast %cst_29 : f32 to vector<256x1xf32>
    %43 = arith.mulf %41, %42 : vector<256x1xf32>
    %44 = arith.mulf %38, %38 : vector<256x1xf32>
    %45 = arith.subf %43, %44 : vector<256x1xf32>
    %46 = vector.broadcast %38 : vector<256x1xf32> to vector<256x128xf32>
    %47 = arith.subf %34, %46 : vector<256x128xf32>
    %cst_30 = arith.constant 9.99999974E-6 : f32
    %48 = vector.broadcast %cst_30 : f32 to vector<256x1xf32>
    %49 = arith.addf %45, %48 : vector<256x1xf32>
    %50 = math.rsqrt %49 : vector<256x1xf32>
    %51 = vector.broadcast %50 : vector<256x1xf32> to vector<256x128xf32>
    %52 = arith.mulf %47, %51 : vector<256x128xf32>
    %c0_31 = arith.constant 0 : index
    %c0_32 = arith.constant 0 : index
    %53 = vector.load %arg11[%c0_31, %c0_32] : memref<1x128xf32, #tpu.memory_space<vmem>>, vector<1x128xf32>
    %54 = vector.broadcast %53 : vector<1x128xf32> to vector<256x128xf32>
    %55 = arith.mulf %52, %54 : vector<256x128xf32>
    %c0_33 = arith.constant 0 : index
    %c0_34 = arith.constant 0 : index
    %56 = vector.load %arg12[%c0_33, %c0_34] : memref<1x128xf32, #tpu.memory_space<vmem>>, vector<1x128xf32>
    %57 = vector.broadcast %56 : vector<1x128xf32> to vector<256x128xf32>
    %58 = arith.addf %55, %57 : vector<256x128xf32>
    %cst_35 = arith.constant 0.000000e+00 : f32
    %59 = vector.broadcast %cst_35 : f32 to vector<256x128xf32>
    %60 = arith.maximumf %58, %59 : vector<256x128xf32>
    %c0_36 = arith.constant 0 : index
    %c0_37 = arith.constant 0 : index
    %61 = vector.load %arg13[%c0_36, %c0_37] : memref<256x128xf32, #tpu.memory_space<vmem>>, vector<256x128xf32>
    tpu.vector_store %arg13[%c0_36, %c0_37], %60 {strides = array<i32>} : memref<256x128xf32, #tpu.memory_space<vmem>>, vector<256x128xf32>,
    return
  }
  func.func @transform_0(%arg0: i32) -> (i32, i32) {
    %c0_i32 = arith.constant 0 : i32
    %c0_i32_0 = arith.constant 0 : i32
    return %arg0, %c0_i32 : i32, i32
  }
  func.func @transform_1(%arg0: i32) -> (i32, i32) {
    %c0_i32 = arith.constant 0 : i32
    %c0_i32_0 = arith.constant 0 : i32
    %c0_i32_1 = arith.constant 0 : i32
    return %c0_i32, %c0_i32_0 : i32, i32
  }
  func.func @transform_2(%arg0: i32) -> (i32, i32) {
    %c0_i32 = arith.constant 0 : i32
    %c0_i32_0 = arith.constant 0 : i32
    %c0_i32_1 = arith.constant 0 : i32
    return %c0_i32, %c0_i32_0 : i32, i32
  }
  func.func @transform_3(%arg0: i32) -> (i32, i32) {
    %c0_i32 = arith.constant 0 : i32
    %c0_i32_0 = arith.constant 0 : i32
    %c0_i32_1 = arith.constant 0 : i32
    return %c0_i32, %c0_i32_0 : i32, i32
  }
  func.func @transform_4(%arg0: i32) -> (i32, i32) {
    %c0_i32 = arith.constant 0 : i32
    %c0_i32_0 = arith.constant 0 : i32
    %c0_i32_1 = arith.constant 0 : i32
    return %c0_i32, %c0_i32_0 : i32, i32
  }
  func.func @transform_5(%arg0: i32) -> (i32, i32) {
    %c0_i32 = arith.constant 0 : i32
    %c0_i32_0 = arith.constant 0 : i32
    %c0_i32_1 = arith.constant 0 : i32
    return %c0_i32, %c0_i32_0 : i32, i32
  }
  func.func @transform_6(%arg0: i32) -> (i32, i32) {
    %c0_i32 = arith.constant 0 : i32
    %c0_i32_0 = arith.constant 0 : i32
    %c0_i32_1 = arith.constant 0 : i32
    return %c0_i32, %c0_i32_0 : i32, i32
  }
  func.func @transform_7(%arg0: i32) -> (i32, i32) {
    %c0_i32 = arith.constant 0 : i32
    %c0_i32_0 = arith.constant 0 : i32
    %c0_i32_1 = arith.constant 0 : i32
    return %c0_i32, %c0_i32_0 : i32, i32
  }
  func.func @transform_8(%arg0: i32) -> (i32, i32) {
    %c0_i32 = arith.constant 0 : i32
    %c0_i32_0 = arith.constant 0 : i32
    %c0_i32_1 = arith.constant 0 : i32
    return %c0_i32, %c0_i32_0 : i32, i32
  }
  func.func @transform_9(%arg0: i32) -> (i32, i32) {
    %c0_i32 = arith.constant 0 : i32
    %c0_i32_0 = arith.constant 0 : i32
    %c0_i32_1 = arith.constant 0 : i32
    return %c0_i32, %c0_i32_0 : i32, i32
  }
  func.func @transform_10(%arg0: i32) -> (i32, i32) {
    %c0_i32 = arith.constant 0 : i32
    %c0_i32_0 = arith.constant 0 : i32
    %c0_i32_1 = arith.constant 0 : i32
    return %c0_i32, %c0_i32_0 : i32, i32
  }
  func.func @transform_11(%arg0: i32) -> (i32, i32) {
    %c0_i32 = arith.constant 0 : i32
    %c0_i32_0 = arith.constant 0 : i32
    %c0_i32_1 = arith.constant 0 : i32
    return %c0_i32, %c0_i32_0 : i32, i32
  }
  func.func @transform_12(%arg0: i32) -> (i32, i32) {
    %c0_i32 = arith.constant 0 : i32
    %c0_i32_0 = arith.constant 0 : i32
    return %arg0, %c0_i32 : i32, i32
  }
}

</mosaic_0001>

<llo_original>
// kernel: tpu_custom_call.1
$region0: #{tpu_custom_call.1}
  #allocation0 [shape = 'u32[]', space=smem, size = 0x4, offset = 0x4, fixed_abs, tag = 'smem constant byte address 0x4 - core index']
  #allocation1 [shape = 'u32[144,128]{1,0:T(1,128)}', space=vmem, size = 0x12000, scoped, tag = 'internal scratch']
  %s0 = inlined_call_operand.vmem [shape: f32[256,128], index: 0, kind: input, shape index: {}]
  %s1 = inlined_call_operand.vmem [shape: bf16[32,1024], index: 1, kind: input, shape index: {}]
  %s2 = inlined_call_operand.vmem [shape: bf16[32,1024], index: 2, kind: input, shape index: {}]
  %s3 = inlined_call_operand.vmem [shape: f32[32,1024], index: 3, kind: input, shape index: {}]
  %s4 = inlined_call_operand.vmem [shape: f32[1024,32], index: 4, kind: input, shape index: {}]
  %s5 = inlined_call_operand.vmem [shape: f32[1,32], index: 5, kind: input, shape index: {}]
  %s6 = inlined_call_operand.vmem [shape: f32[1,32], index: 6, kind: input, shape index: {}]
  %s7 = inlined_call_operand.vmem [shape: bf16[32,128], index: 7, kind: input, shape index: {}]
  %s8 = inlined_call_operand.vmem [shape: bf16[64,128], index: 8, kind: input, shape index: {}]
  %s9 = inlined_call_operand.vmem [shape: f32[1,128], index: 9, kind: input, shape index: {}]
  %s10 = inlined_call_operand.vmem [shape: f32[1,128], index: 10, kind: input, shape index: {}]
  %s11 = inlined_call_operand.vmem [shape: f32[1,128], index: 11, kind: input, shape index: {}]
  %s12 = inlined_call_operand.hbm [shape: f32[256,128], index: 12, kind: output, shape index: {}]
  %s13 = sld [smem:[#allocation0]]
  $region58: #{tpu_custom_call.1} parent=0
    _
  %s15 = ssub.s32 1, %s13
  %s16 = scalar_select 0, %s15, %s13
  $region1: #{tpu_custom_call.1} parent=0
    #allocation2 [shape = 'u8[131072]{0}', space=vmem, size = 0x20000, scoped, tag = 'output window, operand 0, single buffered']
    #allocation3 [shape = 's32[1]{0}', space=sflag, size = 0x4, scoped, tag = 'scoped memory for tpu_custom_call.1']
    %17 = vsyncpa [#allocation3], 0
    // Predicated region
    $region2: #{tpu_custom_call.1} parent=1 // pred_check
      _
    $region3: #{tpu_custom_call.1} parent=1 // pred_check_branch
      %19 = sbr.rel (0) target = $region5
    $region4: #{tpu_custom_call.1} parent=1 // pred_region
      _
    $region5: #{tpu_custom_call.1} parent=1 // pred_fallthru
      _
    // Predicated region
    $region6: #{tpu_custom_call.1} parent=1 // pred_check
      _
    $region7: #{tpu_custom_call.1} parent=1 // pred_check_branch
      %21 = sbr.rel (0) target = $region9
    $region8: #{tpu_custom_call.1} parent=1 // pred_region
      _
    $region9: #{tpu_custom_call.1} parent=1 // pred_fallthru
      _
    // Predicated region
    $region10: #{tpu_custom_call.1} parent=1 // pred_check
      _
    $region11: #{tpu_custom_call.1} parent=1 // pred_check_branch
      %23 = sbr.rel (0) target = $region13
    $region12: #{tpu_custom_call.1} parent=1 // pred_region
      _
    $region13: #{tpu_custom_call.1} parent=1 // pred_fallthru
      _
    // Predicated region
    $region14: #{tpu_custom_call.1} parent=1 // pred_check
      _
    $region15: #{tpu_custom_call.1} parent=1 // pred_check_branch
      %25 = sbr.rel (0) target = $region17
    $region16: #{tpu_custom_call.1} parent=1 // pred_region
      _
    $region17: #{tpu_custom_call.1} parent=1 // pred_fallthru
      _
    // Predicated region
    $region18: #{tpu_custom_call.1} parent=1 // pred_check
      _
    $region19: #{tpu_custom_call.1} parent=1 // pred_check_branch
      %27 = sbr.rel (0) target = $region21
    $region20: #{tpu_custom_call.1} parent=1 // pred_region
      _
    $region21: #{tpu_custom_call.1} parent=1 // pred_fallthru
      _
    // Predicated region
    $region22: #{tpu_custom_call.1} parent=1 // pred_check
      _
    $region23: #{tpu_custom_call.1} parent=1 // pred_check_branch
      %29 = sbr.rel (0) target = $region25
    $region24: #{tpu_custom_call.1} parent=1 // pred_region
      _
    $region25: #{tpu_custom_call.1} parent=1 // pred_fallthru
      _
    // Predicated region
    $region26: #{tpu_custom_call.1} parent=1 // pred_check
      _
    $region27: #{tpu_custom_call.1} parent=1 // pred_check_branch
      %31 = sbr.rel (0) target = $region29
    $region28: #{tpu_custom_call.1} parent=1 // pred_region
      _
    $region29: #{tpu_custom_call.1} parent=1 // pred_fallthru
      _
    // Predicated region
    $region30: #{tpu_custom_call.1} parent=1 // pred_check
      _
    $region31: #{tpu_custom_call.1} parent=1 // pred_check_branch
      %33 = sbr.rel (0) target = $region33
    $region32: #{tpu_custom_call.1} parent=1 // pred_region
      _
    $region33: #{tpu_custom_call.1} parent=1 // pred_fallthru
      _
    // Predicated region
    $region34: #{tpu_custom_call.1} parent=1 // pred_check
      _
    $region35: #{tpu_custom_call.1} parent=1 // pred_check_branch
      %35 = sbr.rel (0) target = $region37
    $region36: #{tpu_custom_call.1} parent=1 // pred_region
      _
    $region37: #{tpu_custom_call.1} parent=1 // pred_fallthru
      _
    // Predicated region
    $region38: #{tpu_custom_call.1} parent=1 // pred_check
      _
    $region39: #{tpu_custom_call.1} parent=1 // pred_check_branch
      %37 = sbr.rel (0) target = $region41
    $region40: #{tpu_custom_call.1} parent=1 // pred_region
      _
    $region41: #{tpu_custom_call.1} parent=1 // pred_fallthru
      _
    // Predicated region
    $region42: #{tpu_custom_call.1} parent=1 // pred_check
      _
    $region43: #{tpu_custom_call.1} parent=1 // pred_check_branch
      %39 = sbr.rel (0) target = $region45
    $region44: #{tpu_custom_call.1} parent=1 // pred_region
      _
    $region45: #{tpu_custom_call.1} parent=1 // pred_fallthru
      _
    // Predicated region
    $region46: #{tpu_custom_call.1} parent=1 // pred_check
      _
    $region47: #{tpu_custom_call.1} parent=1 // pred_check_branch
      %41 = sbr.rel (0) target = $region49
    $region48: #{tpu_custom_call.1} parent=1 // pred_region
      _
    $region49: #{tpu_custom_call.1} parent=1 // pred_fallthru
      _
    %v43 = vld [vmem:[%s0] sm:$0xff]
    %v44 = vld [vmem:[%s0 + $0x8] sm:$0xff]
    %v45 = vld [vmem:[%s0 + $0x10] sm:$0xff]
    %v46 = vld [vmem:[%s0 + $0x18] sm:$0xff]
    %v47 = vld [vmem:[%s0 + $0x20] sm:$0xff]
    %v48 = vld [vmem:[%s0 + $0x28] sm:$0xff]
    %v49 = vld [vmem:[%s0 + $0x30] sm:$0xff]
    %v50 = vld [vmem:[%s0 + $0x38] sm:$0xff]
    %v51 = vld [vmem:[%s0 + $0x40] sm:$0xff]
    %v52 = vld [vmem:[%s0 + $0x48] sm:$0xff]
    %v53 = vld [vmem:[%s0 + $0x50] sm:$0xff]
    %v54 = vld [vmem:[%s0 + $0x58] sm:$0xff]
    %v55 = vld [vmem:[%s0 + $0x60] sm:$0xff]
    %v56 = vld [vmem:[%s0 + $0x68] sm:$0xff]
    %v57 = vld [vmem:[%s0 + $0x70] sm:$0xff]
    %v58 = vld [vmem:[%s0 + $0x78] sm:$0xff]
    %v59 = vld [vmem:[%s0 + $0x80] sm:$0xff]
    %v60 = vld [vmem:[%s0 + $0x88] sm:$0xff]
    %v61 = vld [vmem:[%s0 + $0x90] sm:$0xff]
    %v62 = vld [vmem:[%s0 + $0x98] sm:$0xff]
    %v63 = vld [vmem:[%s0 + $0xa0] sm:$0xff]
    %v64 = vld [vmem:[%s0 + $0xa8] sm:$0xff]
    %v65 = vld [vmem:[%s0 + $0xb0] sm:$0xff]
    %v66 = vld [vmem:[%s0 + $0xb8] sm:$0xff]
    %v67 = vld [vmem:[%s0 + $0xc0] sm:$0xff]
    %v68 = vld [vmem:[%s0 + $0xc8] sm:$0xff]
    %v69 = vld [vmem:[%s0 + $0xd0] sm:$0xff]
    %v70 = vld [vmem:[%s0 + $0xd8] sm:$0xff]
    %v71 = vld [vmem:[%s0 + $0xe0] sm:$0xff]
    %v72 = vld [vmem:[%s0 + $0xe8] sm:$0xff]
    %v73 = vld [vmem:[%s0 + $0xf0] sm:$0xff]
    %v74 = vld [vmem:[%s0 + $0xf8] sm:$0xff]
    %v75 = vpack.c.bf16 %v44, %v43
    %v76 = vpack.c.bf16 %v46, %v45
    %v77 = vpack.c.bf16 %v48, %v47
    %v78 = vpack.c.bf16 %v50, %v49
    %v79 = vpack.c.bf16 %v52, %v51
    %v80 = vpack.c.bf16 %v54, %v53
    %v81 = vpack.c.bf16 %v56, %v55
    %v82 = vpack.c.bf16 %v58, %v57
    %v83 = vpack.c.bf16 %v60, %v59
    %v84 = vpack.c.bf16 %v62, %v61
    %v85 = vpack.c.bf16 %v64, %v63
    %v86 = vpack.c.bf16 %v66, %v65
    %v87 = vpack.c.bf16 %v68, %v67
    %v88 = vpack.c.bf16 %v70, %v69
    %v89 = vpack.c.bf16 %v72, %v71
    %v90 = vpack.c.bf16 %v74, %v73
    %v91 = vld [vmem:[%s3] sm:$0xff]
    %v92 = vld [vmem:[%s3 + $0x8] sm:$0xff]
    %v93 = vld [vmem:[%s3 + $0x10] sm:$0xff]
    %v94 = vld [vmem:[%s3 + $0x18] sm:$0xff]
    %v95 = vld [vmem:[%s3 + $0x20] sm:$0xff]
    %v96 = vld [vmem:[%s3 + $0x28] sm:$0xff]
    %v97 = vld [vmem:[%s3 + $0x30] sm:$0xff]
    %v98 = vld [vmem:[%s3 + $0x38] sm:$0xff]
    %v99 = vld [vmem:[%s3 + $0x40] sm:$0xff]
    %v100 = vld [vmem:[%s3 + $0x48] sm:$0xff]
    %v101 = vld [vmem:[%s3 + $0x50] sm:$0xff]
    %v102 = vld [vmem:[%s3 + $0x58] sm:$0xff]
    %v103 = vld [vmem:[%s3 + $0x60] sm:$0xff]
    %v104 = vld [vmem:[%s3 + $0x68] sm:$0xff]
    %v105 = vld [vmem:[%s3 + $0x70] sm:$0xff]
    %v106 = vld [vmem:[%s3 + $0x78] sm:$0xff]
    %v107 = vld [vmem:[%s3 + $0x80] sm:$0xff]
    %v108 = vld [vmem:[%s3 + $0x88] sm:$0xff]
    %v109 = vld [vmem:[%s3 + $0x90] sm:$0xff]
    %v110 = vld [vmem:[%s3 + $0x98] sm:$0xff]
    %v111 = vld [vmem:[%s3 + $0xa0] sm:$0xff]
    %v112 = vld [vmem:[%s3 + $0xa8] sm:$0xff]
    %v113 = vld [vmem:[%s3 + $0xb0] sm:$0xff]
    %v114 = vld [vmem:[%s3 + $0xb8] sm:$0xff]
    %v115 = vld [vmem:[%s3 + $0xc0] sm:$0xff]
    %v116 = vld [vmem:[%s3 + $0xc8] sm:$0xff]
    %v117 = vld [vmem:[%s3 + $0xd0] sm:$0xff]
    %v118 = vld [vmem:[%s3 + $0xd8] sm:$0xff]
    %v119 = vld [vmem:[%s3 + $0xe0] sm:$0xff]
    %v120 = vld [vmem:[%s3 + $0xe8] sm:$0xff]
    %v121 = vld [vmem:[%s3 + $0xf0] sm:$0xff]
    %v122 = vld [vmem:[%s3 + $0xf8] sm:$0xff]
    %v123 = vld [vmem:[%s4] sm:$0xff]
    %v124 = vld [vmem:[%s4 + $0x8] sm:$0xff]
    %v125 = vld [vmem:[%s4 + $0x10] sm:$0xff]
    %v126 = vld [vmem:[%s4 + $0x18] sm:$0xff]
    %v127 = vld [vmem:[%s4 + $0x20] sm:$0xff]
    %v128 = vld [vmem:[%s4 + $0x28] sm:$0xff]
    %v129 = vld [vmem:[%s4 + $0x30] sm:$0xff]
    %v130 = vld [vmem:[%s4 + $0x38] sm:$0xff]
    %v131 = vld [vmem:[%s4 + $0x40] sm:$0xff]
    %v132 = vld [vmem:[%s4 + $0x48] sm:$0xff]
    %v133 = vld [vmem:[%s4 + $0x50] sm:$0xff]
    %v134 = vld [vmem:[%s4 + $0x58] sm:$0xff]
    %v135 = vld [vmem:[%s4 + $0x60] sm:$0xff]
    %v136 = vld [vmem:[%s4 + $0x68] sm:$0xff]
    %v137 = vld [vmem:[%s4 + $0x70] sm:$0xff]
    %v138 = vld [vmem:[%s4 + $0x78] sm:$0xff]
    %v139 = vld [vmem:[%s4 + $0x80] sm:$0xff]
    %v140 = vld [vmem:[%s4 + $0x88] sm:$0xff]
    %v141 = vld [vmem:[%s4 + $0x90] sm:$0xff]
    %v142 = vld [vmem:[%s4 + $0x98] sm:$0xff]
    %v143 = vld [vmem:[%s4 + $0xa0] sm:$0xff]
    %v144 = vld [vmem:[%s4 + $0xa8] sm:$0xff]
    %v145 = vld [vmem:[%s4 + $0xb0] sm:$0xff]
    %v146 = vld [vmem:[%s4 + $0xb8] sm:$0xff]
    %v147 = vld [vmem:[%s4 + $0xc0] sm:$0xff]
    %v148 = vld [vmem:[%s4 + $0xc8] sm:$0xff]
    %v149 = vld [vmem:[%s4 + $0xd0] sm:$0xff]
    %v150 = vld [vmem:[%s4 + $0xd8] sm:$0xff]
    %v151 = vld [vmem:[%s4 + $0xe0] sm:$0xff]
    %v152 = vld [vmem:[%s4 + $0xe8] sm:$0xff]
    %v153 = vld [vmem:[%s4 + $0xf0] sm:$0xff]
    %v154 = vld [vmem:[%s4 + $0xf8] sm:$0xff]
    %v155 = vld [vmem:[%s4 + $0x100] sm:$0xff]
    %v156 = vld [vmem:[%s4 + $0x108] sm:$0xff]
    %v157 = vld [vmem:[%s4 + $0x110] sm:$0xff]
    %v158 = vld [vmem:[%s4 + $0x118] sm:$0xff]
    %v159 = vld [vmem:[%s4 + $0x120] sm:$0xff]
    %v160 = vld [vmem:[%s4 + $0x128] sm:$0xff]
    %v161 = vld [vmem:[%s4 + $0x130] sm:$0xff]
    %v162 = vld [vmem:[%s4 + $0x138] sm:$0xff]
    %v163 = vld [vmem:[%s4 + $0x140] sm:$0xff]
    %v164 = vld [vmem:[%s4 + $0x148] sm:$0xff]
    %v165 = vld [vmem:[%s4 + $0x150] sm:$0xff]
    %v166 = vld [vmem:[%s4 + $0x158] sm:$0xff]
    %v167 = vld [vmem:[%s4 + $0x160] sm:$0xff]
    %v168 = vld [vmem:[%s4 + $0x168] sm:$0xff]
    %v169 = vld [vmem:[%s4 + $0x170] sm:$0xff]
    %v170 = vld [vmem:[%s4 + $0x178] sm:$0xff]
    %v171 = vld [vmem:[%s4 + $0x180] sm:$0xff]
    %v172 = vld [vmem:[%s4 + $0x188] sm:$0xff]
    %v173 = vld [vmem:[%s4 + $0x190] sm:$0xff]
    %v174 = vld [vmem:[%s4 + $0x198] sm:$0xff]
    %v175 = vld [vmem:[%s4 + $0x1a0] sm:$0xff]
    %v176 = vld [vmem:[%s4 + $0x1a8] sm:$0xff]
    %v177 = vld [vmem:[%s4 + $0x1b0] sm:$0xff]
    %v178 = vld [vmem:[%s4 + $0x1b8] sm:$0xff]
    %v179 = vld [vmem:[%s4 + $0x1c0] sm:$0xff]
    %v180 = vld [vmem:[%s4 + $0x1c8] sm:$0xff]
    %v181 = vld [vmem:[%s4 + $0x1d0] sm:$0xff]
    %v182 = vld [vmem:[%s4 + $0x1d8] sm:$0xff]
    %v183 = vld [vmem:[%s4 + $0x1e0] sm:$0xff]
    %v184 = vld [vmem:[%s4 + $0x1e8] sm:$0xff]
    %v185 = vld [vmem:[%s4 + $0x1f0] sm:$0xff]
    %v186 = vld [vmem:[%s4 + $0x1f8] sm:$0xff]
    %v187 = vld [vmem:[%s4 + $0x200] sm:$0xff]
    %v188 = vld [vmem:[%s4 + $0x208] sm:$0xff]
    %v189 = vld [vmem:[%s4 + $0x210] sm:$0xff]
    %v190 = vld [vmem:[%s4 + $0x218] sm:$0xff]
    %v191 = vld [vmem:[%s4 + $0x220] sm:$0xff]
    %v192 = vld [vmem:[%s4 + $0x228] sm:$0xff]
    %v193 = vld [vmem:[%s4 + $0x230] sm:$0xff]
    %v194 = vld [vmem:[%s4 + $0x238] sm:$0xff]
    %v195 = vld [vmem:[%s4 + $0x240] sm:$0xff]
    %v196 = vld [vmem:[%s4 + $0x248] sm:$0xff]
    %v197 = vld [vmem:[%s4 + $0x250] sm:$0xff]
    %v198 = vld [vmem:[%s4 + $0x258] sm:$0xff]
    %v199 = vld [vmem:[%s4 + $0x260] sm:$0xff]
    %v200 = vld [vmem:[%s4 + $0x268] sm:$0xff]
    %v201 = vld [vmem:[%s4 + $0x270] sm:$0xff]
    %v202 = vld [vmem:[%s4 + $0x278] sm:$0xff]
    %v203 = vld [vmem:[%s4 + $0x280] sm:$0xff]
    %v204 = vld [vmem:[%s4 + $0x288] sm:$0xff]
    %v205 = vld [vmem:[%s4 + $0x290] sm:$0xff]
    %v206 = vld [vmem:[%s4 + $0x298] sm:$0xff]
    %v207 = vld [vmem:[%s4 + $0x2a0] sm:$0xff]
    %v208 = vld [vmem:[%s4 + $0x2a8] sm:$0xff]
    %v209 = vld [vmem:[%s4 + $0x2b0] sm:$0xff]
    %v210 = vld [vmem:[%s4 + $0x2b8] sm:$0xff]
    %v211 = vld [vmem:[%s4 + $0x2c0] sm:$0xff]
    %v212 = vld [vmem:[%s4 + $0x2c8] sm:$0xff]
    %v213 = vld [vmem:[%s4 + $0x2d0] sm:$0xff]
    %v214 = vld [vmem:[%s4 + $0x2d8] sm:$0xff]
    %v215 = vld [vmem:[%s4 + $0x2e0] sm:$0xff]
    %v216 = vld [vmem:[%s4 + $0x2e8] sm:$0xff]
    %v217 = vld [vmem:[%s4 + $0x2f0] sm:$0xff]
    %v218 = vld [vmem:[%s4 + $0x2f8] sm:$0xff]
    %v219 = vld [vmem:[%s4 + $0x300] sm:$0xff]
    %v220 = vld [vmem:[%s4 + $0x308] sm:$0xff]
    %v221 = vld [vmem:[%s4 + $0x310] sm:$0xff]
    %v222 = vld [vmem:[%s4 + $0x318] sm:$0xff]
    %v223 = vld [vmem:[%s4 + $0x320] sm:$0xff]
    %v224 = vld [vmem:[%s4 + $0x328] sm:$0xff]
    %v225 = vld [vmem:[%s4 + $0x330] sm:$0xff]
    %v226 = vld [vmem:[%s4 + $0x338] sm:$0xff]
    %v227 = vld [vmem:[%s4 + $0x340] sm:$0xff]
    %v228 = vld [vmem:[%s4 + $0x348] sm:$0xff]
    %v229 = vld [vmem:[%s4 + $0x350] sm:$0xff]
    %v230 = vld [vmem:[%s4 + $0x358] sm:$0xff]
    %v231 = vld [vmem:[%s4 + $0x360] sm:$0xff]
    %v232 = vld [vmem:[%s4 + $0x368] sm:$0xff]
    %v233 = vld [vmem:[%s4 + $0x370] sm:$0xff]
    %v234 = vld [vmem:[%s4 + $0x378] sm:$0xff]
    %v235 = vld [vmem:[%s4 + $0x380] sm:$0xff]
    %v236 = vld [vmem:[%s4 + $0x388] sm:$0xff]
    %v237 = vld [vmem:[%s4 + $0x390] sm:$0xff]
    %v238 = vld [vmem:[%s4 + $0x398] sm:$0xff]
    %v239 = vld [vmem:[%s4 + $0x3a0] sm:$0xff]
    %v240 = vld [vmem:[%s4 + $0x3a8] sm:$0xff]
    %v241 = vld [vmem:[%s4 + $0x3b0] sm:$0xff]
    %v242 = vld [vmem:[%s4 + $0x3b8] sm:$0xff]
    %v243 = vld [vmem:[%s4 + $0x3c0] sm:$0xff]
    %v244 = vld [vmem:[%s4 + $0x3c8] sm:$0xff]
    %v245 = vld [vmem:[%s4 + $0x3d0] sm:$0xff]
    %v246 = vld [vmem:[%s4 + $0x3d8] sm:$0xff]
    %v247 = vld [vmem:[%s4 + $0x3e0] sm:$0xff]
    %v248 = vld [vmem:[%s4 + $0x3e8] sm:$0xff]
    %v249 = vld [vmem:[%s4 + $0x3f0] sm:$0xff]
    %v250 = vld [vmem:[%s4 + $0x3f8] sm:$0xff]
    %v251 = vld [vmem:[%s1] sm:$0xff]
    %v252 = vld [vmem:[%s1 + $0x8] sm:$0xff]
    %v253 = vld [vmem:[%s1 + $0x10] sm:$0xff]
    %v254 = vld [vmem:[%s1 + $0x18] sm:$0xff]
    %v255 = vld [vmem:[%s1 + $0x20] sm:$0xff]
    %v256 = vld [vmem:[%s1 + $0x28] sm:$0xff]
    %v257 = vld [vmem:[%s1 + $0x30] sm:$0xff]
    %v258 = vld [vmem:[%s1 + $0x38] sm:$0xff]
    %v259 = vld [vmem:[%s1 + $0x40] sm:$0xff]
    %v260 = vld [vmem:[%s1 + $0x48] sm:$0xff]
    %v261 = vld [vmem:[%s1 + $0x50] sm:$0xff]
    %v262 = vld [vmem:[%s1 + $0x58] sm:$0xff]
    %v263 = vld [vmem:[%s1 + $0x60] sm:$0xff]
    %v264 = vld [vmem:[%s1 + $0x68] sm:$0xff]
    %v265 = vld [vmem:[%s1 + $0x70] sm:$0xff]
    %v266 = vld [vmem:[%s1 + $0x78] sm:$0xff]
    %283 = vrot.lane.b32.xlu0 %v75, 96
    %v284 = vpop.permute.xlu0 %283
    %285 = vrot.lane.b32.xlu0 %v76, 96
    %v286 = vpop.permute.xlu0 %285
    %287 = vrot.lane.b32.xlu0 %v77, 96
    %v288 = vpop.permute.xlu0 %287
    %289 = vrot.lane.b32.xlu0 %v78, 96
    %v290 = vpop.permute.xlu0 %289
    %291 = vrot.lane.b32.xlu0 %v79, 96
    %v292 = vpop.permute.xlu0 %291
    %293 = vrot.lane.b32.xlu0 %v80, 96
    %v294 = vpop.permute.xlu0 %293
    %295 = vrot.lane.b32.xlu0 %v81, 96
    %v296 = vpop.permute.xlu0 %295
    %297 = vrot.lane.b32.xlu0 %v82, 96
    %v298 = vpop.permute.xlu0 %297
    %299 = vrot.lane.b32.xlu0 %v83, 96
    %v300 = vpop.permute.xlu0 %299
    %301 = vrot.lane.b32.xlu0 %v84, 96
    %v302 = vpop.permute.xlu0 %301
    %303 = vrot.lane.b32.xlu0 %v85, 96
    %v304 = vpop.permute.xlu0 %303
    %305 = vrot.lane.b32.xlu0 %v86, 96
    %v306 = vpop.permute.xlu0 %305
    %307 = vrot.lane.b32.xlu0 %v87, 96
    %v308 = vpop.permute.xlu0 %307
    %309 = vrot.lane.b32.xlu0 %v88, 96
    %v310 = vpop.permute.xlu0 %309
    %311 = vrot.lane.b32.xlu0 %v89, 96
    %v312 = vpop.permute.xlu0 %311
    %313 = vrot.lane.b32.xlu0 %v90, 96
    %v314 = vpop.permute.xlu0 %313
    %v331 = vunpack.c.l.b16 %v251
    %v332 = vunpack.c.h.b16 %v251
    %v333 = vunpack.c.l.b16 %v252
    %v334 = vunpack.c.h.b16 %v252
    %v335 = vunpack.c.l.b16 %v253
    %v336 = vunpack.c.h.b16 %v253
    %v337 = vunpack.c.l.b16 %v254
    %v338 = vunpack.c.h.b16 %v254
    %v339 = vunpack.c.l.b16 %v255
    %v340 = vunpack.c.h.b16 %v255
    %v341 = vunpack.c.l.b16 %v256
    %v342 = vunpack.c.h.b16 %v256
    %v343 = vunpack.c.l.b16 %v257
    %v344 = vunpack.c.h.b16 %v257
    %v345 = vunpack.c.l.b16 %v258
    %v346 = vunpack.c.h.b16 %v258
    %v347 = vunpack.c.l.b16 %v259
    %v348 = vunpack.c.h.b16 %v259
    %v349 = vunpack.c.l.b16 %v260
    %v350 = vunpack.c.h.b16 %v260
    %v351 = vunpack.c.l.b16 %v261
    %v352 = vunpack.c.h.b16 %v261
    %v353 = vunpack.c.l.b16 %v262
    %v354 = vunpack.c.h.b16 %v262
    %v355 = vunpack.c.l.b16 %v263
    %v356 = vunpack.c.h.b16 %v263
    %v357 = vunpack.c.l.b16 %v264
    %v358 = vunpack.c.h.b16 %v264
    %v359 = vunpack.c.l.b16 %v265
    %v360 = vunpack.c.h.b16 %v265
    %v361 = vunpack.c.l.b16 %v266
    %v362 = vunpack.c.h.b16 %v266
    %v363 = vpack.c.b16 %v339, %v331
    %v364 = vpack.c.b16 %v340, %v332
    %v365 = vpack.c.b16 %v341, %v333
    %v366 = vpack.c.b16 %v342, %v334
    %v367 = vpack.c.b16 %v343, %v335
    %v368 = vpack.c.b16 %v344, %v336
    %v369 = vpack.c.b16 %v345, %v337
    %v370 = vpack.c.b16 %v346, %v338
    %v371 = vpack.c.b16 %v355, %v347
    %v372 = vpack.c.b16 %v356, %v348
    %v373 = vpack.c.b16 %v357, %v349
    %v374 = vpack.c.b16 %v358, %v350
    %v375 = vpack.c.b16 %v359, %v351
    %v376 = vpack.c.b16 %v360, %v352
    %v377 = vpack.c.b16 %v361, %v353
    %v378 = vpack.c.b16 %v362, %v354
    %vm395 = vcmask 261120
    %v397 = vsel %vm395, %v284, 0
    %v400 = vsel %vm395, %v286, 0
    %v403 = vsel %vm395, %v288, 0
    %v406 = vsel %vm395, %v290, 0
    %v409 = vsel %vm395, %v292, 0
    %v412 = vsel %vm395, %v294, 0
    %v415 = vsel %vm395, %v296, 0
    %v418 = vsel %vm395, %v298, 0
    %v421 = vsel %vm395, %v300, 0
    %v424 = vsel %vm395, %v302, 0
    %v427 = vsel %vm395, %v304, 0
    %v430 = vsel %vm395, %v306, 0
    %v433 = vsel %vm395, %v308, 0
    %v436 = vsel %vm395, %v310, 0
    %v439 = vsel %vm395, %v312, 0
    %v442 = vsel %vm395, %v314, 0
    %444 = vmatprep.subr.bf16.mxu0 %v364
    %445 = vmatpush1.bf16.msra.mxu0 %v363
    %446 = vmatprep.subr.bf16.mxu0 %v372
    %447 = vmatpush1.bf16.msra.mxu0 %v371
    %448 = vmatprep.subr.bf16.mxu0 0
    %449 = vmatpush1.bf16.msra.mxu0 0
    %450 = vmatprep.subr.bf16.mxu0 0
    %451 = vmatpush1.bf16.msra.mxu0 0
    %452 = vmatprep.subr.bf16.mxu0 0
    %453 = vmatpush1.bf16.msra.mxu0 0
    %454 = vmatprep.subr.bf16.mxu0 0
    %455 = vmatpush1.bf16.msra.mxu0 0
    %456 = vmatprep.subr.bf16.mxu0 0
    %457 = vmatpush1.bf16.msra.mxu0 0
    %458 = vmatprep.subr.bf16.mxu0 0
    %459 = vmatpush1.bf16.msra.mxu0 0
    %460 = vmatprep.subr.bf16.mxu0 0
    %461 = vmatpush1.bf16.msra.mxu0 0
    %462 = vmatprep.subr.bf16.mxu0 0
    %463 = vmatpush1.bf16.msra.mxu0 0
    %464 = vmatprep.subr.bf16.mxu0 0
    %465 = vmatpush1.bf16.msra.mxu0 0
    %466 = vmatprep.subr.bf16.mxu0 0
    %467 = vmatpush1.bf16.msra.mxu0 0
    %468 = vmatprep.subr.bf16.mxu0 0
    %469 = vmatpush1.bf16.msra.mxu0 0
    %470 = vmatprep.subr.bf16.mxu0 0
    %471 = vmatpush1.bf16.msra.mxu0 0
    %472 = vmatprep.subr.bf16.mxu0 0
    %473 = vmatpush1.bf16.msra.mxu0 0
    %474 = vmatprep.subr.bf16.mxu0 0
    %475 = vmatpush1.bf16.msra.mxu0 0
    %476 = vmatprep.mubr.bf16.mxu0 0
    %477 = vmatmul.mubr.bf16.gmra.mrb[0].mxu0 %v397
    %v478 = vpop.f32.mrb[0].mxu0
    %v479 = vadd.f32 0.0, %v478
    %v480 = vpop.f32.mrb[0].mxu0
    %v481 = vadd.f32 0.0, %v480
    %v482 = vpop.f32.mrb[0].mxu0
    %v483 = vadd.f32 0.0, %v482
    %v484 = vpop.f32.mrb[0].mxu0
    %v485 = vadd.f32 0.0, %v484
    %486 = vmatprep.mubr.bf16.mxu0 0
    %487 = vmatmul.mubr.bf16.gmra.mrb[0].mxu0 %v400
    %v488 = vpop.f32.mrb[0].mxu0
    %v489 = vadd.f32 0.0, %v488
    %v490 = vpop.f32.mrb[0].mxu0
    %v491 = vadd.f32 0.0, %v490
    %v492 = vpop.f32.mrb[0].mxu0
    %v493 = vadd.f32 0.0, %v492
    %v494 = vpop.f32.mrb[0].mxu0
    %v495 = vadd.f32 0.0, %v494
    %496 = vmatprep.mubr.bf16.mxu0 0
    %497 = vmatmul.mubr.bf16.gmra.mrb[0].mxu0 %v403
    %v498 = vpop.f32.mrb[0].mxu0
    %v499 = vadd.f32 0.0, %v498
    %v500 = vpop.f32.mrb[0].mxu0
    %v501 = vadd.f32 0.0, %v500
    %v502 = vpop.f32.mrb[0].mxu0
    %v503 = vadd.f32 0.0, %v502
    %v504 = vpop.f32.mrb[0].mxu0
    %v505 = vadd.f32 0.0, %v504
    %506 = vmatprep.mubr.bf16.mxu0 0
    %507 = vmatmul.mubr.bf16.gmra.mrb[0].mxu0 %v406
    %v508 = vpop.f32.mrb[0].mxu0
    %v509 = vadd.f32 0.0, %v508
    %v510 = vpop.f32.mrb[0].mxu0
    %v511 = vadd.f32 0.0, %v510
    %v512 = vpop.f32.mrb[0].mxu0
    %v513 = vadd.f32 0.0, %v512
    %v514 = vpop.f32.mrb[0].mxu0
    %v515 = vadd.f32 0.0, %v514
    %516 = vmatprep.mubr.bf16.mxu0 0
    %517 = vmatmul.mubr.bf16.gmra.mrb[0].mxu0 %v409
    %v518 = vpop.f32.mrb[0].mxu0
    %v519 = vadd.f32 0.0, %v518
    %v520 = vpop.f32.mrb[0].mxu0
    %v521 = vadd.f32 0.0, %v520
    %v522 = vpop.f32.mrb[0].mxu0
    %v523 = vadd.f32 0.0, %v522
    %v524 = vpop.f32.mrb[0].mxu0
    %v525 = vadd.f32 0.0, %v524
    %526 = vmatprep.mubr.bf16.mxu0 0
    %527 = vmatmul.mubr.bf16.gmra.mrb[0].mxu0 %v412
    %v528 = vpop.f32.mrb[0].mxu0
    %v529 = vadd.f32 0.0, %v528
    %v530 = vpop.f32.mrb[0].mxu0
    %v531 = vadd.f32 0.0, %v530
    %v532 = vpop.f32.mrb[0].mxu0
    %v533 = vadd.f32 0.0, %v532
    %v534 = vpop.f32.mrb[0].mxu0
    %v535 = vadd.f32 0.0, %v534
    %536 = vmatprep.mubr.bf16.mxu0 0
    %537 = vmatmul.mubr.bf16.gmra.mrb[0].mxu0 %v415
    %v538 = vpop.f32.mrb[0].mxu0
    %v539 = vadd.f32 0.0, %v538
    %v540 = vpop.f32.mrb[0].mxu0
    %v541 = vadd.f32 0.0, %v540
    %v542 = vpop.f32.mrb[0].mxu0
    %v543 = vadd.f32 0.0, %v542
    %v544 = vpop.f32.mrb[0].mxu0
    %v545 = vadd.f32 0.0, %v544
    %546 = vmatprep.mubr.bf16.mxu0 0
    %547 = vmatmul.mubr.bf16.gmra.mrb[0].mxu0 %v418
    %v548 = vpop.f32.mrb[0].mxu0
    %v549 = vadd.f32 0.0, %v548
    %v550 = vpop.f32.mrb[0].mxu0
    %v551 = vadd.f32 0.0, %v550
    %v552 = vpop.f32.mrb[0].mxu0
    %v553 = vadd.f32 0.0, %v552
    %v554 = vpop.f32.mrb[0].mxu0
    %v555 = vadd.f32 0.0, %v554
    %556 = vmatprep.mubr.bf16.mxu0 0
    %557 = vmatmul.mubr.bf16.gmra.mrb[0].mxu0 %v421
    %v558 = vpop.f32.mrb[0].mxu0
    %v559 = vadd.f32 0.0, %v558
    %v560 = vpop.f32.mrb[0].mxu0
    %v561 = vadd.f32 0.0, %v560
    %v562 = vpop.f32.mrb[0].mxu0
    %v563 = vadd.f32 0.0, %v562
    %v564 = vpop.f32.mrb[0].mxu0
    %v565 = vadd.f32 0.0, %v564
    %566 = vmatprep.mubr.bf16.mxu0 0
    %567 = vmatmul.mubr.bf16.gmra.mrb[0].mxu0 %v424
    %v568 = vpop.f32.mrb[0].mxu0
    %v569 = vadd.f32 0.0, %v568
    %v570 = vpop.f32.mrb[0].mxu0
    %v571 = vadd.f32 0.0, %v570
    %v572 = vpop.f32.mrb[0].mxu0
    %v573 = vadd.f32 0.0, %v572
    %v574 = vpop.f32.mrb[0].mxu0
    %v575 = vadd.f32 0.0, %v574
    %576 = vmatprep.mubr.bf16.mxu0 0
    %577 = vmatmul.mubr.bf16.gmra.mrb[0].mxu0 %v427
    %v578 = vpop.f32.mrb[0].mxu0
    %v579 = vadd.f32 0.0, %v578
    %v580 = vpop.f32.mrb[0].mxu0
    %v581 = vadd.f32 0.0, %v580
    %v582 = vpop.f32.mrb[0].mxu0
    %v583 = vadd.f32 0.0, %v582
    %v584 = vpop.f32.mrb[0].mxu0
    %v585 = vadd.f32 0.0, %v584
    %586 = vmatprep.mubr.bf16.mxu0 0
    %587 = vmatmul.mubr.bf16.gmra.mrb[0].mxu0 %v430
    %v588 = vpop.f32.mrb[0].mxu0
    %v589 = vadd.f32 0.0, %v588
    %v590 = vpop.f32.mrb[0].mxu0
    %v591 = vadd.f32 0.0, %v590
    %v592 = vpop.f32.mrb[0].mxu0
    %v593 = vadd.f32 0.0, %v592
    %v594 = vpop.f32.mrb[0].mxu0
    %v595 = vadd.f32 0.0, %v594
    %596 = vmatprep.mubr.bf16.mxu0 0
    %597 = vmatmul.mubr.bf16.gmra.mrb[0].mxu0 %v433
    %v598 = vpop.f32.mrb[0].mxu0
    %v599 = vadd.f32 0.0, %v598
    %v600 = vpop.f32.mrb[0].mxu0
    %v601 = vadd.f32 0.0, %v600
    %v602 = vpop.f32.mrb[0].mxu0
    %v603 = vadd.f32 0.0, %v602
    %v604 = vpop.f32.mrb[0].mxu0
    %v605 = vadd.f32 0.0, %v604
    %606 = vmatprep.mubr.bf16.mxu0 0
    %607 = vmatmul.mubr.bf16.gmra.mrb[0].mxu0 %v436
    %v608 = vpop.f32.mrb[0].mxu0
    %v609 = vadd.f32 0.0, %v608
    %v610 = vpop.f32.mrb[0].mxu0
    %v611 = vadd.f32 0.0, %v610
    %v612 = vpop.f32.mrb[0].mxu0
    %v613 = vadd.f32 0.0, %v612
    %v614 = vpop.f32.mrb[0].mxu0
    %v615 = vadd.f32 0.0, %v614
    %616 = vmatprep.mubr.bf16.mxu0 0
    %617 = vmatmul.mubr.bf16.gmra.mrb[0].mxu0 %v439
    %v618 = vpop.f32.mrb[0].mxu0
    %v619 = vadd.f32 0.0, %v618
    %v620 = vpop.f32.mrb[0].mxu0
    %v621 = vadd.f32 0.0, %v620
    %v622 = vpop.f32.mrb[0].mxu0
    %v623 = vadd.f32 0.0, %v622
    %v624 = vpop.f32.mrb[0].mxu0
    %v625 = vadd.f32 0.0, %v624
    %626 = vmatprep.mubr.bf16.mxu0 0
    %627 = vmatmul.mubr.bf16.gmra.mrb[0].mxu0 %v442
    %v628 = vpop.f32.mrb[0].mxu0
    %v629 = vadd.f32 0.0, %v628
    %v630 = vpop.f32.mrb[0].mxu0
    %v631 = vadd.f32 0.0, %v630
    %v632 = vpop.f32.mrb[0].mxu0
    %v633 = vadd.f32 0.0, %v632
    %v634 = vpop.f32.mrb[0].mxu0
    %v635 = vadd.f32 0.0, %v634
    %636 = vdwg.mxu0
    %637 = vmatprep.subr.bf16.mxu0 %v366
    %638 = vmatpush1.bf16.msra.mxu0 %v365
    %639 = vmatprep.subr.bf16.mxu0 %v374
    %640 = vmatpush1.bf16.msra.mxu0 %v373
    %641 = vmatprep.subr.bf16.mxu0 0
    %642 = vmatpush1.bf16.msra.mxu0 0
    %643 = vmatprep.subr.bf16.mxu0 0
    %644 = vmatpush1.bf16.msra.mxu0 0
    %645 = vmatprep.subr.bf16.mxu0 0
    %646 = vmatpush1.bf16.msra.mxu0 0
    %647 = vmatprep.subr.bf16.mxu0 0
    %648 = vmatpush1.bf16.msra.mxu0 0
    %649 = vmatprep.subr.bf16.mxu0 0
    %650 = vmatpush1.bf16.msra.mxu0 0
    %651 = vmatprep.subr.bf16.mxu0 0
    %652 = vmatpush1.bf16.msra.mxu0 0
    %653 = vmatprep.subr.bf16.mxu0 0
    %654 = vmatpush1.bf16.msra.mxu0 0
    %655 = vmatprep.subr.bf16.mxu0 0
    %656 = vmatpush1.bf16.msra.mxu0 0
    %657 = vmatprep.subr.bf16.mxu0 0
    %658 = vmatpush1.bf16.msra.mxu0 0
    %659 = vmatprep.subr.bf16.mxu0 0
    %660 = vmatpush1.bf16.msra.mxu0 0
    %661 = vmatprep.subr.bf16.mxu0 0
    %662 = vmatpush1.bf16.msra.mxu0 0
    %663 = vmatprep.subr.bf16.mxu0 0
    %664 = vmatpush1.bf16.msra.mxu0 0
    %665 = vmatprep.subr.bf16.mxu0 0
    %666 = vmatpush1.bf16.msra.mxu0 0
    %667 = vmatprep.subr.bf16.mxu0 0
    %668 = vmatpush1.bf16.msra.mxu0 0
    %669 = vmatprep.mubr.bf16.mxu0 0
    %670 = vmatmul.mubr.bf16.gmra.mrb[0].mxu0 %v397
    %v671 = vpop.f32.mrb[0].mxu0
    %v672 = vadd.f32 0.0, %v671
    %v673 = vpop.f32.mrb[0].mxu0
    %v674 = vadd.f32 0.0, %v673
    %v675 = vpop.f32.mrb[0].mxu0
    %v676 = vadd.f32 0.0, %v675
    %v677 = vpop.f32.mrb[0].mxu0
    %v678 = vadd.f32 0.0, %v677
    %679 = vmatprep.mubr.bf16.mxu0 0
    %680 = vmatmul.mubr.bf16.gmra.mrb[0].mxu0 %v400
    %v681 = vpop.f32.mrb[0].mxu0
    %v682 = vadd.f32 0.0, %v681
    %v683 = vpop.f32.mrb[0].mxu0
    %v684 = vadd.f32 0.0, %v683
    %v685 = vpop.f32.mrb[0].mxu0
    %v686 = vadd.f32 0.0, %v685
    %v687 = vpop.f32.mrb[0].mxu0
    %v688 = vadd.f32 0.0, %v687
    %689 = vmatprep.mubr.bf16.mxu0 0
    %690 = vmatmul.mubr.bf16.gmra.mrb[0].mxu0 %v403
    %v691 = vpop.f32.mrb[0].mxu0
    %v692 = vadd.f32 0.0, %v691
    %v693 = vpop.f32.mrb[0].mxu0
    %v694 = vadd.f32 0.0, %v693
    %v695 = vpop.f32.mrb[0].mxu0
    %v696 = vadd.f32 0.0, %v695
    %v697 = vpop.f32.mrb[0].mxu0
    %v698 = vadd.f32 0.0, %v697
    %699 = vmatprep.mubr.bf16.mxu0 0
    %700 = vmatmul.mubr.bf16.gmra.mrb[0].mxu0 %v406
    %v701 = vpop.f32.mrb[0].mxu0
    %v702 = vadd.f32 0.0, %v701
    %v703 = vpop.f32.mrb[0].mxu0
    %v704 = vadd.f32 0.0, %v703
    %v705 = vpop.f32.mrb[0].mxu0
    %v706 = vadd.f32 0.0, %v705
    %v707 = vpop.f32.mrb[0].mxu0
    %v708 = vadd.f32 0.0, %v707
    %709 = vmatprep.mubr.bf16.mxu0 0
    %710 = vmatmul.mubr.bf16.gmra.mrb[0].mxu0 %v409
    %v711 = vpop.f32.mrb[0].mxu0
    %v712 = vadd.f32 0.0, %v711
    %v713 = vpop.f32.mrb[0].mxu0
    %v714 = vadd.f32 0.0, %v713
    %v715 = vpop.f32.mrb[0].mxu0
    %v716 = vadd.f32 0.0, %v715
    %v717 = vpop.f32.mrb[0].mxu0
    %v718 = vadd.f32 0.0, %v717
    %719 = vmatprep.mubr.bf16.mxu0 0
    %720 = vmatmul.mubr.bf16.gmra.mrb[0].mxu0 %v412
    %v721 = vpop.f32.mrb[0].mxu0
    %v722 = vadd.f32 0.0, %v721
    %v723 = vpop.f32.mrb[0].mxu0
    %v724 = vadd.f32 0.0, %v723
    %v725 = vpop.f32.mrb[0].mxu0
    %v726 = vadd.f32 0.0, %v725
    %v727 = vpop.f32.mrb[0].mxu0
    %v728 = vadd.f32 0.0, %v727
    %729 = vmatprep.mubr.bf16.mxu0 0
    %730 = vmatmul.mubr.bf16.gmra.mrb[0].mxu0 %v415
    %v731 = vpop.f32.mrb[0].mxu0
    %v732 = vadd.f32 0.0, %v731
    %v733 = vpop.f32.mrb[0].mxu0
    %v734 = vadd.f32 0.0, %v733
    %v735 = vpop.f32.mrb[0].mxu0
    %v736 = vadd.f32 0.0, %v735
    %v737 = vpop.f32.mrb[0].mxu0
    %v738 = vadd.f32 0.0, %v737
    %739 = vmatprep.mubr.bf16.mxu0 0
    %740 = vmatmul.mubr.bf16.gmra.mrb[0].mxu0 %v418
    %v741 = vpop.f32.mrb[0].mxu0
    %v742 = vadd.f32 0.0, %v741
    %v743 = vpop.f32.mrb[0].mxu0
    %v744 = vadd.f32 0.0, %v743
    %v745 = vpop.f32.mrb[0].mxu0
    %v746 = vadd.f32 0.0, %v745
    %v747 = vpop.f32.mrb[0].mxu0
    %v748 = vadd.f32 0.0, %v747
    %749 = vmatprep.mubr.bf16.mxu0 0
    %750 = vmatmul.mubr.bf16.gmra.mrb[0].mxu0 %v421
    %v751 = vpop.f32.mrb[0].mxu0
    %v752 = vadd.f32 0.0, %v751
    %v753 = vpop.f32.mrb[0].mxu0
    %v754 = vadd.f32 0.0, %v753
    %v755 = vpop.f32.mrb[0].mxu0
    %v756 = vadd.f32 0.0, %v755
    %v757 = vpop.f32.mrb[0].mxu0
    %v758 = vadd.f32 0.0, %v757
    %759 = vmatprep.mubr.bf16.mxu0 0
    %760 = vmatmul.mubr.bf16.gmra.mrb[0].mxu0 %v424
    %v761 = vpop.f32.mrb[0].mxu0
    %v762 = vadd.f32 0.0, %v761
    %v763 = vpop.f32.mrb[0].mxu0
    %v764 = vadd.f32 0.0, %v763
    %v765 = vpop.f32.mrb[0].mxu0
    %v766 = vadd.f32 0.0, %v765
    %v767 = vpop.f32.mrb[0].mxu0
    %v768 = vadd.f32 0.0, %v767
    %769 = vmatprep.mubr.bf16.mxu0 0
    %770 = vmatmul.mubr.bf16.gmra.mrb[0].mxu0 %v427
    %v771 = vpop.f32.mrb[0].mxu0
    %v772 = vadd.f32 0.0, %v771
    %v773 = vpop.f32.mrb[0].mxu0
    %v774 = vadd.f32 0.0, %v773
    %v775 = vpop.f32.mrb[0].mxu0
    %v776 = vadd.f32 0.0, %v775
    %v777 = vpop.f32.mrb[0].mxu0
    %v778 = vadd.f32 0.0, %v777
    %779 = vmatprep.mubr.bf16.mxu0 0
    %780 = vmatmul.mubr.bf16.gmra.mrb[0].mxu0 %v430
    %v781 = vpop.f32.mrb[0].mxu0
    %v782 = vadd.f32 0.0, %v781
    %v783 = vpop.f32.mrb[0].mxu0
    %v784 = vadd.f32 0.0, %v783
    %v785 = vpop.f32.mrb[0].mxu0
    %v786 = vadd.f32 0.0, %v785
    %v787 = vpop.f32.mrb[0].mxu0
    %v788 = vadd.f32 0.0, %v787
    %789 = vmatprep.mubr.bf16.mxu0 0
    %790 = vmatmul.mubr.bf16.gmra.mrb[0].mxu0 %v433
    %v791 = vpop.f32.mrb[0].mxu0
    %v792 = vadd.f32 0.0, %v791
    %v793 = vpop.f32.mrb[0].mxu0
    %v794 = vadd.f32 0.0, %v793
    %v795 = vpop.f32.mrb[0].mxu0
    %v796 = vadd.f32 0.0, %v795
    %v797 = vpop.f32.mrb[0].mxu0
    %v798 = vadd.f32 0.0, %v797
    %799 = vmatprep.mubr.bf16.mxu0 0
    %800 = vmatmul.mubr.bf16.gmra.mrb[0].mxu0 %v436
    %v801 = vpop.f32.mrb[0].mxu0
    %v802 = vadd.f32 0.0, %v801
    %v803 = vpop.f32.mrb[0].mxu0
    %v804 = vadd.f32 0.0, %v803
    %v805 = vpop.f32.mrb[0].mxu0
    %v806 = vadd.f32 0.0, %v805
    %v807 = vpop.f32.mrb[0].mxu0
    %v808 = vadd.f32 0.0, %v807
    %809 = vmatprep.mubr.bf16.mxu0 0
    %810 = vmatmul.mubr.bf16.gmra.mrb[0].mxu0 %v439
    %v811 = vpop.f32.mrb[0].mxu0
    %v812 = vadd.f32 0.0, %v811
    %v813 = vpop.f32.mrb[0].mxu0
    %v814 = vadd.f32 0.0, %v813
    %v815 = vpop.f32.mrb[0].mxu0
    %v816 = vadd.f32 0.0, %v815
    %v817 = vpop.f32.mrb[0].mxu0
    %v818 = vadd.f32 0.0, %v817
    %819 = vmatprep.mubr.bf16.mxu0 0
    %820 = vmatmul.mubr.bf16.gmra.mrb[0].mxu0 %v442
    %v821 = vpop.f32.mrb[0].mxu0
    %v822 = vadd.f32 0.0, %v821
    %v823 = vpop.f32.mrb[0].mxu0
    %v824 = vadd.f32 0.0, %v823
    %v825 = vpop.f32.mrb[0].mxu0
    %v826 = vadd.f32 0.0, %v825
    %v827 = vpop.f32.mrb[0].mxu0
    %v828 = vadd.f32 0.0, %v827
    %829 = vdwg.mxu0
    %830 = vmatprep.subr.bf16.mxu0 %v368
    %831 = vmatpush1.bf16.msra.mxu0 %v367
    %832 = vmatprep.subr.bf16.mxu0 %v376
    %833 = vmatpush1.bf16.msra.mxu0 %v375
    %834 = vmatprep.subr.bf16.mxu0 0
    %835 = vmatpush1.bf16.msra.mxu0 0
    %836 = vmatprep.subr.bf16.mxu0 0
    %837 = vmatpush1.bf16.msra.mxu0 0
    %838 = vmatprep.subr.bf16.mxu0 0
    %839 = vmatpush1.bf16.msra.mxu0 0
    %840 = vmatprep.subr.bf16.mxu0 0
    %841 = vmatpush1.bf16.msra.mxu0 0
    %842 = vmatprep.subr.bf16.mxu0 0
    %843 = vmatpush1.bf16.msra.mxu0 0
    %844 = vmatprep.subr.bf16.mxu0 0
    %845 = vmatpush1.bf16.msra.mxu0 0
    %846 = vmatprep.subr.bf16.mxu0 0
    %847 = vmatpush1.bf16.msra.mxu0 0
    %848 = vmatprep.subr.bf16.mxu0 0
    %849 = vmatpush1.bf16.msra.mxu0 0
    %850 = vmatprep.subr.bf16.mxu0 0
    %851 = vmatpush1.bf16.msra.mxu0 0
    %852 = vmatprep.subr.bf16.mxu0 0
    %853 = vmatpush1.bf16.msra.mxu0 0
    %854 = vmatprep.subr.bf16.mxu0 0
    %855 = vmatpush1.bf16.msra.mxu0 0
    %856 = vmatprep.subr.bf16.mxu0 0
    %857 = vmatpush1.bf16.msra.mxu0 0
    %858 = vmatprep.subr.bf16.mxu0 0
    %859 = vmatpush1.bf16.msra.mxu0 0
    %860 = vmatprep.subr.bf16.mxu0 0
    %861 = vmatpush1.bf16.msra.mxu0 0
    %862 = vmatprep.mubr.bf16.mxu0 0
    %863 = vmatmul.mubr.bf16.gmra.mrb[0].mxu0 %v397
    %v864 = vpop.f32.mrb[0].mxu0
    %v865 = vadd.f32 0.0, %v864
    %v866 = vpop.f32.mrb[0].mxu0
    %v867 = vadd.f32 0.0, %v866
    %v868 = vpop.f32.mrb[0].mxu0
    %v869 = vadd.f32 0.0, %v868
    %v870 = vpop.f32.mrb[0].mxu0
    %v871 = vadd.f32 0.0, %v870
    %872 = vmatprep.mubr.bf16.mxu0 0
    %873 = vmatmul.mubr.bf16.gmra.mrb[0].mxu0 %v400
    %v874 = vpop.f32.mrb[0].mxu0
    %v875 = vadd.f32 0.0, %v874
    %v876 = vpop.f32.mrb[0].mxu0
    %v877 = vadd.f32 0.0, %v876
    %v878 = vpop.f32.mrb[0].mxu0
    %v879 = vadd.f32 0.0, %v878
    %v880 = vpop.f32.mrb[0].mxu0
    %v881 = vadd.f32 0.0, %v880
    %882 = vmatprep.mubr.bf16.mxu0 0
    %883 = vmatmul.mubr.bf16.gmra.mrb[0].mxu0 %v403
    %v884 = vpop.f32.mrb[0].mxu0
    %v885 = vadd.f32 0.0, %v884
    %v886 = vpop.f32.mrb[0].mxu0
    %v887 = vadd.f32 0.0, %v886
    %v888 = vpop.f32.mrb[0].mxu0
    %v889 = vadd.f32 0.0, %v888
    %v890 = vpop.f32.mrb[0].mxu0
    %v891 = vadd.f32 0.0, %v890
    %892 = vmatprep.mubr.bf16.mxu0 0
    %893 = vmatmul.mubr.bf16.gmra.mrb[0].mxu0 %v406
    %v894 = vpop.f32.mrb[0].mxu0
    %v895 = vadd.f32 0.0, %v894
    %v896 = vpop.f32.mrb[0].mxu0
    %v897 = vadd.f32 0.0, %v896
    %v898 = vpop.f32.mrb[0].mxu0
    %v899 = vadd.f32 0.0, %v898
    %v900 = vpop.f32.mrb[0].mxu0
    %v901 = vadd.f32 0.0, %v900
    %902 = vmatprep.mubr.bf16.mxu0 0
    %903 = vmatmul.mubr.bf16.gmra.mrb[0].mxu0 %v409
    %v904 = vpop.f32.mrb[0].mxu0
    %v905 = vadd.f32 0.0, %v904
    %v906 = vpop.f32.mrb[0].mxu0
    %v907 = vadd.f32 0.0, %v906
    %v908 = vpop.f32.mrb[0].mxu0
    %v909 = vadd.f32 0.0, %v908
    %v910 = vpop.f32.mrb[0].mxu0
    %v911 = vadd.f32 0.0, %v910
    %912 = vmatprep.mubr.bf16.mxu0 0
    %913 = vmatmul.mubr.bf16.gmra.mrb[0].mxu0 %v412
    %v914 = vpop.f32.mrb[0].mxu0
    %v915 = vadd.f32 0.0, %v914
    %v916 = vpop.f32.mrb[0].mxu0
    %v917 = vadd.f32 0.0, %v916
    %v918 = vpop.f32.mrb[0].mxu0
    %v919 = vadd.f32 0.0, %v918
    %v920 = vpop.f32.mrb[0].mxu0
    %v921 = vadd.f32 0.0, %v920
    %922 = vmatprep.mubr.bf16.mxu0 0
    %923 = vmatmul.mubr.bf16.gmra.mrb[0].mxu0 %v415
    %v924 = vpop.f32.mrb[0].mxu0
    %v925 = vadd.f32 0.0, %v924
    %v926 = vpop.f32.mrb[0].mxu0
    %v927 = vadd.f32 0.0, %v926
    %v928 = vpop.f32.mrb[0].mxu0
    %v929 = vadd.f32 0.0, %v928
    %v930 = vpop.f32.mrb[0].mxu0
    %v931 = vadd.f32 0.0, %v930
    %932 = vmatprep.mubr.bf16.mxu0 0
    %933 = vmatmul.mubr.bf16.gmra.mrb[0].mxu0 %v418
    %v934 = vpop.f32.mrb[0].mxu0
    %v935 = vadd.f32 0.0, %v934
    %v936 = vpop.f32.mrb[0].mxu0
    %v937 = vadd.f32 0.0, %v936
    %v938 = vpop.f32.mrb[0].mxu0
    %v939 = vadd.f32 0.0, %v938
    %v940 = vpop.f32.mrb[0].mxu0
    %v941 = vadd.f32 0.0, %v940
    %942 = vmatprep.mubr.bf16.mxu0 0
    %943 = vmatmul.mubr.bf16.gmra.mrb[0].mxu0 %v421
    %v944 = vpop.f32.mrb[0].mxu0
    %v945 = vadd.f32 0.0, %v944
    %v946 = vpop.f32.mrb[0].mxu0
    %v947 = vadd.f32 0.0, %v946
    %v948 = vpop.f32.mrb[0].mxu0
    %v949 = vadd.f32 0.0, %v948
    %v950 = vpop.f32.mrb[0].mxu0
    %v951 = vadd.f32 0.0, %v950
    %952 = vmatprep.mubr.bf16.mxu0 0
    %953 = vmatmul.mubr.bf16.gmra.mrb[0].mxu0 %v424
    %v954 = vpop.f32.mrb[0].mxu0
    %v955 = vadd.f32 0.0, %v954
    %v956 = vpop.f32.mrb[0].mxu0
    %v957 = vadd.f32 0.0, %v956
    %v958 = vpop.f32.mrb[0].mxu0
    %v959 = vadd.f32 0.0, %v958
    %v960 = vpop.f32.mrb[0].mxu0
    %v961 = vadd.f32 0.0, %v960
    %962 = vmatprep.mubr.bf16.mxu0 0
    %963 = vmatmul.mubr.bf16.gmra.mrb[0].mxu0 %v427
    %v964 = vpop.f32.mrb[0].mxu0
    %v965 = vadd.f32 0.0, %v964
    %v966 = vpop.f32.mrb[0].mxu0
    %v967 = vadd.f32 0.0, %v966
    %v968 = vpop.f32.mrb[0].mxu0
    %v969 = vadd.f32 0.0, %v968
    %v970 = vpop.f32.mrb[0].mxu0
    %v971 = vadd.f32 0.0, %v970
    %972 = vmatprep.mubr.bf16.mxu0 0
    %973 = vmatmul.mubr.bf16.gmra.mrb[0].mxu0 %v430
    %v974 = vpop.f32.mrb[0].mxu0
    %v975 = vadd.f32 0.0, %v974
    %v976 = vpop.f32.mrb[0].mxu0
    %v977 = vadd.f32 0.0, %v976
    %v978 = vpop.f32.mrb[0].mxu0
    %v979 = vadd.f32 0.0, %v978
    %v980 = vpop.f32.mrb[0].mxu0
    %v981 = vadd.f32 0.0, %v980
    %982 = vmatprep.mubr.bf16.mxu0 0
    %983 = vmatmul.mubr.bf16.gmra.mrb[0].mxu0 %v433
    %v984 = vpop.f32.mrb[0].mxu0
    %v985 = vadd.f32 0.0, %v984
    %v986 = vpop.f32.mrb[0].mxu0
    %v987 = vadd.f32 0.0, %v986
    %v988 = vpop.f32.mrb[0].mxu0
    %v989 = vadd.f32 0.0, %v988
    %v990 = vpop.f32.mrb[0].mxu0
    %v991 = vadd.f32 0.0, %v990
    %992 = vmatprep.mubr.bf16.mxu0 0
    %993 = vmatmul.mubr.bf16.gmra.mrb[0].mxu0 %v436
    %v994 = vpop.f32.mrb[0].mxu0
    %v995 = vadd.f32 0.0, %v994
    %v996 = vpop.f32.mrb[0].mxu0
    %v997 = vadd.f32 0.0, %v996
    %v998 = vpop.f32.mrb[0].mxu0
    %v999 = vadd.f32 0.0, %v998
    %v1000 = vpop.f32.mrb[0].mxu0
    %v1001 = vadd.f32 0.0, %v1000
    %1002 = vmatprep.mubr.bf16.mxu0 0
    %1003 = vmatmul.mubr.bf16.gmra.mrb[0].mxu0 %v439
    %v1004 = vpop.f32.mrb[0].mxu0
    %v1005 = vadd.f32 0.0, %v1004
    %v1006 = vpop.f32.mrb[0].mxu0
    %v1007 = vadd.f32 0.0, %v1006
    %v1008 = vpop.f32.mrb[0].mxu0
    %v1009 = vadd.f32 0.0, %v1008
    %v1010 = vpop.f32.mrb[0].mxu0
    %v1011 = vadd.f32 0.0, %v1010
    %1012 = vmatprep.mubr.bf16.mxu0 0
    %1013 = vmatmul.mubr.bf16.gmra.mrb[0].mxu0 %v442
    %v1014 = vpop.f32.mrb[0].mxu0
    %v1015 = vadd.f32 0.0, %v1014
    %v1016 = vpop.f32.mrb[0].mxu0
    %v1017 = vadd.f32 0.0, %v1016
    %v1018 = vpop.f32.mrb[0].mxu0
    %v1019 = vadd.f32 0.0, %v1018
    %v1020 = vpop.f32.mrb[0].mxu0
    %v1021 = vadd.f32 0.0, %v1020
    %1022 = vdwg.mxu0
    %1023 = vmatprep.subr.bf16.mxu0 %v370
    %1024 = vmatpush1.bf16.msra.mxu0 %v369
    %1025 = vmatprep.subr.bf16.mxu0 %v378
    %1026 = vmatpush1.bf16.msra.mxu0 %v377
    %1027 = vmatprep.subr.bf16.mxu0 0
    %1028 = vmatpush1.bf16.msra.mxu0 0
    %1029 = vmatprep.subr.bf16.mxu0 0
    %1030 = vmatpush1.bf16.msra.mxu0 0
    %1031 = vmatprep.subr.bf16.mxu0 0
    %1032 = vmatpush1.bf16.msra.mxu0 0
    %1033 = vmatprep.subr.bf16.mxu0 0
    %1034 = vmatpush1.bf16.msra.mxu0 0
    %1035 = vmatprep.subr.bf16.mxu0 0
    %1036 = vmatpush1.bf16.msra.mxu0 0
    %1037 = vmatprep.subr.bf16.mxu0 0
    %1038 = vmatpush1.bf16.msra.mxu0 0
    %1039 = vmatprep.subr.bf16.mxu0 0
    %1040 = vmatpush1.bf16.msra.mxu0 0
    %1041 = vmatprep.subr.bf16.mxu0 0
    %1042 = vmatpush1.bf16.msra.mxu0 0
    %1043 = vmatprep.subr.bf16.mxu0 0
    %1044 = vmatpush1.bf16.msra.mxu0 0
    %1045 = vmatprep.subr.bf16.mxu0 0
    %1046 = vmatpush1.bf16.msra.mxu0 0
    %1047 = vmatprep.subr.bf16.mxu0 0
    %1048 = vmatpush1.bf16.msra.mxu0 0
    %1049 = vmatprep.subr.bf16.mxu0 0
    %1050 = vmatpush1.bf16.msra.mxu0 0
    %1051 = vmatprep.subr.bf16.mxu0 0
    %1052 = vmatpush1.bf16.msra.mxu0 0
    %1053 = vmatprep.subr.bf16.mxu0 0
    %1054 = vmatpush1.bf16.msra.mxu0 0
    %1055 = vmatprep.mubr.bf16.mxu0 0
    %1056 = vmatmul.mubr.bf16.gmra.mrb[0].mxu0 %v397
    %v1057 = vpop.f32.mrb[0].mxu0
    %v1058 = vadd.f32 0.0, %v1057
    %v1059 = vpop.f32.mrb[0].mxu0
    %v1060 = vadd.f32 0.0, %v1059
    %v1061 = vpop.f32.mrb[0].mxu0
    %v1062 = vadd.f32 0.0, %v1061
    %v1063 = vpop.f32.mrb[0].mxu0
    %v1064 = vadd.f32 0.0, %v1063
    %1065 = vmatprep.mubr.bf16.mxu0 0
    %1066 = vmatmul.mubr.bf16.gmra.mrb[0].mxu0 %v400
    %v1067 = vpop.f32.mrb[0].mxu0
    %v1068 = vadd.f32 0.0, %v1067
    %v1069 = vpop.f32.mrb[0].mxu0
    %v1070 = vadd.f32 0.0, %v1069
    %v1071 = vpop.f32.mrb[0].mxu0
    %v1072 = vadd.f32 0.0, %v1071
    %v1073 = vpop.f32.mrb[0].mxu0
    %v1074 = vadd.f32 0.0, %v1073
    %1075 = vmatprep.mubr.bf16.mxu0 0
    %1076 = vmatmul.mubr.bf16.gmra.mrb[0].mxu0 %v403
    %v1077 = vpop.f32.mrb[0].mxu0
    %v1078 = vadd.f32 0.0, %v1077
    %v1079 = vpop.f32.mrb[0].mxu0
    %v1080 = vadd.f32 0.0, %v1079
    %v1081 = vpop.f32.mrb[0].mxu0
    %v1082 = vadd.f32 0.0, %v1081
    %v1083 = vpop.f32.mrb[0].mxu0
    %v1084 = vadd.f32 0.0, %v1083
    %1085 = vmatprep.mubr.bf16.mxu0 0
    %1086 = vmatmul.mubr.bf16.gmra.mrb[0].mxu0 %v406
    %v1087 = vpop.f32.mrb[0].mxu0
    %v1088 = vadd.f32 0.0, %v1087
    %v1089 = vpop.f32.mrb[0].mxu0
    %v1090 = vadd.f32 0.0, %v1089
    %v1091 = vpop.f32.mrb[0].mxu0
    %v1092 = vadd.f32 0.0, %v1091
    %v1093 = vpop.f32.mrb[0].mxu0
    %v1094 = vadd.f32 0.0, %v1093
    %1095 = vmatprep.mubr.bf16.mxu0 0
    %1096 = vmatmul.mubr.bf16.gmra.mrb[0].mxu0 %v409
    %v1097 = vpop.f32.mrb[0].mxu0
    %v1098 = vadd.f32 0.0, %v1097
    %v1099 = vpop.f32.mrb[0].mxu0
    %v1100 = vadd.f32 0.0, %v1099
    %v1101 = vpop.f32.mrb[0].mxu0
    %v1102 = vadd.f32 0.0, %v1101
    %v1103 = vpop.f32.mrb[0].mxu0
    %v1104 = vadd.f32 0.0, %v1103
    %1105 = vmatprep.mubr.bf16.mxu0 0
    %1106 = vmatmul.mubr.bf16.gmra.mrb[0].mxu0 %v412
    %v1107 = vpop.f32.mrb[0].mxu0
    %v1108 = vadd.f32 0.0, %v1107
    %v1109 = vpop.f32.mrb[0].mxu0
    %v1110 = vadd.f32 0.0, %v1109
    %v1111 = vpop.f32.mrb[0].mxu0
    %v1112 = vadd.f32 0.0, %v1111
    %v1113 = vpop.f32.mrb[0].mxu0
    %v1114 = vadd.f32 0.0, %v1113
    %1115 = vmatprep.mubr.bf16.mxu0 0
    %1116 = vmatmul.mubr.bf16.gmra.mrb[0].mxu0 %v415
    %v1117 = vpop.f32.mrb[0].mxu0
    %v1118 = vadd.f32 0.0, %v1117
    %v1119 = vpop.f32.mrb[0].mxu0
    %v1120 = vadd.f32 0.0, %v1119
    %v1121 = vpop.f32.mrb[0].mxu0
    %v1122 = vadd.f32 0.0, %v1121
    %v1123 = vpop.f32.mrb[0].mxu0
    %v1124 = vadd.f32 0.0, %v1123
    %1125 = vmatprep.mubr.bf16.mxu0 0
    %1126 = vmatmul.mubr.bf16.gmra.mrb[0].mxu0 %v418
    %v1127 = vpop.f32.mrb[0].mxu0
    %v1128 = vadd.f32 0.0, %v1127
    %v1129 = vpop.f32.mrb[0].mxu0
    %v1130 = vadd.f32 0.0, %v1129
    %v1131 = vpop.f32.mrb[0].mxu0
    %v1132 = vadd.f32 0.0, %v1131
    %v1133 = vpop.f32.mrb[0].mxu0
    %v1134 = vadd.f32 0.0, %v1133
    %1135 = vmatprep.mubr.bf16.mxu0 0
    %1136 = vmatmul.mubr.bf16.gmra.mrb[0].mxu0 %v421
    %v1137 = vpop.f32.mrb[0].mxu0
    %v1138 = vadd.f32 0.0, %v1137
    %v1139 = vpop.f32.mrb[0].mxu0
    %v1140 = vadd.f32 0.0, %v1139
    %v1141 = vpop.f32.mrb[0].mxu0
    %v1142 = vadd.f32 0.0, %v1141
    %v1143 = vpop.f32.mrb[0].mxu0
    %v1144 = vadd.f32 0.0, %v1143
    %1145 = vmatprep.mubr.bf16.mxu0 0
    %1146 = vmatmul.mubr.bf16.gmra.mrb[0].mxu0 %v424
    %v1147 = vpop.f32.mrb[0].mxu0
    %v1148 = vadd.f32 0.0, %v1147
    %v1149 = vpop.f32.mrb[0].mxu0
    %v1150 = vadd.f32 0.0, %v1149
    %v1151 = vpop.f32.mrb[0].mxu0
    %v1152 = vadd.f32 0.0, %v1151
    %v1153 = vpop.f32.mrb[0].mxu0
    %v1154 = vadd.f32 0.0, %v1153
    %1155 = vmatprep.mubr.bf16.mxu0 0
    %1156 = vmatmul.mubr.bf16.gmra.mrb[0].mxu0 %v427
    %v1157 = vpop.f32.mrb[0].mxu0
    %v1158 = vadd.f32 0.0, %v1157
    %v1159 = vpop.f32.mrb[0].mxu0
    %v1160 = vadd.f32 0.0, %v1159
    %v1161 = vpop.f32.mrb[0].mxu0
    %v1162 = vadd.f32 0.0, %v1161
    %v1163 = vpop.f32.mrb[0].mxu0
    %v1164 = vadd.f32 0.0, %v1163
    %1165 = vmatprep.mubr.bf16.mxu0 0
    %1166 = vmatmul.mubr.bf16.gmra.mrb[0].mxu0 %v430
    %v1167 = vpop.f32.mrb[0].mxu0
    %v1168 = vadd.f32 0.0, %v1167
    %v1169 = vpop.f32.mrb[0].mxu0
    %v1170 = vadd.f32 0.0, %v1169
    %v1171 = vpop.f32.mrb[0].mxu0
    %v1172 = vadd.f32 0.0, %v1171
    %v1173 = vpop.f32.mrb[0].mxu0
    %v1174 = vadd.f32 0.0, %v1173
    %1175 = vmatprep.mubr.bf16.mxu0 0
    %1176 = vmatmul.mubr.bf16.gmra.mrb[0].mxu0 %v433
    %v1177 = vpop.f32.mrb[0].mxu0
    %v1178 = vadd.f32 0.0, %v1177
    %v1179 = vpop.f32.mrb[0].mxu0
    %v1180 = vadd.f32 0.0, %v1179
    %v1181 = vpop.f32.mrb[0].mxu0
    %v1182 = vadd.f32 0.0, %v1181
    %v1183 = vpop.f32.mrb[0].mxu0
    %v1184 = vadd.f32 0.0, %v1183
    %1185 = vmatprep.mubr.bf16.mxu0 0
    %1186 = vmatmul.mubr.bf16.gmra.mrb[0].mxu0 %v436
    %v1187 = vpop.f32.mrb[0].mxu0
    %v1188 = vadd.f32 0.0, %v1187
    %v1189 = vpop.f32.mrb[0].mxu0
    %v1190 = vadd.f32 0.0, %v1189
    %v1191 = vpop.f32.mrb[0].mxu0
    %v1192 = vadd.f32 0.0, %v1191
    %v1193 = vpop.f32.mrb[0].mxu0
    %v1194 = vadd.f32 0.0, %v1193
    %1195 = vmatprep.mubr.bf16.mxu0 0
    %1196 = vmatmul.mubr.bf16.gmra.mrb[0].mxu0 %v439
    %v1197 = vpop.f32.mrb[0].mxu0
    %v1198 = vadd.f32 0.0, %v1197
    %v1199 = vpop.f32.mrb[0].mxu0
    %v1200 = vadd.f32 0.0, %v1199
    %v1201 = vpop.f32.mrb[0].mxu0
    %v1202 = vadd.f32 0.0, %v1201
    %v1203 = vpop.f32.mrb[0].mxu0
    %v1204 = vadd.f32 0.0, %v1203
    %1205 = vmatprep.mubr.bf16.mxu0 0
    %1206 = vmatmul.mubr.bf16.gmra.mrb[0].mxu0 %v442
    %v1207 = vpop.f32.mrb[0].mxu0
    %v1208 = vadd.f32 0.0, %v1207
    %v1209 = vpop.f32.mrb[0].mxu0
    %v1210 = vadd.f32 0.0, %v1209
    %v1211 = vpop.f32.mrb[0].mxu0
    %v1212 = vadd.f32 0.0, %v1211
    %v1213 = vpop.f32.mrb[0].mxu0
    %v1214 = vadd.f32 0.0, %v1213
    %1215 = vdwg.mxu0
    %v1217 = vsel %vm395, %v43, 0
    %v1220 = vsel %vm395, %v44, 0
    %v1223 = vsel %vm395, %v45, 0
    %v1226 = vsel %vm395, %v46, 0
    %v1229 = vsel %vm395, %v47, 0
    %v1232 = vsel %vm395, %v48, 0
    %v1235 = vsel %vm395, %v49, 0
    %v1238 = vsel %vm395, %v50, 0
    %v1241 = vsel %vm395, %v51, 0
    %v1244 = vsel %vm395, %v52, 0
    %v1247 = vsel %vm395, %v53, 0
    %v1250 = vsel %vm395, %v54, 0
    %v1253 = vsel %vm395, %v55, 0
    %v1256 = vsel %vm395, %v56, 0
    %v1259 = vsel %vm395, %v57, 0
    %v1262 = vsel %vm395, %v58, 0
    %v1265 = vsel %vm395, %v59, 0
    %v1268 = vsel %vm395, %v60, 0
    %v1271 = vsel %vm395, %v61, 0
    %v1274 = vsel %vm395, %v62, 0
    %v1277 = vsel %vm395, %v63, 0
    %v1280 = vsel %vm395, %v64, 0
    %v1283 = vsel %vm395, %v65, 0
    %v1286 = vsel %vm395, %v66, 0
    %v1289 = vsel %vm395, %v67, 0
    %v1292 = vsel %vm395, %v68, 0
    %v1295 = vsel %vm395, %v69, 0
    %v1298 = vsel %vm395, %v70, 0
    %v1301 = vsel %vm395, %v71, 0
    %v1304 = vsel %vm395, %v72, 0
    %v1307 = vsel %vm395, %v73, 0
    %v1310 = vsel %vm395, %v74, 0
    %1312 = vmatprep.subr.mxu0 %v92
    %1313 = vmatpush1.msra.mxu0 %v91
    %1314 = vmatprep.subr.mxu0 %v100
    %1315 = vmatpush1.msra.mxu0 %v99
    %1316 = vmatprep.subr.mxu0 %v108
    %1317 = vmatpush1.msra.mxu0 %v107
    %1318 = vmatprep.subr.mxu0 %v116
    %1319 = vmatpush1.msra.mxu0 %v115
    %1320 = vmatprep.subr.mxu0 0.0
    %1321 = vmatpush1.msra.mxu0 0.0
    %1322 = vmatprep.subr.mxu0 0.0
    %1323 = vmatpush1.msra.mxu0 0.0
    %1324 = vmatprep.subr.mxu0 0.0
    %1325 = vmatpush1.msra.mxu0 0.0
    %1326 = vmatprep.subr.mxu0 0.0
    %1327 = vmatpush1.msra.mxu0 0.0
    %1328 = vmatprep.subr.mxu0 0.0
    %1329 = vmatpush1.msra.mxu0 0.0
    %1330 = vmatprep.subr.mxu0 0.0
    %1331 = vmatpush1.msra.mxu0 0.0
    %1332 = vmatprep.subr.mxu0 0.0
    %1333 = vmatpush1.msra.mxu0 0.0
    %1334 = vmatprep.subr.mxu0 0.0
    %1335 = vmatpush1.msra.mxu0 0.0
    %1336 = vmatprep.subr.mxu0 0.0
    %1337 = vmatpush1.msra.mxu0 0.0
    %1338 = vmatprep.subr.mxu0 0.0
    %1339 = vmatpush1.msra.mxu0 0.0
    %1340 = vmatprep.subr.mxu0 0.0
    %1341 = vmatpush1.msra.mxu0 0.0
    %1342 = vmatprep.subr.mxu0 0.0
    %1343 = vmatpush1.msra.mxu0 0.0
    %1344 = vmatprep.subr.mxu0 0.0
    %1345 = vmatpush1.msra.mxu0 0.0
    %1346 = vmatprep.subr.mxu0 0.0
    %1347 = vmatpush1.msra.mxu0 0.0
    %1348 = vmatprep.subr.mxu0 0.0
    %1349 = vmatpush1.msra.mxu0 0.0
    %1350 = vmatprep.subr.mxu0 0.0
    %1351 = vmatpush1.msra.mxu0 0.0
    %1352 = vmatprep.subr.mxu0 0.0
    %1353 = vmatpush1.msra.mxu0 0.0
    %1354 = vmatprep.subr.mxu0 0.0
    %1355 = vmatpush1.msra.mxu0 0.0
    %1356 = vmatprep.subr.mxu0 0.0
    %1357 = vmatpush1.msra.mxu0 0.0
    %1358 = vmatprep.subr.mxu0 0.0
    %1359 = vmatpush1.msra.mxu0 0.0
    %1360 = vmatprep.subr.mxu0 0.0
    %1361 = vmatpush1.msra.mxu0 0.0
    %1362 = vmatprep.subr.mxu0 0.0
    %1363 = vmatpush1.msra.mxu0 0.0
    %1364 = vmatprep.subr.mxu0 0.0
    %1365 = vmatpush1.msra.mxu0 0.0
    %1366 = vmatprep.subr.mxu0 0.0
    %1367 = vmatpush1.msra.mxu0 0.0
    %1368 = vmatprep.subr.mxu0 0.0
    %1369 = vmatpush1.msra.mxu0 0.0
    %1370 = vmatprep.subr.mxu0 0.0
    %1371 = vmatpush1.msra.mxu0 0.0
    %1372 = vmatprep.subr.mxu0 0.0
    %1373 = vmatpush1.msra.mxu0 0.0
    %1374 = vmatprep.subr.mxu0 0.0
    %1375 = vmatpush1.msra.mxu0 0.0
    %1376 = vmatprep.mubr.f32.mxu0 0.0
    %1377 = vmatmul.mubr.f32.gmra.mrb[0].mxu0 %v1217
    %v1378 = vpop.f32.mrb[0].mxu0
    %v1379 = vadd.f32 0.0, %v1378
    %v1380 = vpop.f32.mrb[0].mxu0
    %v1381 = vadd.f32 0.0, %v1380
    %1382 = vmatprep.mubr.f32.mxu0 0.0
    %1383 = vmatmul.mubr.f32.gmra.mrb[0].mxu0 %v1220
    %v1384 = vpop.f32.mrb[0].mxu0
    %v1385 = vadd.f32 0.0, %v1384
    %v1386 = vpop.f32.mrb[0].mxu0
    %v1387 = vadd.f32 0.0, %v1386
    %1388 = vmatprep.mubr.f32.mxu0 0.0
    %1389 = vmatmul.mubr.f32.gmra.mrb[0].mxu0 %v1223
    %v1390 = vpop.f32.mrb[0].mxu0
    %v1391 = vadd.f32 0.0, %v1390
    %v1392 = vpop.f32.mrb[0].mxu0
    %v1393 = vadd.f32 0.0, %v1392
    %1394 = vmatprep.mubr.f32.mxu0 0.0
    %1395 = vmatmul.mubr.f32.gmra.mrb[0].mxu0 %v1226
    %v1396 = vpop.f32.mrb[0].mxu0
    %v1397 = vadd.f32 0.0, %v1396
    %v1398 = vpop.f32.mrb[0].mxu0
    %v1399 = vadd.f32 0.0, %v1398
    %1400 = vmatprep.mubr.f32.mxu0 0.0
    %1401 = vmatmul.mubr.f32.gmra.mrb[0].mxu0 %v1229
    %v1402 = vpop.f32.mrb[0].mxu0
    %v1403 = vadd.f32 0.0, %v1402
    %v1404 = vpop.f32.mrb[0].mxu0
    %v1405 = vadd.f32 0.0, %v1404
    %1406 = vmatprep.mubr.f32.mxu0 0.0
    %1407 = vmatmul.mubr.f32.gmra.mrb[0].mxu0 %v1232
    %v1408 = vpop.f32.mrb[0].mxu0
    %v1409 = vadd.f32 0.0, %v1408
    %v1410 = vpop.f32.mrb[0].mxu0
    %v1411 = vadd.f32 0.0, %v1410
    %1412 = vmatprep.mubr.f32.mxu0 0.0
    %1413 = vmatmul.mubr.f32.gmra.mrb[0].mxu0 %v1235
    %v1414 = vpop.f32.mrb[0].mxu0
    %v1415 = vadd.f32 0.0, %v1414
    %v1416 = vpop.f32.mrb[0].mxu0
    %v1417 = vadd.f32 0.0, %v1416
    %1418 = vmatprep.mubr.f32.mxu0 0.0
    %1419 = vmatmul.mubr.f32.gmra.mrb[0].mxu0 %v1238
    %v1420 = vpop.f32.mrb[0].mxu0
    %v1421 = vadd.f32 0.0, %v1420
    %v1422 = vpop.f32.mrb[0].mxu0
    %v1423 = vadd.f32 0.0, %v1422
    %1424 = vmatprep.mubr.f32.mxu0 0.0
    %1425 = vmatmul.mubr.f32.gmra.mrb[0].mxu0 %v1241
    %v1426 = vpop.f32.mrb[0].mxu0
    %v1427 = vadd.f32 0.0, %v1426
    %v1428 = vpop.f32.mrb[0].mxu0
    %v1429 = vadd.f32 0.0, %v1428
    %1430 = vmatprep.mubr.f32.mxu0 0.0
    %1431 = vmatmul.mubr.f32.gmra.mrb[0].mxu0 %v1244
    %v1432 = vpop.f32.mrb[0].mxu0
    %v1433 = vadd.f32 0.0, %v1432
    %v1434 = vpop.f32.mrb[0].mxu0
    %v1435 = vadd.f32 0.0, %v1434
    %1436 = vmatprep.mubr.f32.mxu0 0.0
    %1437 = vmatmul.mubr.f32.gmra.mrb[0].mxu0 %v1247
    %v1438 = vpop.f32.mrb[0].mxu0
    %v1439 = vadd.f32 0.0, %v1438
    %v1440 = vpop.f32.mrb[0].mxu0
    %v1441 = vadd.f32 0.0, %v1440
    %1442 = vmatprep.mubr.f32.mxu0 0.0
    %1443 = vmatmul.mubr.f32.gmra.mrb[0].mxu0 %v1250
    %v1444 = vpop.f32.mrb[0].mxu0
    %v1445 = vadd.f32 0.0, %v1444
    %v1446 = vpop.f32.mrb[0].mxu0
    %v1447 = vadd.f32 0.0, %v1446
    %1448 = vmatprep.mubr.f32.mxu0 0.0
    %1449 = vmatmul.mubr.f32.gmra.mrb[0].mxu0 %v1253
    %v1450 = vpop.f32.mrb[0].mxu0
    %v1451 = vadd.f32 0.0, %v1450
    %v1452 = vpop.f32.mrb[0].mxu0
    %v1453 = vadd.f32 0.0, %v1452
    %1454 = vmatprep.mubr.f32.mxu0 0.0
    %1455 = vmatmul.mubr.f32.gmra.mrb[0].mxu0 %v1256
    %v1456 = vpop.f32.mrb[0].mxu0
    %v1457 = vadd.f32 0.0, %v1456
    %v1458 = vpop.f32.mrb[0].mxu0
    %v1459 = vadd.f32 0.0, %v1458
    %1460 = vmatprep.mubr.f32.mxu0 0.0
    %1461 = vmatmul.mubr.f32.gmra.mrb[0].mxu0 %v1259
    %v1462 = vpop.f32.mrb[0].mxu0
    %v1463 = vadd.f32 0.0, %v1462
    %v1464 = vpop.f32.mrb[0].mxu0
    %v1465 = vadd.f32 0.0, %v1464
    %1466 = vmatprep.mubr.f32.mxu0 0.0
    %1467 = vmatmul.mubr.f32.gmra.mrb[0].mxu0 %v1262
    %v1468 = vpop.f32.mrb[0].mxu0
    %v1469 = vadd.f32 0.0, %v1468
    %v1470 = vpop.f32.mrb[0].mxu0
    %v1471 = vadd.f32 0.0, %v1470
    %1472 = vmatprep.mubr.f32.mxu0 0.0
    %1473 = vmatmul.mubr.f32.gmra.mrb[0].mxu0 %v1265
    %v1474 = vpop.f32.mrb[0].mxu0
    %v1475 = vadd.f32 0.0, %v1474
    %v1476 = vpop.f32.mrb[0].mxu0
    %v1477 = vadd.f32 0.0, %v1476
    %1478 = vmatprep.mubr.f32.mxu0 0.0
    %1479 = vmatmul.mubr.f32.gmra.mrb[0].mxu0 %v1268
    %v1480 = vpop.f32.mrb[0].mxu0
    %v1481 = vadd.f32 0.0, %v1480
    %v1482 = vpop.f32.mrb[0].mxu0
    %v1483 = vadd.f32 0.0, %v1482
    %1484 = vmatprep.mubr.f32.mxu0 0.0
    %1485 = vmatmul.mubr.f32.gmra.mrb[0].mxu0 %v1271
    %v1486 = vpop.f32.mrb[0].mxu0
    %v1487 = vadd.f32 0.0, %v1486
    %v1488 = vpop.f32.mrb[0].mxu0
    %v1489 = vadd.f32 0.0, %v1488
    %1490 = vmatprep.mubr.f32.mxu0 0.0
    %1491 = vmatmul.mubr.f32.gmra.mrb[0].mxu0 %v1274
    %v1492 = vpop.f32.mrb[0].mxu0
    %v1493 = vadd.f32 0.0, %v1492
    %v1494 = vpop.f32.mrb[0].mxu0
    %v1495 = vadd.f32 0.0, %v1494
    %1496 = vmatprep.mubr.f32.mxu0 0.0
    %1497 = vmatmul.mubr.f32.gmra.mrb[0].mxu0 %v1277
    %v1498 = vpop.f32.mrb[0].mxu0
    %v1499 = vadd.f32 0.0, %v1498
    %v1500 = vpop.f32.mrb[0].mxu0
    %v1501 = vadd.f32 0.0, %v1500
    %1502 = vmatprep.mubr.f32.mxu0 0.0
    %1503 = vmatmul.mubr.f32.gmra.mrb[0].mxu0 %v1280
    %v1504 = vpop.f32.mrb[0].mxu0
    %v1505 = vadd.f32 0.0, %v1504
    %v1506 = vpop.f32.mrb[0].mxu0
    %v1507 = vadd.f32 0.0, %v1506
    %1508 = vmatprep.mubr.f32.mxu0 0.0
    %1509 = vmatmul.mubr.f32.gmra.mrb[0].mxu0 %v1283
    %v1510 = vpop.f32.mrb[0].mxu0
    %v1511 = vadd.f32 0.0, %v1510
    %v1512 = vpop.f32.mrb[0].mxu0
    %v1513 = vadd.f32 0.0, %v1512
    %1514 = vmatprep.mubr.f32.mxu0 0.0
    %1515 = vmatmul.mubr.f32.gmra.mrb[0].mxu0 %v1286
    %v1516 = vpop.f32.mrb[0].mxu0
    %v1517 = vadd.f32 0.0, %v1516
    %v1518 = vpop.f32.mrb[0].mxu0
    %v1519 = vadd.f32 0.0, %v1518
    %1520 = vmatprep.mubr.f32.mxu0 0.0
    %1521 = vmatmul.mubr.f32.gmra.mrb[0].mxu0 %v1289
    %v1522 = vpop.f32.mrb[0].mxu0
    %v1523 = vadd.f32 0.0, %v1522
    %v1524 = vpop.f32.mrb[0].mxu0
    %v1525 = vadd.f32 0.0, %v1524
    %1526 = vmatprep.mubr.f32.mxu0 0.0
    %1527 = vmatmul.mubr.f32.gmra.mrb[0].mxu0 %v1292
    %v1528 = vpop.f32.mrb[0].mxu0
    %v1529 = vadd.f32 0.0, %v1528
    %v1530 = vpop.f32.mrb[0].mxu0
    %v1531 = vadd.f32 0.0, %v1530
    %1532 = vmatprep.mubr.f32.mxu0 0.0
    %1533 = vmatmul.mubr.f32.gmra.mrb[0].mxu0 %v1295
    %v1534 = vpop.f32.mrb[0].mxu0
    %v1535 = vadd.f32 0.0, %v1534
    %v1536 = vpop.f32.mrb[0].mxu0
    %v1537 = vadd.f32 0.0, %v1536
    %1538 = vmatprep.mubr.f32.mxu0 0.0
    %1539 = vmatmul.mubr.f32.gmra.mrb[0].mxu0 %v1298
    %v1540 = vpop.f32.mrb[0].mxu0
    %v1541 = vadd.f32 0.0, %v1540
    %v1542 = vpop.f32.mrb[0].mxu0
    %v1543 = vadd.f32 0.0, %v1542
    %1544 = vmatprep.mubr.f32.mxu0 0.0
    %1545 = vmatmul.mubr.f32.gmra.mrb[0].mxu0 %v1301
    %v1546 = vpop.f32.mrb[0].mxu0
    %v1547 = vadd.f32 0.0, %v1546
    %v1548 = vpop.f32.mrb[0].mxu0
    %v1549 = vadd.f32 0.0, %v1548
    %1550 = vmatprep.mubr.f32.mxu0 0.0
    %1551 = vmatmul.mubr.f32.gmra.mrb[0].mxu0 %v1304
    %v1552 = vpop.f32.mrb[0].mxu0
    %v1553 = vadd.f32 0.0, %v1552
    %v1554 = vpop.f32.mrb[0].mxu0
    %v1555 = vadd.f32 0.0, %v1554
    %1556 = vmatprep.mubr.f32.mxu0 0.0
    %1557 = vmatmul.mubr.f32.gmra.mrb[0].mxu0 %v1307
    %v1558 = vpop.f32.mrb[0].mxu0
    %v1559 = vadd.f32 0.0, %v1558
    %v1560 = vpop.f32.mrb[0].mxu0
    %v1561 = vadd.f32 0.0, %v1560
    %1562 = vmatprep.mubr.f32.mxu0 0.0
    %1563 = vmatmul.mubr.f32.gmra.mrb[0].mxu0 %v1310
    %v1564 = vpop.f32.mrb[0].mxu0
    %v1565 = vadd.f32 0.0, %v1564
    %v1566 = vpop.f32.mrb[0].mxu0
    %v1567 = vadd.f32 0.0, %v1566
    %1568 = vdwg.mxu0
    %1569 = vmatprep.subr.mxu0 %v94
    %1570 = vmatpush1.msra.mxu0 %v93
    %1571 = vmatprep.subr.mxu0 %v102
    %1572 = vmatpush1.msra.mxu0 %v101
    %1573 = vmatprep.subr.mxu0 %v110
    %1574 = vmatpush1.msra.mxu0 %v109
    %1575 = vmatprep.subr.mxu0 %v118
    %1576 = vmatpush1.msra.mxu0 %v117
    %1577 = vmatprep.subr.mxu0 0.0
    %1578 = vmatpush1.msra.mxu0 0.0
    %1579 = vmatprep.subr.mxu0 0.0
    %1580 = vmatpush1.msra.mxu0 0.0
    %1581 = vmatprep.subr.mxu0 0.0
    %1582 = vmatpush1.msra.mxu0 0.0
    %1583 = vmatprep.subr.mxu0 0.0
    %1584 = vmatpush1.msra.mxu0 0.0
    %1585 = vmatprep.subr.mxu0 0.0
    %1586 = vmatpush1.msra.mxu0 0.0
    %1587 = vmatprep.subr.mxu0 0.0
    %1588 = vmatpush1.msra.mxu0 0.0
    %1589 = vmatprep.subr.mxu0 0.0
    %1590 = vmatpush1.msra.mxu0 0.0
    %1591 = vmatprep.subr.mxu0 0.0
    %1592 = vmatpush1.msra.mxu0 0.0
    %1593 = vmatprep.subr.mxu0 0.0
    %1594 = vmatpush1.msra.mxu0 0.0
    %1595 = vmatprep.subr.mxu0 0.0
    %1596 = vmatpush1.msra.mxu0 0.0
    %1597 = vmatprep.subr.mxu0 0.0
    %1598 = vmatpush1.msra.mxu0 0.0
    %1599 = vmatprep.subr.mxu0 0.0
    %1600 = vmatpush1.msra.mxu0 0.0
    %1601 = vmatprep.subr.mxu0 0.0
    %1602 = vmatpush1.msra.mxu0 0.0
    %1603 = vmatprep.subr.mxu0 0.0
    %1604 = vmatpush1.msra.mxu0 0.0
    %1605 = vmatprep.subr.mxu0 0.0
    %1606 = vmatpush1.msra.mxu0 0.0
    %1607 = vmatprep.subr.mxu0 0.0
    %1608 = vmatpush1.msra.mxu0 0.0
    %1609 = vmatprep.subr.mxu0 0.0
    %1610 = vmatpush1.msra.mxu0 0.0
    %1611 = vmatprep.subr.mxu0 0.0
    %1612 = vmatpush1.msra.mxu0 0.0
    %1613 = vmatprep.subr.mxu0 0.0
    %1614 = vmatpush1.msra.mxu0 0.0
    %1615 = vmatprep.subr.mxu0 0.0
    %1616 = vmatpush1.msra.mxu0 0.0
    %1617 = vmatprep.subr.mxu0 0.0
    %1618 = vmatpush1.msra.mxu0 0.0
    %1619 = vmatprep.subr.mxu0 0.0
    %1620 = vmatpush1.msra.mxu0 0.0
    %1621 = vmatprep.subr.mxu0 0.0
    %1622 = vmatpush1.msra.mxu0 0.0
    %1623 = vmatprep.subr.mxu0 0.0
    %1624 = vmatpush1.msra.mxu0 0.0
    %1625 = vmatprep.subr.mxu0 0.0
    %1626 = vmatpush1.msra.mxu0 0.0
    %1627 = vmatprep.subr.mxu0 0.0
    %1628 = vmatpush1.msra.mxu0 0.0
    %1629 = vmatprep.subr.mxu0 0.0
    %1630 = vmatpush1.msra.mxu0 0.0
    %1631 = vmatprep.subr.mxu0 0.0
    %1632 = vmatpush1.msra.mxu0 0.0
    %1633 = vmatprep.mubr.f32.mxu0 0.0
    %1634 = vmatmul.mubr.f32.gmra.mrb[0].mxu0 %v1217
    %v1635 = vpop.f32.mrb[0].mxu0
    %v1636 = vadd.f32 0.0, %v1635
    %v1637 = vpop.f32.mrb[0].mxu0
    %v1638 = vadd.f32 0.0, %v1637
    %1639 = vmatprep.mubr.f32.mxu0 0.0
    %1640 = vmatmul.mubr.f32.gmra.mrb[0].mxu0 %v1220
    %v1641 = vpop.f32.mrb[0].mxu0
    %v1642 = vadd.f32 0.0, %v1641
    %v1643 = vpop.f32.mrb[0].mxu0
    %v1644 = vadd.f32 0.0, %v1643
    %1645 = vmatprep.mubr.f32.mxu0 0.0
    %1646 = vmatmul.mubr.f32.gmra.mrb[0].mxu0 %v1223
    %v1647 = vpop.f32.mrb[0].mxu0
    %v1648 = vadd.f32 0.0, %v1647
    %v1649 = vpop.f32.mrb[0].mxu0
    %v1650 = vadd.f32 0.0, %v1649
    %1651 = vmatprep.mubr.f32.mxu0 0.0
    %1652 = vmatmul.mubr.f32.gmra.mrb[0].mxu0 %v1226
    %v1653 = vpop.f32.mrb[0].mxu0
    %v1654 = vadd.f32 0.0, %v1653
    %v1655 = vpop.f32.mrb[0].mxu0
    %v1656 = vadd.f32 0.0, %v1655
    %1657 = vmatprep.mubr.f32.mxu0 0.0
    %1658 = vmatmul.mubr.f32.gmra.mrb[0].mxu0 %v1229
    %v1659 = vpop.f32.mrb[0].mxu0
    %v1660 = vadd.f32 0.0, %v1659
    %v1661 = vpop.f32.mrb[0].mxu0
    %v1662 = vadd.f32 0.0, %v1661
    %1663 = vmatprep.mubr.f32.mxu0 0.0
    %1664 = vmatmul.mubr.f32.gmra.mrb[0].mxu0 %v1232
    %v1665 = vpop.f32.mrb[0].mxu0
    %v1666 = vadd.f32 0.0, %v1665
    %v1667 = vpop.f32.mrb[0].mxu0
    %v1668 = vadd.f32 0.0, %v1667
    %1669 = vmatprep.mubr.f32.mxu0 0.0
    %1670 = vmatmul.mubr.f32.gmra.mrb[0].mxu0 %v1235
    %v1671 = vpop.f32.mrb[0].mxu0
    %v1672 = vadd.f32 0.0, %v1671
    %v1673 = vpop.f32.mrb[0].mxu0
    %v1674 = vadd.f32 0.0, %v1673
    %1675 = vmatprep.mubr.f32.mxu0 0.0
    %1676 = vmatmul.mubr.f32.gmra.mrb[0].mxu0 %v1238
    %v1677 = vpop.f32.mrb[0].mxu0
    %v1678 = vadd.f32 0.0, %v1677
    %v1679 = vpop.f32.mrb[0].mxu0
    %v1680 = vadd.f32 0.0, %v1679
    %1681 = vmatprep.mubr.f32.mxu0 0.0
    %1682 = vmatmul.mubr.f32.gmra.mrb[0].mxu0 %v1241
    %v1683 = vpop.f32.mrb[0].mxu0
    %v1684 = vadd.f32 0.0, %v1683
    %v1685 = vpop.f32.mrb[0].mxu0
    %v1686 = vadd.f32 0.0, %v1685
    %1687 = vmatprep.mubr.f32.mxu0 0.0
    %1688 = vmatmul.mubr.f32.gmra.mrb[0].mxu0 %v1244
    %v1689 = vpop.f32.mrb[0].mxu0
    %v1690 = vadd.f32 0.0, %v1689
    %v1691 = vpop.f32.mrb[0].mxu0
    %v1692 = vadd.f32 0.0, %v1691
    %1693 = vmatprep.mubr.f32.mxu0 0.0
    %1694 = vmatmul.mubr.f32.gmra.mrb[0].mxu0 %v1247
    %v1695 = vpop.f32.mrb[0].mxu0
    %v1696 = vadd.f32 0.0, %v1695
    %v1697 = vpop.f32.mrb[0].mxu0
    %v1698 = vadd.f32 0.0, %v1697
    %1699 = vmatprep.mubr.f32.mxu0 0.0
    %1700 = vmatmul.mubr.f32.gmra.mrb[0].mxu0 %v1250
    %v1701 = vpop.f32.mrb[0].mxu0
    %v1702 = vadd.f32 0.0, %v1701
    %v1703 = vpop.f32.mrb[0].mxu0
    %v1704 = vadd.f32 0.0, %v1703
    %1705 = vmatprep.mubr.f32.mxu0 0.0
    %1706 = vmatmul.mubr.f32.gmra.mrb[0].mxu0 %v1253
    %v1707 = vpop.f32.mrb[0].mxu0
    %v1708 = vadd.f32 0.0, %v1707
    %v1709 = vpop.f32.mrb[0].mxu0
    %v1710 = vadd.f32 0.0, %v1709
    %1711 = vmatprep.mubr.f32.mxu0 0.0
    %1712 = vmatmul.mubr.f32.gmra.mrb[0].mxu0 %v1256
    %v1713 = vpop.f32.mrb[0].mxu0
    %v1714 = vadd.f32 0.0, %v1713
    %v1715 = vpop.f32.mrb[0].mxu0
    %v1716 = vadd.f32 0.0, %v1715
    %1717 = vmatprep.mubr.f32.mxu0 0.0
    %1718 = vmatmul.mubr.f32.gmra.mrb[0].mxu0 %v1259
    %v1719 = vpop.f32.mrb[0].mxu0
    %v1720 = vadd.f32 0.0, %v1719
    %v1721 = vpop.f32.mrb[0].mxu0
    %v1722 = vadd.f32 0.0, %v1721
    %1723 = vmatprep.mubr.f32.mxu0 0.0
    %1724 = vmatmul.mubr.f32.gmra.mrb[0].mxu0 %v1262
    %v1725 = vpop.f32.mrb[0].mxu0
    %v1726 = vadd.f32 0.0, %v1725
    %v1727 = vpop.f32.mrb[0].mxu0
    %v1728 = vadd.f32 0.0, %v1727
    %1729 = vmatprep.mubr.f32.mxu0 0.0
    %1730 = vmatmul.mubr.f32.gmra.mrb[0].mxu0 %v1265
    %v1731 = vpop.f32.mrb[0].mxu0
    %v1732 = vadd.f32 0.0, %v1731
    %v1733 = vpop.f32.mrb[0].mxu0
    %v1734 = vadd.f32 0.0, %v1733
    %1735 = vmatprep.mubr.f32.mxu0 0.0
    %1736 = vmatmul.mubr.f32.gmra.mrb[0].mxu0 %v1268
    %v1737 = vpop.f32.mrb[0].mxu0
    %v1738 = vadd.f32 0.0, %v1737
    %v1739 = vpop.f32.mrb[0].mxu0
    %v1740 = vadd.f32 0.0, %v1739
    %1741 = vmatprep.mubr.f32.mxu0 0.0
    %1742 = vmatmul.mubr.f32.gmra.mrb[0].mxu0 %v1271
    %v1743 = vpop.f32.mrb[0].mxu0
    %v1744 = vadd.f32 0.0, %v1743
    %v1745 = vpop.f32.mrb[0].mxu0
    %v1746 = vadd.f32 0.0, %v1745
    %1747 = vmatprep.mubr.f32.mxu0 0.0
    %1748 = vmatmul.mubr.f32.gmra.mrb[0].mxu0 %v1274
    %v1749 = vpop.f32.mrb[0].mxu0
    %v1750 = vadd.f32 0.0, %v1749
    %v1751 = vpop.f32.mrb[0].mxu0
    %v1752 = vadd.f32 0.0, %v1751
    %1753 = vmatprep.mubr.f32.mxu0 0.0
    %1754 = vmatmul.mubr.f32.gmra.mrb[0].mxu0 %v1277
    %v1755 = vpop.f32.mrb[0].mxu0
    %v1756 = vadd.f32 0.0, %v1755
    %v1757 = vpop.f32.mrb[0].mxu0
    %v1758 = vadd.f32 0.0, %v1757
    %1759 = vmatprep.mubr.f32.mxu0 0.0
    %1760 = vmatmul.mubr.f32.gmra.mrb[0].mxu0 %v1280
    %v1761 = vpop.f32.mrb[0].mxu0
    %v1762 = vadd.f32 0.0, %v1761
    %v1763 = vpop.f32.mrb[0].mxu0
    %v1764 = vadd.f32 0.0, %v1763
    %1765 = vmatprep.mubr.f32.mxu0 0.0
    %1766 = vmatmul.mubr.f32.gmra.mrb[0].mxu0 %v1283
    %v1767 = vpop.f32.mrb[0].mxu0
    %v1768 = vadd.f32 0.0, %v1767
    %v1769 = vpop.f32.mrb[0].mxu0
    %v1770 = vadd.f32 0.0, %v1769
    %1771 = vmatprep.mubr.f32.mxu0 0.0
    %1772 = vmatmul.mubr.f32.gmra.mrb[0].mxu0 %v1286
    %v1773 = vpop.f32.mrb[0].mxu0
    %v1774 = vadd.f32 0.0, %v1773
    %v1775 = vpop.f32.mrb[0].mxu0
    %v1776 = vadd.f32 0.0, %v1775
    %1777 = vmatprep.mubr.f32.mxu0 0.0
    %1778 = vmatmul.mubr.f32.gmra.mrb[0].mxu0 %v1289
    %v1779 = vpop.f32.mrb[0].mxu0
    %v1780 = vadd.f32 0.0, %v1779
    %v1781 = vpop.f32.mrb[0].mxu0
    %v1782 = vadd.f32 0.0, %v1781
    %1783 = vmatprep.mubr.f32.mxu0 0.0
    %1784 = vmatmul.mubr.f32.gmra.mrb[0].mxu0 %v1292
    %v1785 = vpop.f32.mrb[0].mxu0
    %v1786 = vadd.f32 0.0, %v1785
    %v1787 = vpop.f32.mrb[0].mxu0
    %v1788 = vadd.f32 0.0, %v1787
    %1789 = vmatprep.mubr.f32.mxu0 0.0
    %1790 = vmatmul.mubr.f32.gmra.mrb[0].mxu0 %v1295
    %v1791 = vpop.f32.mrb[0].mxu0
    %v1792 = vadd.f32 0.0, %v1791
    %v1793 = vpop.f32.mrb[0].mxu0
    %v1794 = vadd.f32 0.0, %v1793
    %1795 = vmatprep.mubr.f32.mxu0 0.0
    %1796 = vmatmul.mubr.f32.gmra.mrb[0].mxu0 %v1298
    %v1797 = vpop.f32.mrb[0].mxu0
    %v1798 = vadd.f32 0.0, %v1797
    %v1799 = vpop.f32.mrb[0].mxu0
    %v1800 = vadd.f32 0.0, %v1799
    %1801 = vmatprep.mubr.f32.mxu0 0.0
    %1802 = vmatmul.mubr.f32.gmra.mrb[0].mxu0 %v1301
    %v1803 = vpop.f32.mrb[0].mxu0
    %v1804 = vadd.f32 0.0, %v1803
    %v1805 = vpop.f32.mrb[0].mxu0
    %v1806 = vadd.f32 0.0, %v1805
    %1807 = vmatprep.mubr.f32.mxu0 0.0
    %1808 = vmatmul.mubr.f32.gmra.mrb[0].mxu0 %v1304
    %v1809 = vpop.f32.mrb[0].mxu0
    %v1810 = vadd.f32 0.0, %v1809
    %v1811 = vpop.f32.mrb[0].mxu0
    %v1812 = vadd.f32 0.0, %v1811
    %1813 = vmatprep.mubr.f32.mxu0 0.0
    %1814 = vmatmul.mubr.f32.gmra.mrb[0].mxu0 %v1307
    %v1815 = vpop.f32.mrb[0].mxu0
    %v1816 = vadd.f32 0.0, %v1815
    %v1817 = vpop.f32.mrb[0].mxu0
    %v1818 = vadd.f32 0.0, %v1817
    %1819 = vmatprep.mubr.f32.mxu0 0.0
    %1820 = vmatmul.mubr.f32.gmra.mrb[0].mxu0 %v1310
    %v1821 = vpop.f32.mrb[0].mxu0
    %v1822 = vadd.f32 0.0, %v1821
    %v1823 = vpop.f32.mrb[0].mxu0
    %v1824 = vadd.f32 0.0, %v1823
    %1825 = vdwg.mxu0
    %1826 = vmatprep.subr.mxu0 %v96
    %1827 = vmatpush1.msra.mxu0 %v95
    %1828 = vmatprep.subr.mxu0 %v104
    %1829 = vmatpush1.msra.mxu0 %v103
    %1830 = vmatprep.subr.mxu0 %v112
    %1831 = vmatpush1.msra.mxu0 %v111
    %1832 = vmatprep.subr.mxu0 %v120
    %1833 = vmatpush1.msra.mxu0 %v119
    %1834 = vmatprep.subr.mxu0 0.0
    %1835 = vmatpush1.msra.mxu0 0.0
    %1836 = vmatprep.subr.mxu0 0.0
    %1837 = vmatpush1.msra.mxu0 0.0
    %1838 = vmatprep.subr.mxu0 0.0
    %1839 = vmatpush1.msra.mxu0 0.0
    %1840 = vmatprep.subr.mxu0 0.0
    %1841 = vmatpush1.msra.mxu0 0.0
    %1842 = vmatprep.subr.mxu0 0.0
    %1843 = vmatpush1.msra.mxu0 0.0
    %1844 = vmatprep.subr.mxu0 0.0
    %1845 = vmatpush1.msra.mxu0 0.0
    %1846 = vmatprep.subr.mxu0 0.0
    %1847 = vmatpush1.msra.mxu0 0.0
    %1848 = vmatprep.subr.mxu0 0.0
    %1849 = vmatpush1.msra.mxu0 0.0
    %1850 = vmatprep.subr.mxu0 0.0
    %1851 = vmatpush1.msra.mxu0 0.0
    %1852 = vmatprep.subr.mxu0 0.0
    %1853 = vmatpush1.msra.mxu0 0.0
    %1854 = vmatprep.subr.mxu0 0.0
    %1855 = vmatpush1.msra.mxu0 0.0
    %1856 = vmatprep.subr.mxu0 0.0
    %1857 = vmatpush1.msra.mxu0 0.0
    %1858 = vmatprep.subr.mxu0 0.0
    %1859 = vmatpush1.msra.mxu0 0.0
    %1860 = vmatprep.subr.mxu0 0.0
    %1861 = vmatpush1.msra.mxu0 0.0
    %1862 = vmatprep.subr.mxu0 0.0
    %1863 = vmatpush1.msra.mxu0 0.0
    %1864 = vmatprep.subr.mxu0 0.0
    %1865 = vmatpush1.msra.mxu0 0.0
    %1866 = vmatprep.subr.mxu0 0.0
    %1867 = vmatpush1.msra.mxu0 0.0
    %1868 = vmatprep.subr.mxu0 0.0
    %1869 = vmatpush1.msra.mxu0 0.0
    %1870 = vmatprep.subr.mxu0 0.0
    %1871 = vmatpush1.msra.mxu0 0.0
    %1872 = vmatprep.subr.mxu0 0.0
    %1873 = vmatpush1.msra.mxu0 0.0
    %1874 = vmatprep.subr.mxu0 0.0
    %1875 = vmatpush1.msra.mxu0 0.0
    %1876 = vmatprep.subr.mxu0 0.0
    %1877 = vmatpush1.msra.mxu0 0.0
    %1878 = vmatprep.subr.mxu0 0.0
    %1879 = vmatpush1.msra.mxu0 0.0
    %1880 = vmatprep.subr.mxu0 0.0
    %1881 = vmatpush1.msra.mxu0 0.0
    %1882 = vmatprep.subr.mxu0 0.0
    %1883 = vmatpush1.msra.mxu0 0.0
    %1884 = vmatprep.subr.mxu0 0.0
    %1885 = vmatpush1.msra.mxu0 0.0
    %1886 = vmatprep.subr.mxu0 0.0
    %1887 = vmatpush1.msra.mxu0 0.0
    %1888 = vmatprep.subr.mxu0 0.0
    %1889 = vmatpush1.msra.mxu0 0.0
    %1890 = vmatprep.mubr.f32.mxu0 0.0
    %1891 = vmatmul.mubr.f32.gmra.mrb[0].mxu0 %v1217
    %v1892 = vpop.f32.mrb[0].mxu0
    %v1893 = vadd.f32 0.0, %v1892
    %v1894 = vpop.f32.mrb[0].mxu0
    %v1895 = vadd.f32 0.0, %v1894
    %1896 = vmatprep.mubr.f32.mxu0 0.0
    %1897 = vmatmul.mubr.f32.gmra.mrb[0].mxu0 %v1220
    %v1898 = vpop.f32.mrb[0].mxu0
    %v1899 = vadd.f32 0.0, %v1898
    %v1900 = vpop.f32.mrb[0].mxu0
    %v1901 = vadd.f32 0.0, %v1900
    %1902 = vmatprep.mubr.f32.mxu0 0.0
    %1903 = vmatmul.mubr.f32.gmra.mrb[0].mxu0 %v1223
    %v1904 = vpop.f32.mrb[0].mxu0
    %v1905 = vadd.f32 0.0, %v1904
    %v1906 = vpop.f32.mrb[0].mxu0
    %v1907 = vadd.f32 0.0, %v1906
    %1908 = vmatprep.mubr.f32.mxu0 0.0
    %1909 = vmatmul.mubr.f32.gmra.mrb[0].mxu0 %v1226
    %v1910 = vpop.f32.mrb[0].mxu0
    %v1911 = vadd.f32 0.0, %v1910
    %v1912 = vpop.f32.mrb[0].mxu0
    %v1913 = vadd.f32 0.0, %v1912
    %1914 = vmatprep.mubr.f32.mxu0 0.0
    %1915 = vmatmul.mubr.f32.gmra.mrb[0].mxu0 %v1229
    %v1916 = vpop.f32.mrb[0].mxu0
    %v1917 = vadd.f32 0.0, %v1916
    %v1918 = vpop.f32.mrb[0].mxu0
    %v1919 = vadd.f32 0.0, %v1918
    %1920 = vmatprep.mubr.f32.mxu0 0.0
    %1921 = vmatmul.mubr.f32.gmra.mrb[0].mxu0 %v1232
    %v1922 = vpop.f32.mrb[0].mxu0
    %v1923 = vadd.f32 0.0, %v1922
    %v1924 = vpop.f32.mrb[0].mxu0
    %v1925 = vadd.f32 0.0, %v1924
    %1926 = vmatprep.mubr.f32.mxu0 0.0
    %1927 = vmatmul.mubr.f32.gmra.mrb[0].mxu0 %v1235
    %v1928 = vpop.f32.mrb[0].mxu0
    %v1929 = vadd.f32 0.0, %v1928
    %v1930 = vpop.f32.mrb[0].mxu0
    %v1931 = vadd.f32 0.0, %v1930
    %1932 = vmatprep.mubr.f32.mxu0 0.0
    %1933 = vmatmul.mubr.f32.gmra.mrb[0].mxu0 %v1238
    %v1934 = vpop.f32.mrb[0].mxu0
    %v1935 = vadd.f32 0.0, %v1934
    %v1936 = vpop.f32.mrb[0].mxu0
    %v1937 = vadd.f32 0.0, %v1936
    %1938 = vmatprep.mubr.f32.mxu0 0.0
    %1939 = vmatmul.mubr.f32.gmra.mrb[0].mxu0 %v1241
    %v1940 = vpop.f32.mrb[0].mxu0
    %v1941 = vadd.f32 0.0, %v1940
    %v1942 = vpop.f32.mrb[0].mxu0
    %v1943 = vadd.f32 0.0, %v1942
    %1944 = vmatprep.mubr.f32.mxu0 0.0
    %1945 = vmatmul.mubr.f32.gmra.mrb[0].mxu0 %v1244
    %v1946 = vpop.f32.mrb[0].mxu0
    %v1947 = vadd.f32 0.0, %v1946
    %v1948 = vpop.f32.mrb[0].mxu0
    %v1949 = vadd.f32 0.0, %v1948
    %1950 = vmatprep.mubr.f32.mxu0 0.0
    %1951 = vmatmul.mubr.f32.gmra.mrb[0].mxu0 %v1247
    %v1952 = vpop.f32.mrb[0].mxu0
    %v1953 = vadd.f32 0.0, %v1952
    %v1954 = vpop.f32.mrb[0].mxu0
    %v1955 = vadd.f32 0.0, %v1954
    %1956 = vmatprep.mubr.f32.mxu0 0.0
    %1957 = vmatmul.mubr.f32.gmra.mrb[0].mxu0 %v1250
    %v1958 = vpop.f32.mrb[0].mxu0
    %v1959 = vadd.f32 0.0, %v1958
    %v1960 = vpop.f32.mrb[0].mxu0
    %v1961 = vadd.f32 0.0, %v1960
    %1962 = vmatprep.mubr.f32.mxu0 0.0
    %1963 = vmatmul.mubr.f32.gmra.mrb[0].mxu0 %v1253
    %v1964 = vpop.f32.mrb[0].mxu0
    %v1965 = vadd.f32 0.0, %v1964
    %v1966 = vpop.f32.mrb[0].mxu0
    %v1967 = vadd.f32 0.0, %v1966
    %1968 = vmatprep.mubr.f32.mxu0 0.0
    %1969 = vmatmul.mubr.f32.gmra.mrb[0].mxu0 %v1256
    %v1970 = vpop.f32.mrb[0].mxu0
    %v1971 = vadd.f32 0.0, %v1970
    %v1972 = vpop.f32.mrb[0].mxu0
    %v1973 = vadd.f32 0.0, %v1972
    %1974 = vmatprep.mubr.f32.mxu0 0.0
    %1975 = vmatmul.mubr.f32.gmra.mrb[0].mxu0 %v1259
    %v1976 = vpop.f32.mrb[0].mxu0
    %v1977 = vadd.f32 0.0, %v1976
    %v1978 = vpop.f32.mrb[0].mxu0
    %v1979 = vadd.f32 0.0, %v1978
    %1980 = vmatprep.mubr.f32.mxu0 0.0
    %1981 = vmatmul.mubr.f32.gmra.mrb[0].mxu0 %v1262
    %v1982 = vpop.f32.mrb[0].mxu0
    %v1983 = vadd.f32 0.0, %v1982
    %v1984 = vpop.f32.mrb[0].mxu0
    %v1985 = vadd.f32 0.0, %v1984
    %1986 = vmatprep.mubr.f32.mxu0 0.0
    %1987 = vmatmul.mubr.f32.gmra.mrb[0].mxu0 %v1265
    %v1988 = vpop.f32.mrb[0].mxu0
    %v1989 = vadd.f32 0.0, %v1988
    %v1990 = vpop.f32.mrb[0].mxu0
    %v1991 = vadd.f32 0.0, %v1990
    %1992 = vmatprep.mubr.f32.mxu0 0.0
    %1993 = vmatmul.mubr.f32.gmra.mrb[0].mxu0 %v1268
    %v1994 = vpop.f32.mrb[0].mxu0
    %v1995 = vadd.f32 0.0, %v1994
    %v1996 = vpop.f32.mrb[0].mxu0
    %v1997 = vadd.f32 0.0, %v1996
    %1998 = vmatprep.mubr.f32.mxu0 0.0
    %1999 = vmatmul.mubr.f32.gmra.mrb[0].mxu0 %v1271
    %v2000 = vpop.f32.mrb[0].mxu0
    %v2001 = vadd.f32 0.0, %v2000
    %v2002 = vpop.f32.mrb[0].mxu0
    %v2003 = vadd.f32 0.0, %v2002
    %2004 = vmatprep.mubr.f32.mxu0 0.0
    %2005 = vmatmul.mubr.f32.gmra.mrb[0].mxu0 %v1274
    %v2006 = vpop.f32.mrb[0].mxu0
    %v2007 = vadd.f32 0.0, %v2006
    %v2008 = vpop.f32.mrb[0].mxu0
    %v2009 = vadd.f32 0.0, %v2008
    %2010 = vmatprep.mubr.f32.mxu0 0.0
    %2011 = vmatmul.mubr.f32.gmra.mrb[0].mxu0 %v1277
    %v2012 = vpop.f32.mrb[0].mxu0
    %v2013 = vadd.f32 0.0, %v2012
    %v2014 = vpop.f32.mrb[0].mxu0
    %v2015 = vadd.f32 0.0, %v2014
    %2016 = vmatprep.mubr.f32.mxu0 0.0
    %2017 = vmatmul.mubr.f32.gmra.mrb[0].mxu0 %v1280
    %v2018 = vpop.f32.mrb[0].mxu0
    %v2019 = vadd.f32 0.0, %v2018
    %v2020 = vpop.f32.mrb[0].mxu0
    %v2021 = vadd.f32 0.0, %v2020
    %2022 = vmatprep.mubr.f32.mxu0 0.0
    %2023 = vmatmul.mubr.f32.gmra.mrb[0].mxu0 %v1283
    %v2024 = vpop.f32.mrb[0].mxu0
    %v2025 = vadd.f32 0.0, %v2024
    %v2026 = vpop.f32.mrb[0].mxu0
    %v2027 = vadd.f32 0.0, %v2026
    %2028 = vmatprep.mubr.f32.mxu0 0.0
    %2029 = vmatmul.mubr.f32.gmra.mrb[0].mxu0 %v1286
    %v2030 = vpop.f32.mrb[0].mxu0
    %v2031 = vadd.f32 0.0, %v2030
    %v2032 = vpop.f32.mrb[0].mxu0
    %v2033 = vadd.f32 0.0, %v2032
    %2034 = vmatprep.mubr.f32.mxu0 0.0
    %2035 = vmatmul.mubr.f32.gmra.mrb[0].mxu0 %v1289
    %v2036 = vpop.f32.mrb[0].mxu0
    %v2037 = vadd.f32 0.0, %v2036
    %v2038 = vpop.f32.mrb[0].mxu0
    %v2039 = vadd.f32 0.0, %v2038
    %2040 = vmatprep.mubr.f32.mxu0 0.0
    %2041 = vmatmul.mubr.f32.gmra.mrb[0].mxu0 %v1292
    %v2042 = vpop.f32.mrb[0].mxu0
    %v2043 = vadd.f32 0.0, %v2042
    %v2044 = vpop.f32.mrb[0].mxu0
    %v2045 = vadd.f32 0.0, %v2044
    %2046 = vmatprep.mubr.f32.mxu0 0.0
    %2047 = vmatmul.mubr.f32.gmra.mrb[0].mxu0 %v1295
    %v2048 = vpop.f32.mrb[0].mxu0
    %v2049 = vadd.f32 0.0, %v2048
    %v2050 = vpop.f32.mrb[0].mxu0
    %v2051 = vadd.f32 0.0, %v2050
    %2052 = vmatprep.mubr.f32.mxu0 0.0
    %2053 = vmatmul.mubr.f32.gmra.mrb[0].mxu0 %v1298
    %v2054 = vpop.f32.mrb[0].mxu0
    %v2055 = vadd.f32 0.0, %v2054
    %v2056 = vpop.f32.mrb[0].mxu0
    %v2057 = vadd.f32 0.0, %v2056
    %2058 = vmatprep.mubr.f32.mxu0 0.0
    %2059 = vmatmul.mubr.f32.gmra.mrb[0].mxu0 %v1301
    %v2060 = vpop.f32.mrb[0].mxu0
    %v2061 = vadd.f32 0.0, %v2060
    %v2062 = vpop.f32.mrb[0].mxu0
    %v2063 = vadd.f32 0.0, %v2062
    %2064 = vmatprep.mubr.f32.mxu0 0.0
    %2065 = vmatmul.mubr.f32.gmra.mrb[0].mxu0 %v1304
    %v2066 = vpop.f32.mrb[0].mxu0
    %v2067 = vadd.f32 0.0, %v2066
    %v2068 = vpop.f32.mrb[0].mxu0
    %v2069 = vadd.f32 0.0, %v2068
    %2070 = vmatprep.mubr.f32.mxu0 0.0
    %2071 = vmatmul.mubr.f32.gmra.mrb[0].mxu0 %v1307
    %v2072 = vpop.f32.mrb[0].mxu0
    %v2073 = vadd.f32 0.0, %v2072
    %v2074 = vpop.f32.mrb[0].mxu0
    %v2075 = vadd.f32 0.0, %v2074
    %2076 = vmatprep.mubr.f32.mxu0 0.0
    %2077 = vmatmul.mubr.f32.gmra.mrb[0].mxu0 %v1310
    %v2078 = vpop.f32.mrb[0].mxu0
    %v2079 = vadd.f32 0.0, %v2078
    %v2080 = vpop.f32.mrb[0].mxu0
    %v2081 = vadd.f32 0.0, %v2080
    %2082 = vdwg.mxu0
    %2083 = vmatprep.subr.mxu0 %v98
    %2084 = vmatpush1.msra.mxu0 %v97
    %2085 = vmatprep.subr.mxu0 %v106
    %2086 = vmatpush1.msra.mxu0 %v105
    %2087 = vmatprep.subr.mxu0 %v114
    %2088 = vmatpush1.msra.mxu0 %v113
    %2089 = vmatprep.subr.mxu0 %v122
    %2090 = vmatpush1.msra.mxu0 %v121
    %2091 = vmatprep.subr.mxu0 0.0
    %2092 = vmatpush1.msra.mxu0 0.0
    %2093 = vmatprep.subr.mxu0 0.0
    %2094 = vmatpush1.msra.mxu0 0.0
    %2095 = vmatprep.subr.mxu0 0.0
    %2096 = vmatpush1.msra.mxu0 0.0
    %2097 = vmatprep.subr.mxu0 0.0
    %2098 = vmatpush1.msra.mxu0 0.0
    %2099 = vmatprep.subr.mxu0 0.0
    %2100 = vmatpush1.msra.mxu0 0.0
    %2101 = vmatprep.subr.mxu0 0.0
    %2102 = vmatpush1.msra.mxu0 0.0
    %2103 = vmatprep.subr.mxu0 0.0
    %2104 = vmatpush1.msra.mxu0 0.0
    %2105 = vmatprep.subr.mxu0 0.0
    %2106 = vmatpush1.msra.mxu0 0.0
    %2107 = vmatprep.subr.mxu0 0.0
    %2108 = vmatpush1.msra.mxu0 0.0
    %2109 = vmatprep.subr.mxu0 0.0
    %2110 = vmatpush1.msra.mxu0 0.0
    %2111 = vmatprep.subr.mxu0 0.0
    %2112 = vmatpush1.msra.mxu0 0.0
    %2113 = vmatprep.subr.mxu0 0.0
    %2114 = vmatpush1.msra.mxu0 0.0
    %2115 = vmatprep.subr.mxu0 0.0
    %2116 = vmatpush1.msra.mxu0 0.0
    %2117 = vmatprep.subr.mxu0 0.0
    %2118 = vmatpush1.msra.mxu0 0.0
    %2119 = vmatprep.subr.mxu0 0.0
    %2120 = vmatpush1.msra.mxu0 0.0
    %2121 = vmatprep.subr.mxu0 0.0
    %2122 = vmatpush1.msra.mxu0 0.0
    %2123 = vmatprep.subr.mxu0 0.0
    %2124 = vmatpush1.msra.mxu0 0.0
    %2125 = vmatprep.subr.mxu0 0.0
    %2126 = vmatpush1.msra.mxu0 0.0
    %2127 = vmatprep.subr.mxu0 0.0
    %2128 = vmatpush1.msra.mxu0 0.0
    %2129 = vmatprep.subr.mxu0 0.0
    %2130 = vmatpush1.msra.mxu0 0.0
    %2131 = vmatprep.subr.mxu0 0.0
    %2132 = vmatpush1.msra.mxu0 0.0
    %2133 = vmatprep.subr.mxu0 0.0
    %2134 = vmatpush1.msra.mxu0 0.0
    %2135 = vmatprep.subr.mxu0 0.0
    %2136 = vmatpush1.msra.mxu0 0.0
    %2137 = vmatprep.subr.mxu0 0.0
    %2138 = vmatpush1.msra.mxu0 0.0
    %2139 = vmatprep.subr.mxu0 0.0
    %2140 = vmatpush1.msra.mxu0 0.0
    %2141 = vmatprep.subr.mxu0 0.0
    %2142 = vmatpush1.msra.mxu0 0.0
    %2143 = vmatprep.subr.mxu0 0.0
    %2144 = vmatpush1.msra.mxu0 0.0
    %2145 = vmatprep.subr.mxu0 0.0
    %2146 = vmatpush1.msra.mxu0 0.0
    %2147 = vmatprep.mubr.f32.mxu0 0.0
    %2148 = vmatmul.mubr.f32.gmra.mrb[0].mxu0 %v1217
    %v2149 = vpop.f32.mrb[0].mxu0
    %v2150 = vadd.f32 0.0, %v2149
    %v2151 = vpop.f32.mrb[0].mxu0
    %v2152 = vadd.f32 0.0, %v2151
    %2153 = vmatprep.mubr.f32.mxu0 0.0
    %2154 = vmatmul.mubr.f32.gmra.mrb[0].mxu0 %v1220
    %v2155 = vpop.f32.mrb[0].mxu0
    %v2156 = vadd.f32 0.0, %v2155
    %v2157 = vpop.f32.mrb[0].mxu0
    %v2158 = vadd.f32 0.0, %v2157
    %2159 = vmatprep.mubr.f32.mxu0 0.0
    %2160 = vmatmul.mubr.f32.gmra.mrb[0].mxu0 %v1223
    %v2161 = vpop.f32.mrb[0].mxu0
    %v2162 = vadd.f32 0.0, %v2161
    %v2163 = vpop.f32.mrb[0].mxu0
    %v2164 = vadd.f32 0.0, %v2163
    %2165 = vmatprep.mubr.f32.mxu0 0.0
    %2166 = vmatmul.mubr.f32.gmra.mrb[0].mxu0 %v1226
    %v2167 = vpop.f32.mrb[0].mxu0
    %v2168 = vadd.f32 0.0, %v2167
    %v2169 = vpop.f32.mrb[0].mxu0
    %v2170 = vadd.f32 0.0, %v2169
    %2171 = vmatprep.mubr.f32.mxu0 0.0
    %2172 = vmatmul.mubr.f32.gmra.mrb[0].mxu0 %v1229
    %v2173 = vpop.f32.mrb[0].mxu0
    %v2174 = vadd.f32 0.0, %v2173
    %v2175 = vpop.f32.mrb[0].mxu0
    %v2176 = vadd.f32 0.0, %v2175
    %2177 = vmatprep.mubr.f32.mxu0 0.0
    %2178 = vmatmul.mubr.f32.gmra.mrb[0].mxu0 %v1232
    %v2179 = vpop.f32.mrb[0].mxu0
    %v2180 = vadd.f32 0.0, %v2179
    %v2181 = vpop.f32.mrb[0].mxu0
    %v2182 = vadd.f32 0.0, %v2181
    %2183 = vmatprep.mubr.f32.mxu0 0.0
    %2184 = vmatmul.mubr.f32.gmra.mrb[0].mxu0 %v1235
    %v2185 = vpop.f32.mrb[0].mxu0
    %v2186 = vadd.f32 0.0, %v2185
    %v2187 = vpop.f32.mrb[0].mxu0
    %v2188 = vadd.f32 0.0, %v2187
    %2189 = vmatprep.mubr.f32.mxu0 0.0
    %2190 = vmatmul.mubr.f32.gmra.mrb[0].mxu0 %v1238
    %v2191 = vpop.f32.mrb[0].mxu0
    %v2192 = vadd.f32 0.0, %v2191
    %v2193 = vpop.f32.mrb[0].mxu0
    %v2194 = vadd.f32 0.0, %v2193
    %2195 = vmatprep.mubr.f32.mxu0 0.0
    %2196 = vmatmul.mubr.f32.gmra.mrb[0].mxu0 %v1241
    %v2197 = vpop.f32.mrb[0].mxu0
    %v2198 = vadd.f32 0.0, %v2197
    %v2199 = vpop.f32.mrb[0].mxu0
    %v2200 = vadd.f32 0.0, %v2199
    %2201 = vmatprep.mubr.f32.mxu0 0.0
    %2202 = vmatmul.mubr.f32.gmra.mrb[0].mxu0 %v1244
    %v2203 = vpop.f32.mrb[0].mxu0
    %v2204 = vadd.f32 0.0, %v2203
    %v2205 = vpop.f32.mrb[0].mxu0
    %v2206 = vadd.f32 0.0, %v2205
    %2207 = vmatprep.mubr.f32.mxu0 0.0
    %2208 = vmatmul.mubr.f32.gmra.mrb[0].mxu0 %v1247
    %v2209 = vpop.f32.mrb[0].mxu0
    %v2210 = vadd.f32 0.0, %v2209
    %v2211 = vpop.f32.mrb[0].mxu0
    %v2212 = vadd.f32 0.0, %v2211
    %2213 = vmatprep.mubr.f32.mxu0 0.0
    %2214 = vmatmul.mubr.f32.gmra.mrb[0].mxu0 %v1250
    %v2215 = vpop.f32.mrb[0].mxu0
    %v2216 = vadd.f32 0.0, %v2215
    %v2217 = vpop.f32.mrb[0].mxu0
    %v2218 = vadd.f32 0.0, %v2217
    %2219 = vmatprep.mubr.f32.mxu0 0.0
    %2220 = vmatmul.mubr.f32.gmra.mrb[0].mxu0 %v1253
    %v2221 = vpop.f32.mrb[0].mxu0
    %v2222 = vadd.f32 0.0, %v2221
    %v2223 = vpop.f32.mrb[0].mxu0
    %v2224 = vadd.f32 0.0, %v2223
    %2225 = vmatprep.mubr.f32.mxu0 0.0
    %2226 = vmatmul.mubr.f32.gmra.mrb[0].mxu0 %v1256
    %v2227 = vpop.f32.mrb[0].mxu0
    %v2228 = vadd.f32 0.0, %v2227
    %v2229 = vpop.f32.mrb[0].mxu0
    %v2230 = vadd.f32 0.0, %v2229
    %2231 = vmatprep.mubr.f32.mxu0 0.0
    %2232 = vmatmul.mubr.f32.gmra.mrb[0].mxu0 %v1259
    %v2233 = vpop.f32.mrb[0].mxu0
    %v2234 = vadd.f32 0.0, %v2233
    %v2235 = vpop.f32.mrb[0].mxu0
    %v2236 = vadd.f32 0.0, %v2235
    %2237 = vmatprep.mubr.f32.mxu0 0.0
    %2238 = vmatmul.mubr.f32.gmra.mrb[0].mxu0 %v1262
    %v2239 = vpop.f32.mrb[0].mxu0
    %v2240 = vadd.f32 0.0, %v2239
    %v2241 = vpop.f32.mrb[0].mxu0
    %v2242 = vadd.f32 0.0, %v2241
    %2243 = vmatprep.mubr.f32.mxu0 0.0
    %2244 = vmatmul.mubr.f32.gmra.mrb[0].mxu0 %v1265
    %v2245 = vpop.f32.mrb[0].mxu0
    %v2246 = vadd.f32 0.0, %v2245
    %v2247 = vpop.f32.mrb[0].mxu0
    %v2248 = vadd.f32 0.0, %v2247
    %2249 = vmatprep.mubr.f32.mxu0 0.0
    %2250 = vmatmul.mubr.f32.gmra.mrb[0].mxu0 %v1268
    %v2251 = vpop.f32.mrb[0].mxu0
    %v2252 = vadd.f32 0.0, %v2251
    %v2253 = vpop.f32.mrb[0].mxu0
    %v2254 = vadd.f32 0.0, %v2253
    %2255 = vmatprep.mubr.f32.mxu0 0.0
    %2256 = vmatmul.mubr.f32.gmra.mrb[0].mxu0 %v1271
    %v2257 = vpop.f32.mrb[0].mxu0
    %v2258 = vadd.f32 0.0, %v2257
    %v2259 = vpop.f32.mrb[0].mxu0
    %v2260 = vadd.f32 0.0, %v2259
    %2261 = vmatprep.mubr.f32.mxu0 0.0
    %2262 = vmatmul.mubr.f32.gmra.mrb[0].mxu0 %v1274
    %v2263 = vpop.f32.mrb[0].mxu0
    %v2264 = vadd.f32 0.0, %v2263
    %v2265 = vpop.f32.mrb[0].mxu0
    %v2266 = vadd.f32 0.0, %v2265
    %2267 = vmatprep.mubr.f32.mxu0 0.0
    %2268 = vmatmul.mubr.f32.gmra.mrb[0].mxu0 %v1277
    %v2269 = vpop.f32.mrb[0].mxu0
    %v2270 = vadd.f32 0.0, %v2269
    %v2271 = vpop.f32.mrb[0].mxu0
    %v2272 = vadd.f32 0.0, %v2271
    %2273 = vmatprep.mubr.f32.mxu0 0.0
    %2274 = vmatmul.mubr.f32.gmra.mrb[0].mxu0 %v1280
    %v2275 = vpop.f32.mrb[0].mxu0
    %v2276 = vadd.f32 0.0, %v2275
    %v2277 = vpop.f32.mrb[0].mxu0
    %v2278 = vadd.f32 0.0, %v2277
    %2279 = vmatprep.mubr.f32.mxu0 0.0
    %2280 = vmatmul.mubr.f32.gmra.mrb[0].mxu0 %v1283
    %v2281 = vpop.f32.mrb[0].mxu0
    %v2282 = vadd.f32 0.0, %v2281
    %v2283 = vpop.f32.mrb[0].mxu0
    %v2284 = vadd.f32 0.0, %v2283
    %2285 = vmatprep.mubr.f32.mxu0 0.0
    %2286 = vmatmul.mubr.f32.gmra.mrb[0].mxu0 %v1286
    %v2287 = vpop.f32.mrb[0].mxu0
    %v2288 = vadd.f32 0.0, %v2287
    %v2289 = vpop.f32.mrb[0].mxu0
    %v2290 = vadd.f32 0.0, %v2289
    %2291 = vmatprep.mubr.f32.mxu0 0.0
    %2292 = vmatmul.mubr.f32.gmra.mrb[0].mxu0 %v1289
    %v2293 = vpop.f32.mrb[0].mxu0
    %v2294 = vadd.f32 0.0, %v2293
    %v2295 = vpop.f32.mrb[0].mxu0
    %v2296 = vadd.f32 0.0, %v2295
    %2297 = vmatprep.mubr.f32.mxu0 0.0
    %2298 = vmatmul.mubr.f32.gmra.mrb[0].mxu0 %v1292
    %v2299 = vpop.f32.mrb[0].mxu0
    %v2300 = vadd.f32 0.0, %v2299
    %v2301 = vpop.f32.mrb[0].mxu0
    %v2302 = vadd.f32 0.0, %v2301
    %2303 = vmatprep.mubr.f32.mxu0 0.0
    %2304 = vmatmul.mubr.f32.gmra.mrb[0].mxu0 %v1295
    %v2305 = vpop.f32.mrb[0].mxu0
    %v2306 = vadd.f32 0.0, %v2305
    %v2307 = vpop.f32.mrb[0].mxu0
    %v2308 = vadd.f32 0.0, %v2307
    %2309 = vmatprep.mubr.f32.mxu0 0.0
    %2310 = vmatmul.mubr.f32.gmra.mrb[0].mxu0 %v1298
    %v2311 = vpop.f32.mrb[0].mxu0
    %v2312 = vadd.f32 0.0, %v2311
    %v2313 = vpop.f32.mrb[0].mxu0
    %v2314 = vadd.f32 0.0, %v2313
    %2315 = vmatprep.mubr.f32.mxu0 0.0
    %2316 = vmatmul.mubr.f32.gmra.mrb[0].mxu0 %v1301
    %v2317 = vpop.f32.mrb[0].mxu0
    %v2318 = vadd.f32 0.0, %v2317
    %v2319 = vpop.f32.mrb[0].mxu0
    %v2320 = vadd.f32 0.0, %v2319
    %2321 = vmatprep.mubr.f32.mxu0 0.0
    %2322 = vmatmul.mubr.f32.gmra.mrb[0].mxu0 %v1304
    %v2323 = vpop.f32.mrb[0].mxu0
    %v2324 = vadd.f32 0.0, %v2323
    %v2325 = vpop.f32.mrb[0].mxu0
    %v2326 = vadd.f32 0.0, %v2325
    %2327 = vmatprep.mubr.f32.mxu0 0.0
    %2328 = vmatmul.mubr.f32.gmra.mrb[0].mxu0 %v1307
    %v2329 = vpop.f32.mrb[0].mxu0
    %v2330 = vadd.f32 0.0, %v2329
    %v2331 = vpop.f32.mrb[0].mxu0
    %v2332 = vadd.f32 0.0, %v2331
    %2333 = vmatprep.mubr.f32.mxu0 0.0
    %2334 = vmatmul.mubr.f32.gmra.mrb[0].mxu0 %v1310
    %v2335 = vpop.f32.mrb[0].mxu0
    %v2336 = vadd.f32 0.0, %v2335
    %v2337 = vpop.f32.mrb[0].mxu0
    %v2338 = vadd.f32 0.0, %v2337
    %2339 = vdwg.mxu0
    %v2340 = vmul.f32 %v479, %v1379
    %v2341 = vmul.f32 %v481, %v1381
    %v2342 = vmul.f32 %v672, %v1636
    %v2343 = vmul.f32 %v674, %v1638
    %v2344 = vmul.f32 %v865, %v1893
    %v2345 = vmul.f32 %v867, %v1895
    %v2346 = vmul.f32 %v1058, %v2150
    %v2347 = vmul.f32 %v1060, %v2152
    %v2348 = vmul.f32 %v483, %v1385
    %v2349 = vmul.f32 %v485, %v1387
    %v2350 = vmul.f32 %v676, %v1642
    %v2351 = vmul.f32 %v678, %v1644
    %v2352 = vmul.f32 %v869, %v1899
    %v2353 = vmul.f32 %v871, %v1901
    %v2354 = vmul.f32 %v1062, %v2156
    %v2355 = vmul.f32 %v1064, %v2158
    %v2356 = vmul.f32 %v489, %v1391
    %v2357 = vmul.f32 %v491, %v1393
    %v2358 = vmul.f32 %v682, %v1648
    %v2359 = vmul.f32 %v684, %v1650
    %v2360 = vmul.f32 %v875, %v1905
    %v2361 = vmul.f32 %v877, %v1907
    %v2362 = vmul.f32 %v1068, %v2162
    %v2363 = vmul.f32 %v1070, %v2164
    %v2364 = vmul.f32 %v493, %v1397
    %v2365 = vmul.f32 %v495, %v1399
    %v2366 = vmul.f32 %v686, %v1654
    %v2367 = vmul.f32 %v688, %v1656
    %v2368 = vmul.f32 %v879, %v1911
    %v2369 = vmul.f32 %v881, %v1913
    %v2370 = vmul.f32 %v1072, %v2168
    %v2371 = vmul.f32 %v1074, %v2170
    %v2372 = vmul.f32 %v499, %v1403
    %v2373 = vmul.f32 %v501, %v1405
    %v2374 = vmul.f32 %v692, %v1660
    %v2375 = vmul.f32 %v694, %v1662
    %v2376 = vmul.f32 %v885, %v1917
    %v2377 = vmul.f32 %v887, %v1919
    %v2378 = vmul.f32 %v1078, %v2174
    %v2379 = vmul.f32 %v1080, %v2176
    %v2380 = vmul.f32 %v503, %v1409
    %v2381 = vmul.f32 %v505, %v1411
    %v2382 = vmul.f32 %v696, %v1666
    %v2383 = vmul.f32 %v698, %v1668
    %v2384 = vmul.f32 %v889, %v1923
    %v2385 = vmul.f32 %v891, %v1925
    %v2386 = vmul.f32 %v1082, %v2180
    %v2387 = vmul.f32 %v1084, %v2182
    %v2388 = vmul.f32 %v509, %v1415
    %v2389 = vmul.f32 %v511, %v1417
    %v2390 = vmul.f32 %v702, %v1672
    %v2391 = vmul.f32 %v704, %v1674
    %v2392 = vmul.f32 %v895, %v1929
    %v2393 = vmul.f32 %v897, %v1931
    %v2394 = vmul.f32 %v1088, %v2186
    %v2395 = vmul.f32 %v1090, %v2188
    %v2396 = vmul.f32 %v513, %v1421
    %v2397 = vmul.f32 %v515, %v1423
    %v2398 = vmul.f32 %v706, %v1678
    %v2399 = vmul.f32 %v708, %v1680
    %v2400 = vmul.f32 %v899, %v1935
    %v2401 = vmul.f32 %v901, %v1937
    %v2402 = vmul.f32 %v1092, %v2192
    %v2403 = vmul.f32 %v1094, %v2194
    %v2404 = vmul.f32 %v519, %v1427
    %v2405 = vmul.f32 %v521, %v1429
    %v2406 = vmul.f32 %v712, %v1684
    %v2407 = vmul.f32 %v714, %v1686
    %v2408 = vmul.f32 %v905, %v1941
    %v2409 = vmul.f32 %v907, %v1943
    %v2410 = vmul.f32 %v1098, %v2198
    %v2411 = vmul.f32 %v1100, %v2200
    %v2412 = vmul.f32 %v523, %v1433
    %v2413 = vmul.f32 %v525, %v1435
    %v2414 = vmul.f32 %v716, %v1690
    %v2415 = vmul.f32 %v718, %v1692
    %v2416 = vmul.f32 %v909, %v1947
    %v2417 = vmul.f32 %v911, %v1949
    %v2418 = vmul.f32 %v1102, %v2204
    %v2419 = vmul.f32 %v1104, %v2206
    %v2420 = vmul.f32 %v529, %v1439
    %v2421 = vmul.f32 %v531, %v1441
    %v2422 = vmul.f32 %v722, %v1696
    %v2423 = vmul.f32 %v724, %v1698
    %v2424 = vmul.f32 %v915, %v1953
    %v2425 = vmul.f32 %v917, %v1955
    %v2426 = vmul.f32 %v1108, %v2210
    %v2427 = vmul.f32 %v1110, %v2212
    %v2428 = vmul.f32 %v533, %v1445
    %v2429 = vmul.f32 %v535, %v1447
    %v2430 = vmul.f32 %v726, %v1702
    %v2431 = vmul.f32 %v728, %v1704
    %v2432 = vmul.f32 %v919, %v1959
    %v2433 = vmul.f32 %v921, %v1961
    %v2434 = vmul.f32 %v1112, %v2216
    %v2435 = vmul.f32 %v1114, %v2218
    %v2436 = vmul.f32 %v539, %v1451
    %v2437 = vmul.f32 %v541, %v1453
    %v2438 = vmul.f32 %v732, %v1708
    %v2439 = vmul.f32 %v734, %v1710
    %v2440 = vmul.f32 %v925, %v1965
    %v2441 = vmul.f32 %v927, %v1967
    %v2442 = vmul.f32 %v1118, %v2222
    %v2443 = vmul.f32 %v1120, %v2224
    %v2444 = vmul.f32 %v543, %v1457
    %v2445 = vmul.f32 %v545, %v1459
    %v2446 = vmul.f32 %v736, %v1714
    %v2447 = vmul.f32 %v738, %v1716
    %v2448 = vmul.f32 %v929, %v1971
    %v2449 = vmul.f32 %v931, %v1973
    %v2450 = vmul.f32 %v1122, %v2228
    %v2451 = vmul.f32 %v1124, %v2230
    %v2452 = vmul.f32 %v549, %v1463
    %v2453 = vmul.f32 %v551, %v1465
    %v2454 = vmul.f32 %v742, %v1720
    %v2455 = vmul.f32 %v744, %v1722
    %v2456 = vmul.f32 %v935, %v1977
    %v2457 = vmul.f32 %v937, %v1979
    %v2458 = vmul.f32 %v1128, %v2234
    %v2459 = vmul.f32 %v1130, %v2236
    %v2460 = vmul.f32 %v553, %v1469
    %v2461 = vmul.f32 %v555, %v1471
    %v2462 = vmul.f32 %v746, %v1726
    %v2463 = vmul.f32 %v748, %v1728
    %v2464 = vmul.f32 %v939, %v1983
    %v2465 = vmul.f32 %v941, %v1985
    %v2466 = vmul.f32 %v1132, %v2240
    %v2467 = vmul.f32 %v1134, %v2242
    %v2468 = vmul.f32 %v559, %v1475
    %v2469 = vmul.f32 %v561, %v1477
    %v2470 = vmul.f32 %v752, %v1732
    %v2471 = vmul.f32 %v754, %v1734
    %v2472 = vmul.f32 %v945, %v1989
    %v2473 = vmul.f32 %v947, %v1991
    %v2474 = vmul.f32 %v1138, %v2246
    %v2475 = vmul.f32 %v1140, %v2248
    %v2476 = vmul.f32 %v563, %v1481
    %v2477 = vmul.f32 %v565, %v1483
    %v2478 = vmul.f32 %v756, %v1738
    %v2479 = vmul.f32 %v758, %v1740
    %v2480 = vmul.f32 %v949, %v1995
    %v2481 = vmul.f32 %v951, %v1997
    %v2482 = vmul.f32 %v1142, %v2252
    %v2483 = vmul.f32 %v1144, %v2254
    %v2484 = vmul.f32 %v569, %v1487
    %v2485 = vmul.f32 %v571, %v1489
    %v2486 = vmul.f32 %v762, %v1744
    %v2487 = vmul.f32 %v764, %v1746
    %v2488 = vmul.f32 %v955, %v2001
    %v2489 = vmul.f32 %v957, %v2003
    %v2490 = vmul.f32 %v1148, %v2258
    %v2491 = vmul.f32 %v1150, %v2260
    %v2492 = vmul.f32 %v573, %v1493
    %v2493 = vmul.f32 %v575, %v1495
    %v2494 = vmul.f32 %v766, %v1750
    %v2495 = vmul.f32 %v768, %v1752
    %v2496 = vmul.f32 %v959, %v2007
    %v2497 = vmul.f32 %v961, %v2009
    %v2498 = vmul.f32 %v1152, %v2264
    %v2499 = vmul.f32 %v1154, %v2266
    %v2500 = vmul.f32 %v579, %v1499
    %v2501 = vmul.f32 %v581, %v1501
    %v2502 = vmul.f32 %v772, %v1756
    %v2503 = vmul.f32 %v774, %v1758
    %v2504 = vmul.f32 %v965, %v2013
    %v2505 = vmul.f32 %v967, %v2015
    %v2506 = vmul.f32 %v1158, %v2270
    %v2507 = vmul.f32 %v1160, %v2272
    %v2508 = vmul.f32 %v583, %v1505
    %v2509 = vmul.f32 %v585, %v1507
    %v2510 = vmul.f32 %v776, %v1762
    %v2511 = vmul.f32 %v778, %v1764
    %v2512 = vmul.f32 %v969, %v2019
    %v2513 = vmul.f32 %v971, %v2021
    %v2514 = vmul.f32 %v1162, %v2276
    %v2515 = vmul.f32 %v1164, %v2278
    %v2516 = vmul.f32 %v589, %v1511
    %v2517 = vmul.f32 %v591, %v1513
    %v2518 = vmul.f32 %v782, %v1768
    %v2519 = vmul.f32 %v784, %v1770
    %v2520 = vmul.f32 %v975, %v2025
    %v2521 = vmul.f32 %v977, %v2027
    %v2522 = vmul.f32 %v1168, %v2282
    %v2523 = vmul.f32 %v1170, %v2284
    %v2524 = vmul.f32 %v593, %v1517
    %v2525 = vmul.f32 %v595, %v1519
    %v2526 = vmul.f32 %v786, %v1774
    %v2527 = vmul.f32 %v788, %v1776
    %v2528 = vmul.f32 %v979, %v2031
    %v2529 = vmul.f32 %v981, %v2033
    %v2530 = vmul.f32 %v1172, %v2288
    %v2531 = vmul.f32 %v1174, %v2290
    %v2532 = vmul.f32 %v599, %v1523
    %v2533 = vmul.f32 %v601, %v1525
    %v2534 = vmul.f32 %v792, %v1780
    %v2535 = vmul.f32 %v794, %v1782
    %v2536 = vmul.f32 %v985, %v2037
    %v2537 = vmul.f32 %v987, %v2039
    %v2538 = vmul.f32 %v1178, %v2294
    %v2539 = vmul.f32 %v1180, %v2296
    %v2540 = vmul.f32 %v603, %v1529
    %v2541 = vmul.f32 %v605, %v1531
    %v2542 = vmul.f32 %v796, %v1786
    %v2543 = vmul.f32 %v798, %v1788
    %v2544 = vmul.f32 %v989, %v2043
    %v2545 = vmul.f32 %v991, %v2045
    %v2546 = vmul.f32 %v1182, %v2300
    %v2547 = vmul.f32 %v1184, %v2302
    %v2548 = vmul.f32 %v609, %v1535
    %v2549 = vmul.f32 %v611, %v1537
    %v2550 = vmul.f32 %v802, %v1792
    %v2551 = vmul.f32 %v804, %v1794
    %v2552 = vmul.f32 %v995, %v2049
    %v2553 = vmul.f32 %v997, %v2051
    %v2554 = vmul.f32 %v1188, %v2306
    %v2555 = vmul.f32 %v1190, %v2308
    %v2556 = vmul.f32 %v613, %v1541
    %v2557 = vmul.f32 %v615, %v1543
    %v2558 = vmul.f32 %v806, %v1798
    %v2559 = vmul.f32 %v808, %v1800
    %v2560 = vmul.f32 %v999, %v2055
    %v2561 = vmul.f32 %v1001, %v2057
    %v2562 = vmul.f32 %v1192, %v2312
    %v2563 = vmul.f32 %v1194, %v2314
    %v2564 = vmul.f32 %v619, %v1547
    %v2565 = vmul.f32 %v621, %v1549
    %v2566 = vmul.f32 %v812, %v1804
    %v2567 = vmul.f32 %v814, %v1806
    %v2568 = vmul.f32 %v1005, %v2061
    %v2569 = vmul.f32 %v1007, %v2063
    %v2570 = vmul.f32 %v1198, %v2318
    %v2571 = vmul.f32 %v1200, %v2320
    %v2572 = vmul.f32 %v623, %v1553
    %v2573 = vmul.f32 %v625, %v1555
    %v2574 = vmul.f32 %v816, %v1810
    %v2575 = vmul.f32 %v818, %v1812
    %v2576 = vmul.f32 %v1009, %v2067
    %v2577 = vmul.f32 %v1011, %v2069
    %v2578 = vmul.f32 %v1202, %v2324
    %v2579 = vmul.f32 %v1204, %v2326
    %v2580 = vmul.f32 %v629, %v1559
    %v2581 = vmul.f32 %v631, %v1561
    %v2582 = vmul.f32 %v822, %v1816
    %v2583 = vmul.f32 %v824, %v1818
    %v2584 = vmul.f32 %v1015, %v2073
    %v2585 = vmul.f32 %v1017, %v2075
    %v2586 = vmul.f32 %v1208, %v2330
    %v2587 = vmul.f32 %v1210, %v2332
    %v2588 = vmul.f32 %v633, %v1565
    %v2589 = vmul.f32 %v635, %v1567
    %v2590 = vmul.f32 %v826, %v1822
    %v2591 = vmul.f32 %v828, %v1824
    %v2592 = vmul.f32 %v1019, %v2079
    %v2593 = vmul.f32 %v1021, %v2081
    %v2594 = vmul.f32 %v1212, %v2336
    %v2595 = vmul.f32 %v1214, %v2338
    %v2596 = vld [vmem:[%s5] sm:$0x1]
    %v2598 = vlaneseq
    %v2599 = vshrl.u32 %v2598, 7
    %v2600 = vsub.s32 0, %v2599
    %v2601 = vrot.slane %v2596, %v2600
    %2603 = vmatprep.subr.mxu0 0.0
    %2604 = vmatpush1.msra.mxu0 %v123
    %2605 = vmatprep.subr.mxu0 0.0
    %2606 = vmatpush1.msra.mxu0 %v124
    %2607 = vmatprep.subr.mxu0 0.0
    %2608 = vmatpush1.msra.mxu0 %v125
    %2609 = vmatprep.subr.mxu0 0.0
    %2610 = vmatpush1.msra.mxu0 %v126
    %2611 = vmatprep.subr.mxu0 0.0
    %2612 = vmatpush1.msra.mxu0 %v127
    %2613 = vmatprep.subr.mxu0 0.0
    %2614 = vmatpush1.msra.mxu0 %v128
    %2615 = vmatprep.subr.mxu0 0.0
    %2616 = vmatpush1.msra.mxu0 %v129
    %2617 = vmatprep.subr.mxu0 0.0
    %2618 = vmatpush1.msra.mxu0 %v130
    %2619 = vmatprep.subr.mxu0 0.0
    %2620 = vmatpush1.msra.mxu0 %v131
    %2621 = vmatprep.subr.mxu0 0.0
    %2622 = vmatpush1.msra.mxu0 %v132
    %2623 = vmatprep.subr.mxu0 0.0
    %2624 = vmatpush1.msra.mxu0 %v133
    %2625 = vmatprep.subr.mxu0 0.0
    %2626 = vmatpush1.msra.mxu0 %v134
    %2627 = vmatprep.subr.mxu0 0.0
    %2628 = vmatpush1.msra.mxu0 %v135
    %2629 = vmatprep.subr.mxu0 0.0
    %2630 = vmatpush1.msra.mxu0 %v136
    %2631 = vmatprep.subr.mxu0 0.0
    %2632 = vmatpush1.msra.mxu0 %v137
    %2633 = vmatprep.subr.mxu0 0.0
    %2634 = vmatpush1.msra.mxu0 %v138
    %2635 = vmatprep.subr.mxu0 0.0
    %2636 = vmatpush1.msra.mxu0 %v139
    %2637 = vmatprep.subr.mxu0 0.0
    %2638 = vmatpush1.msra.mxu0 %v140
    %2639 = vmatprep.subr.mxu0 0.0
    %2640 = vmatpush1.msra.mxu0 %v141
    %2641 = vmatprep.subr.mxu0 0.0
    %2642 = vmatpush1.msra.mxu0 %v142
    %2643 = vmatprep.subr.mxu0 0.0
    %2644 = vmatpush1.msra.mxu0 %v143
    %2645 = vmatprep.subr.mxu0 0.0
    %2646 = vmatpush1.msra.mxu0 %v144
    %2647 = vmatprep.subr.mxu0 0.0
    %2648 = vmatpush1.msra.mxu0 %v145
    %2649 = vmatprep.subr.mxu0 0.0
    %2650 = vmatpush1.msra.mxu0 %v146
    %2651 = vmatprep.subr.mxu0 0.0
    %2652 = vmatpush1.msra.mxu0 %v147
    %2653 = vmatprep.subr.mxu0 0.0
    %2654 = vmatpush1.msra.mxu0 %v148
    %2655 = vmatprep.subr.mxu0 0.0
    %2656 = vmatpush1.msra.mxu0 %v149
    %2657 = vmatprep.subr.mxu0 0.0
    %2658 = vmatpush1.msra.mxu0 %v150
    %2659 = vmatprep.subr.mxu0 0.0
    %2660 = vmatpush1.msra.mxu0 %v151
    %2661 = vmatprep.subr.mxu0 0.0
    %2662 = vmatpush1.msra.mxu0 %v152
    %2663 = vmatprep.subr.mxu0 0.0
    %2664 = vmatpush1.msra.mxu0 %v153
    %2665 = vmatprep.subr.mxu0 0.0
    %2666 = vmatpush1.msra.mxu0 %v154
    %2667 = vmatprep.mubr.f32.mxu0 %v2341
    %2668 = vmatmul.mubr.f32.gmra.mrb[0].mxu0 %v2340
    %v2669 = vpop.f32.mrb[0].mxu0
    %v2670 = vadd.f32 %v2601, %v2669
    %v2671 = vpop.f32.mrb[0].mxu0
    %2672 = vmatprep.mubr.f32.mxu0 %v2349
    %2673 = vmatmul.mubr.f32.gmra.mrb[0].mxu0 %v2348
    %v2674 = vpop.f32.mrb[0].mxu0
    %v2675 = vadd.f32 %v2601, %v2674
    %v2676 = vpop.f32.mrb[0].mxu0
    %2677 = vmatprep.mubr.f32.mxu0 %v2357
    %2678 = vmatmul.mubr.f32.gmra.mrb[0].mxu0 %v2356
    %v2679 = vpop.f32.mrb[0].mxu0
    %v2680 = vadd.f32 %v2601, %v2679
    %v2681 = vpop.f32.mrb[0].mxu0
    %2682 = vmatprep.mubr.f32.mxu0 %v2365
    %2683 = vmatmul.mubr.f32.gmra.mrb[0].mxu0 %v2364
    %v2684 = vpop.f32.mrb[0].mxu0
    %v2685 = vadd.f32 %v2601, %v2684
    %v2686 = vpop.f32.mrb[0].mxu0
    %2687 = vmatprep.mubr.f32.mxu0 %v2373
    %2688 = vmatmul.mubr.f32.gmra.mrb[0].mxu0 %v2372
    %v2689 = vpop.f32.mrb[0].mxu0
    %v2690 = vadd.f32 %v2601, %v2689
    %v2691 = vpop.f32.mrb[0].mxu0
    %2692 = vmatprep.mubr.f32.mxu0 %v2381
    %2693 = vmatmul.mubr.f32.gmra.mrb[0].mxu0 %v2380
    %v2694 = vpop.f32.mrb[0].mxu0
    %v2695 = vadd.f32 %v2601, %v2694
    %v2696 = vpop.f32.mrb[0].mxu0
    %2697 = vmatprep.mubr.f32.mxu0 %v2389
    %2698 = vmatmul.mubr.f32.gmra.mrb[0].mxu0 %v2388
    %v2699 = vpop.f32.mrb[0].mxu0
    %v2700 = vadd.f32 %v2601, %v2699
    %v2701 = vpop.f32.mrb[0].mxu0
    %2702 = vmatprep.mubr.f32.mxu0 %v2397
    %2703 = vmatmul.mubr.f32.gmra.mrb[0].mxu0 %v2396
    %v2704 = vpop.f32.mrb[0].mxu0
    %v2705 = vadd.f32 %v2601, %v2704
    %v2706 = vpop.f32.mrb[0].mxu0
    %2707 = vmatprep.mubr.f32.mxu0 %v2405
    %2708 = vmatmul.mubr.f32.gmra.mrb[0].mxu0 %v2404
    %v2709 = vpop.f32.mrb[0].mxu0
    %v2710 = vadd.f32 %v2601, %v2709
    %v2711 = vpop.f32.mrb[0].mxu0
    %2712 = vmatprep.mubr.f32.mxu0 %v2413
    %2713 = vmatmul.mubr.f32.gmra.mrb[0].mxu0 %v2412
    %v2714 = vpop.f32.mrb[0].mxu0
    %v2715 = vadd.f32 %v2601, %v2714
    %v2716 = vpop.f32.mrb[0].mxu0
    %2717 = vmatprep.mubr.f32.mxu0 %v2421
    %2718 = vmatmul.mubr.f32.gmra.mrb[0].mxu0 %v2420
    %v2719 = vpop.f32.mrb[0].mxu0
    %v2720 = vadd.f32 %v2601, %v2719
    %v2721 = vpop.f32.mrb[0].mxu0
    %2722 = vmatprep.mubr.f32.mxu0 %v2429
    %2723 = vmatmul.mubr.f32.gmra.mrb[0].mxu0 %v2428
    %v2724 = vpop.f32.mrb[0].mxu0
    %v2725 = vadd.f32 %v2601, %v2724
    %v2726 = vpop.f32.mrb[0].mxu0
    %2727 = vmatprep.mubr.f32.mxu0 %v2437
    %2728 = vmatmul.mubr.f32.gmra.mrb[0].mxu0 %v2436
    %v2729 = vpop.f32.mrb[0].mxu0
    %v2730 = vadd.f32 %v2601, %v2729
    %v2731 = vpop.f32.mrb[0].mxu0
    %2732 = vmatprep.mubr.f32.mxu0 %v2445
    %2733 = vmatmul.mubr.f32.gmra.mrb[0].mxu0 %v2444
    %v2734 = vpop.f32.mrb[0].mxu0
    %v2735 = vadd.f32 %v2601, %v2734
    %v2736 = vpop.f32.mrb[0].mxu0
    %2737 = vmatprep.mubr.f32.mxu0 %v2453
    %2738 = vmatmul.mubr.f32.gmra.mrb[0].mxu0 %v2452
    %v2739 = vpop.f32.mrb[0].mxu0
    %v2740 = vadd.f32 %v2601, %v2739
    %v2741 = vpop.f32.mrb[0].mxu0
    %2742 = vmatprep.mubr.f32.mxu0 %v2461
    %2743 = vmatmul.mubr.f32.gmra.mrb[0].mxu0 %v2460
    %v2744 = vpop.f32.mrb[0].mxu0
    %v2745 = vadd.f32 %v2601, %v2744
    %v2746 = vpop.f32.mrb[0].mxu0
    %2747 = vmatprep.mubr.f32.mxu0 %v2469
    %2748 = vmatmul.mubr.f32.gmra.mrb[0].mxu0 %v2468
    %v2749 = vpop.f32.mrb[0].mxu0
    %v2750 = vadd.f32 %v2601, %v2749
    %v2751 = vpop.f32.mrb[0].mxu0
    %2752 = vmatprep.mubr.f32.mxu0 %v2477
    %2753 = vmatmul.mubr.f32.gmra.mrb[0].mxu0 %v2476
    %v2754 = vpop.f32.mrb[0].mxu0
    %v2755 = vadd.f32 %v2601, %v2754
    %v2756 = vpop.f32.mrb[0].mxu0
    %2757 = vmatprep.mubr.f32.mxu0 %v2485
    %2758 = vmatmul.mubr.f32.gmra.mrb[0].mxu0 %v2484
    %v2759 = vpop.f32.mrb[0].mxu0
    %v2760 = vadd.f32 %v2601, %v2759
    %v2761 = vpop.f32.mrb[0].mxu0
    %2762 = vmatprep.mubr.f32.mxu0 %v2493
    %2763 = vmatmul.mubr.f32.gmra.mrb[0].mxu0 %v2492
    %v2764 = vpop.f32.mrb[0].mxu0
    %v2765 = vadd.f32 %v2601, %v2764
    %v2766 = vpop.f32.mrb[0].mxu0
    %2767 = vmatprep.mubr.f32.mxu0 %v2501
    %2768 = vmatmul.mubr.f32.gmra.mrb[0].mxu0 %v2500
    %v2769 = vpop.f32.mrb[0].mxu0
    %v2770 = vadd.f32 %v2601, %v2769
    %v2771 = vpop.f32.mrb[0].mxu0
    %2772 = vmatprep.mubr.f32.mxu0 %v2509
    %2773 = vmatmul.mubr.f32.gmra.mrb[0].mxu0 %v2508
    %v2774 = vpop.f32.mrb[0].mxu0
    %v2775 = vadd.f32 %v2601, %v2774
    %v2776 = vpop.f32.mrb[0].mxu0
    %2777 = vmatprep.mubr.f32.mxu0 %v2517
    %2778 = vmatmul.mubr.f32.gmra.mrb[0].mxu0 %v2516
    %v2779 = vpop.f32.mrb[0].mxu0
    %v2780 = vadd.f32 %v2601, %v2779
    %v2781 = vpop.f32.mrb[0].mxu0
    %2782 = vmatprep.mubr.f32.mxu0 %v2525
    %2783 = vmatmul.mubr.f32.gmra.mrb[0].mxu0 %v2524
    %v2784 = vpop.f32.mrb[0].mxu0
    %v2785 = vadd.f32 %v2601, %v2784
    %v2786 = vpop.f32.mrb[0].mxu0
    %2787 = vmatprep.mubr.f32.mxu0 %v2533
    %2788 = vmatmul.mubr.f32.gmra.mrb[0].mxu0 %v2532
    %v2789 = vpop.f32.mrb[0].mxu0
    %v2790 = vadd.f32 %v2601, %v2789
    %v2791 = vpop.f32.mrb[0].mxu0
    %2792 = vmatprep.mubr.f32.mxu0 %v2541
    %2793 = vmatmul.mubr.f32.gmra.mrb[0].mxu0 %v2540
    %v2794 = vpop.f32.mrb[0].mxu0
    %v2795 = vadd.f32 %v2601, %v2794
    %v2796 = vpop.f32.mrb[0].mxu0
    %2797 = vmatprep.mubr.f32.mxu0 %v2549
    %2798 = vmatmul.mubr.f32.gmra.mrb[0].mxu0 %v2548
    %v2799 = vpop.f32.mrb[0].mxu0
    %v2800 = vadd.f32 %v2601, %v2799
    %v2801 = vpop.f32.mrb[0].mxu0
    %2802 = vmatprep.mubr.f32.mxu0 %v2557
    %2803 = vmatmul.mubr.f32.gmra.mrb[0].mxu0 %v2556
    %v2804 = vpop.f32.mrb[0].mxu0
    %v2805 = vadd.f32 %v2601, %v2804
    %v2806 = vpop.f32.mrb[0].mxu0
    %2807 = vmatprep.mubr.f32.mxu0 %v2565
    %2808 = vmatmul.mubr.f32.gmra.mrb[0].mxu0 %v2564
    %v2809 = vpop.f32.mrb[0].mxu0
    %v2810 = vadd.f32 %v2601, %v2809
    %v2811 = vpop.f32.mrb[0].mxu0
    %2812 = vmatprep.mubr.f32.mxu0 %v2573
    %2813 = vmatmul.mubr.f32.gmra.mrb[0].mxu0 %v2572
    %v2814 = vpop.f32.mrb[0].mxu0
    %v2815 = vadd.f32 %v2601, %v2814
    %v2816 = vpop.f32.mrb[0].mxu0
    %2817 = vmatprep.mubr.f32.mxu0 %v2581
    %2818 = vmatmul.mubr.f32.gmra.mrb[0].mxu0 %v2580
    %v2819 = vpop.f32.mrb[0].mxu0
    %v2820 = vadd.f32 %v2601, %v2819
    %v2821 = vpop.f32.mrb[0].mxu0
    %2822 = vmatprep.mubr.f32.mxu0 %v2589
    %2823 = vmatmul.mubr.f32.gmra.mrb[0].mxu0 %v2588
    %v2824 = vpop.f32.mrb[0].mxu0
    %v2825 = vadd.f32 %v2601, %v2824
    %v2826 = vpop.f32.mrb[0].mxu0
    %2827 = vdwg.mxu0
    %2828 = vmatprep.subr.mxu0 0.0
    %2829 = vmatpush1.msra.mxu0 %v155
    %2830 = vmatprep.subr.mxu0 0.0
    %2831 = vmatpush1.msra.mxu0 %v156
    %2832 = vmatprep.subr.mxu0 0.0
    %2833 = vmatpush1.msra.mxu0 %v157
    %2834 = vmatprep.subr.mxu0 0.0
    %2835 = vmatpush1.msra.mxu0 %v158
    %2836 = vmatprep.subr.mxu0 0.0
    %2837 = vmatpush1.msra.mxu0 %v159
    %2838 = vmatprep.subr.mxu0 0.0
    %2839 = vmatpush1.msra.mxu0 %v160
    %2840 = vmatprep.subr.mxu0 0.0
    %2841 = vmatpush1.msra.mxu0 %v161
    %2842 = vmatprep.subr.mxu0 0.0
    %2843 = vmatpush1.msra.mxu0 %v162
    %2844 = vmatprep.subr.mxu0 0.0
    %2845 = vmatpush1.msra.mxu0 %v163
    %2846 = vmatprep.subr.mxu0 0.0
    %2847 = vmatpush1.msra.mxu0 %v164
    %2848 = vmatprep.subr.mxu0 0.0
    %2849 = vmatpush1.msra.mxu0 %v165
    %2850 = vmatprep.subr.mxu0 0.0
    %2851 = vmatpush1.msra.mxu0 %v166
    %2852 = vmatprep.subr.mxu0 0.0
    %2853 = vmatpush1.msra.mxu0 %v167
    %2854 = vmatprep.subr.mxu0 0.0
    %2855 = vmatpush1.msra.mxu0 %v168
    %2856 = vmatprep.subr.mxu0 0.0
    %2857 = vmatpush1.msra.mxu0 %v169
    %2858 = vmatprep.subr.mxu0 0.0
    %2859 = vmatpush1.msra.mxu0 %v170
    %2860 = vmatprep.subr.mxu0 0.0
    %2861 = vmatpush1.msra.mxu0 %v171
    %2862 = vmatprep.subr.mxu0 0.0
    %2863 = vmatpush1.msra.mxu0 %v172
    %2864 = vmatprep.subr.mxu0 0.0
    %2865 = vmatpush1.msra.mxu0 %v173
    %2866 = vmatprep.subr.mxu0 0.0
    %2867 = vmatpush1.msra.mxu0 %v174
    %2868 = vmatprep.subr.mxu0 0.0
    %2869 = vmatpush1.msra.mxu0 %v175
    %2870 = vmatprep.subr.mxu0 0.0
    %2871 = vmatpush1.msra.mxu0 %v176
    %2872 = vmatprep.subr.mxu0 0.0
    %2873 = vmatpush1.msra.mxu0 %v177
    %2874 = vmatprep.subr.mxu0 0.0
    %2875 = vmatpush1.msra.mxu0 %v178
    %2876 = vmatprep.subr.mxu0 0.0
    %2877 = vmatpush1.msra.mxu0 %v179
    %2878 = vmatprep.subr.mxu0 0.0
    %2879 = vmatpush1.msra.mxu0 %v180
    %2880 = vmatprep.subr.mxu0 0.0
    %2881 = vmatpush1.msra.mxu0 %v181
    %2882 = vmatprep.subr.mxu0 0.0
    %2883 = vmatpush1.msra.mxu0 %v182
    %2884 = vmatprep.subr.mxu0 0.0
    %2885 = vmatpush1.msra.mxu0 %v183
    %2886 = vmatprep.subr.mxu0 0.0
    %2887 = vmatpush1.msra.mxu0 %v184
    %2888 = vmatprep.subr.mxu0 0.0
    %2889 = vmatpush1.msra.mxu0 %v185
    %2890 = vmatprep.subr.mxu0 0.0
    %2891 = vmatpush1.msra.mxu0 %v186
    %2892 = vmatprep.mubr.f32.mxu0 %v2343
    %2893 = vmatmul.mubr.f32.gmra.mrb[0].mxu0 %v2342
    %v2894 = vpop.f32.mrb[0].mxu0
    %v2895 = vadd.f32 %v2670, %v2894
    %v2896 = vpop.f32.mrb[0].mxu0
    %2897 = vmatprep.mubr.f32.mxu0 %v2351
    %2898 = vmatmul.mubr.f32.gmra.mrb[0].mxu0 %v2350
    %v2899 = vpop.f32.mrb[0].mxu0
    %v2900 = vadd.f32 %v2675, %v2899
    %v2901 = vpop.f32.mrb[0].mxu0
    %2902 = vmatprep.mubr.f32.mxu0 %v2359
    %2903 = vmatmul.mubr.f32.gmra.mrb[0].mxu0 %v2358
    %v2904 = vpop.f32.mrb[0].mxu0
    %v2905 = vadd.f32 %v2680, %v2904
    %v2906 = vpop.f32.mrb[0].mxu0
    %2907 = vmatprep.mubr.f32.mxu0 %v2367
    %2908 = vmatmul.mubr.f32.gmra.mrb[0].mxu0 %v2366
    %v2909 = vpop.f32.mrb[0].mxu0
    %v2910 = vadd.f32 %v2685, %v2909
    %v2911 = vpop.f32.mrb[0].mxu0
    %2912 = vmatprep.mubr.f32.mxu0 %v2375
    %2913 = vmatmul.mubr.f32.gmra.mrb[0].mxu0 %v2374
    %v2914 = vpop.f32.mrb[0].mxu0
    %v2915 = vadd.f32 %v2690, %v2914
    %v2916 = vpop.f32.mrb[0].mxu0
    %2917 = vmatprep.mubr.f32.mxu0 %v2383
    %2918 = vmatmul.mubr.f32.gmra.mrb[0].mxu0 %v2382
    %v2919 = vpop.f32.mrb[0].mxu0
    %v2920 = vadd.f32 %v2695, %v2919
    %v2921 = vpop.f32.mrb[0].mxu0
    %2922 = vmatprep.mubr.f32.mxu0 %v2391
    %2923 = vmatmul.mubr.f32.gmra.mrb[0].mxu0 %v2390
    %v2924 = vpop.f32.mrb[0].mxu0
    %v2925 = vadd.f32 %v2700, %v2924
    %v2926 = vpop.f32.mrb[0].mxu0
    %2927 = vmatprep.mubr.f32.mxu0 %v2399
    %2928 = vmatmul.mubr.f32.gmra.mrb[0].mxu0 %v2398
    %v2929 = vpop.f32.mrb[0].mxu0
    %v2930 = vadd.f32 %v2705, %v2929
    %v2931 = vpop.f32.mrb[0].mxu0
    %2932 = vmatprep.mubr.f32.mxu0 %v2407
    %2933 = vmatmul.mubr.f32.gmra.mrb[0].mxu0 %v2406
    %v2934 = vpop.f32.mrb[0].mxu0
    %v2935 = vadd.f32 %v2710, %v2934
    %v2936 = vpop.f32.mrb[0].mxu0
    %2937 = vmatprep.mubr.f32.mxu0 %v2415
    %2938 = vmatmul.mubr.f32.gmra.mrb[0].mxu0 %v2414
    %v2939 = vpop.f32.mrb[0].mxu0
    %v2940 = vadd.f32 %v2715, %v2939
    %v2941 = vpop.f32.mrb[0].mxu0
    %2942 = vmatprep.mubr.f32.mxu0 %v2423
    %2943 = vmatmul.mubr.f32.gmra.mrb[0].mxu0 %v2422
    %v2944 = vpop.f32.mrb[0].mxu0
    %v2945 = vadd.f32 %v2720, %v2944
    %v2946 = vpop.f32.mrb[0].mxu0
    %2947 = vmatprep.mubr.f32.mxu0 %v2431
    %2948 = vmatmul.mubr.f32.gmra.mrb[0].mxu0 %v2430
    %v2949 = vpop.f32.mrb[0].mxu0
    %v2950 = vadd.f32 %v2725, %v2949
    %v2951 = vpop.f32.mrb[0].mxu0
    %2952 = vmatprep.mubr.f32.mxu0 %v2439
    %2953 = vmatmul.mubr.f32.gmra.mrb[0].mxu0 %v2438
    %v2954 = vpop.f32.mrb[0].mxu0
    %v2955 = vadd.f32 %v2730, %v2954
    %v2956 = vpop.f32.mrb[0].mxu0
    %2957 = vmatprep.mubr.f32.mxu0 %v2447
    %2958 = vmatmul.mubr.f32.gmra.mrb[0].mxu0 %v2446
    %v2959 = vpop.f32.mrb[0].mxu0
    %v2960 = vadd.f32 %v2735, %v2959
    %v2961 = vpop.f32.mrb[0].mxu0
    %2962 = vmatprep.mubr.f32.mxu0 %v2455
    %2963 = vmatmul.mubr.f32.gmra.mrb[0].mxu0 %v2454
    %v2964 = vpop.f32.mrb[0].mxu0
    %v2965 = vadd.f32 %v2740, %v2964
    %v2966 = vpop.f32.mrb[0].mxu0
    %2967 = vmatprep.mubr.f32.mxu0 %v2463
    %2968 = vmatmul.mubr.f32.gmra.mrb[0].mxu0 %v2462
    %v2969 = vpop.f32.mrb[0].mxu0
    %v2970 = vadd.f32 %v2745, %v2969
    %v2971 = vpop.f32.mrb[0].mxu0
    %2972 = vmatprep.mubr.f32.mxu0 %v2471
    %2973 = vmatmul.mubr.f32.gmra.mrb[0].mxu0 %v2470
    %v2974 = vpop.f32.mrb[0].mxu0
    %v2975 = vadd.f32 %v2750, %v2974
    %v2976 = vpop.f32.mrb[0].mxu0
    %2977 = vmatprep.mubr.f32.mxu0 %v2479
    %2978 = vmatmul.mubr.f32.gmra.mrb[0].mxu0 %v2478
    %v2979 = vpop.f32.mrb[0].mxu0
    %v2980 = vadd.f32 %v2755, %v2979
    %v2981 = vpop.f32.mrb[0].mxu0
    %2982 = vmatprep.mubr.f32.mxu0 %v2487
    %2983 = vmatmul.mubr.f32.gmra.mrb[0].mxu0 %v2486
    %v2984 = vpop.f32.mrb[0].mxu0
    %v2985 = vadd.f32 %v2760, %v2984
    %v2986 = vpop.f32.mrb[0].mxu0
    %2987 = vmatprep.mubr.f32.mxu0 %v2495
    %2988 = vmatmul.mubr.f32.gmra.mrb[0].mxu0 %v2494
    %v2989 = vpop.f32.mrb[0].mxu0
    %v2990 = vadd.f32 %v2765, %v2989
    %v2991 = vpop.f32.mrb[0].mxu0
    %2992 = vmatprep.mubr.f32.mxu0 %v2503
    %2993 = vmatmul.mubr.f32.gmra.mrb[0].mxu0 %v2502
    %v2994 = vpop.f32.mrb[0].mxu0
    %v2995 = vadd.f32 %v2770, %v2994
    %v2996 = vpop.f32.mrb[0].mxu0
    %2997 = vmatprep.mubr.f32.mxu0 %v2511
    %2998 = vmatmul.mubr.f32.gmra.mrb[0].mxu0 %v2510
    %v2999 = vpop.f32.mrb[0].mxu0
    %v3000 = vadd.f32 %v2775, %v2999
    %v3001 = vpop.f32.mrb[0].mxu0
    %3002 = vmatprep.mubr.f32.mxu0 %v2519
    %3003 = vmatmul.mubr.f32.gmra.mrb[0].mxu0 %v2518
    %v3004 = vpop.f32.mrb[0].mxu0
    %v3005 = vadd.f32 %v2780, %v3004
    %v3006 = vpop.f32.mrb[0].mxu0
    %3007 = vmatprep.mubr.f32.mxu0 %v2527
    %3008 = vmatmul.mubr.f32.gmra.mrb[0].mxu0 %v2526
    %v3009 = vpop.f32.mrb[0].mxu0
    %v3010 = vadd.f32 %v2785, %v3009
    %v3011 = vpop.f32.mrb[0].mxu0
    %3012 = vmatprep.mubr.f32.mxu0 %v2535
    %3013 = vmatmul.mubr.f32.gmra.mrb[0].mxu0 %v2534
    %v3014 = vpop.f32.mrb[0].mxu0
    %v3015 = vadd.f32 %v2790, %v3014
    %v3016 = vpop.f32.mrb[0].mxu0
    %3017 = vmatprep.mubr.f32.mxu0 %v2543
    %3018 = vmatmul.mubr.f32.gmra.mrb[0].mxu0 %v2542
    %v3019 = vpop.f32.mrb[0].mxu0
    %v3020 = vadd.f32 %v2795, %v3019
    %v3021 = vpop.f32.mrb[0].mxu0
    %3022 = vmatprep.mubr.f32.mxu0 %v2551
    %3023 = vmatmul.mubr.f32.gmra.mrb[0].mxu0 %v2550
    %v3024 = vpop.f32.mrb[0].mxu0
    %v3025 = vadd.f32 %v2800, %v3024
    %v3026 = vpop.f32.mrb[0].mxu0
    %3027 = vmatprep.mubr.f32.mxu0 %v2559
    %3028 = vmatmul.mubr.f32.gmra.mrb[0].mxu0 %v2558
    %v3029 = vpop.f32.mrb[0].mxu0
    %v3030 = vadd.f32 %v2805, %v3029
    %v3031 = vpop.f32.mrb[0].mxu0
    %3032 = vmatprep.mubr.f32.mxu0 %v2567
    %3033 = vmatmul.mubr.f32.gmra.mrb[0].mxu0 %v2566
    %v3034 = vpop.f32.mrb[0].mxu0
    %v3035 = vadd.f32 %v2810, %v3034
    %v3036 = vpop.f32.mrb[0].mxu0
    %3037 = vmatprep.mubr.f32.mxu0 %v2575
    %3038 = vmatmul.mubr.f32.gmra.mrb[0].mxu0 %v2574
    %v3039 = vpop.f32.mrb[0].mxu0
    %v3040 = vadd.f32 %v2815, %v3039
    %v3041 = vpop.f32.mrb[0].mxu0
    %3042 = vmatprep.mubr.f32.mxu0 %v2583
    %3043 = vmatmul.mubr.f32.gmra.mrb[0].mxu0 %v2582
    %v3044 = vpop.f32.mrb[0].mxu0
    %v3045 = vadd.f32 %v2820, %v3044
    %v3046 = vpop.f32.mrb[0].mxu0
    %3047 = vmatprep.mubr.f32.mxu0 %v2591
    %3048 = vmatmul.mubr.f32.gmra.mrb[0].mxu0 %v2590
    %v3049 = vpop.f32.mrb[0].mxu0
    %v3050 = vadd.f32 %v2825, %v3049
    %v3051 = vpop.f32.mrb[0].mxu0
    %3052 = vdwg.mxu0
    %3053 = vmatprep.subr.mxu0 0.0
    %3054 = vmatpush1.msra.mxu0 %v187
    %3055 = vmatprep.subr.mxu0 0.0
    %3056 = vmatpush1.msra.mxu0 %v188
    %3057 = vmatprep.subr.mxu0 0.0
    %3058 = vmatpush1.msra.mxu0 %v189
    %3059 = vmatprep.subr.mxu0 0.0
    %3060 = vmatpush1.msra.mxu0 %v190
    %3061 = vmatprep.subr.mxu0 0.0
    %3062 = vmatpush1.msra.mxu0 %v191
    %3063 = vmatprep.subr.mxu0 0.0
    %3064 = vmatpush1.msra.mxu0 %v192
    %3065 = vmatprep.subr.mxu0 0.0
    %3066 = vmatpush1.msra.mxu0 %v193
    %3067 = vmatprep.subr.mxu0 0.0
    %3068 = vmatpush1.msra.mxu0 %v194
    %3069 = vmatprep.subr.mxu0 0.0
    %3070 = vmatpush1.msra.mxu0 %v195
    %3071 = vmatprep.subr.mxu0 0.0
    %3072 = vmatpush1.msra.mxu0 %v196
    %3073 = vmatprep.subr.mxu0 0.0
    %3074 = vmatpush1.msra.mxu0 %v197
    %3075 = vmatprep.subr.mxu0 0.0
    %3076 = vmatpush1.msra.mxu0 %v198
    %3077 = vmatprep.subr.mxu0 0.0
    %3078 = vmatpush1.msra.mxu0 %v199
    %3079 = vmatprep.subr.mxu0 0.0
    %3080 = vmatpush1.msra.mxu0 %v200
    %3081 = vmatprep.subr.mxu0 0.0
    %3082 = vmatpush1.msra.mxu0 %v201
    %3083 = vmatprep.subr.mxu0 0.0
    %3084 = vmatpush1.msra.mxu0 %v202
    %3085 = vmatprep.subr.mxu0 0.0
    %3086 = vmatpush1.msra.mxu0 %v203
    %3087 = vmatprep.subr.mxu0 0.0
    %3088 = vmatpush1.msra.mxu0 %v204
    %3089 = vmatprep.subr.mxu0 0.0
    %3090 = vmatpush1.msra.mxu0 %v205
    %3091 = vmatprep.subr.mxu0 0.0
    %3092 = vmatpush1.msra.mxu0 %v206
    %3093 = vmatprep.subr.mxu0 0.0
    %3094 = vmatpush1.msra.mxu0 %v207
    %3095 = vmatprep.subr.mxu0 0.0
    %3096 = vmatpush1.msra.mxu0 %v208
    %3097 = vmatprep.subr.mxu0 0.0
    %3098 = vmatpush1.msra.mxu0 %v209
    %3099 = vmatprep.subr.mxu0 0.0
    %3100 = vmatpush1.msra.mxu0 %v210
    %3101 = vmatprep.subr.mxu0 0.0
    %3102 = vmatpush1.msra.mxu0 %v211
    %3103 = vmatprep.subr.mxu0 0.0
    %3104 = vmatpush1.msra.mxu0 %v212
    %3105 = vmatprep.subr.mxu0 0.0
    %3106 = vmatpush1.msra.mxu0 %v213
    %3107 = vmatprep.subr.mxu0 0.0
    %3108 = vmatpush1.msra.mxu0 %v214
    %3109 = vmatprep.subr.mxu0 0.0
    %3110 = vmatpush1.msra.mxu0 %v215
    %3111 = vmatprep.subr.mxu0 0.0
    %3112 = vmatpush1.msra.mxu0 %v216
    %3113 = vmatprep.subr.mxu0 0.0
    %3114 = vmatpush1.msra.mxu0 %v217
    %3115 = vmatprep.subr.mxu0 0.0
    %3116 = vmatpush1.msra.mxu0 %v218
    %3117 = vmatprep.mubr.f32.mxu0 %v2345
    %3118 = vmatmul.mubr.f32.gmra.mrb[0].mxu0 %v2344
    %v3119 = vpop.f32.mrb[0].mxu0
    %v3120 = vadd.f32 %v2895, %v3119
    %v3121 = vpop.f32.mrb[0].mxu0
    %3122 = vmatprep.mubr.f32.mxu0 %v2353
    %3123 = vmatmul.mubr.f32.gmra.mrb[0].mxu0 %v2352
    %v3124 = vpop.f32.mrb[0].mxu0
    %v3125 = vadd.f32 %v2900, %v3124
    %v3126 = vpop.f32.mrb[0].mxu0
    %3127 = vmatprep.mubr.f32.mxu0 %v2361
    %3128 = vmatmul.mubr.f32.gmra.mrb[0].mxu0 %v2360
    %v3129 = vpop.f32.mrb[0].mxu0
    %v3130 = vadd.f32 %v2905, %v3129
    %v3131 = vpop.f32.mrb[0].mxu0
    %3132 = vmatprep.mubr.f32.mxu0 %v2369
    %3133 = vmatmul.mubr.f32.gmra.mrb[0].mxu0 %v2368
    %v3134 = vpop.f32.mrb[0].mxu0
    %v3135 = vadd.f32 %v2910, %v3134
    %v3136 = vpop.f32.mrb[0].mxu0
    %3137 = vmatprep.mubr.f32.mxu0 %v2377
    %3138 = vmatmul.mubr.f32.gmra.mrb[0].mxu0 %v2376
    %v3139 = vpop.f32.mrb[0].mxu0
    %v3140 = vadd.f32 %v2915, %v3139
    %v3141 = vpop.f32.mrb[0].mxu0
    %3142 = vmatprep.mubr.f32.mxu0 %v2385
    %3143 = vmatmul.mubr.f32.gmra.mrb[0].mxu0 %v2384
    %v3144 = vpop.f32.mrb[0].mxu0
    %v3145 = vadd.f32 %v2920, %v3144
    %v3146 = vpop.f32.mrb[0].mxu0
    %3147 = vmatprep.mubr.f32.mxu0 %v2393
    %3148 = vmatmul.mubr.f32.gmra.mrb[0].mxu0 %v2392
    %v3149 = vpop.f32.mrb[0].mxu0
    %v3150 = vadd.f32 %v2925, %v3149
    %v3151 = vpop.f32.mrb[0].mxu0
    %3152 = vmatprep.mubr.f32.mxu0 %v2401
    %3153 = vmatmul.mubr.f32.gmra.mrb[0].mxu0 %v2400
    %v3154 = vpop.f32.mrb[0].mxu0
    %v3155 = vadd.f32 %v2930, %v3154
    %v3156 = vpop.f32.mrb[0].mxu0
    %3157 = vmatprep.mubr.f32.mxu0 %v2409
    %3158 = vmatmul.mubr.f32.gmra.mrb[0].mxu0 %v2408
    %v3159 = vpop.f32.mrb[0].mxu0
    %v3160 = vadd.f32 %v2935, %v3159
    %v3161 = vpop.f32.mrb[0].mxu0
    %3162 = vmatprep.mubr.f32.mxu0 %v2417
    %3163 = vmatmul.mubr.f32.gmra.mrb[0].mxu0 %v2416
    %v3164 = vpop.f32.mrb[0].mxu0
    %v3165 = vadd.f32 %v2940, %v3164
    %v3166 = vpop.f32.mrb[0].mxu0
    %3167 = vmatprep.mubr.f32.mxu0 %v2425
    %3168 = vmatmul.mubr.f32.gmra.mrb[0].mxu0 %v2424
    %v3169 = vpop.f32.mrb[0].mxu0
    %v3170 = vadd.f32 %v2945, %v3169
    %v3171 = vpop.f32.mrb[0].mxu0
    %3172 = vmatprep.mubr.f32.mxu0 %v2433
    %3173 = vmatmul.mubr.f32.gmra.mrb[0].mxu0 %v2432
    %v3174 = vpop.f32.mrb[0].mxu0
    %v3175 = vadd.f32 %v2950, %v3174
    %v3176 = vpop.f32.mrb[0].mxu0
    %3177 = vmatprep.mubr.f32.mxu0 %v2441
    %3178 = vmatmul.mubr.f32.gmra.mrb[0].mxu0 %v2440
    %v3179 = vpop.f32.mrb[0].mxu0
    %v3180 = vadd.f32 %v2955, %v3179
    %v3181 = vpop.f32.mrb[0].mxu0
    %3182 = vmatprep.mubr.f32.mxu0 %v2449
    %3183 = vmatmul.mubr.f32.gmra.mrb[0].mxu0 %v2448
    %v3184 = vpop.f32.mrb[0].mxu0
    %v3185 = vadd.f32 %v2960, %v3184
    %v3186 = vpop.f32.mrb[0].mxu0
    %3187 = vmatprep.mubr.f32.mxu0 %v2457
    %3188 = vmatmul.mubr.f32.gmra.mrb[0].mxu0 %v2456
    %v3189 = vpop.f32.mrb[0].mxu0
    %v3190 = vadd.f32 %v2965, %v3189
    %v3191 = vpop.f32.mrb[0].mxu0
    %3192 = vmatprep.mubr.f32.mxu0 %v2465
    %3193 = vmatmul.mubr.f32.gmra.mrb[0].mxu0 %v2464
    %v3194 = vpop.f32.mrb[0].mxu0
    %v3195 = vadd.f32 %v2970, %v3194
    %v3196 = vpop.f32.mrb[0].mxu0
    %3197 = vmatprep.mubr.f32.mxu0 %v2473
    %3198 = vmatmul.mubr.f32.gmra.mrb[0].mxu0 %v2472
    %v3199 = vpop.f32.mrb[0].mxu0
    %v3200 = vadd.f32 %v2975, %v3199
    %v3201 = vpop.f32.mrb[0].mxu0
    %3202 = vmatprep.mubr.f32.mxu0 %v2481
    %3203 = vmatmul.mubr.f32.gmra.mrb[0].mxu0 %v2480
    %v3204 = vpop.f32.mrb[0].mxu0
    %v3205 = vadd.f32 %v2980, %v3204
    %v3206 = vpop.f32.mrb[0].mxu0
    %3207 = vmatprep.mubr.f32.mxu0 %v2489
    %3208 = vmatmul.mubr.f32.gmra.mrb[0].mxu0 %v2488
    %v3209 = vpop.f32.mrb[0].mxu0
    %v3210 = vadd.f32 %v2985, %v3209
    %v3211 = vpop.f32.mrb[0].mxu0
    %3212 = vmatprep.mubr.f32.mxu0 %v2497
    %3213 = vmatmul.mubr.f32.gmra.mrb[0].mxu0 %v2496
    %v3214 = vpop.f32.mrb[0].mxu0
    %v3215 = vadd.f32 %v2990, %v3214
    %v3216 = vpop.f32.mrb[0].mxu0
    %3217 = vmatprep.mubr.f32.mxu0 %v2505
    %3218 = vmatmul.mubr.f32.gmra.mrb[0].mxu0 %v2504
    %v3219 = vpop.f32.mrb[0].mxu0
    %v3220 = vadd.f32 %v2995, %v3219
    %v3221 = vpop.f32.mrb[0].mxu0
    %3222 = vmatprep.mubr.f32.mxu0 %v2513
    %3223 = vmatmul.mubr.f32.gmra.mrb[0].mxu0 %v2512
    %v3224 = vpop.f32.mrb[0].mxu0
    %v3225 = vadd.f32 %v3000, %v3224
    %v3226 = vpop.f32.mrb[0].mxu0
    %3227 = vmatprep.mubr.f32.mxu0 %v2521
    %3228 = vmatmul.mubr.f32.gmra.mrb[0].mxu0 %v2520
    %v3229 = vpop.f32.mrb[0].mxu0
    %v3230 = vadd.f32 %v3005, %v3229
    %v3231 = vpop.f32.mrb[0].mxu0
    %3232 = vmatprep.mubr.f32.mxu0 %v2529
    %3233 = vmatmul.mubr.f32.gmra.mrb[0].mxu0 %v2528
    %v3234 = vpop.f32.mrb[0].mxu0
    %v3235 = vadd.f32 %v3010, %v3234
    %v3236 = vpop.f32.mrb[0].mxu0
    %3237 = vmatprep.mubr.f32.mxu0 %v2537
    %3238 = vmatmul.mubr.f32.gmra.mrb[0].mxu0 %v2536
    %v3239 = vpop.f32.mrb[0].mxu0
    %v3240 = vadd.f32 %v3015, %v3239
    %v3241 = vpop.f32.mrb[0].mxu0
    %3242 = vmatprep.mubr.f32.mxu0 %v2545
    %3243 = vmatmul.mubr.f32.gmra.mrb[0].mxu0 %v2544
    %v3244 = vpop.f32.mrb[0].mxu0
    %v3245 = vadd.f32 %v3020, %v3244
    %v3246 = vpop.f32.mrb[0].mxu0
    %3247 = vmatprep.mubr.f32.mxu0 %v2553
    %3248 = vmatmul.mubr.f32.gmra.mrb[0].mxu0 %v2552
    %v3249 = vpop.f32.mrb[0].mxu0
    %v3250 = vadd.f32 %v3025, %v3249
    %v3251 = vpop.f32.mrb[0].mxu0
    %3252 = vmatprep.mubr.f32.mxu0 %v2561
    %3253 = vmatmul.mubr.f32.gmra.mrb[0].mxu0 %v2560
    %v3254 = vpop.f32.mrb[0].mxu0
    %v3255 = vadd.f32 %v3030, %v3254
    %v3256 = vpop.f32.mrb[0].mxu0
    %3257 = vmatprep.mubr.f32.mxu0 %v2569
    %3258 = vmatmul.mubr.f32.gmra.mrb[0].mxu0 %v2568
    %v3259 = vpop.f32.mrb[0].mxu0
    %v3260 = vadd.f32 %v3035, %v3259
    %v3261 = vpop.f32.mrb[0].mxu0
    %3262 = vmatprep.mubr.f32.mxu0 %v2577
    %3263 = vmatmul.mubr.f32.gmra.mrb[0].mxu0 %v2576
    %v3264 = vpop.f32.mrb[0].mxu0
    %v3265 = vadd.f32 %v3040, %v3264
    %v3266 = vpop.f32.mrb[0].mxu0
    %3267 = vmatprep.mubr.f32.mxu0 %v2585
    %3268 = vmatmul.mubr.f32.gmra.mrb[0].mxu0 %v2584
    %v3269 = vpop.f32.mrb[0].mxu0
    %v3270 = vadd.f32 %v3045, %v3269
    %v3271 = vpop.f32.mrb[0].mxu0
    %3272 = vmatprep.mubr.f32.mxu0 %v2593
    %3273 = vmatmul.mubr.f32.gmra.mrb[0].mxu0 %v2592
    %v3274 = vpop.f32.mrb[0].mxu0
    %v3275 = vadd.f32 %v3050, %v3274
    %v3276 = vpop.f32.mrb[0].mxu0
    %3277 = vdwg.mxu0
    %3278 = vmatprep.subr.mxu0 0.0
    %3279 = vmatpush1.msra.mxu0 %v219
    %3280 = vmatprep.subr.mxu0 0.0
    %3281 = vmatpush1.msra.mxu0 %v220
    %3282 = vmatprep.subr.mxu0 0.0
    %3283 = vmatpush1.msra.mxu0 %v221
    %3284 = vmatprep.subr.mxu0 0.0
    %3285 = vmatpush1.msra.mxu0 %v222
    %3286 = vmatprep.subr.mxu0 0.0
    %3287 = vmatpush1.msra.mxu0 %v223
    %3288 = vmatprep.subr.mxu0 0.0
    %3289 = vmatpush1.msra.mxu0 %v224
    %3290 = vmatprep.subr.mxu0 0.0
    %3291 = vmatpush1.msra.mxu0 %v225
    %3292 = vmatprep.subr.mxu0 0.0
    %3293 = vmatpush1.msra.mxu0 %v226
    %3294 = vmatprep.subr.mxu0 0.0
    %3295 = vmatpush1.msra.mxu0 %v227
    %3296 = vmatprep.subr.mxu0 0.0
    %3297 = vmatpush1.msra.mxu0 %v228
    %3298 = vmatprep.subr.mxu0 0.0
    %3299 = vmatpush1.msra.mxu0 %v229
    %3300 = vmatprep.subr.mxu0 0.0
    %3301 = vmatpush1.msra.mxu0 %v230
    %3302 = vmatprep.subr.mxu0 0.0
    %3303 = vmatpush1.msra.mxu0 %v231
    %3304 = vmatprep.subr.mxu0 0.0
    %3305 = vmatpush1.msra.mxu0 %v232
    %3306 = vmatprep.subr.mxu0 0.0
    %3307 = vmatpush1.msra.mxu0 %v233
    %3308 = vmatprep.subr.mxu0 0.0
    %3309 = vmatpush1.msra.mxu0 %v234
    %3310 = vmatprep.subr.mxu0 0.0
    %3311 = vmatpush1.msra.mxu0 %v235
    %3312 = vmatprep.subr.mxu0 0.0
    %3313 = vmatpush1.msra.mxu0 %v236
    %3314 = vmatprep.subr.mxu0 0.0
    %3315 = vmatpush1.msra.mxu0 %v237
    %3316 = vmatprep.subr.mxu0 0.0
    %3317 = vmatpush1.msra.mxu0 %v238
    %3318 = vmatprep.subr.mxu0 0.0
    %3319 = vmatpush1.msra.mxu0 %v239
    %3320 = vmatprep.subr.mxu0 0.0
    %3321 = vmatpush1.msra.mxu0 %v240
    %3322 = vmatprep.subr.mxu0 0.0
    %3323 = vmatpush1.msra.mxu0 %v241
    %3324 = vmatprep.subr.mxu0 0.0
    %3325 = vmatpush1.msra.mxu0 %v242
    %3326 = vmatprep.subr.mxu0 0.0
    %3327 = vmatpush1.msra.mxu0 %v243
    %3328 = vmatprep.subr.mxu0 0.0
    %3329 = vmatpush1.msra.mxu0 %v244
    %3330 = vmatprep.subr.mxu0 0.0
    %3331 = vmatpush1.msra.mxu0 %v245
    %3332 = vmatprep.subr.mxu0 0.0
    %3333 = vmatpush1.msra.mxu0 %v246
    %3334 = vmatprep.subr.mxu0 0.0
    %3335 = vmatpush1.msra.mxu0 %v247
    %3336 = vmatprep.subr.mxu0 0.0
    %3337 = vmatpush1.msra.mxu0 %v248
    %3338 = vmatprep.subr.mxu0 0.0
    %3339 = vmatpush1.msra.mxu0 %v249
    %3340 = vmatprep.subr.mxu0 0.0
    %3341 = vmatpush1.msra.mxu0 %v250
    %3342 = vmatprep.mubr.f32.mxu0 %v2347
    %3343 = vmatmul.mubr.f32.gmra.mrb[0].mxu0 %v2346
    %v3344 = vpop.f32.mrb[0].mxu0
    %v3345 = vadd.f32 %v3120, %v3344
    %v3346 = vpop.f32.mrb[0].mxu0
    %3347 = vmatprep.mubr.f32.mxu0 %v2355
    %3348 = vmatmul.mubr.f32.gmra.mrb[0].mxu0 %v2354
    %v3349 = vpop.f32.mrb[0].mxu0
    %v3350 = vadd.f32 %v3125, %v3349
    %v3351 = vpop.f32.mrb[0].mxu0
    %3352 = vmatprep.mubr.f32.mxu0 %v2363
    %3353 = vmatmul.mubr.f32.gmra.mrb[0].mxu0 %v2362
    %v3354 = vpop.f32.mrb[0].mxu0
    %v3355 = vadd.f32 %v3130, %v3354
    %v3356 = vpop.f32.mrb[0].mxu0
    %3357 = vmatprep.mubr.f32.mxu0 %v2371
    %3358 = vmatmul.mubr.f32.gmra.mrb[0].mxu0 %v2370
    %v3359 = vpop.f32.mrb[0].mxu0
    %v3360 = vadd.f32 %v3135, %v3359
    %v3361 = vpop.f32.mrb[0].mxu0
    %3362 = vmatprep.mubr.f32.mxu0 %v2379
    %3363 = vmatmul.mubr.f32.gmra.mrb[0].mxu0 %v2378
    %v3364 = vpop.f32.mrb[0].mxu0
    %v3365 = vadd.f32 %v3140, %v3364
    %v3366 = vpop.f32.mrb[0].mxu0
    %3367 = vmatprep.mubr.f32.mxu0 %v2387
    %3368 = vmatmul.mubr.f32.gmra.mrb[0].mxu0 %v2386
    %v3369 = vpop.f32.mrb[0].mxu0
    %v3370 = vadd.f32 %v3145, %v3369
    %v3371 = vpop.f32.mrb[0].mxu0
    %3372 = vmatprep.mubr.f32.mxu0 %v2395
    %3373 = vmatmul.mubr.f32.gmra.mrb[0].mxu0 %v2394
    %v3374 = vpop.f32.mrb[0].mxu0
    %v3375 = vadd.f32 %v3150, %v3374
    %v3376 = vpop.f32.mrb[0].mxu0
    %3377 = vmatprep.mubr.f32.mxu0 %v2403
    %3378 = vmatmul.mubr.f32.gmra.mrb[0].mxu0 %v2402
    %v3379 = vpop.f32.mrb[0].mxu0
    %v3380 = vadd.f32 %v3155, %v3379
    %v3381 = vpop.f32.mrb[0].mxu0
    %3382 = vmatprep.mubr.f32.mxu0 %v2411
    %3383 = vmatmul.mubr.f32.gmra.mrb[0].mxu0 %v2410
    %v3384 = vpop.f32.mrb[0].mxu0
    %v3385 = vadd.f32 %v3160, %v3384
    %v3386 = vpop.f32.mrb[0].mxu0
    %3387 = vmatprep.mubr.f32.mxu0 %v2419
    %3388 = vmatmul.mubr.f32.gmra.mrb[0].mxu0 %v2418
    %v3389 = vpop.f32.mrb[0].mxu0
    %v3390 = vadd.f32 %v3165, %v3389
    %v3391 = vpop.f32.mrb[0].mxu0
    %3392 = vmatprep.mubr.f32.mxu0 %v2427
    %3393 = vmatmul.mubr.f32.gmra.mrb[0].mxu0 %v2426
    %v3394 = vpop.f32.mrb[0].mxu0
    %v3395 = vadd.f32 %v3170, %v3394
    %v3396 = vpop.f32.mrb[0].mxu0
    %3397 = vmatprep.mubr.f32.mxu0 %v2435
    %3398 = vmatmul.mubr.f32.gmra.mrb[0].mxu0 %v2434
    %v3399 = vpop.f32.mrb[0].mxu0
    %v3400 = vadd.f32 %v3175, %v3399
    %v3401 = vpop.f32.mrb[0].mxu0
    %3402 = vmatprep.mubr.f32.mxu0 %v2443
    %3403 = vmatmul.mubr.f32.gmra.mrb[0].mxu0 %v2442
    %v3404 = vpop.f32.mrb[0].mxu0
    %v3405 = vadd.f32 %v3180, %v3404
    %v3406 = vpop.f32.mrb[0].mxu0
    %3407 = vmatprep.mubr.f32.mxu0 %v2451
    %3408 = vmatmul.mubr.f32.gmra.mrb[0].mxu0 %v2450
    %v3409 = vpop.f32.mrb[0].mxu0
    %v3410 = vadd.f32 %v3185, %v3409
    %v3411 = vpop.f32.mrb[0].mxu0
    %3412 = vmatprep.mubr.f32.mxu0 %v2459
    %3413 = vmatmul.mubr.f32.gmra.mrb[0].mxu0 %v2458
    %v3414 = vpop.f32.mrb[0].mxu0
    %v3415 = vadd.f32 %v3190, %v3414
    %v3416 = vpop.f32.mrb[0].mxu0
    %3417 = vmatprep.mubr.f32.mxu0 %v2467
    %3418 = vmatmul.mubr.f32.gmra.mrb[0].mxu0 %v2466
    %v3419 = vpop.f32.mrb[0].mxu0
    %v3420 = vadd.f32 %v3195, %v3419
    %v3421 = vpop.f32.mrb[0].mxu0
    %3422 = vmatprep.mubr.f32.mxu0 %v2475
    %3423 = vmatmul.mubr.f32.gmra.mrb[0].mxu0 %v2474
    %v3424 = vpop.f32.mrb[0].mxu0
    %v3425 = vadd.f32 %v3200, %v3424
    %v3426 = vpop.f32.mrb[0].mxu0
    %3427 = vmatprep.mubr.f32.mxu0 %v2483
    %3428 = vmatmul.mubr.f32.gmra.mrb[0].mxu0 %v2482
    %v3429 = vpop.f32.mrb[0].mxu0
    %v3430 = vadd.f32 %v3205, %v3429
    %v3431 = vpop.f32.mrb[0].mxu0
    %3432 = vmatprep.mubr.f32.mxu0 %v2491
    %3433 = vmatmul.mubr.f32.gmra.mrb[0].mxu0 %v2490
    %v3434 = vpop.f32.mrb[0].mxu0
    %v3435 = vadd.f32 %v3210, %v3434
    %v3436 = vpop.f32.mrb[0].mxu0
    %3437 = vmatprep.mubr.f32.mxu0 %v2499
    %3438 = vmatmul.mubr.f32.gmra.mrb[0].mxu0 %v2498
    %v3439 = vpop.f32.mrb[0].mxu0
    %v3440 = vadd.f32 %v3215, %v3439
    %v3441 = vpop.f32.mrb[0].mxu0
    %3442 = vmatprep.mubr.f32.mxu0 %v2507
    %3443 = vmatmul.mubr.f32.gmra.mrb[0].mxu0 %v2506
    %v3444 = vpop.f32.mrb[0].mxu0
    %v3445 = vadd.f32 %v3220, %v3444
    %v3446 = vpop.f32.mrb[0].mxu0
    %3447 = vmatprep.mubr.f32.mxu0 %v2515
    %3448 = vmatmul.mubr.f32.gmra.mrb[0].mxu0 %v2514
    %v3449 = vpop.f32.mrb[0].mxu0
    %v3450 = vadd.f32 %v3225, %v3449
    %v3451 = vpop.f32.mrb[0].mxu0
    %3452 = vmatprep.mubr.f32.mxu0 %v2523
    %3453 = vmatmul.mubr.f32.gmra.mrb[0].mxu0 %v2522
    %v3454 = vpop.f32.mrb[0].mxu0
    %v3455 = vadd.f32 %v3230, %v3454
    %v3456 = vpop.f32.mrb[0].mxu0
    %3457 = vmatprep.mubr.f32.mxu0 %v2531
    %3458 = vmatmul.mubr.f32.gmra.mrb[0].mxu0 %v2530
    %v3459 = vpop.f32.mrb[0].mxu0
    %v3460 = vadd.f32 %v3235, %v3459
    %v3461 = vpop.f32.mrb[0].mxu0
    %3462 = vmatprep.mubr.f32.mxu0 %v2539
    %3463 = vmatmul.mubr.f32.gmra.mrb[0].mxu0 %v2538
    %v3464 = vpop.f32.mrb[0].mxu0
    %v3465 = vadd.f32 %v3240, %v3464
    %v3466 = vpop.f32.mrb[0].mxu0
    %3467 = vmatprep.mubr.f32.mxu0 %v2547
    %3468 = vmatmul.mubr.f32.gmra.mrb[0].mxu0 %v2546
    %v3469 = vpop.f32.mrb[0].mxu0
    %v3470 = vadd.f32 %v3245, %v3469
    %v3471 = vpop.f32.mrb[0].mxu0
    %3472 = vmatprep.mubr.f32.mxu0 %v2555
    %3473 = vmatmul.mubr.f32.gmra.mrb[0].mxu0 %v2554
    %v3474 = vpop.f32.mrb[0].mxu0
    %v3475 = vadd.f32 %v3250, %v3474
    %v3476 = vpop.f32.mrb[0].mxu0
    %3477 = vmatprep.mubr.f32.mxu0 %v2563
    %3478 = vmatmul.mubr.f32.gmra.mrb[0].mxu0 %v2562
    %v3479 = vpop.f32.mrb[0].mxu0
    %v3480 = vadd.f32 %v3255, %v3479
    %v3481 = vpop.f32.mrb[0].mxu0
    %3482 = vmatprep.mubr.f32.mxu0 %v2571
    %3483 = vmatmul.mubr.f32.gmra.mrb[0].mxu0 %v2570
    %v3484 = vpop.f32.mrb[0].mxu0
    %v3485 = vadd.f32 %v3260, %v3484
    %v3486 = vpop.f32.mrb[0].mxu0
    %3487 = vmatprep.mubr.f32.mxu0 %v2579
    %3488 = vmatmul.mubr.f32.gmra.mrb[0].mxu0 %v2578
    %v3489 = vpop.f32.mrb[0].mxu0
    %v3490 = vadd.f32 %v3265, %v3489
    %v3491 = vpop.f32.mrb[0].mxu0
    %3492 = vmatprep.mubr.f32.mxu0 %v2587
    %3493 = vmatmul.mubr.f32.gmra.mrb[0].mxu0 %v2586
    %v3494 = vpop.f32.mrb[0].mxu0
    %v3495 = vadd.f32 %v3270, %v3494
    %v3496 = vpop.f32.mrb[0].mxu0
    %3497 = vmatprep.mubr.f32.mxu0 %v2595
    %3498 = vmatmul.mubr.f32.gmra.mrb[0].mxu0 %v2594
    %v3499 = vpop.f32.mrb[0].mxu0
    %v3500 = vadd.f32 %v3275, %v3499
    %v3501 = vpop.f32.mrb[0].mxu0
    %3502 = vdwg.mxu0
    %v3503 = vld [vmem:[%s2] sm:$0xff]
    %v3504 = vld [vmem:[%s2 + $0x8] sm:$0xff]
    %v3505 = vld [vmem:[%s2 + $0x10] sm:$0xff]
    %v3506 = vld [vmem:[%s2 + $0x18] sm:$0xff]
    %v3507 = vld [vmem:[%s2 + $0x20] sm:$0xff]
    %v3508 = vld [vmem:[%s2 + $0x28] sm:$0xff]
    %v3509 = vld [vmem:[%s2 + $0x30] sm:$0xff]
    %v3510 = vld [vmem:[%s2 + $0x38] sm:$0xff]
    %v3511 = vld [vmem:[%s2 + $0x40] sm:$0xff]
    %v3512 = vld [vmem:[%s2 + $0x48] sm:$0xff]
    %v3513 = vld [vmem:[%s2 + $0x50] sm:$0xff]
    %v3514 = vld [vmem:[%s2 + $0x58] sm:$0xff]
    %v3515 = vld [vmem:[%s2 + $0x60] sm:$0xff]
    %v3516 = vld [vmem:[%s2 + $0x68] sm:$0xff]
    %v3517 = vld [vmem:[%s2 + $0x70] sm:$0xff]
    %v3518 = vld [vmem:[%s2 + $0x78] sm:$0xff]
    %3519 = vrot.lane.b32.xlu0 %v75, 64
    %v3520 = vpop.permute.xlu0 %3519
    %3521 = vrot.lane.b32.xlu0 %v76, 64
    %v3522 = vpop.permute.xlu0 %3521
    %3523 = vrot.lane.b32.xlu0 %v77, 64
    %v3524 = vpop.permute.xlu0 %3523
    %3525 = vrot.lane.b32.xlu0 %v78, 64
    %v3526 = vpop.permute.xlu0 %3525
    %3527 = vrot.lane.b32.xlu0 %v79, 64
    %v3528 = vpop.permute.xlu0 %3527
    %3529 = vrot.lane.b32.xlu0 %v80, 64
    %v3530 = vpop.permute.xlu0 %3529
    %3531 = vrot.lane.b32.xlu0 %v81, 64
    %v3532 = vpop.permute.xlu0 %3531
    %3533 = vrot.lane.b32.xlu0 %v82, 64
    %v3534 = vpop.permute.xlu0 %3533
    %3535 = vrot.lane.b32.xlu0 %v83, 64
    %v3536 = vpop.permute.xlu0 %3535
    %3537 = vrot.lane.b32.xlu0 %v84, 64
    %v3538 = vpop.permute.xlu0 %3537
    %3539 = vrot.lane.b32.xlu0 %v85, 64
    %v3540 = vpop.permute.xlu0 %3539
    %3541 = vrot.lane.b32.xlu0 %v86, 64
    %v3542 = vpop.permute.xlu0 %3541
    %3543 = vrot.lane.b32.xlu0 %v87, 64
    %v3544 = vpop.permute.xlu0 %3543
    %3545 = vrot.lane.b32.xlu0 %v88, 64
    %v3546 = vpop.permute.xlu0 %3545
    %3547 = vrot.lane.b32.xlu0 %v89, 64
    %v3548 = vpop.permute.xlu0 %3547
    %3549 = vrot.lane.b32.xlu0 %v90, 64
    %v3550 = vpop.permute.xlu0 %3549
    %v3567 = vunpack.c.l.b16 %v3503
    %v3568 = vunpack.c.h.b16 %v3503
    %v3569 = vunpack.c.l.b16 %v3504
    %v3570 = vunpack.c.h.b16 %v3504
    %v3571 = vunpack.c.l.b16 %v3505
    %v3572 = vunpack.c.h.b16 %v3505
    %v3573 = vunpack.c.l.b16 %v3506
    %v3574 = vunpack.c.h.b16 %v3506
    %v3575 = vunpack.c.l.b16 %v3507
    %v3576 = vunpack.c.h.b16 %v3507
    %v3577 = vunpack.c.l.b16 %v3508
    %v3578 = vunpack.c.h.b16 %v3508
    %v3579 = vunpack.c.l.b16 %v3509
    %v3580 = vunpack.c.h.b16 %v3509
    %v3581 = vunpack.c.l.b16 %v3510
    %v3582 = vunpack.c.h.b16 %v3510
    %v3583 = vunpack.c.l.b16 %v3511
    %v3584 = vunpack.c.h.b16 %v3511
    %v3585 = vunpack.c.l.b16 %v3512
    %v3586 = vunpack.c.h.b16 %v3512
    %v3587 = vunpack.c.l.b16 %v3513
    %v3588 = vunpack.c.h.b16 %v3513
    %v3589 = vunpack.c.l.b16 %v3514
    %v3590 = vunpack.c.h.b16 %v3514
    %v3591 = vunpack.c.l.b16 %v3515
    %v3592 = vunpack.c.h.b16 %v3515
    %v3593 = vunpack.c.l.b16 %v3516
    %v3594 = vunpack.c.h.b16 %v3516
    %v3595 = vunpack.c.l.b16 %v3517
    %v3596 = vunpack.c.h.b16 %v3517
    %v3597 = vunpack.c.l.b16 %v3518
    %v3598 = vunpack.c.h.b16 %v3518
    %v3599 = vpack.c.b16 %v3575, %v3567
    %v3600 = vpack.c.b16 %v3576, %v3568
    %v3601 = vpack.c.b16 %v3577, %v3569
    %v3602 = vpack.c.b16 %v3578, %v3570
    %v3603 = vpack.c.b16 %v3579, %v3571
    %v3604 = vpack.c.b16 %v3580, %v3572
    %v3605 = vpack.c.b16 %v3581, %v3573
    %v3606 = vpack.c.b16 %v3582, %v3574
    %v3607 = vpack.c.b16 %v3591, %v3583
    %v3608 = vpack.c.b16 %v3592, %v3584
    %v3609 = vpack.c.b16 %v3593, %v3585
    %v3610 = vpack.c.b16 %v3594, %v3586
    %v3611 = vpack.c.b16 %v3595, %v3587
    %v3612 = vpack.c.b16 %v3596, %v3588
    %v3613 = vpack.c.b16 %v3597, %v3589
    %v3614 = vpack.c.b16 %v3598, %v3590
    %v3632 = vsel %vm395, %v3520, 0
    %v3635 = vsel %vm395, %v3522, 0
    %v3638 = vsel %vm395, %v3524, 0
    %v3641 = vsel %vm395, %v3526, 0
    %v3644 = vsel %vm395, %v3528, 0
    %v3647 = vsel %vm395, %v3530, 0
    %v3650 = vsel %vm395, %v3532, 0
    %v3653 = vsel %vm395, %v3534, 0
    %v3656 = vsel %vm395, %v3536, 0
    %v3659 = vsel %vm395, %v3538, 0
    %v3662 = vsel %vm395, %v3540, 0
    %v3665 = vsel %vm395, %v3542, 0
    %v3668 = vsel %vm395, %v3544, 0
    %v3671 = vsel %vm395, %v3546, 0
    %v3674 = vsel %vm395, %v3548, 0
    %v3677 = vsel %vm395, %v3550, 0
    %3679 = vmatprep.subr.bf16.mxu0 %v3600
    %3680 = vmatpush1.bf16.msra.mxu0 %v3599
    %3681 = vmatprep.subr.bf16.mxu0 %v3608
    %3682 = vmatpush1.bf16.msra.mxu0 %v3607
    %3683 = vmatprep.subr.bf16.mxu0 0
    %3684 = vmatpush1.bf16.msra.mxu0 0
    %3685 = vmatprep.subr.bf16.mxu0 0
    %3686 = vmatpush1.bf16.msra.mxu0 0
    %3687 = vmatprep.subr.bf16.mxu0 0
    %3688 = vmatpush1.bf16.msra.mxu0 0
    %3689 = vmatprep.subr.bf16.mxu0 0
    %3690 = vmatpush1.bf16.msra.mxu0 0
    %3691 = vmatprep.subr.bf16.mxu0 0
    %3692 = vmatpush1.bf16.msra.mxu0 0
    %3693 = vmatprep.subr.bf16.mxu0 0
    %3694 = vmatpush1.bf16.msra.mxu0 0
    %3695 = vmatprep.subr.bf16.mxu0 0
    %3696 = vmatpush1.bf16.msra.mxu0 0
    %3697 = vmatprep.subr.bf16.mxu0 0
    %3698 = vmatpush1.bf16.msra.mxu0 0
    %3699 = vmatprep.subr.bf16.mxu0 0
    %3700 = vmatpush1.bf16.msra.mxu0 0
    %3701 = vmatprep.subr.bf16.mxu0 0
    %3702 = vmatpush1.bf16.msra.mxu0 0
    %3703 = vmatprep.subr.bf16.mxu0 0
    %3704 = vmatpush1.bf16.msra.mxu0 0
    %3705 = vmatprep.subr.bf16.mxu0 0
    %3706 = vmatpush1.bf16.msra.mxu0 0
    %3707 = vmatprep.subr.bf16.mxu0 0
    %3708 = vmatpush1.bf16.msra.mxu0 0
    %3709 = vmatprep.subr.bf16.mxu0 0
    %3710 = vmatpush1.bf16.msra.mxu0 0
    %3711 = vmatprep.mubr.bf16.mxu0 0
    %3712 = vmatmul.mubr.bf16.gmra.mrb[0].mxu0 %v3632
    %v3713 = vpop.f32.mrb[0].mxu0
    %v3714 = vadd.f32 0.0, %v3713
    %v3715 = vpop.f32.mrb[0].mxu0
    %v3716 = vadd.f32 0.0, %v3715
    %v3717 = vpop.f32.mrb[0].mxu0
    %v3718 = vadd.f32 0.0, %v3717
    %v3719 = vpop.f32.mrb[0].mxu0
    %v3720 = vadd.f32 0.0, %v3719
    %3721 = vmatprep.mubr.bf16.mxu0 0
    %3722 = vmatmul.mubr.bf16.gmra.mrb[0].mxu0 %v3635
    %v3723 = vpop.f32.mrb[0].mxu0
    %v3724 = vadd.f32 0.0, %v3723
    %v3725 = vpop.f32.mrb[0].mxu0
    %v3726 = vadd.f32 0.0, %v3725
    %v3727 = vpop.f32.mrb[0].mxu0
    %v3728 = vadd.f32 0.0, %v3727
    %v3729 = vpop.f32.mrb[0].mxu0
    %v3730 = vadd.f32 0.0, %v3729
    %3731 = vmatprep.mubr.bf16.mxu0 0
    %3732 = vmatmul.mubr.bf16.gmra.mrb[0].mxu0 %v3638
    %v3733 = vpop.f32.mrb[0].mxu0
    %v3734 = vadd.f32 0.0, %v3733
    %v3735 = vpop.f32.mrb[0].mxu0
    %v3736 = vadd.f32 0.0, %v3735
    %v3737 = vpop.f32.mrb[0].mxu0
    %v3738 = vadd.f32 0.0, %v3737
    %v3739 = vpop.f32.mrb[0].mxu0
    %v3740 = vadd.f32 0.0, %v3739
    %3741 = vmatprep.mubr.bf16.mxu0 0
    %3742 = vmatmul.mubr.bf16.gmra.mrb[0].mxu0 %v3641
    %v3743 = vpop.f32.mrb[0].mxu0
    %v3744 = vadd.f32 0.0, %v3743
    %v3745 = vpop.f32.mrb[0].mxu0
    %v3746 = vadd.f32 0.0, %v3745
    %v3747 = vpop.f32.mrb[0].mxu0
    %v3748 = vadd.f32 0.0, %v3747
    %v3749 = vpop.f32.mrb[0].mxu0
    %v3750 = vadd.f32 0.0, %v3749
    %3751 = vmatprep.mubr.bf16.mxu0 0
    %3752 = vmatmul.mubr.bf16.gmra.mrb[0].mxu0 %v3644
    %v3753 = vpop.f32.mrb[0].mxu0
    %v3754 = vadd.f32 0.0, %v3753
    %v3755 = vpop.f32.mrb[0].mxu0
    %v3756 = vadd.f32 0.0, %v3755
    %v3757 = vpop.f32.mrb[0].mxu0
    %v3758 = vadd.f32 0.0, %v3757
    %v3759 = vpop.f32.mrb[0].mxu0
    %v3760 = vadd.f32 0.0, %v3759
    %3761 = vmatprep.mubr.bf16.mxu0 0
    %3762 = vmatmul.mubr.bf16.gmra.mrb[0].mxu0 %v3647
    %v3763 = vpop.f32.mrb[0].mxu0
    %v3764 = vadd.f32 0.0, %v3763
    %v3765 = vpop.f32.mrb[0].mxu0
    %v3766 = vadd.f32 0.0, %v3765
    %v3767 = vpop.f32.mrb[0].mxu0
    %v3768 = vadd.f32 0.0, %v3767
    %v3769 = vpop.f32.mrb[0].mxu0
    %v3770 = vadd.f32 0.0, %v3769
    %3771 = vmatprep.mubr.bf16.mxu0 0
    %3772 = vmatmul.mubr.bf16.gmra.mrb[0].mxu0 %v3650
    %v3773 = vpop.f32.mrb[0].mxu0
    %v3774 = vadd.f32 0.0, %v3773
    %v3775 = vpop.f32.mrb[0].mxu0
    %v3776 = vadd.f32 0.0, %v3775
    %v3777 = vpop.f32.mrb[0].mxu0
    %v3778 = vadd.f32 0.0, %v3777
    %v3779 = vpop.f32.mrb[0].mxu0
    %v3780 = vadd.f32 0.0, %v3779
    %3781 = vmatprep.mubr.bf16.mxu0 0
    %3782 = vmatmul.mubr.bf16.gmra.mrb[0].mxu0 %v3653
    %v3783 = vpop.f32.mrb[0].mxu0
    %v3784 = vadd.f32 0.0, %v3783
    %v3785 = vpop.f32.mrb[0].mxu0
    %v3786 = vadd.f32 0.0, %v3785
    %v3787 = vpop.f32.mrb[0].mxu0
    %v3788 = vadd.f32 0.0, %v3787
    %v3789 = vpop.f32.mrb[0].mxu0
    %v3790 = vadd.f32 0.0, %v3789
    %3791 = vmatprep.mubr.bf16.mxu0 0
    %3792 = vmatmul.mubr.bf16.gmra.mrb[0].mxu0 %v3656
    %v3793 = vpop.f32.mrb[0].mxu0
    %v3794 = vadd.f32 0.0, %v3793
    %v3795 = vpop.f32.mrb[0].mxu0
    %v3796 = vadd.f32 0.0, %v3795
    %v3797 = vpop.f32.mrb[0].mxu0
    %v3798 = vadd.f32 0.0, %v3797
    %v3799 = vpop.f32.mrb[0].mxu0
    %v3800 = vadd.f32 0.0, %v3799
    %3801 = vmatprep.mubr.bf16.mxu0 0
    %3802 = vmatmul.mubr.bf16.gmra.mrb[0].mxu0 %v3659
    %v3803 = vpop.f32.mrb[0].mxu0
    %v3804 = vadd.f32 0.0, %v3803
    %v3805 = vpop.f32.mrb[0].mxu0
    %v3806 = vadd.f32 0.0, %v3805
    %v3807 = vpop.f32.mrb[0].mxu0
    %v3808 = vadd.f32 0.0, %v3807
    %v3809 = vpop.f32.mrb[0].mxu0
    %v3810 = vadd.f32 0.0, %v3809
    %3811 = vmatprep.mubr.bf16.mxu0 0
    %3812 = vmatmul.mubr.bf16.gmra.mrb[0].mxu0 %v3662
    %v3813 = vpop.f32.mrb[0].mxu0
    %v3814 = vadd.f32 0.0, %v3813
    %v3815 = vpop.f32.mrb[0].mxu0
    %v3816 = vadd.f32 0.0, %v3815
    %v3817 = vpop.f32.mrb[0].mxu0
    %v3818 = vadd.f32 0.0, %v3817
    %v3819 = vpop.f32.mrb[0].mxu0
    %v3820 = vadd.f32 0.0, %v3819
    %3821 = vmatprep.mubr.bf16.mxu0 0
    %3822 = vmatmul.mubr.bf16.gmra.mrb[0].mxu0 %v3665
    %v3823 = vpop.f32.mrb[0].mxu0
    %v3824 = vadd.f32 0.0, %v3823
    %v3825 = vpop.f32.mrb[0].mxu0
    %v3826 = vadd.f32 0.0, %v3825
    %v3827 = vpop.f32.mrb[0].mxu0
    %v3828 = vadd.f32 0.0, %v3827
    %v3829 = vpop.f32.mrb[0].mxu0
    %v3830 = vadd.f32 0.0, %v3829
    %3831 = vmatprep.mubr.bf16.mxu0 0
    %3832 = vmatmul.mubr.bf16.gmra.mrb[0].mxu0 %v3668
    %v3833 = vpop.f32.mrb[0].mxu0
    %v3834 = vadd.f32 0.0, %v3833
    %v3835 = vpop.f32.mrb[0].mxu0
    %v3836 = vadd.f32 0.0, %v3835
    %v3837 = vpop.f32.mrb[0].mxu0
    %v3838 = vadd.f32 0.0, %v3837
    %v3839 = vpop.f32.mrb[0].mxu0
    %v3840 = vadd.f32 0.0, %v3839
    %3841 = vmatprep.mubr.bf16.mxu0 0
    %3842 = vmatmul.mubr.bf16.gmra.mrb[0].mxu0 %v3671
    %v3843 = vpop.f32.mrb[0].mxu0
    %v3844 = vadd.f32 0.0, %v3843
    %v3845 = vpop.f32.mrb[0].mxu0
    %v3846 = vadd.f32 0.0, %v3845
    %v3847 = vpop.f32.mrb[0].mxu0
    %v3848 = vadd.f32 0.0, %v3847
    %v3849 = vpop.f32.mrb[0].mxu0
    %v3850 = vadd.f32 0.0, %v3849
    %3851 = vmatprep.mubr.bf16.mxu0 0
    %3852 = vmatmul.mubr.bf16.gmra.mrb[0].mxu0 %v3674
    %v3853 = vpop.f32.mrb[0].mxu0
    %v3854 = vadd.f32 0.0, %v3853
    %v3855 = vpop.f32.mrb[0].mxu0
    %v3856 = vadd.f32 0.0, %v3855
    %v3857 = vpop.f32.mrb[0].mxu0
    %v3858 = vadd.f32 0.0, %v3857
    %v3859 = vpop.f32.mrb[0].mxu0
    %v3860 = vadd.f32 0.0, %v3859
    %3861 = vmatprep.mubr.bf16.mxu0 0
    %3862 = vmatmul.mubr.bf16.gmra.mrb[0].mxu0 %v3677
    %v3863 = vpop.f32.mrb[0].mxu0
    %v3864 = vadd.f32 0.0, %v3863
    %v3865 = vpop.f32.mrb[0].mxu0
    %v3866 = vadd.f32 0.0, %v3865
    %v3867 = vpop.f32.mrb[0].mxu0
    %v3868 = vadd.f32 0.0, %v3867
    %v3869 = vpop.f32.mrb[0].mxu0
    %v3870 = vadd.f32 0.0, %v3869
    %3871 = vdwg.mxu0
    %3872 = vmatprep.subr.bf16.mxu0 %v3602
    %3873 = vmatpush1.bf16.msra.mxu0 %v3601
    %3874 = vmatprep.subr.bf16.mxu0 %v3610
    %3875 = vmatpush1.bf16.msra.mxu0 %v3609
    %3876 = vmatprep.subr.bf16.mxu0 0
    %3877 = vmatpush1.bf16.msra.mxu0 0
    %3878 = vmatprep.subr.bf16.mxu0 0
    %3879 = vmatpush1.bf16.msra.mxu0 0
    %3880 = vmatprep.subr.bf16.mxu0 0
    %3881 = vmatpush1.bf16.msra.mxu0 0
    %3882 = vmatprep.subr.bf16.mxu0 0
    %3883 = vmatpush1.bf16.msra.mxu0 0
    %3884 = vmatprep.subr.bf16.mxu0 0
    %3885 = vmatpush1.bf16.msra.mxu0 0
    %3886 = vmatprep.subr.bf16.mxu0 0
    %3887 = vmatpush1.bf16.msra.mxu0 0
    %3888 = vmatprep.subr.bf16.mxu0 0
    %3889 = vmatpush1.bf16.msra.mxu0 0
    %3890 = vmatprep.subr.bf16.mxu0 0
    %3891 = vmatpush1.bf16.msra.mxu0 0
    %3892 = vmatprep.subr.bf16.mxu0 0
    %3893 = vmatpush1.bf16.msra.mxu0 0
    %3894 = vmatprep.subr.bf16.mxu0 0
    %3895 = vmatpush1.bf16.msra.mxu0 0
    %3896 = vmatprep.subr.bf16.mxu0 0
    %3897 = vmatpush1.bf16.msra.mxu0 0
    %3898 = vmatprep.subr.bf16.mxu0 0
    %3899 = vmatpush1.bf16.msra.mxu0 0
    %3900 = vmatprep.subr.bf16.mxu0 0
    %3901 = vmatpush1.bf16.msra.mxu0 0
    %3902 = vmatprep.subr.bf16.mxu0 0
    %3903 = vmatpush1.bf16.msra.mxu0 0
    %3904 = vmatprep.mubr.bf16.mxu0 0
    %3905 = vmatmul.mubr.bf16.gmra.mrb[0].mxu0 %v3632
    %v3906 = vpop.f32.mrb[0].mxu0
    %v3907 = vadd.f32 0.0, %v3906
    %v3908 = vpop.f32.mrb[0].mxu0
    %v3909 = vadd.f32 0.0, %v3908
    %v3910 = vpop.f32.mrb[0].mxu0
    %v3911 = vadd.f32 0.0, %v3910
    %v3912 = vpop.f32.mrb[0].mxu0
    %v3913 = vadd.f32 0.0, %v3912
    %3914 = vmatprep.mubr.bf16.mxu0 0
    %3915 = vmatmul.mubr.bf16.gmra.mrb[0].mxu0 %v3635
    %v3916 = vpop.f32.mrb[0].mxu0
    %v3917 = vadd.f32 0.0, %v3916
    %v3918 = vpop.f32.mrb[0].mxu0
    %v3919 = vadd.f32 0.0, %v3918
    %v3920 = vpop.f32.mrb[0].mxu0
    %v3921 = vadd.f32 0.0, %v3920
    %v3922 = vpop.f32.mrb[0].mxu0
    %v3923 = vadd.f32 0.0, %v3922
    %3924 = vmatprep.mubr.bf16.mxu0 0
    %3925 = vmatmul.mubr.bf16.gmra.mrb[0].mxu0 %v3638
    %v3926 = vpop.f32.mrb[0].mxu0
    %v3927 = vadd.f32 0.0, %v3926
    %v3928 = vpop.f32.mrb[0].mxu0
    %v3929 = vadd.f32 0.0, %v3928
    %v3930 = vpop.f32.mrb[0].mxu0
    %v3931 = vadd.f32 0.0, %v3930
    %v3932 = vpop.f32.mrb[0].mxu0
    %v3933 = vadd.f32 0.0, %v3932
    %3934 = vmatprep.mubr.bf16.mxu0 0
    %3935 = vmatmul.mubr.bf16.gmra.mrb[0].mxu0 %v3641
    %v3936 = vpop.f32.mrb[0].mxu0
    %v3937 = vadd.f32 0.0, %v3936
    %v3938 = vpop.f32.mrb[0].mxu0
    %v3939 = vadd.f32 0.0, %v3938
    %v3940 = vpop.f32.mrb[0].mxu0
    %v3941 = vadd.f32 0.0, %v3940
    %v3942 = vpop.f32.mrb[0].mxu0
    %v3943 = vadd.f32 0.0, %v3942
    %3944 = vmatprep.mubr.bf16.mxu0 0
    %3945 = vmatmul.mubr.bf16.gmra.mrb[0].mxu0 %v3644
    %v3946 = vpop.f32.mrb[0].mxu0
    %v3947 = vadd.f32 0.0, %v3946
    %v3948 = vpop.f32.mrb[0].mxu0
    %v3949 = vadd.f32 0.0, %v3948
    %v3950 = vpop.f32.mrb[0].mxu0
    %v3951 = vadd.f32 0.0, %v3950
    %v3952 = vpop.f32.mrb[0].mxu0
    %v3953 = vadd.f32 0.0, %v3952
    %3954 = vmatprep.mubr.bf16.mxu0 0
    %3955 = vmatmul.mubr.bf16.gmra.mrb[0].mxu0 %v3647
    %v3956 = vpop.f32.mrb[0].mxu0
    %v3957 = vadd.f32 0.0, %v3956
    %v3958 = vpop.f32.mrb[0].mxu0
    %v3959 = vadd.f32 0.0, %v3958
    %v3960 = vpop.f32.mrb[0].mxu0
    %v3961 = vadd.f32 0.0, %v3960
    %v3962 = vpop.f32.mrb[0].mxu0
    %v3963 = vadd.f32 0.0, %v3962
    %3964 = vmatprep.mubr.bf16.mxu0 0
    %3965 = vmatmul.mubr.bf16.gmra.mrb[0].mxu0 %v3650
    %v3966 = vpop.f32.mrb[0].mxu0
    %v3967 = vadd.f32 0.0, %v3966
    %v3968 = vpop.f32.mrb[0].mxu0
    %v3969 = vadd.f32 0.0, %v3968
    %v3970 = vpop.f32.mrb[0].mxu0
    %v3971 = vadd.f32 0.0, %v3970
    %v3972 = vpop.f32.mrb[0].mxu0
    %v3973 = vadd.f32 0.0, %v3972
    %3974 = vmatprep.mubr.bf16.mxu0 0
    %3975 = vmatmul.mubr.bf16.gmra.mrb[0].mxu0 %v3653
    %v3976 = vpop.f32.mrb[0].mxu0
    %v3977 = vadd.f32 0.0, %v3976
    %v3978 = vpop.f32.mrb[0].mxu0
    %v3979 = vadd.f32 0.0, %v3978
    %v3980 = vpop.f32.mrb[0].mxu0
    %v3981 = vadd.f32 0.0, %v3980
    %v3982 = vpop.f32.mrb[0].mxu0
    %v3983 = vadd.f32 0.0, %v3982
    %3984 = vmatprep.mubr.bf16.mxu0 0
    %3985 = vmatmul.mubr.bf16.gmra.mrb[0].mxu0 %v3656
    %v3986 = vpop.f32.mrb[0].mxu0
    %v3987 = vadd.f32 0.0, %v3986
    %v3988 = vpop.f32.mrb[0].mxu0
    %v3989 = vadd.f32 0.0, %v3988
    %v3990 = vpop.f32.mrb[0].mxu0
    %v3991 = vadd.f32 0.0, %v3990
    %v3992 = vpop.f32.mrb[0].mxu0
    %v3993 = vadd.f32 0.0, %v3992
    %3994 = vmatprep.mubr.bf16.mxu0 0
    %3995 = vmatmul.mubr.bf16.gmra.mrb[0].mxu0 %v3659
    %v3996 = vpop.f32.mrb[0].mxu0
    %v3997 = vadd.f32 0.0, %v3996
    %v3998 = vpop.f32.mrb[0].mxu0
    %v3999 = vadd.f32 0.0, %v3998
    %v4000 = vpop.f32.mrb[0].mxu0
    %v4001 = vadd.f32 0.0, %v4000
    %v4002 = vpop.f32.mrb[0].mxu0
    %v4003 = vadd.f32 0.0, %v4002
    %4004 = vmatprep.mubr.bf16.mxu0 0
    %4005 = vmatmul.mubr.bf16.gmra.mrb[0].mxu0 %v3662
    %v4006 = vpop.f32.mrb[0].mxu0
    %v4007 = vadd.f32 0.0, %v4006
    %v4008 = vpop.f32.mrb[0].mxu0
    %v4009 = vadd.f32 0.0, %v4008
    %v4010 = vpop.f32.mrb[0].mxu0
    %v4011 = vadd.f32 0.0, %v4010
    %v4012 = vpop.f32.mrb[0].mxu0
    %v4013 = vadd.f32 0.0, %v4012
    %4014 = vmatprep.mubr.bf16.mxu0 0
    %4015 = vmatmul.mubr.bf16.gmra.mrb[0].mxu0 %v3665
    %v4016 = vpop.f32.mrb[0].mxu0
    %v4017 = vadd.f32 0.0, %v4016
    %v4018 = vpop.f32.mrb[0].mxu0
    %v4019 = vadd.f32 0.0, %v4018
    %v4020 = vpop.f32.mrb[0].mxu0
    %v4021 = vadd.f32 0.0, %v4020
    %v4022 = vpop.f32.mrb[0].mxu0
    %v4023 = vadd.f32 0.0, %v4022
    %4024 = vmatprep.mubr.bf16.mxu0 0
    %4025 = vmatmul.mubr.bf16.gmra.mrb[0].mxu0 %v3668
    %v4026 = vpop.f32.mrb[0].mxu0
    %v4027 = vadd.f32 0.0, %v4026
    %v4028 = vpop.f32.mrb[0].mxu0
    %v4029 = vadd.f32 0.0, %v4028
    %v4030 = vpop.f32.mrb[0].mxu0
    %v4031 = vadd.f32 0.0, %v4030
    %v4032 = vpop.f32.mrb[0].mxu0
    %v4033 = vadd.f32 0.0, %v4032
    %4034 = vmatprep.mubr.bf16.mxu0 0
    %4035 = vmatmul.mubr.bf16.gmra.mrb[0].mxu0 %v3671
    %v4036 = vpop.f32.mrb[0].mxu0
    %v4037 = vadd.f32 0.0, %v4036
    %v4038 = vpop.f32.mrb[0].mxu0
    %v4039 = vadd.f32 0.0, %v4038
    %v4040 = vpop.f32.mrb[0].mxu0
    %v4041 = vadd.f32 0.0, %v4040
    %v4042 = vpop.f32.mrb[0].mxu0
    %v4043 = vadd.f32 0.0, %v4042
    %4044 = vmatprep.mubr.bf16.mxu0 0
    %4045 = vmatmul.mubr.bf16.gmra.mrb[0].mxu0 %v3674
    %v4046 = vpop.f32.mrb[0].mxu0
    %v4047 = vadd.f32 0.0, %v4046
    %v4048 = vpop.f32.mrb[0].mxu0
    %v4049 = vadd.f32 0.0, %v4048
    %v4050 = vpop.f32.mrb[0].mxu0
    %v4051 = vadd.f32 0.0, %v4050
    %v4052 = vpop.f32.mrb[0].mxu0
    %v4053 = vadd.f32 0.0, %v4052
    %4054 = vmatprep.mubr.bf16.mxu0 0
    %4055 = vmatmul.mubr.bf16.gmra.mrb[0].mxu0 %v3677
    %v4056 = vpop.f32.mrb[0].mxu0
    %v4057 = vadd.f32 0.0, %v4056
    %v4058 = vpop.f32.mrb[0].mxu0
    %v4059 = vadd.f32 0.0, %v4058
    %v4060 = vpop.f32.mrb[0].mxu0
    %v4061 = vadd.f32 0.0, %v4060
    %v4062 = vpop.f32.mrb[0].mxu0
    %v4063 = vadd.f32 0.0, %v4062
    %4064 = vdwg.mxu0
    %4065 = vmatprep.subr.bf16.mxu0 %v3604
    %4066 = vmatpush1.bf16.msra.mxu0 %v3603
    %4067 = vmatprep.subr.bf16.mxu0 %v3612
    %4068 = vmatpush1.bf16.msra.mxu0 %v3611
    %4069 = vmatprep.subr.bf16.mxu0 0
    %4070 = vmatpush1.bf16.msra.mxu0 0
    %4071 = vmatprep.subr.bf16.mxu0 0
    %4072 = vmatpush1.bf16.msra.mxu0 0
    %4073 = vmatprep.subr.bf16.mxu0 0
    %4074 = vmatpush1.bf16.msra.mxu0 0
    %4075 = vmatprep.subr.bf16.mxu0 0
    %4076 = vmatpush1.bf16.msra.mxu0 0
    %4077 = vmatprep.subr.bf16.mxu0 0
    %4078 = vmatpush1.bf16.msra.mxu0 0
    %4079 = vmatprep.subr.bf16.mxu0 0
    %4080 = vmatpush1.bf16.msra.mxu0 0
    %4081 = vmatprep.subr.bf16.mxu0 0
    %4082 = vmatpush1.bf16.msra.mxu0 0
    %4083 = vmatprep.subr.bf16.mxu0 0
    %4084 = vmatpush1.bf16.msra.mxu0 0
    %4085 = vmatprep.subr.bf16.mxu0 0
    %4086 = vmatpush1.bf16.msra.mxu0 0
    %4087 = vmatprep.subr.bf16.mxu0 0
    %4088 = vmatpush1.bf16.msra.mxu0 0
    %4089 = vmatprep.subr.bf16.mxu0 0
    %4090 = vmatpush1.bf16.msra.mxu0 0
    %4091 = vmatprep.subr.bf16.mxu0 0
    %4092 = vmatpush1.bf16.msra.mxu0 0
    %4093 = vmatprep.subr.bf16.mxu0 0
    %4094 = vmatpush1.bf16.msra.mxu0 0
    %4095 = vmatprep.subr.bf16.mxu0 0
    %4096 = vmatpush1.bf16.msra.mxu0 0
    %4097 = vmatprep.mubr.bf16.mxu0 0
    %4098 = vmatmul.mubr.bf16.gmra.mrb[0].mxu0 %v3632
    %v4099 = vpop.f32.mrb[0].mxu0
    %v4100 = vadd.f32 0.0, %v4099
    %v4101 = vpop.f32.mrb[0].mxu0
    %v4102 = vadd.f32 0.0, %v4101
    %v4103 = vpop.f32.mrb[0].mxu0
    %v4104 = vadd.f32 0.0, %v4103
    %v4105 = vpop.f32.mrb[0].mxu0
    %v4106 = vadd.f32 0.0, %v4105
    %4107 = vmatprep.mubr.bf16.mxu0 0
    %4108 = vmatmul.mubr.bf16.gmra.mrb[0].mxu0 %v3635
    %v4109 = vpop.f32.mrb[0].mxu0
    %v4110 = vadd.f32 0.0, %v4109
    %v4111 = vpop.f32.mrb[0].mxu0
    %v4112 = vadd.f32 0.0, %v4111
    %v4113 = vpop.f32.mrb[0].mxu0
    %v4114 = vadd.f32 0.0, %v4113
    %v4115 = vpop.f32.mrb[0].mxu0
    %v4116 = vadd.f32 0.0, %v4115
    %4117 = vmatprep.mubr.bf16.mxu0 0
    %4118 = vmatmul.mubr.bf16.gmra.mrb[0].mxu0 %v3638
    %v4119 = vpop.f32.mrb[0].mxu0
    %v4120 = vadd.f32 0.0, %v4119
    %v4121 = vpop.f32.mrb[0].mxu0
    %v4122 = vadd.f32 0.0, %v4121
    %v4123 = vpop.f32.mrb[0].mxu0
    %v4124 = vadd.f32 0.0, %v4123
    %v4125 = vpop.f32.mrb[0].mxu0
    %v4126 = vadd.f32 0.0, %v4125
    %4127 = vmatprep.mubr.bf16.mxu0 0
    %4128 = vmatmul.mubr.bf16.gmra.mrb[0].mxu0 %v3641
    %v4129 = vpop.f32.mrb[0].mxu0
    %v4130 = vadd.f32 0.0, %v4129
    %v4131 = vpop.f32.mrb[0].mxu0
    %v4132 = vadd.f32 0.0, %v4131
    %v4133 = vpop.f32.mrb[0].mxu0
    %v4134 = vadd.f32 0.0, %v4133
    %v4135 = vpop.f32.mrb[0].mxu0
    %v4136 = vadd.f32 0.0, %v4135
    %4137 = vmatprep.mubr.bf16.mxu0 0
    %4138 = vmatmul.mubr.bf16.gmra.mrb[0].mxu0 %v3644
    %v4139 = vpop.f32.mrb[0].mxu0
    %v4140 = vadd.f32 0.0, %v4139
    %v4141 = vpop.f32.mrb[0].mxu0
    %v4142 = vadd.f32 0.0, %v4141
    %v4143 = vpop.f32.mrb[0].mxu0
    %v4144 = vadd.f32 0.0, %v4143
    %v4145 = vpop.f32.mrb[0].mxu0
    %v4146 = vadd.f32 0.0, %v4145
    %4147 = vmatprep.mubr.bf16.mxu0 0
    %4148 = vmatmul.mubr.bf16.gmra.mrb[0].mxu0 %v3647
    %v4149 = vpop.f32.mrb[0].mxu0
    %v4150 = vadd.f32 0.0, %v4149
    %v4151 = vpop.f32.mrb[0].mxu0
    %v4152 = vadd.f32 0.0, %v4151
    %v4153 = vpop.f32.mrb[0].mxu0
    %v4154 = vadd.f32 0.0, %v4153
    %v4155 = vpop.f32.mrb[0].mxu0
    %v4156 = vadd.f32 0.0, %v4155
    %4157 = vmatprep.mubr.bf16.mxu0 0
    %4158 = vmatmul.mubr.bf16.gmra.mrb[0].mxu0 %v3650
    %v4159 = vpop.f32.mrb[0].mxu0
    %v4160 = vadd.f32 0.0, %v4159
    %v4161 = vpop.f32.mrb[0].mxu0
    %v4162 = vadd.f32 0.0, %v4161
    %v4163 = vpop.f32.mrb[0].mxu0
    %v4164 = vadd.f32 0.0, %v4163
    %v4165 = vpop.f32.mrb[0].mxu0
    %v4166 = vadd.f32 0.0, %v4165
    %4167 = vmatprep.mubr.bf16.mxu0 0
    %4168 = vmatmul.mubr.bf16.gmra.mrb[0].mxu0 %v3653
    %v4169 = vpop.f32.mrb[0].mxu0
    %v4170 = vadd.f32 0.0, %v4169
    %v4171 = vpop.f32.mrb[0].mxu0
    %v4172 = vadd.f32 0.0, %v4171
    %v4173 = vpop.f32.mrb[0].mxu0
    %v4174 = vadd.f32 0.0, %v4173
    %v4175 = vpop.f32.mrb[0].mxu0
    %v4176 = vadd.f32 0.0, %v4175
    %4177 = vmatprep.mubr.bf16.mxu0 0
    %4178 = vmatmul.mubr.bf16.gmra.mrb[0].mxu0 %v3656
    %v4179 = vpop.f32.mrb[0].mxu0
    %v4180 = vadd.f32 0.0, %v4179
    %v4181 = vpop.f32.mrb[0].mxu0
    %v4182 = vadd.f32 0.0, %v4181
    %v4183 = vpop.f32.mrb[0].mxu0
    %v4184 = vadd.f32 0.0, %v4183
    %v4185 = vpop.f32.mrb[0].mxu0
    %v4186 = vadd.f32 0.0, %v4185
    %4187 = vmatprep.mubr.bf16.mxu0 0
    %4188 = vmatmul.mubr.bf16.gmra.mrb[0].mxu0 %v3659
    %v4189 = vpop.f32.mrb[0].mxu0
    %v4190 = vadd.f32 0.0, %v4189
    %v4191 = vpop.f32.mrb[0].mxu0
    %v4192 = vadd.f32 0.0, %v4191
    %v4193 = vpop.f32.mrb[0].mxu0
    %v4194 = vadd.f32 0.0, %v4193
    %v4195 = vpop.f32.mrb[0].mxu0
    %v4196 = vadd.f32 0.0, %v4195
    %4197 = vmatprep.mubr.bf16.mxu0 0
    %4198 = vmatmul.mubr.bf16.gmra.mrb[0].mxu0 %v3662
    %v4199 = vpop.f32.mrb[0].mxu0
    %v4200 = vadd.f32 0.0, %v4199
    %v4201 = vpop.f32.mrb[0].mxu0
    %v4202 = vadd.f32 0.0, %v4201
    %v4203 = vpop.f32.mrb[0].mxu0
    %v4204 = vadd.f32 0.0, %v4203
    %v4205 = vpop.f32.mrb[0].mxu0
    %v4206 = vadd.f32 0.0, %v4205
    %4207 = vmatprep.mubr.bf16.mxu0 0
    %4208 = vmatmul.mubr.bf16.gmra.mrb[0].mxu0 %v3665
    %v4209 = vpop.f32.mrb[0].mxu0
    %v4210 = vadd.f32 0.0, %v4209
    %v4211 = vpop.f32.mrb[0].mxu0
    %v4212 = vadd.f32 0.0, %v4211
    %v4213 = vpop.f32.mrb[0].mxu0
    %v4214 = vadd.f32 0.0, %v4213
    %v4215 = vpop.f32.mrb[0].mxu0
    %v4216 = vadd.f32 0.0, %v4215
    %4217 = vmatprep.mubr.bf16.mxu0 0
    %4218 = vmatmul.mubr.bf16.gmra.mrb[0].mxu0 %v3668
    %v4219 = vpop.f32.mrb[0].mxu0
    %v4220 = vadd.f32 0.0, %v4219
    %v4221 = vpop.f32.mrb[0].mxu0
    %v4222 = vadd.f32 0.0, %v4221
    %v4223 = vpop.f32.mrb[0].mxu0
    %v4224 = vadd.f32 0.0, %v4223
    %v4225 = vpop.f32.mrb[0].mxu0
    %v4226 = vadd.f32 0.0, %v4225
    %4227 = vmatprep.mubr.bf16.mxu0 0
    %4228 = vmatmul.mubr.bf16.gmra.mrb[0].mxu0 %v3671
    %v4229 = vpop.f32.mrb[0].mxu0
    %v4230 = vadd.f32 0.0, %v4229
    %v4231 = vpop.f32.mrb[0].mxu0
    %v4232 = vadd.f32 0.0, %v4231
    %v4233 = vpop.f32.mrb[0].mxu0
    %v4234 = vadd.f32 0.0, %v4233
    %v4235 = vpop.f32.mrb[0].mxu0
    %v4236 = vadd.f32 0.0, %v4235
    %4237 = vmatprep.mubr.bf16.mxu0 0
    %4238 = vmatmul.mubr.bf16.gmra.mrb[0].mxu0 %v3674
    %v4239 = vpop.f32.mrb[0].mxu0
    %v4240 = vadd.f32 0.0, %v4239
    %v4241 = vpop.f32.mrb[0].mxu0
    %v4242 = vadd.f32 0.0, %v4241
    %v4243 = vpop.f32.mrb[0].mxu0
    %v4244 = vadd.f32 0.0, %v4243
    %v4245 = vpop.f32.mrb[0].mxu0
    %v4246 = vadd.f32 0.0, %v4245
    %4247 = vmatprep.mubr.bf16.mxu0 0
    %4248 = vmatmul.mubr.bf16.gmra.mrb[0].mxu0 %v3677
    %v4249 = vpop.f32.mrb[0].mxu0
    %v4250 = vadd.f32 0.0, %v4249
    %v4251 = vpop.f32.mrb[0].mxu0
    %v4252 = vadd.f32 0.0, %v4251
    %v4253 = vpop.f32.mrb[0].mxu0
    %v4254 = vadd.f32 0.0, %v4253
    %v4255 = vpop.f32.mrb[0].mxu0
    %v4256 = vadd.f32 0.0, %v4255
    %4257 = vdwg.mxu0
    %4258 = vmatprep.subr.bf16.mxu0 %v3606
    %4259 = vmatpush1.bf16.msra.mxu0 %v3605
    %4260 = vmatprep.subr.bf16.mxu0 %v3614
    %4261 = vmatpush1.bf16.msra.mxu0 %v3613
    %4262 = vmatprep.subr.bf16.mxu0 0
    %4263 = vmatpush1.bf16.msra.mxu0 0
    %4264 = vmatprep.subr.bf16.mxu0 0
    %4265 = vmatpush1.bf16.msra.mxu0 0
    %4266 = vmatprep.subr.bf16.mxu0 0
    %4267 = vmatpush1.bf16.msra.mxu0 0
    %4268 = vmatprep.subr.bf16.mxu0 0
    %4269 = vmatpush1.bf16.msra.mxu0 0
    %4270 = vmatprep.subr.bf16.mxu0 0
    %4271 = vmatpush1.bf16.msra.mxu0 0
    %4272 = vmatprep.subr.bf16.mxu0 0
    %4273 = vmatpush1.bf16.msra.mxu0 0
    %4274 = vmatprep.subr.bf16.mxu0 0
    %4275 = vmatpush1.bf16.msra.mxu0 0
    %4276 = vmatprep.subr.bf16.mxu0 0
    %4277 = vmatpush1.bf16.msra.mxu0 0
    %4278 = vmatprep.subr.bf16.mxu0 0
    %4279 = vmatpush1.bf16.msra.mxu0 0
    %4280 = vmatprep.subr.bf16.mxu0 0
    %4281 = vmatpush1.bf16.msra.mxu0 0
    %4282 = vmatprep.subr.bf16.mxu0 0
    %4283 = vmatpush1.bf16.msra.mxu0 0
    %4284 = vmatprep.subr.bf16.mxu0 0
    %4285 = vmatpush1.bf16.msra.mxu0 0
    %4286 = vmatprep.subr.bf16.mxu0 0
    %4287 = vmatpush1.bf16.msra.mxu0 0
    %4288 = vmatprep.subr.bf16.mxu0 0
    %4289 = vmatpush1.bf16.msra.mxu0 0
    %4290 = vmatprep.mubr.bf16.mxu0 0
    %4291 = vmatmul.mubr.bf16.gmra.mrb[0].mxu0 %v3632
    %v4292 = vpop.f32.mrb[0].mxu0
    %v4293 = vadd.f32 0.0, %v4292
    %v4294 = vpop.f32.mrb[0].mxu0
    %v4295 = vadd.f32 0.0, %v4294
    %v4296 = vpop.f32.mrb[0].mxu0
    %v4297 = vadd.f32 0.0, %v4296
    %v4298 = vpop.f32.mrb[0].mxu0
    %v4299 = vadd.f32 0.0, %v4298
    %4300 = vmatprep.mubr.bf16.mxu0 0
    %4301 = vmatmul.mubr.bf16.gmra.mrb[0].mxu0 %v3635
    %v4302 = vpop.f32.mrb[0].mxu0
    %v4303 = vadd.f32 0.0, %v4302
    %v4304 = vpop.f32.mrb[0].mxu0
    %v4305 = vadd.f32 0.0, %v4304
    %v4306 = vpop.f32.mrb[0].mxu0
    %v4307 = vadd.f32 0.0, %v4306
    %v4308 = vpop.f32.mrb[0].mxu0
    %v4309 = vadd.f32 0.0, %v4308
    %4310 = vmatprep.mubr.bf16.mxu0 0
    %4311 = vmatmul.mubr.bf16.gmra.mrb[0].mxu0 %v3638
    %v4312 = vpop.f32.mrb[0].mxu0
    %v4313 = vadd.f32 0.0, %v4312
    %v4314 = vpop.f32.mrb[0].mxu0
    %v4315 = vadd.f32 0.0, %v4314
    %v4316 = vpop.f32.mrb[0].mxu0
    %v4317 = vadd.f32 0.0, %v4316
    %v4318 = vpop.f32.mrb[0].mxu0
    %v4319 = vadd.f32 0.0, %v4318
    %4320 = vmatprep.mubr.bf16.mxu0 0
    %4321 = vmatmul.mubr.bf16.gmra.mrb[0].mxu0 %v3641
    %v4322 = vpop.f32.mrb[0].mxu0
    %v4323 = vadd.f32 0.0, %v4322
    %v4324 = vpop.f32.mrb[0].mxu0
    %v4325 = vadd.f32 0.0, %v4324
    %v4326 = vpop.f32.mrb[0].mxu0
    %v4327 = vadd.f32 0.0, %v4326
    %v4328 = vpop.f32.mrb[0].mxu0
    %v4329 = vadd.f32 0.0, %v4328
    %4330 = vmatprep.mubr.bf16.mxu0 0
    %4331 = vmatmul.mubr.bf16.gmra.mrb[0].mxu0 %v3644
    %v4332 = vpop.f32.mrb[0].mxu0
    %v4333 = vadd.f32 0.0, %v4332
    %v4334 = vpop.f32.mrb[0].mxu0
    %v4335 = vadd.f32 0.0, %v4334
    %v4336 = vpop.f32.mrb[0].mxu0
    %v4337 = vadd.f32 0.0, %v4336
    %v4338 = vpop.f32.mrb[0].mxu0
    %v4339 = vadd.f32 0.0, %v4338
    %4340 = vmatprep.mubr.bf16.mxu0 0
    %4341 = vmatmul.mubr.bf16.gmra.mrb[0].mxu0 %v3647
    %v4342 = vpop.f32.mrb[0].mxu0
    %v4343 = vadd.f32 0.0, %v4342
    %v4344 = vpop.f32.mrb[0].mxu0
    %v4345 = vadd.f32 0.0, %v4344
    %v4346 = vpop.f32.mrb[0].mxu0
    %v4347 = vadd.f32 0.0, %v4346
    %v4348 = vpop.f32.mrb[0].mxu0
    %v4349 = vadd.f32 0.0, %v4348
    %4350 = vmatprep.mubr.bf16.mxu0 0
    %4351 = vmatmul.mubr.bf16.gmra.mrb[0].mxu0 %v3650
    %v4352 = vpop.f32.mrb[0].mxu0
    %v4353 = vadd.f32 0.0, %v4352
    %v4354 = vpop.f32.mrb[0].mxu0
    %v4355 = vadd.f32 0.0, %v4354
    %v4356 = vpop.f32.mrb[0].mxu0
    %v4357 = vadd.f32 0.0, %v4356
    %v4358 = vpop.f32.mrb[0].mxu0
    %v4359 = vadd.f32 0.0, %v4358
    %4360 = vmatprep.mubr.bf16.mxu0 0
    %4361 = vmatmul.mubr.bf16.gmra.mrb[0].mxu0 %v3653
    %v4362 = vpop.f32.mrb[0].mxu0
    %v4363 = vadd.f32 0.0, %v4362
    %v4364 = vpop.f32.mrb[0].mxu0
    %v4365 = vadd.f32 0.0, %v4364
    %v4366 = vpop.f32.mrb[0].mxu0
    %v4367 = vadd.f32 0.0, %v4366
    %v4368 = vpop.f32.mrb[0].mxu0
    %v4369 = vadd.f32 0.0, %v4368
    %4370 = vmatprep.mubr.bf16.mxu0 0
    %4371 = vmatmul.mubr.bf16.gmra.mrb[0].mxu0 %v3656
    %v4372 = vpop.f32.mrb[0].mxu0
    %v4373 = vadd.f32 0.0, %v4372
    %v4374 = vpop.f32.mrb[0].mxu0
    %v4375 = vadd.f32 0.0, %v4374
    %v4376 = vpop.f32.mrb[0].mxu0
    %v4377 = vadd.f32 0.0, %v4376
    %v4378 = vpop.f32.mrb[0].mxu0
    %v4379 = vadd.f32 0.0, %v4378
    %4380 = vmatprep.mubr.bf16.mxu0 0
    %4381 = vmatmul.mubr.bf16.gmra.mrb[0].mxu0 %v3659
    %v4382 = vpop.f32.mrb[0].mxu0
    %v4383 = vadd.f32 0.0, %v4382
    %v4384 = vpop.f32.mrb[0].mxu0
    %v4385 = vadd.f32 0.0, %v4384
    %v4386 = vpop.f32.mrb[0].mxu0
    %v4387 = vadd.f32 0.0, %v4386
    %v4388 = vpop.f32.mrb[0].mxu0
    %v4389 = vadd.f32 0.0, %v4388
    %4390 = vmatprep.mubr.bf16.mxu0 0
    %4391 = vmatmul.mubr.bf16.gmra.mrb[0].mxu0 %v3662
    %v4392 = vpop.f32.mrb[0].mxu0
    %v4393 = vadd.f32 0.0, %v4392
    %v4394 = vpop.f32.mrb[0].mxu0
    %v4395 = vadd.f32 0.0, %v4394
    %v4396 = vpop.f32.mrb[0].mxu0
    %v4397 = vadd.f32 0.0, %v4396
    %v4398 = vpop.f32.mrb[0].mxu0
    %v4399 = vadd.f32 0.0, %v4398
    %4400 = vmatprep.mubr.bf16.mxu0 0
    %4401 = vmatmul.mubr.bf16.gmra.mrb[0].mxu0 %v3665
    %v4402 = vpop.f32.mrb[0].mxu0
    %v4403 = vadd.f32 0.0, %v4402
    %v4404 = vpop.f32.mrb[0].mxu0
    %v4405 = vadd.f32 0.0, %v4404
    %v4406 = vpop.f32.mrb[0].mxu0
    %v4407 = vadd.f32 0.0, %v4406
    %v4408 = vpop.f32.mrb[0].mxu0
    %v4409 = vadd.f32 0.0, %v4408
    %4410 = vmatprep.mubr.bf16.mxu0 0
    %4411 = vmatmul.mubr.bf16.gmra.mrb[0].mxu0 %v3668
    %v4412 = vpop.f32.mrb[0].mxu0
    %v4413 = vadd.f32 0.0, %v4412
    %v4414 = vpop.f32.mrb[0].mxu0
    %v4415 = vadd.f32 0.0, %v4414
    %v4416 = vpop.f32.mrb[0].mxu0
    %v4417 = vadd.f32 0.0, %v4416
    %v4418 = vpop.f32.mrb[0].mxu0
    %v4419 = vadd.f32 0.0, %v4418
    %4420 = vmatprep.mubr.bf16.mxu0 0
    %4421 = vmatmul.mubr.bf16.gmra.mrb[0].mxu0 %v3671
    %v4422 = vpop.f32.mrb[0].mxu0
    %v4423 = vadd.f32 0.0, %v4422
    %v4424 = vpop.f32.mrb[0].mxu0
    %v4425 = vadd.f32 0.0, %v4424
    %v4426 = vpop.f32.mrb[0].mxu0
    %v4427 = vadd.f32 0.0, %v4426
    %v4428 = vpop.f32.mrb[0].mxu0
    %v4429 = vadd.f32 0.0, %v4428
    %4430 = vmatprep.mubr.bf16.mxu0 0
    %4431 = vmatmul.mubr.bf16.gmra.mrb[0].mxu0 %v3674
    %v4432 = vpop.f32.mrb[0].mxu0
    %v4433 = vadd.f32 0.0, %v4432
    %v4434 = vpop.f32.mrb[0].mxu0
    %v4435 = vadd.f32 0.0, %v4434
    %v4436 = vpop.f32.mrb[0].mxu0
    %v4437 = vadd.f32 0.0, %v4436
    %v4438 = vpop.f32.mrb[0].mxu0
    %v4439 = vadd.f32 0.0, %v4438
    %4440 = vmatprep.mubr.bf16.mxu0 0
    %4441 = vmatmul.mubr.bf16.gmra.mrb[0].mxu0 %v3677
    %v4442 = vpop.f32.mrb[0].mxu0
    %v4443 = vadd.f32 0.0, %v4442
    %v4444 = vpop.f32.mrb[0].mxu0
    %v4445 = vadd.f32 0.0, %v4444
    %v4446 = vpop.f32.mrb[0].mxu0
    %v4447 = vadd.f32 0.0, %v4446
    %v4448 = vpop.f32.mrb[0].mxu0
    %v4449 = vadd.f32 0.0, %v4448
    %4450 = vdwg.mxu0
    %v4452 = vsel %vm395, %v3345, 0
    %v4455 = vsel %vm395, %v3350, 0
    %v4458 = vsel %vm395, %v3355, 0
    %v4461 = vsel %vm395, %v3360, 0
    %v4464 = vsel %vm395, %v3365, 0
    %v4467 = vsel %vm395, %v3370, 0
    %v4470 = vsel %vm395, %v3375, 0
    %v4473 = vsel %vm395, %v3380, 0
    %v4476 = vsel %vm395, %v3385, 0
    %v4479 = vsel %vm395, %v3390, 0
    %v4482 = vsel %vm395, %v3395, 0
    %v4485 = vsel %vm395, %v3400, 0
    %v4488 = vsel %vm395, %v3405, 0
    %v4491 = vsel %vm395, %v3410, 0
    %v4494 = vsel %vm395, %v3415, 0
    %v4497 = vsel %vm395, %v3420, 0
    %v4500 = vsel %vm395, %v3425, 0
    %v4503 = vsel %vm395, %v3430, 0
    %v4506 = vsel %vm395, %v3435, 0
    %v4509 = vsel %vm395, %v3440, 0
    %v4512 = vsel %vm395, %v3445, 0
    %v4515 = vsel %vm395, %v3450, 0
    %v4518 = vsel %vm395, %v3455, 0
    %v4521 = vsel %vm395, %v3460, 0
    %v4524 = vsel %vm395, %v3465, 0
    %v4527 = vsel %vm395, %v3470, 0
    %v4530 = vsel %vm395, %v3475, 0
    %v4533 = vsel %vm395, %v3480, 0
    %v4536 = vsel %vm395, %v3485, 0
    %v4539 = vsel %vm395, %v3490, 0
    %v4542 = vsel %vm395, %v3495, 0
    %v4545 = vsel %vm395, %v3500, 0
    %4547 = vmatprep.subr.mxu0 %v92
    %4548 = vmatpush1.msra.mxu0 %v91
    %4549 = vmatprep.subr.mxu0 %v100
    %4550 = vmatpush1.msra.mxu0 %v99
    %4551 = vmatprep.subr.mxu0 %v108
    %4552 = vmatpush1.msra.mxu0 %v107
    %4553 = vmatprep.subr.mxu0 %v116
    %4554 = vmatpush1.msra.mxu0 %v115
    %4555 = vmatprep.subr.mxu0 0.0
    %4556 = vmatpush1.msra.mxu0 0.0
    %4557 = vmatprep.subr.mxu0 0.0
    %4558 = vmatpush1.msra.mxu0 0.0
    %4559 = vmatprep.subr.mxu0 0.0
    %4560 = vmatpush1.msra.mxu0 0.0
    %4561 = vmatprep.subr.mxu0 0.0
    %4562 = vmatpush1.msra.mxu0 0.0
    %4563 = vmatprep.subr.mxu0 0.0
    %4564 = vmatpush1.msra.mxu0 0.0
    %4565 = vmatprep.subr.mxu0 0.0
    %4566 = vmatpush1.msra.mxu0 0.0
    %4567 = vmatprep.subr.mxu0 0.0
    %4568 = vmatpush1.msra.mxu0 0.0
    %4569 = vmatprep.subr.mxu0 0.0
    %4570 = vmatpush1.msra.mxu0 0.0
    %4571 = vmatprep.subr.mxu0 0.0
    %4572 = vmatpush1.msra.mxu0 0.0
    %4573 = vmatprep.subr.mxu0 0.0
    %4574 = vmatpush1.msra.mxu0 0.0
    %4575 = vmatprep.subr.mxu0 0.0
    %4576 = vmatpush1.msra.mxu0 0.0
    %4577 = vmatprep.subr.mxu0 0.0
    %4578 = vmatpush1.msra.mxu0 0.0
    %4579 = vmatprep.subr.mxu0 0.0
    %4580 = vmatpush1.msra.mxu0 0.0
    %4581 = vmatprep.subr.mxu0 0.0
    %4582 = vmatpush1.msra.mxu0 0.0
    %4583 = vmatprep.subr.mxu0 0.0
    %4584 = vmatpush1.msra.mxu0 0.0
    %4585 = vmatprep.subr.mxu0 0.0
    %4586 = vmatpush1.msra.mxu0 0.0
    %4587 = vmatprep.subr.mxu0 0.0
    %4588 = vmatpush1.msra.mxu0 0.0
    %4589 = vmatprep.subr.mxu0 0.0
    %4590 = vmatpush1.msra.mxu0 0.0
    %4591 = vmatprep.subr.mxu0 0.0
    %4592 = vmatpush1.msra.mxu0 0.0
    %4593 = vmatprep.subr.mxu0 0.0
    %4594 = vmatpush1.msra.mxu0 0.0
    %4595 = vmatprep.subr.mxu0 0.0
    %4596 = vmatpush1.msra.mxu0 0.0
    %4597 = vmatprep.subr.mxu0 0.0
    %4598 = vmatpush1.msra.mxu0 0.0
    %4599 = vmatprep.subr.mxu0 0.0
    %4600 = vmatpush1.msra.mxu0 0.0
    %4601 = vmatprep.subr.mxu0 0.0
    %4602 = vmatpush1.msra.mxu0 0.0
    %4603 = vmatprep.subr.mxu0 0.0
    %4604 = vmatpush1.msra.mxu0 0.0
    %4605 = vmatprep.subr.mxu0 0.0
    %4606 = vmatpush1.msra.mxu0 0.0
    %4607 = vmatprep.subr.mxu0 0.0
    %4608 = vmatpush1.msra.mxu0 0.0
    %4609 = vmatprep.subr.mxu0 0.0
    %4610 = vmatpush1.msra.mxu0 0.0
    %4611 = vmatprep.mubr.f32.mxu0 0.0
    %4612 = vmatmul.mubr.f32.gmra.mrb[0].mxu0 %v4452
    %v4613 = vpop.f32.mrb[0].mxu0
    %v4614 = vadd.f32 0.0, %v4613
    %v4615 = vpop.f32.mrb[0].mxu0
    %v4616 = vadd.f32 0.0, %v4615
    %4617 = vmatprep.mubr.f32.mxu0 0.0
    %4618 = vmatmul.mubr.f32.gmra.mrb[0].mxu0 %v4455
    %v4619 = vpop.f32.mrb[0].mxu0
    %v4620 = vadd.f32 0.0, %v4619
    %v4621 = vpop.f32.mrb[0].mxu0
    %v4622 = vadd.f32 0.0, %v4621
    %4623 = vmatprep.mubr.f32.mxu0 0.0
    %4624 = vmatmul.mubr.f32.gmra.mrb[0].mxu0 %v4458
    %v4625 = vpop.f32.mrb[0].mxu0
    %v4626 = vadd.f32 0.0, %v4625
    %v4627 = vpop.f32.mrb[0].mxu0
    %v4628 = vadd.f32 0.0, %v4627
    %4629 = vmatprep.mubr.f32.mxu0 0.0
    %4630 = vmatmul.mubr.f32.gmra.mrb[0].mxu0 %v4461
    %v4631 = vpop.f32.mrb[0].mxu0
    %v4632 = vadd.f32 0.0, %v4631
    %v4633 = vpop.f32.mrb[0].mxu0
    %v4634 = vadd.f32 0.0, %v4633
    %4635 = vmatprep.mubr.f32.mxu0 0.0
    %4636 = vmatmul.mubr.f32.gmra.mrb[0].mxu0 %v4464
    %v4637 = vpop.f32.mrb[0].mxu0
    %v4638 = vadd.f32 0.0, %v4637
    %v4639 = vpop.f32.mrb[0].mxu0
    %v4640 = vadd.f32 0.0, %v4639
    %4641 = vmatprep.mubr.f32.mxu0 0.0
    %4642 = vmatmul.mubr.f32.gmra.mrb[0].mxu0 %v4467
    %v4643 = vpop.f32.mrb[0].mxu0
    %v4644 = vadd.f32 0.0, %v4643
    %v4645 = vpop.f32.mrb[0].mxu0
    %v4646 = vadd.f32 0.0, %v4645
    %4647 = vmatprep.mubr.f32.mxu0 0.0
    %4648 = vmatmul.mubr.f32.gmra.mrb[0].mxu0 %v4470
    %v4649 = vpop.f32.mrb[0].mxu0
    %v4650 = vadd.f32 0.0, %v4649
    %v4651 = vpop.f32.mrb[0].mxu0
    %v4652 = vadd.f32 0.0, %v4651
    %4653 = vmatprep.mubr.f32.mxu0 0.0
    %4654 = vmatmul.mubr.f32.gmra.mrb[0].mxu0 %v4473
    %v4655 = vpop.f32.mrb[0].mxu0
    %v4656 = vadd.f32 0.0, %v4655
    %v4657 = vpop.f32.mrb[0].mxu0
    %v4658 = vadd.f32 0.0, %v4657
    %4659 = vmatprep.mubr.f32.mxu0 0.0
    %4660 = vmatmul.mubr.f32.gmra.mrb[0].mxu0 %v4476
    %v4661 = vpop.f32.mrb[0].mxu0
    %v4662 = vadd.f32 0.0, %v4661
    %v4663 = vpop.f32.mrb[0].mxu0
    %v4664 = vadd.f32 0.0, %v4663
    %4665 = vmatprep.mubr.f32.mxu0 0.0
    %4666 = vmatmul.mubr.f32.gmra.mrb[0].mxu0 %v4479
    %v4667 = vpop.f32.mrb[0].mxu0
    %v4668 = vadd.f32 0.0, %v4667
    %v4669 = vpop.f32.mrb[0].mxu0
    %v4670 = vadd.f32 0.0, %v4669
    %4671 = vmatprep.mubr.f32.mxu0 0.0
    %4672 = vmatmul.mubr.f32.gmra.mrb[0].mxu0 %v4482
    %v4673 = vpop.f32.mrb[0].mxu0
    %v4674 = vadd.f32 0.0, %v4673
    %v4675 = vpop.f32.mrb[0].mxu0
    %v4676 = vadd.f32 0.0, %v4675
    %4677 = vmatprep.mubr.f32.mxu0 0.0
    %4678 = vmatmul.mubr.f32.gmra.mrb[0].mxu0 %v4485
    %v4679 = vpop.f32.mrb[0].mxu0
    %v4680 = vadd.f32 0.0, %v4679
    %v4681 = vpop.f32.mrb[0].mxu0
    %v4682 = vadd.f32 0.0, %v4681
    %4683 = vmatprep.mubr.f32.mxu0 0.0
    %4684 = vmatmul.mubr.f32.gmra.mrb[0].mxu0 %v4488
    %v4685 = vpop.f32.mrb[0].mxu0
    %v4686 = vadd.f32 0.0, %v4685
    %v4687 = vpop.f32.mrb[0].mxu0
    %v4688 = vadd.f32 0.0, %v4687
    %4689 = vmatprep.mubr.f32.mxu0 0.0
    %4690 = vmatmul.mubr.f32.gmra.mrb[0].mxu0 %v4491
    %v4691 = vpop.f32.mrb[0].mxu0
    %v4692 = vadd.f32 0.0, %v4691
    %v4693 = vpop.f32.mrb[0].mxu0
    %v4694 = vadd.f32 0.0, %v4693
    %4695 = vmatprep.mubr.f32.mxu0 0.0
    %4696 = vmatmul.mubr.f32.gmra.mrb[0].mxu0 %v4494
    %v4697 = vpop.f32.mrb[0].mxu0
    %v4698 = vadd.f32 0.0, %v4697
    %v4699 = vpop.f32.mrb[0].mxu0
    %v4700 = vadd.f32 0.0, %v4699
    %4701 = vmatprep.mubr.f32.mxu0 0.0
    %4702 = vmatmul.mubr.f32.gmra.mrb[0].mxu0 %v4497
    %v4703 = vpop.f32.mrb[0].mxu0
    %v4704 = vadd.f32 0.0, %v4703
    %v4705 = vpop.f32.mrb[0].mxu0
    %v4706 = vadd.f32 0.0, %v4705
    %4707 = vmatprep.mubr.f32.mxu0 0.0
    %4708 = vmatmul.mubr.f32.gmra.mrb[0].mxu0 %v4500
    %v4709 = vpop.f32.mrb[0].mxu0
    %v4710 = vadd.f32 0.0, %v4709
    %v4711 = vpop.f32.mrb[0].mxu0
    %v4712 = vadd.f32 0.0, %v4711
    %4713 = vmatprep.mubr.f32.mxu0 0.0
    %4714 = vmatmul.mubr.f32.gmra.mrb[0].mxu0 %v4503
    %v4715 = vpop.f32.mrb[0].mxu0
    %v4716 = vadd.f32 0.0, %v4715
    %v4717 = vpop.f32.mrb[0].mxu0
    %v4718 = vadd.f32 0.0, %v4717
    %4719 = vmatprep.mubr.f32.mxu0 0.0
    %4720 = vmatmul.mubr.f32.gmra.mrb[0].mxu0 %v4506
    %v4721 = vpop.f32.mrb[0].mxu0
    %v4722 = vadd.f32 0.0, %v4721
    %v4723 = vpop.f32.mrb[0].mxu0
    %v4724 = vadd.f32 0.0, %v4723
    %4725 = vmatprep.mubr.f32.mxu0 0.0
    %4726 = vmatmul.mubr.f32.gmra.mrb[0].mxu0 %v4509
    %v4727 = vpop.f32.mrb[0].mxu0
    %v4728 = vadd.f32 0.0, %v4727
    %v4729 = vpop.f32.mrb[0].mxu0
    %v4730 = vadd.f32 0.0, %v4729
    %4731 = vmatprep.mubr.f32.mxu0 0.0
    %4732 = vmatmul.mubr.f32.gmra.mrb[0].mxu0 %v4512
    %v4733 = vpop.f32.mrb[0].mxu0
    %v4734 = vadd.f32 0.0, %v4733
    %v4735 = vpop.f32.mrb[0].mxu0
    %v4736 = vadd.f32 0.0, %v4735
    %4737 = vmatprep.mubr.f32.mxu0 0.0
    %4738 = vmatmul.mubr.f32.gmra.mrb[0].mxu0 %v4515
    %v4739 = vpop.f32.mrb[0].mxu0
    %v4740 = vadd.f32 0.0, %v4739
    %v4741 = vpop.f32.mrb[0].mxu0
    %v4742 = vadd.f32 0.0, %v4741
    %4743 = vmatprep.mubr.f32.mxu0 0.0
    %4744 = vmatmul.mubr.f32.gmra.mrb[0].mxu0 %v4518
    %v4745 = vpop.f32.mrb[0].mxu0
    %v4746 = vadd.f32 0.0, %v4745
    %v4747 = vpop.f32.mrb[0].mxu0
    %v4748 = vadd.f32 0.0, %v4747
    %4749 = vmatprep.mubr.f32.mxu0 0.0
    %4750 = vmatmul.mubr.f32.gmra.mrb[0].mxu0 %v4521
    %v4751 = vpop.f32.mrb[0].mxu0
    %v4752 = vadd.f32 0.0, %v4751
    %v4753 = vpop.f32.mrb[0].mxu0
    %v4754 = vadd.f32 0.0, %v4753
    %4755 = vmatprep.mubr.f32.mxu0 0.0
    %4756 = vmatmul.mubr.f32.gmra.mrb[0].mxu0 %v4524
    %v4757 = vpop.f32.mrb[0].mxu0
    %v4758 = vadd.f32 0.0, %v4757
    %v4759 = vpop.f32.mrb[0].mxu0
    %v4760 = vadd.f32 0.0, %v4759
    %4761 = vmatprep.mubr.f32.mxu0 0.0
    %4762 = vmatmul.mubr.f32.gmra.mrb[0].mxu0 %v4527
    %v4763 = vpop.f32.mrb[0].mxu0
    %v4764 = vadd.f32 0.0, %v4763
    %v4765 = vpop.f32.mrb[0].mxu0
    %v4766 = vadd.f32 0.0, %v4765
    %4767 = vmatprep.mubr.f32.mxu0 0.0
    %4768 = vmatmul.mubr.f32.gmra.mrb[0].mxu0 %v4530
    %v4769 = vpop.f32.mrb[0].mxu0
    %v4770 = vadd.f32 0.0, %v4769
    %v4771 = vpop.f32.mrb[0].mxu0
    %v4772 = vadd.f32 0.0, %v4771
    %4773 = vmatprep.mubr.f32.mxu0 0.0
    %4774 = vmatmul.mubr.f32.gmra.mrb[0].mxu0 %v4533
    %v4775 = vpop.f32.mrb[0].mxu0
    %v4776 = vadd.f32 0.0, %v4775
    %v4777 = vpop.f32.mrb[0].mxu0
    %v4778 = vadd.f32 0.0, %v4777
    %4779 = vmatprep.mubr.f32.mxu0 0.0
    %4780 = vmatmul.mubr.f32.gmra.mrb[0].mxu0 %v4536
    %v4781 = vpop.f32.mrb[0].mxu0
    %v4782 = vadd.f32 0.0, %v4781
    %v4783 = vpop.f32.mrb[0].mxu0
    %v4784 = vadd.f32 0.0, %v4783
    %4785 = vmatprep.mubr.f32.mxu0 0.0
    %4786 = vmatmul.mubr.f32.gmra.mrb[0].mxu0 %v4539
    %v4787 = vpop.f32.mrb[0].mxu0
    %v4788 = vadd.f32 0.0, %v4787
    %v4789 = vpop.f32.mrb[0].mxu0
    %v4790 = vadd.f32 0.0, %v4789
    %4791 = vmatprep.mubr.f32.mxu0 0.0
    %4792 = vmatmul.mubr.f32.gmra.mrb[0].mxu0 %v4542
    %v4793 = vpop.f32.mrb[0].mxu0
    %v4794 = vadd.f32 0.0, %v4793
    %v4795 = vpop.f32.mrb[0].mxu0
    %v4796 = vadd.f32 0.0, %v4795
    %4797 = vmatprep.mubr.f32.mxu0 0.0
    %4798 = vmatmul.mubr.f32.gmra.mrb[0].mxu0 %v4545
    %v4799 = vpop.f32.mrb[0].mxu0
    %v4800 = vadd.f32 0.0, %v4799
    %v4801 = vpop.f32.mrb[0].mxu0
    %v4802 = vadd.f32 0.0, %v4801
    %4803 = vdwg.mxu0
    %4804 = vmatprep.subr.mxu0 %v94
    %4805 = vmatpush1.msra.mxu0 %v93
    %4806 = vmatprep.subr.mxu0 %v102
    %4807 = vmatpush1.msra.mxu0 %v101
    %4808 = vmatprep.subr.mxu0 %v110
    %4809 = vmatpush1.msra.mxu0 %v109
    %4810 = vmatprep.subr.mxu0 %v118
    %4811 = vmatpush1.msra.mxu0 %v117
    %4812 = vmatprep.subr.mxu0 0.0
    %4813 = vmatpush1.msra.mxu0 0.0
    %4814 = vmatprep.subr.mxu0 0.0
    %4815 = vmatpush1.msra.mxu0 0.0
    %4816 = vmatprep.subr.mxu0 0.0
    %4817 = vmatpush1.msra.mxu0 0.0
    %4818 = vmatprep.subr.mxu0 0.0
    %4819 = vmatpush1.msra.mxu0 0.0
    %4820 = vmatprep.subr.mxu0 0.0
    %4821 = vmatpush1.msra.mxu0 0.0
    %4822 = vmatprep.subr.mxu0 0.0
    %4823 = vmatpush1.msra.mxu0 0.0
    %4824 = vmatprep.subr.mxu0 0.0
    %4825 = vmatpush1.msra.mxu0 0.0
    %4826 = vmatprep.subr.mxu0 0.0
    %4827 = vmatpush1.msra.mxu0 0.0
    %4828 = vmatprep.subr.mxu0 0.0
    %4829 = vmatpush1.msra.mxu0 0.0
    %4830 = vmatprep.subr.mxu0 0.0
    %4831 = vmatpush1.msra.mxu0 0.0
    %4832 = vmatprep.subr.mxu0 0.0
    %4833 = vmatpush1.msra.mxu0 0.0
    %4834 = vmatprep.subr.mxu0 0.0
    %4835 = vmatpush1.msra.mxu0 0.0
    %4836 = vmatprep.subr.mxu0 0.0
    %4837 = vmatpush1.msra.mxu0 0.0
    %4838 = vmatprep.subr.mxu0 0.0
    %4839 = vmatpush1.msra.mxu0 0.0
    %4840 = vmatprep.subr.mxu0 0.0
    %4841 = vmatpush1.msra.mxu0 0.0
    %4842 = vmatprep.subr.mxu0 0.0
    %4843 = vmatpush1.msra.mxu0 0.0
    %4844 = vmatprep.subr.mxu0 0.0
    %4845 = vmatpush1.msra.mxu0 0.0
    %4846 = vmatprep.subr.mxu0 0.0
    %4847 = vmatpush1.msra.mxu0 0.0
    %4848 = vmatprep.subr.mxu0 0.0
    %4849 = vmatpush1.msra.mxu0 0.0
    %4850 = vmatprep.subr.mxu0 0.0
    %4851 = vmatpush1.msra.mxu0 0.0
    %4852 = vmatprep.subr.mxu0 0.0
    %4853 = vmatpush1.msra.mxu0 0.0
    %4854 = vmatprep.subr.mxu0 0.0
    %4855 = vmatpush1.msra.mxu0 0.0
    %4856 = vmatprep.subr.mxu0 0.0
    %4857 = vmatpush1.msra.mxu0 0.0
    %4858 = vmatprep.subr.mxu0 0.0
    %4859 = vmatpush1.msra.mxu0 0.0
    %4860 = vmatprep.subr.mxu0 0.0
    %4861 = vmatpush1.msra.mxu0 0.0
    %4862 = vmatprep.subr.mxu0 0.0
    %4863 = vmatpush1.msra.mxu0 0.0
    %4864 = vmatprep.subr.mxu0 0.0
    %4865 = vmatpush1.msra.mxu0 0.0
    %4866 = vmatprep.subr.mxu0 0.0
    %4867 = vmatpush1.msra.mxu0 0.0
    %4868 = vmatprep.mubr.f32.mxu0 0.0
    %4869 = vmatmul.mubr.f32.gmra.mrb[0].mxu0 %v4452
    %v4870 = vpop.f32.mrb[0].mxu0
    %v4871 = vadd.f32 0.0, %v4870
    %v4872 = vpop.f32.mrb[0].mxu0
    %v4873 = vadd.f32 0.0, %v4872
    %4874 = vmatprep.mubr.f32.mxu0 0.0
    %4875 = vmatmul.mubr.f32.gmra.mrb[0].mxu0 %v4455
    %v4876 = vpop.f32.mrb[0].mxu0
    %v4877 = vadd.f32 0.0, %v4876
    %v4878 = vpop.f32.mrb[0].mxu0
    %v4879 = vadd.f32 0.0, %v4878
    %4880 = vmatprep.mubr.f32.mxu0 0.0
    %4881 = vmatmul.mubr.f32.gmra.mrb[0].mxu0 %v4458
    %v4882 = vpop.f32.mrb[0].mxu0
    %v4883 = vadd.f32 0.0, %v4882
    %v4884 = vpop.f32.mrb[0].mxu0
    %v4885 = vadd.f32 0.0, %v4884
    %4886 = vmatprep.mubr.f32.mxu0 0.0
    %4887 = vmatmul.mubr.f32.gmra.mrb[0].mxu0 %v4461
    %v4888 = vpop.f32.mrb[0].mxu0
    %v4889 = vadd.f32 0.0, %v4888
    %v4890 = vpop.f32.mrb[0].mxu0
    %v4891 = vadd.f32 0.0, %v4890
    %4892 = vmatprep.mubr.f32.mxu0 0.0
    %4893 = vmatmul.mubr.f32.gmra.mrb[0].mxu0 %v4464
    %v4894 = vpop.f32.mrb[0].mxu0
    %v4895 = vadd.f32 0.0, %v4894
    %v4896 = vpop.f32.mrb[0].mxu0
    %v4897 = vadd.f32 0.0, %v4896
    %4898 = vmatprep.mubr.f32.mxu0 0.0
    %4899 = vmatmul.mubr.f32.gmra.mrb[0].mxu0 %v4467
    %v4900 = vpop.f32.mrb[0].mxu0
    %v4901 = vadd.f32 0.0, %v4900
    %v4902 = vpop.f32.mrb[0].mxu0
    %v4903 = vadd.f32 0.0, %v4902
    %4904 = vmatprep.mubr.f32.mxu0 0.0
    %4905 = vmatmul.mubr.f32.gmra.mrb[0].mxu0 %v4470
    %v4906 = vpop.f32.mrb[0].mxu0
    %v4907 = vadd.f32 0.0, %v4906
    %v4908 = vpop.f32.mrb[0].mxu0
    %v4909 = vadd.f32 0.0, %v4908
    %4910 = vmatprep.mubr.f32.mxu0 0.0
    %4911 = vmatmul.mubr.f32.gmra.mrb[0].mxu0 %v4473
    %v4912 = vpop.f32.mrb[0].mxu0
    %v4913 = vadd.f32 0.0, %v4912
    %v4914 = vpop.f32.mrb[0].mxu0
    %v4915 = vadd.f32 0.0, %v4914
    %4916 = vmatprep.mubr.f32.mxu0 0.0
    %4917 = vmatmul.mubr.f32.gmra.mrb[0].mxu0 %v4476
    %v4918 = vpop.f32.mrb[0].mxu0
    %v4919 = vadd.f32 0.0, %v4918
    %v4920 = vpop.f32.mrb[0].mxu0
    %v4921 = vadd.f32 0.0, %v4920
    %4922 = vmatprep.mubr.f32.mxu0 0.0
    %4923 = vmatmul.mubr.f32.gmra.mrb[0].mxu0 %v4479
    %v4924 = vpop.f32.mrb[0].mxu0
    %v4925 = vadd.f32 0.0, %v4924
    %v4926 = vpop.f32.mrb[0].mxu0
    %v4927 = vadd.f32 0.0, %v4926
    %4928 = vmatprep.mubr.f32.mxu0 0.0
    %4929 = vmatmul.mubr.f32.gmra.mrb[0].mxu0 %v4482
    %v4930 = vpop.f32.mrb[0].mxu0
    %v4931 = vadd.f32 0.0, %v4930
    %v4932 = vpop.f32.mrb[0].mxu0
    %v4933 = vadd.f32 0.0, %v4932
    %4934 = vmatprep.mubr.f32.mxu0 0.0
    %4935 = vmatmul.mubr.f32.gmra.mrb[0].mxu0 %v4485
    %v4936 = vpop.f32.mrb[0].mxu0
    %v4937 = vadd.f32 0.0, %v4936
    %v4938 = vpop.f32.mrb[0].mxu0
    %v4939 = vadd.f32 0.0, %v4938
    %4940 = vmatprep.mubr.f32.mxu0 0.0
    %4941 = vmatmul.mubr.f32.gmra.mrb[0].mxu0 %v4488
    %v4942 = vpop.f32.mrb[0].mxu0
    %v4943 = vadd.f32 0.0, %v4942
    %v4944 = vpop.f32.mrb[0].mxu0
    %v4945 = vadd.f32 0.0, %v4944
    %4946 = vmatprep.mubr.f32.mxu0 0.0
    %4947 = vmatmul.mubr.f32.gmra.mrb[0].mxu0 %v4491
    %v4948 = vpop.f32.mrb[0].mxu0
    %v4949 = vadd.f32 0.0, %v4948
    %v4950 = vpop.f32.mrb[0].mxu0
    %v4951 = vadd.f32 0.0, %v4950
    %4952 = vmatprep.mubr.f32.mxu0 0.0
    %4953 = vmatmul.mubr.f32.gmra.mrb[0].mxu0 %v4494
    %v4954 = vpop.f32.mrb[0].mxu0
    %v4955 = vadd.f32 0.0, %v4954
    %v4956 = vpop.f32.mrb[0].mxu0
    %v4957 = vadd.f32 0.0, %v4956
    %4958 = vmatprep.mubr.f32.mxu0 0.0
    %4959 = vmatmul.mubr.f32.gmra.mrb[0].mxu0 %v4497
    %v4960 = vpop.f32.mrb[0].mxu0
    %v4961 = vadd.f32 0.0, %v4960
    %v4962 = vpop.f32.mrb[0].mxu0
    %v4963 = vadd.f32 0.0, %v4962
    %4964 = vmatprep.mubr.f32.mxu0 0.0
    %4965 = vmatmul.mubr.f32.gmra.mrb[0].mxu0 %v4500
    %v4966 = vpop.f32.mrb[0].mxu0
    %v4967 = vadd.f32 0.0, %v4966
    %v4968 = vpop.f32.mrb[0].mxu0
    %v4969 = vadd.f32 0.0, %v4968
    %4970 = vmatprep.mubr.f32.mxu0 0.0
    %4971 = vmatmul.mubr.f32.gmra.mrb[0].mxu0 %v4503
    %v4972 = vpop.f32.mrb[0].mxu0
    %v4973 = vadd.f32 0.0, %v4972
    %v4974 = vpop.f32.mrb[0].mxu0
    %v4975 = vadd.f32 0.0, %v4974
    %4976 = vmatprep.mubr.f32.mxu0 0.0
    %4977 = vmatmul.mubr.f32.gmra.mrb[0].mxu0 %v4506
    %v4978 = vpop.f32.mrb[0].mxu0
    %v4979 = vadd.f32 0.0, %v4978
    %v4980 = vpop.f32.mrb[0].mxu0
    %v4981 = vadd.f32 0.0, %v4980
    %4982 = vmatprep.mubr.f32.mxu0 0.0
    %4983 = vmatmul.mubr.f32.gmra.mrb[0].mxu0 %v4509
    %v4984 = vpop.f32.mrb[0].mxu0
    %v4985 = vadd.f32 0.0, %v4984
    %v4986 = vpop.f32.mrb[0].mxu0
    %v4987 = vadd.f32 0.0, %v4986
    %4988 = vmatprep.mubr.f32.mxu0 0.0
    %4989 = vmatmul.mubr.f32.gmra.mrb[0].mxu0 %v4512
    %v4990 = vpop.f32.mrb[0].mxu0
    %v4991 = vadd.f32 0.0, %v4990
    %v4992 = vpop.f32.mrb[0].mxu0
    %v4993 = vadd.f32 0.0, %v4992
    %4994 = vmatprep.mubr.f32.mxu0 0.0
    %4995 = vmatmul.mubr.f32.gmra.mrb[0].mxu0 %v4515
    %v4996 = vpop.f32.mrb[0].mxu0
    %v4997 = vadd.f32 0.0, %v4996
    %v4998 = vpop.f32.mrb[0].mxu0
    %v4999 = vadd.f32 0.0, %v4998
    %5000 = vmatprep.mubr.f32.mxu0 0.0
    %5001 = vmatmul.mubr.f32.gmra.mrb[0].mxu0 %v4518
    %v5002 = vpop.f32.mrb[0].mxu0
    %v5003 = vadd.f32 0.0, %v5002
    %v5004 = vpop.f32.mrb[0].mxu0
    %v5005 = vadd.f32 0.0, %v5004
    %5006 = vmatprep.mubr.f32.mxu0 0.0
    %5007 = vmatmul.mubr.f32.gmra.mrb[0].mxu0 %v4521
    %v5008 = vpop.f32.mrb[0].mxu0
    %v5009 = vadd.f32 0.0, %v5008
    %v5010 = vpop.f32.mrb[0].mxu0
    %v5011 = vadd.f32 0.0, %v5010
    %5012 = vmatprep.mubr.f32.mxu0 0.0
    %5013 = vmatmul.mubr.f32.gmra.mrb[0].mxu0 %v4524
    %v5014 = vpop.f32.mrb[0].mxu0
    %v5015 = vadd.f32 0.0, %v5014
    %v5016 = vpop.f32.mrb[0].mxu0
    %v5017 = vadd.f32 0.0, %v5016
    %5018 = vmatprep.mubr.f32.mxu0 0.0
    %5019 = vmatmul.mubr.f32.gmra.mrb[0].mxu0 %v4527
    %v5020 = vpop.f32.mrb[0].mxu0
    %v5021 = vadd.f32 0.0, %v5020
    %v5022 = vpop.f32.mrb[0].mxu0
    %v5023 = vadd.f32 0.0, %v5022
    %5024 = vmatprep.mubr.f32.mxu0 0.0
    %5025 = vmatmul.mubr.f32.gmra.mrb[0].mxu0 %v4530
    %v5026 = vpop.f32.mrb[0].mxu0
    %v5027 = vadd.f32 0.0, %v5026
    %v5028 = vpop.f32.mrb[0].mxu0
    %v5029 = vadd.f32 0.0, %v5028
    %5030 = vmatprep.mubr.f32.mxu0 0.0
    %5031 = vmatmul.mubr.f32.gmra.mrb[0].mxu0 %v4533
    %v5032 = vpop.f32.mrb[0].mxu0
    %v5033 = vadd.f32 0.0, %v5032
    %v5034 = vpop.f32.mrb[0].mxu0
    %v5035 = vadd.f32 0.0, %v5034
    %5036 = vmatprep.mubr.f32.mxu0 0.0
    %5037 = vmatmul.mubr.f32.gmra.mrb[0].mxu0 %v4536
    %v5038 = vpop.f32.mrb[0].mxu0
    %v5039 = vadd.f32 0.0, %v5038
    %v5040 = vpop.f32.mrb[0].mxu0
    %v5041 = vadd.f32 0.0, %v5040
    %5042 = vmatprep.mubr.f32.mxu0 0.0
    %5043 = vmatmul.mubr.f32.gmra.mrb[0].mxu0 %v4539
    %v5044 = vpop.f32.mrb[0].mxu0
    %v5045 = vadd.f32 0.0, %v5044
    %v5046 = vpop.f32.mrb[0].mxu0
    %v5047 = vadd.f32 0.0, %v5046
    %5048 = vmatprep.mubr.f32.mxu0 0.0
    %5049 = vmatmul.mubr.f32.gmra.mrb[0].mxu0 %v4542
    %v5050 = vpop.f32.mrb[0].mxu0
    %v5051 = vadd.f32 0.0, %v5050
    %v5052 = vpop.f32.mrb[0].mxu0
    %v5053 = vadd.f32 0.0, %v5052
    %5054 = vmatprep.mubr.f32.mxu0 0.0
    %5055 = vmatmul.mubr.f32.gmra.mrb[0].mxu0 %v4545
    %v5056 = vpop.f32.mrb[0].mxu0
    %v5057 = vadd.f32 0.0, %v5056
    %v5058 = vpop.f32.mrb[0].mxu0
    %v5059 = vadd.f32 0.0, %v5058
    %5060 = vdwg.mxu0
    %5061 = vmatprep.subr.mxu0 %v96
    %5062 = vmatpush1.msra.mxu0 %v95
    %5063 = vmatprep.subr.mxu0 %v104
    %5064 = vmatpush1.msra.mxu0 %v103
    %5065 = vmatprep.subr.mxu0 %v112
    %5066 = vmatpush1.msra.mxu0 %v111
    %5067 = vmatprep.subr.mxu0 %v120
    %5068 = vmatpush1.msra.mxu0 %v119
    %5069 = vmatprep.subr.mxu0 0.0
    %5070 = vmatpush1.msra.mxu0 0.0
    %5071 = vmatprep.subr.mxu0 0.0
    %5072 = vmatpush1.msra.mxu0 0.0
    %5073 = vmatprep.subr.mxu0 0.0
    %5074 = vmatpush1.msra.mxu0 0.0
    %5075 = vmatprep.subr.mxu0 0.0
    %5076 = vmatpush1.msra.mxu0 0.0
    %5077 = vmatprep.subr.mxu0 0.0
    %5078 = vmatpush1.msra.mxu0 0.0
    %5079 = vmatprep.subr.mxu0 0.0
    %5080 = vmatpush1.msra.mxu0 0.0
    %5081 = vmatprep.subr.mxu0 0.0
    %5082 = vmatpush1.msra.mxu0 0.0
    %5083 = vmatprep.subr.mxu0 0.0
    %5084 = vmatpush1.msra.mxu0 0.0
    %5085 = vmatprep.subr.mxu0 0.0
    %5086 = vmatpush1.msra.mxu0 0.0
    %5087 = vmatprep.subr.mxu0 0.0
    %5088 = vmatpush1.msra.mxu0 0.0
    %5089 = vmatprep.subr.mxu0 0.0
    %5090 = vmatpush1.msra.mxu0 0.0
    %5091 = vmatprep.subr.mxu0 0.0
    %5092 = vmatpush1.msra.mxu0 0.0
    %5093 = vmatprep.subr.mxu0 0.0
    %5094 = vmatpush1.msra.mxu0 0.0
    %5095 = vmatprep.subr.mxu0 0.0
    %5096 = vmatpush1.msra.mxu0 0.0
    %5097 = vmatprep.subr.mxu0 0.0
    %5098 = vmatpush1.msra.mxu0 0.0
    %5099 = vmatprep.subr.mxu0 0.0
    %5100 = vmatpush1.msra.mxu0 0.0
    %5101 = vmatprep.subr.mxu0 0.0
    %5102 = vmatpush1.msra.mxu0 0.0
    %5103 = vmatprep.subr.mxu0 0.0
    %5104 = vmatpush1.msra.mxu0 0.0
    %5105 = vmatprep.subr.mxu0 0.0
    %5106 = vmatpush1.msra.mxu0 0.0
    %5107 = vmatprep.subr.mxu0 0.0
    %5108 = vmatpush1.msra.mxu0 0.0
    %5109 = vmatprep.subr.mxu0 0.0
    %5110 = vmatpush1.msra.mxu0 0.0
    %5111 = vmatprep.subr.mxu0 0.0
    %5112 = vmatpush1.msra.mxu0 0.0
    %5113 = vmatprep.subr.mxu0 0.0
    %5114 = vmatpush1.msra.mxu0 0.0
    %5115 = vmatprep.subr.mxu0 0.0
    %5116 = vmatpush1.msra.mxu0 0.0
    %5117 = vmatprep.subr.mxu0 0.0
    %5118 = vmatpush1.msra.mxu0 0.0
    %5119 = vmatprep.subr.mxu0 0.0
    %5120 = vmatpush1.msra.mxu0 0.0
    %5121 = vmatprep.subr.mxu0 0.0
    %5122 = vmatpush1.msra.mxu0 0.0
    %5123 = vmatprep.subr.mxu0 0.0
    %5124 = vmatpush1.msra.mxu0 0.0
    %5125 = vmatprep.mubr.f32.mxu0 0.0
    %5126 = vmatmul.mubr.f32.gmra.mrb[0].mxu0 %v4452
    %v5127 = vpop.f32.mrb[0].mxu0
    %v5128 = vadd.f32 0.0, %v5127
    %v5129 = vpop.f32.mrb[0].mxu0
    %v5130 = vadd.f32 0.0, %v5129
    %5131 = vmatprep.mubr.f32.mxu0 0.0
    %5132 = vmatmul.mubr.f32.gmra.mrb[0].mxu0 %v4455
    %v5133 = vpop.f32.mrb[0].mxu0
    %v5134 = vadd.f32 0.0, %v5133
    %v5135 = vpop.f32.mrb[0].mxu0
    %v5136 = vadd.f32 0.0, %v5135
    %5137 = vmatprep.mubr.f32.mxu0 0.0
    %5138 = vmatmul.mubr.f32.gmra.mrb[0].mxu0 %v4458
    %v5139 = vpop.f32.mrb[0].mxu0
    %v5140 = vadd.f32 0.0, %v5139
    %v5141 = vpop.f32.mrb[0].mxu0
    %v5142 = vadd.f32 0.0, %v5141
    %5143 = vmatprep.mubr.f32.mxu0 0.0
    %5144 = vmatmul.mubr.f32.gmra.mrb[0].mxu0 %v4461
    %v5145 = vpop.f32.mrb[0].mxu0
    %v5146 = vadd.f32 0.0, %v5145
    %v5147 = vpop.f32.mrb[0].mxu0
    %v5148 = vadd.f32 0.0, %v5147
    %5149 = vmatprep.mubr.f32.mxu0 0.0
    %5150 = vmatmul.mubr.f32.gmra.mrb[0].mxu0 %v4464
    %v5151 = vpop.f32.mrb[0].mxu0
    %v5152 = vadd.f32 0.0, %v5151
    %v5153 = vpop.f32.mrb[0].mxu0
    %v5154 = vadd.f32 0.0, %v5153
    %5155 = vmatprep.mubr.f32.mxu0 0.0
    %5156 = vmatmul.mubr.f32.gmra.mrb[0].mxu0 %v4467
    %v5157 = vpop.f32.mrb[0].mxu0
    %v5158 = vadd.f32 0.0, %v5157
    %v5159 = vpop.f32.mrb[0].mxu0
    %v5160 = vadd.f32 0.0, %v5159
    %5161 = vmatprep.mubr.f32.mxu0 0.0
    %5162 = vmatmul.mubr.f32.gmra.mrb[0].mxu0 %v4470
    %v5163 = vpop.f32.mrb[0].mxu0
    %v5164 = vadd.f32 0.0, %v5163
    %v5165 = vpop.f32.mrb[0].mxu0
    %v5166 = vadd.f32 0.0, %v5165
    %5167 = vmatprep.mubr.f32.mxu0 0.0
    %5168 = vmatmul.mubr.f32.gmra.mrb[0].mxu0 %v4473
    %v5169 = vpop.f32.mrb[0].mxu0
    %v5170 = vadd.f32 0.0, %v5169
    %v5171 = vpop.f32.mrb[0].mxu0
    %v5172 = vadd.f32 0.0, %v5171
    %5173 = vmatprep.mubr.f32.mxu0 0.0
    %5174 = vmatmul.mubr.f32.gmra.mrb[0].mxu0 %v4476
    %v5175 = vpop.f32.mrb[0].mxu0
    %v5176 = vadd.f32 0.0, %v5175
    %v5177 = vpop.f32.mrb[0].mxu0
    %v5178 = vadd.f32 0.0, %v5177
    %5179 = vmatprep.mubr.f32.mxu0 0.0
    %5180 = vmatmul.mubr.f32.gmra.mrb[0].mxu0 %v4479
    %v5181 = vpop.f32.mrb[0].mxu0
    %v5182 = vadd.f32 0.0, %v5181
    %v5183 = vpop.f32.mrb[0].mxu0
    %v5184 = vadd.f32 0.0, %v5183
    %5185 = vmatprep.mubr.f32.mxu0 0.0
    %5186 = vmatmul.mubr.f32.gmra.mrb[0].mxu0 %v4482
    %v5187 = vpop.f32.mrb[0].mxu0
    %v5188 = vadd.f32 0.0, %v5187
    %v5189 = vpop.f32.mrb[0].mxu0
    %v5190 = vadd.f32 0.0, %v5189
    %5191 = vmatprep.mubr.f32.mxu0 0.0
    %5192 = vmatmul.mubr.f32.gmra.mrb[0].mxu0 %v4485
    %v5193 = vpop.f32.mrb[0].mxu0
    %v5194 = vadd.f32 0.0, %v5193
    %v5195 = vpop.f32.mrb[0].mxu0
    %v5196 = vadd.f32 0.0, %v5195
    %5197 = vmatprep.mubr.f32.mxu0 0.0
    %5198 = vmatmul.mubr.f32.gmra.mrb[0].mxu0 %v4488
    %v5199 = vpop.f32.mrb[0].mxu0
    %v5200 = vadd.f32 0.0, %v5199
    %v5201 = vpop.f32.mrb[0].mxu0
    %v5202 = vadd.f32 0.0, %v5201
    %5203 = vmatprep.mubr.f32.mxu0 0.0
    %5204 = vmatmul.mubr.f32.gmra.mrb[0].mxu0 %v4491
    %v5205 = vpop.f32.mrb[0].mxu0
    %v5206 = vadd.f32 0.0, %v5205
    %v5207 = vpop.f32.mrb[0].mxu0
    %v5208 = vadd.f32 0.0, %v5207
    %5209 = vmatprep.mubr.f32.mxu0 0.0
    %5210 = vmatmul.mubr.f32.gmra.mrb[0].mxu0 %v4494
    %v5211 = vpop.f32.mrb[0].mxu0
    %v5212 = vadd.f32 0.0, %v5211
    %v5213 = vpop.f32.mrb[0].mxu0
    %v5214 = vadd.f32 0.0, %v5213
    %5215 = vmatprep.mubr.f32.mxu0 0.0
    %5216 = vmatmul.mubr.f32.gmra.mrb[0].mxu0 %v4497
    %v5217 = vpop.f32.mrb[0].mxu0
    %v5218 = vadd.f32 0.0, %v5217
    %v5219 = vpop.f32.mrb[0].mxu0
    %v5220 = vadd.f32 0.0, %v5219
    %5221 = vmatprep.mubr.f32.mxu0 0.0
    %5222 = vmatmul.mubr.f32.gmra.mrb[0].mxu0 %v4500
    %v5223 = vpop.f32.mrb[0].mxu0
    %v5224 = vadd.f32 0.0, %v5223
    %v5225 = vpop.f32.mrb[0].mxu0
    %v5226 = vadd.f32 0.0, %v5225
    %5227 = vmatprep.mubr.f32.mxu0 0.0
    %5228 = vmatmul.mubr.f32.gmra.mrb[0].mxu0 %v4503
    %v5229 = vpop.f32.mrb[0].mxu0
    %v5230 = vadd.f32 0.0, %v5229
    %v5231 = vpop.f32.mrb[0].mxu0
    %v5232 = vadd.f32 0.0, %v5231
    %5233 = vmatprep.mubr.f32.mxu0 0.0
    %5234 = vmatmul.mubr.f32.gmra.mrb[0].mxu0 %v4506
    %v5235 = vpop.f32.mrb[0].mxu0
    %v5236 = vadd.f32 0.0, %v5235
    %v5237 = vpop.f32.mrb[0].mxu0
    %v5238 = vadd.f32 0.0, %v5237
    %5239 = vmatprep.mubr.f32.mxu0 0.0
    %5240 = vmatmul.mubr.f32.gmra.mrb[0].mxu0 %v4509
    %v5241 = vpop.f32.mrb[0].mxu0
    %v5242 = vadd.f32 0.0, %v5241
    %v5243 = vpop.f32.mrb[0].mxu0
    %v5244 = vadd.f32 0.0, %v5243
    %5245 = vmatprep.mubr.f32.mxu0 0.0
    %5246 = vmatmul.mubr.f32.gmra.mrb[0].mxu0 %v4512
    %v5247 = vpop.f32.mrb[0].mxu0
    %v5248 = vadd.f32 0.0, %v5247
    %v5249 = vpop.f32.mrb[0].mxu0
    %v5250 = vadd.f32 0.0, %v5249
    %5251 = vmatprep.mubr.f32.mxu0 0.0
    %5252 = vmatmul.mubr.f32.gmra.mrb[0].mxu0 %v4515
    %v5253 = vpop.f32.mrb[0].mxu0
    %v5254 = vadd.f32 0.0, %v5253
    %v5255 = vpop.f32.mrb[0].mxu0
    %v5256 = vadd.f32 0.0, %v5255
    %5257 = vmatprep.mubr.f32.mxu0 0.0
    %5258 = vmatmul.mubr.f32.gmra.mrb[0].mxu0 %v4518
    %v5259 = vpop.f32.mrb[0].mxu0
    %v5260 = vadd.f32 0.0, %v5259
    %v5261 = vpop.f32.mrb[0].mxu0
    %v5262 = vadd.f32 0.0, %v5261
    %5263 = vmatprep.mubr.f32.mxu0 0.0
    %5264 = vmatmul.mubr.f32.gmra.mrb[0].mxu0 %v4521
    %v5265 = vpop.f32.mrb[0].mxu0
    %v5266 = vadd.f32 0.0, %v5265
    %v5267 = vpop.f32.mrb[0].mxu0
    %v5268 = vadd.f32 0.0, %v5267
    %5269 = vmatprep.mubr.f32.mxu0 0.0
    %5270 = vmatmul.mubr.f32.gmra.mrb[0].mxu0 %v4524
    %v5271 = vpop.f32.mrb[0].mxu0
    %v5272 = vadd.f32 0.0, %v5271
    %v5273 = vpop.f32.mrb[0].mxu0
    %v5274 = vadd.f32 0.0, %v5273
    %5275 = vmatprep.mubr.f32.mxu0 0.0
    %5276 = vmatmul.mubr.f32.gmra.mrb[0].mxu0 %v4527
    %v5277 = vpop.f32.mrb[0].mxu0
    %v5278 = vadd.f32 0.0, %v5277
    %v5279 = vpop.f32.mrb[0].mxu0
    %v5280 = vadd.f32 0.0, %v5279
    %5281 = vmatprep.mubr.f32.mxu0 0.0
    %5282 = vmatmul.mubr.f32.gmra.mrb[0].mxu0 %v4530
    %v5283 = vpop.f32.mrb[0].mxu0
    %v5284 = vadd.f32 0.0, %v5283
    %v5285 = vpop.f32.mrb[0].mxu0
    %v5286 = vadd.f32 0.0, %v5285
    %5287 = vmatprep.mubr.f32.mxu0 0.0
    %5288 = vmatmul.mubr.f32.gmra.mrb[0].mxu0 %v4533
    %v5289 = vpop.f32.mrb[0].mxu0
    %v5290 = vadd.f32 0.0, %v5289
    %v5291 = vpop.f32.mrb[0].mxu0
    %v5292 = vadd.f32 0.0, %v5291
    %5293 = vmatprep.mubr.f32.mxu0 0.0
    %5294 = vmatmul.mubr.f32.gmra.mrb[0].mxu0 %v4536
    %v5295 = vpop.f32.mrb[0].mxu0
    %v5296 = vadd.f32 0.0, %v5295
    %v5297 = vpop.f32.mrb[0].mxu0
    %v5298 = vadd.f32 0.0, %v5297
    %5299 = vmatprep.mubr.f32.mxu0 0.0
    %5300 = vmatmul.mubr.f32.gmra.mrb[0].mxu0 %v4539
    %v5301 = vpop.f32.mrb[0].mxu0
    %v5302 = vadd.f32 0.0, %v5301
    %v5303 = vpop.f32.mrb[0].mxu0
    %v5304 = vadd.f32 0.0, %v5303
    %5305 = vmatprep.mubr.f32.mxu0 0.0
    %5306 = vmatmul.mubr.f32.gmra.mrb[0].mxu0 %v4542
    %v5307 = vpop.f32.mrb[0].mxu0
    %v5308 = vadd.f32 0.0, %v5307
    %v5309 = vpop.f32.mrb[0].mxu0
    %v5310 = vadd.f32 0.0, %v5309
    %5311 = vmatprep.mubr.f32.mxu0 0.0
    %5312 = vmatmul.mubr.f32.gmra.mrb[0].mxu0 %v4545
    %v5313 = vpop.f32.mrb[0].mxu0
    %v5314 = vadd.f32 0.0, %v5313
    %v5315 = vpop.f32.mrb[0].mxu0
    %v5316 = vadd.f32 0.0, %v5315
    %5317 = vdwg.mxu0
    %5318 = vmatprep.subr.mxu0 %v98
    %5319 = vmatpush1.msra.mxu0 %v97
    %5320 = vmatprep.subr.mxu0 %v106
    %5321 = vmatpush1.msra.mxu0 %v105
    %5322 = vmatprep.subr.mxu0 %v114
    %5323 = vmatpush1.msra.mxu0 %v113
    %5324 = vmatprep.subr.mxu0 %v122
    %5325 = vmatpush1.msra.mxu0 %v121
    %5326 = vmatprep.subr.mxu0 0.0
    %5327 = vmatpush1.msra.mxu0 0.0
    %5328 = vmatprep.subr.mxu0 0.0
    %5329 = vmatpush1.msra.mxu0 0.0
    %5330 = vmatprep.subr.mxu0 0.0
    %5331 = vmatpush1.msra.mxu0 0.0
    %5332 = vmatprep.subr.mxu0 0.0
    %5333 = vmatpush1.msra.mxu0 0.0
    %5334 = vmatprep.subr.mxu0 0.0
    %5335 = vmatpush1.msra.mxu0 0.0
    %5336 = vmatprep.subr.mxu0 0.0
    %5337 = vmatpush1.msra.mxu0 0.0
    %5338 = vmatprep.subr.mxu0 0.0
    %5339 = vmatpush1.msra.mxu0 0.0
    %5340 = vmatprep.subr.mxu0 0.0
    %5341 = vmatpush1.msra.mxu0 0.0
    %5342 = vmatprep.subr.mxu0 0.0
    %5343 = vmatpush1.msra.mxu0 0.0
    %5344 = vmatprep.subr.mxu0 0.0
    %5345 = vmatpush1.msra.mxu0 0.0
    %5346 = vmatprep.subr.mxu0 0.0
    %5347 = vmatpush1.msra.mxu0 0.0
    %5348 = vmatprep.subr.mxu0 0.0
    %5349 = vmatpush1.msra.mxu0 0.0
    %5350 = vmatprep.subr.mxu0 0.0
    %5351 = vmatpush1.msra.mxu0 0.0
    %5352 = vmatprep.subr.mxu0 0.0
    %5353 = vmatpush1.msra.mxu0 0.0
    %5354 = vmatprep.subr.mxu0 0.0
    %5355 = vmatpush1.msra.mxu0 0.0
    %5356 = vmatprep.subr.mxu0 0.0
    %5357 = vmatpush1.msra.mxu0 0.0
    %5358 = vmatprep.subr.mxu0 0.0
    %5359 = vmatpush1.msra.mxu0 0.0
    %5360 = vmatprep.subr.mxu0 0.0
    %5361 = vmatpush1.msra.mxu0 0.0
    %5362 = vmatprep.subr.mxu0 0.0
    %5363 = vmatpush1.msra.mxu0 0.0
    %5364 = vmatprep.subr.mxu0 0.0
    %5365 = vmatpush1.msra.mxu0 0.0
    %5366 = vmatprep.subr.mxu0 0.0
    %5367 = vmatpush1.msra.mxu0 0.0
    %5368 = vmatprep.subr.mxu0 0.0
    %5369 = vmatpush1.msra.mxu0 0.0
    %5370 = vmatprep.subr.mxu0 0.0
    %5371 = vmatpush1.msra.mxu0 0.0
    %5372 = vmatprep.subr.mxu0 0.0
    %5373 = vmatpush1.msra.mxu0 0.0
    %5374 = vmatprep.subr.mxu0 0.0
    %5375 = vmatpush1.msra.mxu0 0.0
    %5376 = vmatprep.subr.mxu0 0.0
    %5377 = vmatpush1.msra.mxu0 0.0
    %5378 = vmatprep.subr.mxu0 0.0
    %5379 = vmatpush1.msra.mxu0 0.0
    %5380 = vmatprep.subr.mxu0 0.0
    %5381 = vmatpush1.msra.mxu0 0.0
    %5382 = vmatprep.mubr.f32.mxu0 0.0
    %5383 = vmatmul.mubr.f32.gmra.mrb[0].mxu0 %v4452
    %v5384 = vpop.f32.mrb[0].mxu0
    %v5385 = vadd.f32 0.0, %v5384
    %v5386 = vpop.f32.mrb[0].mxu0
    %v5387 = vadd.f32 0.0, %v5386
    %5388 = vmatprep.mubr.f32.mxu0 0.0
    %5389 = vmatmul.mubr.f32.gmra.mrb[0].mxu0 %v4455
    %v5390 = vpop.f32.mrb[0].mxu0
    %v5391 = vadd.f32 0.0, %v5390
    %v5392 = vpop.f32.mrb[0].mxu0
    %v5393 = vadd.f32 0.0, %v5392
    %5394 = vmatprep.mubr.f32.mxu0 0.0
    %5395 = vmatmul.mubr.f32.gmra.mrb[0].mxu0 %v4458
    %v5396 = vpop.f32.mrb[0].mxu0
    %v5397 = vadd.f32 0.0, %v5396
    %v5398 = vpop.f32.mrb[0].mxu0
    %v5399 = vadd.f32 0.0, %v5398
    %5400 = vmatprep.mubr.f32.mxu0 0.0
    %5401 = vmatmul.mubr.f32.gmra.mrb[0].mxu0 %v4461
    %v5402 = vpop.f32.mrb[0].mxu0
    %v5403 = vadd.f32 0.0, %v5402
    %v5404 = vpop.f32.mrb[0].mxu0
    %v5405 = vadd.f32 0.0, %v5404
    %5406 = vmatprep.mubr.f32.mxu0 0.0
    %5407 = vmatmul.mubr.f32.gmra.mrb[0].mxu0 %v4464
    %v5408 = vpop.f32.mrb[0].mxu0
    %v5409 = vadd.f32 0.0, %v5408
    %v5410 = vpop.f32.mrb[0].mxu0
    %v5411 = vadd.f32 0.0, %v5410
    %5412 = vmatprep.mubr.f32.mxu0 0.0
    %5413 = vmatmul.mubr.f32.gmra.mrb[0].mxu0 %v4467
    %v5414 = vpop.f32.mrb[0].mxu0
    %v5415 = vadd.f32 0.0, %v5414
    %v5416 = vpop.f32.mrb[0].mxu0
    %v5417 = vadd.f32 0.0, %v5416
    %5418 = vmatprep.mubr.f32.mxu0 0.0
    %5419 = vmatmul.mubr.f32.gmra.mrb[0].mxu0 %v4470
    %v5420 = vpop.f32.mrb[0].mxu0
    %v5421 = vadd.f32 0.0, %v5420
    %v5422 = vpop.f32.mrb[0].mxu0
    %v5423 = vadd.f32 0.0, %v5422
    %5424 = vmatprep.mubr.f32.mxu0 0.0
    %5425 = vmatmul.mubr.f32.gmra.mrb[0].mxu0 %v4473
    %v5426 = vpop.f32.mrb[0].mxu0
    %v5427 = vadd.f32 0.0, %v5426
    %v5428 = vpop.f32.mrb[0].mxu0
    %v5429 = vadd.f32 0.0, %v5428
    %5430 = vmatprep.mubr.f32.mxu0 0.0
    %5431 = vmatmul.mubr.f32.gmra.mrb[0].mxu0 %v4476
    %v5432 = vpop.f32.mrb[0].mxu0
    %v5433 = vadd.f32 0.0, %v5432
    %v5434 = vpop.f32.mrb[0].mxu0
    %v5435 = vadd.f32 0.0, %v5434
    %5436 = vmatprep.mubr.f32.mxu0 0.0
    %5437 = vmatmul.mubr.f32.gmra.mrb[0].mxu0 %v4479
    %v5438 = vpop.f32.mrb[0].mxu0
    %v5439 = vadd.f32 0.0, %v5438
    %v5440 = vpop.f32.mrb[0].mxu0
    %v5441 = vadd.f32 0.0, %v5440
    %5442 = vmatprep.mubr.f32.mxu0 0.0
    %5443 = vmatmul.mubr.f32.gmra.mrb[0].mxu0 %v4482
    %v5444 = vpop.f32.mrb[0].mxu0
    %v5445 = vadd.f32 0.0, %v5444
    %v5446 = vpop.f32.mrb[0].mxu0
    %v5447 = vadd.f32 0.0, %v5446
    %5448 = vmatprep.mubr.f32.mxu0 0.0
    %5449 = vmatmul.mubr.f32.gmra.mrb[0].mxu0 %v4485
    %v5450 = vpop.f32.mrb[0].mxu0
    %v5451 = vadd.f32 0.0, %v5450
    %v5452 = vpop.f32.mrb[0].mxu0
    %v5453 = vadd.f32 0.0, %v5452
    %5454 = vmatprep.mubr.f32.mxu0 0.0
    %5455 = vmatmul.mubr.f32.gmra.mrb[0].mxu0 %v4488
    %v5456 = vpop.f32.mrb[0].mxu0
    %v5457 = vadd.f32 0.0, %v5456
    %v5458 = vpop.f32.mrb[0].mxu0
    %v5459 = vadd.f32 0.0, %v5458
    %5460 = vmatprep.mubr.f32.mxu0 0.0
    %5461 = vmatmul.mubr.f32.gmra.mrb[0].mxu0 %v4491
    %v5462 = vpop.f32.mrb[0].mxu0
    %v5463 = vadd.f32 0.0, %v5462
    %v5464 = vpop.f32.mrb[0].mxu0
    %v5465 = vadd.f32 0.0, %v5464
    %5466 = vmatprep.mubr.f32.mxu0 0.0
    %5467 = vmatmul.mubr.f32.gmra.mrb[0].mxu0 %v4494
    %v5468 = vpop.f32.mrb[0].mxu0
    %v5469 = vadd.f32 0.0, %v5468
    %v5470 = vpop.f32.mrb[0].mxu0
    %v5471 = vadd.f32 0.0, %v5470
    %5472 = vmatprep.mubr.f32.mxu0 0.0
    %5473 = vmatmul.mubr.f32.gmra.mrb[0].mxu0 %v4497
    %v5474 = vpop.f32.mrb[0].mxu0
    %v5475 = vadd.f32 0.0, %v5474
    %v5476 = vpop.f32.mrb[0].mxu0
    %v5477 = vadd.f32 0.0, %v5476
    %5478 = vmatprep.mubr.f32.mxu0 0.0
    %5479 = vmatmul.mubr.f32.gmra.mrb[0].mxu0 %v4500
    %v5480 = vpop.f32.mrb[0].mxu0
    %v5481 = vadd.f32 0.0, %v5480
    %v5482 = vpop.f32.mrb[0].mxu0
    %v5483 = vadd.f32 0.0, %v5482
    %5484 = vmatprep.mubr.f32.mxu0 0.0
    %5485 = vmatmul.mubr.f32.gmra.mrb[0].mxu0 %v4503
    %v5486 = vpop.f32.mrb[0].mxu0
    %v5487 = vadd.f32 0.0, %v5486
    %v5488 = vpop.f32.mrb[0].mxu0
    %v5489 = vadd.f32 0.0, %v5488
    %5490 = vmatprep.mubr.f32.mxu0 0.0
    %5491 = vmatmul.mubr.f32.gmra.mrb[0].mxu0 %v4506
    %v5492 = vpop.f32.mrb[0].mxu0
    %v5493 = vadd.f32 0.0, %v5492
    %v5494 = vpop.f32.mrb[0].mxu0
    %v5495 = vadd.f32 0.0, %v5494
    %5496 = vmatprep.mubr.f32.mxu0 0.0
    %5497 = vmatmul.mubr.f32.gmra.mrb[0].mxu0 %v4509
    %v5498 = vpop.f32.mrb[0].mxu0
    %v5499 = vadd.f32 0.0, %v5498
    %v5500 = vpop.f32.mrb[0].mxu0
    %v5501 = vadd.f32 0.0, %v5500
    %5502 = vmatprep.mubr.f32.mxu0 0.0
    %5503 = vmatmul.mubr.f32.gmra.mrb[0].mxu0 %v4512
    %v5504 = vpop.f32.mrb[0].mxu0
    %v5505 = vadd.f32 0.0, %v5504
    %v5506 = vpop.f32.mrb[0].mxu0
    %v5507 = vadd.f32 0.0, %v5506
    %5508 = vmatprep.mubr.f32.mxu0 0.0
    %5509 = vmatmul.mubr.f32.gmra.mrb[0].mxu0 %v4515
    %v5510 = vpop.f32.mrb[0].mxu0
    %v5511 = vadd.f32 0.0, %v5510
    %v5512 = vpop.f32.mrb[0].mxu0
    %v5513 = vadd.f32 0.0, %v5512
    %5514 = vmatprep.mubr.f32.mxu0 0.0
    %5515 = vmatmul.mubr.f32.gmra.mrb[0].mxu0 %v4518
    %v5516 = vpop.f32.mrb[0].mxu0
    %v5517 = vadd.f32 0.0, %v5516
    %v5518 = vpop.f32.mrb[0].mxu0
    %v5519 = vadd.f32 0.0, %v5518
    %5520 = vmatprep.mubr.f32.mxu0 0.0
    %5521 = vmatmul.mubr.f32.gmra.mrb[0].mxu0 %v4521
    %v5522 = vpop.f32.mrb[0].mxu0
    %v5523 = vadd.f32 0.0, %v5522
    %v5524 = vpop.f32.mrb[0].mxu0
    %v5525 = vadd.f32 0.0, %v5524
    %5526 = vmatprep.mubr.f32.mxu0 0.0
    %5527 = vmatmul.mubr.f32.gmra.mrb[0].mxu0 %v4524
    %v5528 = vpop.f32.mrb[0].mxu0
    %v5529 = vadd.f32 0.0, %v5528
    %v5530 = vpop.f32.mrb[0].mxu0
    %v5531 = vadd.f32 0.0, %v5530
    %5532 = vmatprep.mubr.f32.mxu0 0.0
    %5533 = vmatmul.mubr.f32.gmra.mrb[0].mxu0 %v4527
    %v5534 = vpop.f32.mrb[0].mxu0
    %v5535 = vadd.f32 0.0, %v5534
    %v5536 = vpop.f32.mrb[0].mxu0
    %v5537 = vadd.f32 0.0, %v5536
    %5538 = vmatprep.mubr.f32.mxu0 0.0
    %5539 = vmatmul.mubr.f32.gmra.mrb[0].mxu0 %v4530
    %v5540 = vpop.f32.mrb[0].mxu0
    %v5541 = vadd.f32 0.0, %v5540
    %v5542 = vpop.f32.mrb[0].mxu0
    %v5543 = vadd.f32 0.0, %v5542
    %5544 = vmatprep.mubr.f32.mxu0 0.0
    %5545 = vmatmul.mubr.f32.gmra.mrb[0].mxu0 %v4533
    %v5546 = vpop.f32.mrb[0].mxu0
    %v5547 = vadd.f32 0.0, %v5546
    %v5548 = vpop.f32.mrb[0].mxu0
    %v5549 = vadd.f32 0.0, %v5548
    %5550 = vmatprep.mubr.f32.mxu0 0.0
    %5551 = vmatmul.mubr.f32.gmra.mrb[0].mxu0 %v4536
    %v5552 = vpop.f32.mrb[0].mxu0
    %v5553 = vadd.f32 0.0, %v5552
    %v5554 = vpop.f32.mrb[0].mxu0
    %v5555 = vadd.f32 0.0, %v5554
    %5556 = vmatprep.mubr.f32.mxu0 0.0
    %5557 = vmatmul.mubr.f32.gmra.mrb[0].mxu0 %v4539
    %v5558 = vpop.f32.mrb[0].mxu0
    %v5559 = vadd.f32 0.0, %v5558
    %v5560 = vpop.f32.mrb[0].mxu0
    %v5561 = vadd.f32 0.0, %v5560
    %5562 = vmatprep.mubr.f32.mxu0 0.0
    %5563 = vmatmul.mubr.f32.gmra.mrb[0].mxu0 %v4542
    %v5564 = vpop.f32.mrb[0].mxu0
    %v5565 = vadd.f32 0.0, %v5564
    %v5566 = vpop.f32.mrb[0].mxu0
    %v5567 = vadd.f32 0.0, %v5566
    %5568 = vmatprep.mubr.f32.mxu0 0.0
    %5569 = vmatmul.mubr.f32.gmra.mrb[0].mxu0 %v4545
    %v5570 = vpop.f32.mrb[0].mxu0
    %v5571 = vadd.f32 0.0, %v5570
    %v5572 = vpop.f32.mrb[0].mxu0
    %v5573 = vadd.f32 0.0, %v5572
    %5574 = vdwg.mxu0
    %v5575 = vmul.f32 %v3714, %v4614
    %v5576 = vmul.f32 %v3716, %v4616
    %v5577 = vmul.f32 %v3907, %v4871
    %v5578 = vmul.f32 %v3909, %v4873
    %v5579 = vmul.f32 %v4100, %v5128
    %v5580 = vmul.f32 %v4102, %v5130
    %v5581 = vmul.f32 %v4293, %v5385
    %v5582 = vmul.f32 %v4295, %v5387
    %v5583 = vmul.f32 %v3718, %v4620
    %v5584 = vmul.f32 %v3720, %v4622
    %v5585 = vmul.f32 %v3911, %v4877
    %v5586 = vmul.f32 %v3913, %v4879
    %v5587 = vmul.f32 %v4104, %v5134
    %v5588 = vmul.f32 %v4106, %v5136
    %v5589 = vmul.f32 %v4297, %v5391
    %v5590 = vmul.f32 %v4299, %v5393
    %v5591 = vmul.f32 %v3724, %v4626
    %v5592 = vmul.f32 %v3726, %v4628
    %v5593 = vmul.f32 %v3917, %v4883
    %v5594 = vmul.f32 %v3919, %v4885
    %v5595 = vmul.f32 %v4110, %v5140
    %v5596 = vmul.f32 %v4112, %v5142
    %v5597 = vmul.f32 %v4303, %v5397
    %v5598 = vmul.f32 %v4305, %v5399
    %v5599 = vmul.f32 %v3728, %v4632
    %v5600 = vmul.f32 %v3730, %v4634
    %v5601 = vmul.f32 %v3921, %v4889
    %v5602 = vmul.f32 %v3923, %v4891
    %v5603 = vmul.f32 %v4114, %v5146
    %v5604 = vmul.f32 %v4116, %v5148
    %v5605 = vmul.f32 %v4307, %v5403
    %v5606 = vmul.f32 %v4309, %v5405
    %v5607 = vmul.f32 %v3734, %v4638
    %v5608 = vmul.f32 %v3736, %v4640
    %v5609 = vmul.f32 %v3927, %v4895
    %v5610 = vmul.f32 %v3929, %v4897
    %v5611 = vmul.f32 %v4120, %v5152
    %v5612 = vmul.f32 %v4122, %v5154
    %v5613 = vmul.f32 %v4313, %v5409
    %v5614 = vmul.f32 %v4315, %v5411
    %v5615 = vmul.f32 %v3738, %v4644
    %v5616 = vmul.f32 %v3740, %v4646
    %v5617 = vmul.f32 %v3931, %v4901
    %v5618 = vmul.f32 %v3933, %v4903
    %v5619 = vmul.f32 %v4124, %v5158
    %v5620 = vmul.f32 %v4126, %v5160
    %v5621 = vmul.f32 %v4317, %v5415
    %v5622 = vmul.f32 %v4319, %v5417
    %v5623 = vmul.f32 %v3744, %v4650
    %v5624 = vmul.f32 %v3746, %v4652
    %v5625 = vmul.f32 %v3937, %v4907
    %v5626 = vmul.f32 %v3939, %v4909
    %v5627 = vmul.f32 %v4130, %v5164
    %v5628 = vmul.f32 %v4132, %v5166
    %v5629 = vmul.f32 %v4323, %v5421
    %v5630 = vmul.f32 %v4325, %v5423
    %v5631 = vmul.f32 %v3748, %v4656
    %v5632 = vmul.f32 %v3750, %v4658
    %v5633 = vmul.f32 %v3941, %v4913
    %v5634 = vmul.f32 %v3943, %v4915
    %v5635 = vmul.f32 %v4134, %v5170
    %v5636 = vmul.f32 %v4136, %v5172
    %v5637 = vmul.f32 %v4327, %v5427
    %v5638 = vmul.f32 %v4329, %v5429
    %v5639 = vmul.f32 %v3754, %v4662
    %v5640 = vmul.f32 %v3756, %v4664
    %v5641 = vmul.f32 %v3947, %v4919
    %v5642 = vmul.f32 %v3949, %v4921
    %v5643 = vmul.f32 %v4140, %v5176
    %v5644 = vmul.f32 %v4142, %v5178
    %v5645 = vmul.f32 %v4333, %v5433
    %v5646 = vmul.f32 %v4335, %v5435
    %v5647 = vmul.f32 %v3758, %v4668
    %v5648 = vmul.f32 %v3760, %v4670
    %v5649 = vmul.f32 %v3951, %v4925
    %v5650 = vmul.f32 %v3953, %v4927
    %v5651 = vmul.f32 %v4144, %v5182
    %v5652 = vmul.f32 %v4146, %v5184
    %v5653 = vmul.f32 %v4337, %v5439
    %v5654 = vmul.f32 %v4339, %v5441
    %v5655 = vmul.f32 %v3764, %v4674
    %v5656 = vmul.f32 %v3766, %v4676
    %v5657 = vmul.f32 %v3957, %v4931
    %v5658 = vmul.f32 %v3959, %v4933
    %v5659 = vmul.f32 %v4150, %v5188
    %v5660 = vmul.f32 %v4152, %v5190
    %v5661 = vmul.f32 %v4343, %v5445
    %v5662 = vmul.f32 %v4345, %v5447
    %v5663 = vmul.f32 %v3768, %v4680
    %v5664 = vmul.f32 %v3770, %v4682
    %v5665 = vmul.f32 %v3961, %v4937
    %v5666 = vmul.f32 %v3963, %v4939
    %v5667 = vmul.f32 %v4154, %v5194
    %v5668 = vmul.f32 %v4156, %v5196
    %v5669 = vmul.f32 %v4347, %v5451
    %v5670 = vmul.f32 %v4349, %v5453
    %v5671 = vmul.f32 %v3774, %v4686
    %v5672 = vmul.f32 %v3776, %v4688
    %v5673 = vmul.f32 %v3967, %v4943
    %v5674 = vmul.f32 %v3969, %v4945
    %v5675 = vmul.f32 %v4160, %v5200
    %v5676 = vmul.f32 %v4162, %v5202
    %v5677 = vmul.f32 %v4353, %v5457
    %v5678 = vmul.f32 %v4355, %v5459
    %v5679 = vmul.f32 %v3778, %v4692
    %v5680 = vmul.f32 %v3780, %v4694
    %v5681 = vmul.f32 %v3971, %v4949
    %v5682 = vmul.f32 %v3973, %v4951
    %v5683 = vmul.f32 %v4164, %v5206
    %v5684 = vmul.f32 %v4166, %v5208
    %v5685 = vmul.f32 %v4357, %v5463
    %v5686 = vmul.f32 %v4359, %v5465
    %v5687 = vmul.f32 %v3784, %v4698
    %v5688 = vmul.f32 %v3786, %v4700
    %v5689 = vmul.f32 %v3977, %v4955
    %v5690 = vmul.f32 %v3979, %v4957
    %v5691 = vmul.f32 %v4170, %v5212
    %v5692 = vmul.f32 %v4172, %v5214
    %v5693 = vmul.f32 %v4363, %v5469
    %v5694 = vmul.f32 %v4365, %v5471
    %v5695 = vmul.f32 %v3788, %v4704
    %v5696 = vmul.f32 %v3790, %v4706
    %v5697 = vmul.f32 %v3981, %v4961
    %v5698 = vmul.f32 %v3983, %v4963
    %v5699 = vmul.f32 %v4174, %v5218
    %v5700 = vmul.f32 %v4176, %v5220
    %v5701 = vmul.f32 %v4367, %v5475
    %v5702 = vmul.f32 %v4369, %v5477
    %v5703 = vmul.f32 %v3794, %v4710
    %v5704 = vmul.f32 %v3796, %v4712
    %v5705 = vmul.f32 %v3987, %v4967
    %v5706 = vmul.f32 %v3989, %v4969
    %v5707 = vmul.f32 %v4180, %v5224
    %v5708 = vmul.f32 %v4182, %v5226
    %v5709 = vmul.f32 %v4373, %v5481
    %v5710 = vmul.f32 %v4375, %v5483
    %v5711 = vmul.f32 %v3798, %v4716
    %v5712 = vmul.f32 %v3800, %v4718
    %v5713 = vmul.f32 %v3991, %v4973
    %v5714 = vmul.f32 %v3993, %v4975
    %v5715 = vmul.f32 %v4184, %v5230
    %v5716 = vmul.f32 %v4186, %v5232
    %v5717 = vmul.f32 %v4377, %v5487
    %v5718 = vmul.f32 %v4379, %v5489
    %v5719 = vmul.f32 %v3804, %v4722
    %v5720 = vmul.f32 %v3806, %v4724
    %v5721 = vmul.f32 %v3997, %v4979
    %v5722 = vmul.f32 %v3999, %v4981
    %v5723 = vmul.f32 %v4190, %v5236
    %v5724 = vmul.f32 %v4192, %v5238
    %v5725 = vmul.f32 %v4383, %v5493
    %v5726 = vmul.f32 %v4385, %v5495
    %v5727 = vmul.f32 %v3808, %v4728
    %v5728 = vmul.f32 %v3810, %v4730
    %v5729 = vmul.f32 %v4001, %v4985
    %v5730 = vmul.f32 %v4003, %v4987
    %v5731 = vmul.f32 %v4194, %v5242
    %v5732 = vmul.f32 %v4196, %v5244
    %v5733 = vmul.f32 %v4387, %v5499
    %v5734 = vmul.f32 %v4389, %v5501
    %v5735 = vmul.f32 %v3814, %v4734
    %v5736 = vmul.f32 %v3816, %v4736
    %v5737 = vmul.f32 %v4007, %v4991
    %v5738 = vmul.f32 %v4009, %v4993
    %v5739 = vmul.f32 %v4200, %v5248
    %v5740 = vmul.f32 %v4202, %v5250
    %v5741 = vmul.f32 %v4393, %v5505
    %v5742 = vmul.f32 %v4395, %v5507
    %v5743 = vmul.f32 %v3818, %v4740
    %v5744 = vmul.f32 %v3820, %v4742
    %v5745 = vmul.f32 %v4011, %v4997
    %v5746 = vmul.f32 %v4013, %v4999
    %v5747 = vmul.f32 %v4204, %v5254
    %v5748 = vmul.f32 %v4206, %v5256
    %v5749 = vmul.f32 %v4397, %v5511
    %v5750 = vmul.f32 %v4399, %v5513
    %v5751 = vmul.f32 %v3824, %v4746
    %v5752 = vmul.f32 %v3826, %v4748
    %v5753 = vmul.f32 %v4017, %v5003
    %v5754 = vmul.f32 %v4019, %v5005
    %v5755 = vmul.f32 %v4210, %v5260
    %v5756 = vmul.f32 %v4212, %v5262
    %v5757 = vmul.f32 %v4403, %v5517
    %v5758 = vmul.f32 %v4405, %v5519
    %v5759 = vmul.f32 %v3828, %v4752
    %v5760 = vmul.f32 %v3830, %v4754
    %v5761 = vmul.f32 %v4021, %v5009
    %v5762 = vmul.f32 %v4023, %v5011
    %v5763 = vmul.f32 %v4214, %v5266
    %v5764 = vmul.f32 %v4216, %v5268
    %v5765 = vmul.f32 %v4407, %v5523
    %v5766 = vmul.f32 %v4409, %v5525
    %v5767 = vmul.f32 %v3834, %v4758
    %v5768 = vmul.f32 %v3836, %v4760
    %v5769 = vmul.f32 %v4027, %v5015
    %v5770 = vmul.f32 %v4029, %v5017
    %v5771 = vmul.f32 %v4220, %v5272
    %v5772 = vmul.f32 %v4222, %v5274
    %v5773 = vmul.f32 %v4413, %v5529
    %v5774 = vmul.f32 %v4415, %v5531
    %v5775 = vmul.f32 %v3838, %v4764
    %v5776 = vmul.f32 %v3840, %v4766
    %v5777 = vmul.f32 %v4031, %v5021
    %v5778 = vmul.f32 %v4033, %v5023
    %v5779 = vmul.f32 %v4224, %v5278
    %v5780 = vmul.f32 %v4226, %v5280
    %v5781 = vmul.f32 %v4417, %v5535
    %v5782 = vmul.f32 %v4419, %v5537
    %v5783 = vmul.f32 %v3844, %v4770
    %v5784 = vmul.f32 %v3846, %v4772
    %v5785 = vmul.f32 %v4037, %v5027
    %v5786 = vmul.f32 %v4039, %v5029
    %v5787 = vmul.f32 %v4230, %v5284
    %v5788 = vmul.f32 %v4232, %v5286
    %v5789 = vmul.f32 %v4423, %v5541
    %v5790 = vmul.f32 %v4425, %v5543
    %v5791 = vmul.f32 %v3848, %v4776
    %v5792 = vmul.f32 %v3850, %v4778
    %v5793 = vmul.f32 %v4041, %v5033
    %v5794 = vmul.f32 %v4043, %v5035
    %v5795 = vmul.f32 %v4234, %v5290
    %v5796 = vmul.f32 %v4236, %v5292
    %v5797 = vmul.f32 %v4427, %v5547
    %v5798 = vmul.f32 %v4429, %v5549
    %v5799 = vmul.f32 %v3854, %v4782
    %v5800 = vmul.f32 %v3856, %v4784
    %v5801 = vmul.f32 %v4047, %v5039
    %v5802 = vmul.f32 %v4049, %v5041
    %v5803 = vmul.f32 %v4240, %v5296
    %v5804 = vmul.f32 %v4242, %v5298
    %v5805 = vmul.f32 %v4433, %v5553
    %v5806 = vmul.f32 %v4435, %v5555
    %v5807 = vmul.f32 %v3858, %v4788
    %v5808 = vmul.f32 %v3860, %v4790
    %v5809 = vmul.f32 %v4051, %v5045
    %v5810 = vmul.f32 %v4053, %v5047
    %v5811 = vmul.f32 %v4244, %v5302
    %v5812 = vmul.f32 %v4246, %v5304
    %v5813 = vmul.f32 %v4437, %v5559
    %v5814 = vmul.f32 %v4439, %v5561
    %v5815 = vmul.f32 %v3864, %v4794
    %v5816 = vmul.f32 %v3866, %v4796
    %v5817 = vmul.f32 %v4057, %v5051
    %v5818 = vmul.f32 %v4059, %v5053
    %v5819 = vmul.f32 %v4250, %v5308
    %v5820 = vmul.f32 %v4252, %v5310
    %v5821 = vmul.f32 %v4443, %v5565
    %v5822 = vmul.f32 %v4445, %v5567
    %v5823 = vmul.f32 %v3868, %v4800
    %v5824 = vmul.f32 %v3870, %v4802
    %v5825 = vmul.f32 %v4061, %v5057
    %v5826 = vmul.f32 %v4063, %v5059
    %v5827 = vmul.f32 %v4254, %v5314
    %v5828 = vmul.f32 %v4256, %v5316
    %v5829 = vmul.f32 %v4447, %v5571
    %v5830 = vmul.f32 %v4449, %v5573
    %v5831 = vld [vmem:[%s6] sm:$0x1]
    %v5833 = vlaneseq
    %v5834 = vshrl.u32 %v5833, 7
    %v5835 = vsub.s32 0, %v5834
    %v5836 = vrot.slane %v5831, %v5835
    %5838 = vmatprep.subr.mxu0 0.0
    %5839 = vmatpush1.msra.mxu0 %v123
    %5840 = vmatprep.subr.mxu0 0.0
    %5841 = vmatpush1.msra.mxu0 %v124
    %5842 = vmatprep.subr.mxu0 0.0
    %5843 = vmatpush1.msra.mxu0 %v125
    %5844 = vmatprep.subr.mxu0 0.0
    %5845 = vmatpush1.msra.mxu0 %v126
    %5846 = vmatprep.subr.mxu0 0.0
    %5847 = vmatpush1.msra.mxu0 %v127
    %5848 = vmatprep.subr.mxu0 0.0
    %5849 = vmatpush1.msra.mxu0 %v128
    %5850 = vmatprep.subr.mxu0 0.0
    %5851 = vmatpush1.msra.mxu0 %v129
    %5852 = vmatprep.subr.mxu0 0.0
    %5853 = vmatpush1.msra.mxu0 %v130
    %5854 = vmatprep.subr.mxu0 0.0
    %5855 = vmatpush1.msra.mxu0 %v131
    %5856 = vmatprep.subr.mxu0 0.0
    %5857 = vmatpush1.msra.mxu0 %v132
    %5858 = vmatprep.subr.mxu0 0.0
    %5859 = vmatpush1.msra.mxu0 %v133
    %5860 = vmatprep.subr.mxu0 0.0
    %5861 = vmatpush1.msra.mxu0 %v134
    %5862 = vmatprep.subr.mxu0 0.0
    %5863 = vmatpush1.msra.mxu0 %v135
    %5864 = vmatprep.subr.mxu0 0.0
    %5865 = vmatpush1.msra.mxu0 %v136
    %5866 = vmatprep.subr.mxu0 0.0
    %5867 = vmatpush1.msra.mxu0 %v137
    %5868 = vmatprep.subr.mxu0 0.0
    %5869 = vmatpush1.msra.mxu0 %v138
    %5870 = vmatprep.subr.mxu0 0.0
    %5871 = vmatpush1.msra.mxu0 %v139
    %5872 = vmatprep.subr.mxu0 0.0
    %5873 = vmatpush1.msra.mxu0 %v140
    %5874 = vmatprep.subr.mxu0 0.0
    %5875 = vmatpush1.msra.mxu0 %v141
    %5876 = vmatprep.subr.mxu0 0.0
    %5877 = vmatpush1.msra.mxu0 %v142
    %5878 = vmatprep.subr.mxu0 0.0
    %5879 = vmatpush1.msra.mxu0 %v143
    %5880 = vmatprep.subr.mxu0 0.0
    %5881 = vmatpush1.msra.mxu0 %v144
    %5882 = vmatprep.subr.mxu0 0.0
    %5883 = vmatpush1.msra.mxu0 %v145
    %5884 = vmatprep.subr.mxu0 0.0
    %5885 = vmatpush1.msra.mxu0 %v146
    %5886 = vmatprep.subr.mxu0 0.0
    %5887 = vmatpush1.msra.mxu0 %v147
    %5888 = vmatprep.subr.mxu0 0.0
    %5889 = vmatpush1.msra.mxu0 %v148
    %5890 = vmatprep.subr.mxu0 0.0
    %5891 = vmatpush1.msra.mxu0 %v149
    %5892 = vmatprep.subr.mxu0 0.0
    %5893 = vmatpush1.msra.mxu0 %v150
    %5894 = vmatprep.subr.mxu0 0.0
    %5895 = vmatpush1.msra.mxu0 %v151
    %5896 = vmatprep.subr.mxu0 0.0
    %5897 = vmatpush1.msra.mxu0 %v152
    %5898 = vmatprep.subr.mxu0 0.0
    %5899 = vmatpush1.msra.mxu0 %v153
    %5900 = vmatprep.subr.mxu0 0.0
    %5901 = vmatpush1.msra.mxu0 %v154
    %5902 = vmatprep.mubr.f32.mxu0 %v5576
    %5903 = vmatmul.mubr.f32.gmra.mrb[0].mxu0 %v5575
    %v5904 = vpop.f32.mrb[0].mxu0
    %v5905 = vadd.f32 %v5836, %v5904
    %v5906 = vpop.f32.mrb[0].mxu0
    %5907 = vmatprep.mubr.f32.mxu0 %v5584
    %5908 = vmatmul.mubr.f32.gmra.mrb[0].mxu0 %v5583
    %v5909 = vpop.f32.mrb[0].mxu0
    %v5910 = vadd.f32 %v5836, %v5909
    %v5911 = vpop.f32.mrb[0].mxu0
    %5912 = vmatprep.mubr.f32.mxu0 %v5592
    %5913 = vmatmul.mubr.f32.gmra.mrb[0].mxu0 %v5591
    %v5914 = vpop.f32.mrb[0].mxu0
    %v5915 = vadd.f32 %v5836, %v5914
    %v5916 = vpop.f32.mrb[0].mxu0
    %5917 = vmatprep.mubr.f32.mxu0 %v5600
    %5918 = vmatmul.mubr.f32.gmra.mrb[0].mxu0 %v5599
    %v5919 = vpop.f32.mrb[0].mxu0
    %v5920 = vadd.f32 %v5836, %v5919
    %v5921 = vpop.f32.mrb[0].mxu0
    %5922 = vmatprep.mubr.f32.mxu0 %v5608
    %5923 = vmatmul.mubr.f32.gmra.mrb[0].mxu0 %v5607
    %v5924 = vpop.f32.mrb[0].mxu0
    %v5925 = vadd.f32 %v5836, %v5924
    %v5926 = vpop.f32.mrb[0].mxu0
    %5927 = vmatprep.mubr.f32.mxu0 %v5616
    %5928 = vmatmul.mubr.f32.gmra.mrb[0].mxu0 %v5615
    %v5929 = vpop.f32.mrb[0].mxu0
    %v5930 = vadd.f32 %v5836, %v5929
    %v5931 = vpop.f32.mrb[0].mxu0
    %5932 = vmatprep.mubr.f32.mxu0 %v5624
    %5933 = vmatmul.mubr.f32.gmra.mrb[0].mxu0 %v5623
    %v5934 = vpop.f32.mrb[0].mxu0
    %v5935 = vadd.f32 %v5836, %v5934
    %v5936 = vpop.f32.mrb[0].mxu0
    %5937 = vmatprep.mubr.f32.mxu0 %v5632
    %5938 = vmatmul.mubr.f32.gmra.mrb[0].mxu0 %v5631
    %v5939 = vpop.f32.mrb[0].mxu0
    %v5940 = vadd.f32 %v5836, %v5939
    %v5941 = vpop.f32.mrb[0].mxu0
    %5942 = vmatprep.mubr.f32.mxu0 %v5640
    %5943 = vmatmul.mubr.f32.gmra.mrb[0].mxu0 %v5639
    %v5944 = vpop.f32.mrb[0].mxu0
    %v5945 = vadd.f32 %v5836, %v5944
    %v5946 = vpop.f32.mrb[0].mxu0
    %5947 = vmatprep.mubr.f32.mxu0 %v5648
    %5948 = vmatmul.mubr.f32.gmra.mrb[0].mxu0 %v5647
    %v5949 = vpop.f32.mrb[0].mxu0
    %v5950 = vadd.f32 %v5836, %v5949
    %v5951 = vpop.f32.mrb[0].mxu0
    %5952 = vmatprep.mubr.f32.mxu0 %v5656
    %5953 = vmatmul.mubr.f32.gmra.mrb[0].mxu0 %v5655
    %v5954 = vpop.f32.mrb[0].mxu0
    %v5955 = vadd.f32 %v5836, %v5954
    %v5956 = vpop.f32.mrb[0].mxu0
    %5957 = vmatprep.mubr.f32.mxu0 %v5664
    %5958 = vmatmul.mubr.f32.gmra.mrb[0].mxu0 %v5663
    %v5959 = vpop.f32.mrb[0].mxu0
    %v5960 = vadd.f32 %v5836, %v5959
    %v5961 = vpop.f32.mrb[0].mxu0
    %5962 = vmatprep.mubr.f32.mxu0 %v5672
    %5963 = vmatmul.mubr.f32.gmra.mrb[0].mxu0 %v5671
    %v5964 = vpop.f32.mrb[0].mxu0
    %v5965 = vadd.f32 %v5836, %v5964
    %v5966 = vpop.f32.mrb[0].mxu0
    %5967 = vmatprep.mubr.f32.mxu0 %v5680
    %5968 = vmatmul.mubr.f32.gmra.mrb[0].mxu0 %v5679
    %v5969 = vpop.f32.mrb[0].mxu0
    %v5970 = vadd.f32 %v5836, %v5969
    %v5971 = vpop.f32.mrb[0].mxu0
    %5972 = vmatprep.mubr.f32.mxu0 %v5688
    %5973 = vmatmul.mubr.f32.gmra.mrb[0].mxu0 %v5687
    %v5974 = vpop.f32.mrb[0].mxu0
    %v5975 = vadd.f32 %v5836, %v5974
    %v5976 = vpop.f32.mrb[0].mxu0
    %5977 = vmatprep.mubr.f32.mxu0 %v5696
    %5978 = vmatmul.mubr.f32.gmra.mrb[0].mxu0 %v5695
    %v5979 = vpop.f32.mrb[0].mxu0
    %v5980 = vadd.f32 %v5836, %v5979
    %v5981 = vpop.f32.mrb[0].mxu0
    %5982 = vmatprep.mubr.f32.mxu0 %v5704
    %5983 = vmatmul.mubr.f32.gmra.mrb[0].mxu0 %v5703
    %v5984 = vpop.f32.mrb[0].mxu0
    %v5985 = vadd.f32 %v5836, %v5984
    %v5986 = vpop.f32.mrb[0].mxu0
    %5987 = vmatprep.mubr.f32.mxu0 %v5712
    %5988 = vmatmul.mubr.f32.gmra.mrb[0].mxu0 %v5711
    %v5989 = vpop.f32.mrb[0].mxu0
    %v5990 = vadd.f32 %v5836, %v5989
    %v5991 = vpop.f32.mrb[0].mxu0
    %5992 = vmatprep.mubr.f32.mxu0 %v5720
    %5993 = vmatmul.mubr.f32.gmra.mrb[0].mxu0 %v5719
    %v5994 = vpop.f32.mrb[0].mxu0
    %v5995 = vadd.f32 %v5836, %v5994
    %v5996 = vpop.f32.mrb[0].mxu0
    %5997 = vmatprep.mubr.f32.mxu0 %v5728
    %5998 = vmatmul.mubr.f32.gmra.mrb[0].mxu0 %v5727
    %v5999 = vpop.f32.mrb[0].mxu0
    %v6000 = vadd.f32 %v5836, %v5999
    %v6001 = vpop.f32.mrb[0].mxu0
    %6002 = vmatprep.mubr.f32.mxu0 %v5736
    %6003 = vmatmul.mubr.f32.gmra.mrb[0].mxu0 %v5735
    %v6004 = vpop.f32.mrb[0].mxu0
    %v6005 = vadd.f32 %v5836, %v6004
    %v6006 = vpop.f32.mrb[0].mxu0
    %6007 = vmatprep.mubr.f32.mxu0 %v5744
    %6008 = vmatmul.mubr.f32.gmra.mrb[0].mxu0 %v5743
    %v6009 = vpop.f32.mrb[0].mxu0
    %v6010 = vadd.f32 %v5836, %v6009
    %v6011 = vpop.f32.mrb[0].mxu0
    %6012 = vmatprep.mubr.f32.mxu0 %v5752
    %6013 = vmatmul.mubr.f32.gmra.mrb[0].mxu0 %v5751
    %v6014 = vpop.f32.mrb[0].mxu0
    %v6015 = vadd.f32 %v5836, %v6014
    %v6016 = vpop.f32.mrb[0].mxu0
    %6017 = vmatprep.mubr.f32.mxu0 %v5760
    %6018 = vmatmul.mubr.f32.gmra.mrb[0].mxu0 %v5759
    %v6019 = vpop.f32.mrb[0].mxu0
    %v6020 = vadd.f32 %v5836, %v6019
    %v6021 = vpop.f32.mrb[0].mxu0
    %6022 = vmatprep.mubr.f32.mxu0 %v5768
    %6023 = vmatmul.mubr.f32.gmra.mrb[0].mxu0 %v5767
    %v6024 = vpop.f32.mrb[0].mxu0
    %v6025 = vadd.f32 %v5836, %v6024
    %v6026 = vpop.f32.mrb[0].mxu0
    %6027 = vmatprep.mubr.f32.mxu0 %v5776
    %6028 = vmatmul.mubr.f32.gmra.mrb[0].mxu0 %v5775
    %v6029 = vpop.f32.mrb[0].mxu0
    %v6030 = vadd.f32 %v5836, %v6029
    %v6031 = vpop.f32.mrb[0].mxu0
    %6032 = vmatprep.mubr.f32.mxu0 %v5784
    %6033 = vmatmul.mubr.f32.gmra.mrb[0].mxu0 %v5783
    %v6034 = vpop.f32.mrb[0].mxu0
    %v6035 = vadd.f32 %v5836, %v6034
    %v6036 = vpop.f32.mrb[0].mxu0
    %6037 = vmatprep.mubr.f32.mxu0 %v5792
    %6038 = vmatmul.mubr.f32.gmra.mrb[0].mxu0 %v5791
    %v6039 = vpop.f32.mrb[0].mxu0
    %v6040 = vadd.f32 %v5836, %v6039
    %v6041 = vpop.f32.mrb[0].mxu0
    %6042 = vmatprep.mubr.f32.mxu0 %v5800
    %6043 = vmatmul.mubr.f32.gmra.mrb[0].mxu0 %v5799
    %v6044 = vpop.f32.mrb[0].mxu0
    %v6045 = vadd.f32 %v5836, %v6044
    %v6046 = vpop.f32.mrb[0].mxu0
    %6047 = vmatprep.mubr.f32.mxu0 %v5808
    %6048 = vmatmul.mubr.f32.gmra.mrb[0].mxu0 %v5807
    %v6049 = vpop.f32.mrb[0].mxu0
    %v6050 = vadd.f32 %v5836, %v6049
    %v6051 = vpop.f32.mrb[0].mxu0
    %6052 = vmatprep.mubr.f32.mxu0 %v5816
    %6053 = vmatmul.mubr.f32.gmra.mrb[0].mxu0 %v5815
    %v6054 = vpop.f32.mrb[0].mxu0
    %v6055 = vadd.f32 %v5836, %v6054
    %v6056 = vpop.f32.mrb[0].mxu0
    %6057 = vmatprep.mubr.f32.mxu0 %v5824
    %6058 = vmatmul.mubr.f32.gmra.mrb[0].mxu0 %v5823
    %v6059 = vpop.f32.mrb[0].mxu0
    %v6060 = vadd.f32 %v5836, %v6059
    %v6061 = vpop.f32.mrb[0].mxu0
    %6062 = vdwg.mxu0
    %6063 = vmatprep.subr.mxu0 0.0
    %6064 = vmatpush1.msra.mxu0 %v155
    %6065 = vmatprep.subr.mxu0 0.0
    %6066 = vmatpush1.msra.mxu0 %v156
    %6067 = vmatprep.subr.mxu0 0.0
    %6068 = vmatpush1.msra.mxu0 %v157
    %6069 = vmatprep.subr.mxu0 0.0
    %6070 = vmatpush1.msra.mxu0 %v158
    %6071 = vmatprep.subr.mxu0 0.0
    %6072 = vmatpush1.msra.mxu0 %v159
    %6073 = vmatprep.subr.mxu0 0.0
    %6074 = vmatpush1.msra.mxu0 %v160
    %6075 = vmatprep.subr.mxu0 0.0
    %6076 = vmatpush1.msra.mxu0 %v161
    %6077 = vmatprep.subr.mxu0 0.0
    %6078 = vmatpush1.msra.mxu0 %v162
    %6079 = vmatprep.subr.mxu0 0.0
    %6080 = vmatpush1.msra.mxu0 %v163
    %6081 = vmatprep.subr.mxu0 0.0
    %6082 = vmatpush1.msra.mxu0 %v164
    %6083 = vmatprep.subr.mxu0 0.0
    %6084 = vmatpush1.msra.mxu0 %v165
    %6085 = vmatprep.subr.mxu0 0.0
    %6086 = vmatpush1.msra.mxu0 %v166
    %6087 = vmatprep.subr.mxu0 0.0
    %6088 = vmatpush1.msra.mxu0 %v167
    %6089 = vmatprep.subr.mxu0 0.0
    %6090 = vmatpush1.msra.mxu0 %v168
    %6091 = vmatprep.subr.mxu0 0.0
    %6092 = vmatpush1.msra.mxu0 %v169
    %6093 = vmatprep.subr.mxu0 0.0
    %6094 = vmatpush1.msra.mxu0 %v170
    %6095 = vmatprep.subr.mxu0 0.0
    %6096 = vmatpush1.msra.mxu0 %v171
    %6097 = vmatprep.subr.mxu0 0.0
    %6098 = vmatpush1.msra.mxu0 %v172
    %6099 = vmatprep.subr.mxu0 0.0
    %6100 = vmatpush1.msra.mxu0 %v173
    %6101 = vmatprep.subr.mxu0 0.0
    %6102 = vmatpush1.msra.mxu0 %v174
    %6103 = vmatprep.subr.mxu0 0.0
    %6104 = vmatpush1.msra.mxu0 %v175
    %6105 = vmatprep.subr.mxu0 0.0
    %6106 = vmatpush1.msra.mxu0 %v176
    %6107 = vmatprep.subr.mxu0 0.0
    %6108 = vmatpush1.msra.mxu0 %v177
    %6109 = vmatprep.subr.mxu0 0.0
    %6110 = vmatpush1.msra.mxu0 %v178
    %6111 = vmatprep.subr.mxu0 0.0
    %6112 = vmatpush1.msra.mxu0 %v179
    %6113 = vmatprep.subr.mxu0 0.0
    %6114 = vmatpush1.msra.mxu0 %v180
    %6115 = vmatprep.subr.mxu0 0.0
    %6116 = vmatpush1.msra.mxu0 %v181
    %6117 = vmatprep.subr.mxu0 0.0
    %6118 = vmatpush1.msra.mxu0 %v182
    %6119 = vmatprep.subr.mxu0 0.0
    %6120 = vmatpush1.msra.mxu0 %v183
    %6121 = vmatprep.subr.mxu0 0.0
    %6122 = vmatpush1.msra.mxu0 %v184
    %6123 = vmatprep.subr.mxu0 0.0
    %6124 = vmatpush1.msra.mxu0 %v185
    %6125 = vmatprep.subr.mxu0 0.0
    %6126 = vmatpush1.msra.mxu0 %v186
    %6127 = vmatprep.mubr.f32.mxu0 %v5578
    %6128 = vmatmul.mubr.f32.gmra.mrb[0].mxu0 %v5577
    %v6129 = vpop.f32.mrb[0].mxu0
    %v6130 = vadd.f32 %v5905, %v6129
    %v6131 = vpop.f32.mrb[0].mxu0
    %6132 = vmatprep.mubr.f32.mxu0 %v5586
    %6133 = vmatmul.mubr.f32.gmra.mrb[0].mxu0 %v5585
    %v6134 = vpop.f32.mrb[0].mxu0
    %v6135 = vadd.f32 %v5910, %v6134
    %v6136 = vpop.f32.mrb[0].mxu0
    %6137 = vmatprep.mubr.f32.mxu0 %v5594
    %6138 = vmatmul.mubr.f32.gmra.mrb[0].mxu0 %v5593
    %v6139 = vpop.f32.mrb[0].mxu0
    %v6140 = vadd.f32 %v5915, %v6139
    %v6141 = vpop.f32.mrb[0].mxu0
    %6142 = vmatprep.mubr.f32.mxu0 %v5602
    %6143 = vmatmul.mubr.f32.gmra.mrb[0].mxu0 %v5601
    %v6144 = vpop.f32.mrb[0].mxu0
    %v6145 = vadd.f32 %v5920, %v6144
    %v6146 = vpop.f32.mrb[0].mxu0
    %6147 = vmatprep.mubr.f32.mxu0 %v5610
    %6148 = vmatmul.mubr.f32.gmra.mrb[0].mxu0 %v5609
    %v6149 = vpop.f32.mrb[0].mxu0
    %v6150 = vadd.f32 %v5925, %v6149
    %v6151 = vpop.f32.mrb[0].mxu0
    %6152 = vmatprep.mubr.f32.mxu0 %v5618
    %6153 = vmatmul.mubr.f32.gmra.mrb[0].mxu0 %v5617
    %v6154 = vpop.f32.mrb[0].mxu0
    %v6155 = vadd.f32 %v5930, %v6154
    %v6156 = vpop.f32.mrb[0].mxu0
    %6157 = vmatprep.mubr.f32.mxu0 %v5626
    %6158 = vmatmul.mubr.f32.gmra.mrb[0].mxu0 %v5625
    %v6159 = vpop.f32.mrb[0].mxu0
    %v6160 = vadd.f32 %v5935, %v6159
    %v6161 = vpop.f32.mrb[0].mxu0
    %6162 = vmatprep.mubr.f32.mxu0 %v5634
    %6163 = vmatmul.mubr.f32.gmra.mrb[0].mxu0 %v5633
    %v6164 = vpop.f32.mrb[0].mxu0
    %v6165 = vadd.f32 %v5940, %v6164
    %v6166 = vpop.f32.mrb[0].mxu0
    %6167 = vmatprep.mubr.f32.mxu0 %v5642
    %6168 = vmatmul.mubr.f32.gmra.mrb[0].mxu0 %v5641
    %v6169 = vpop.f32.mrb[0].mxu0
    %v6170 = vadd.f32 %v5945, %v6169
    %v6171 = vpop.f32.mrb[0].mxu0
    %6172 = vmatprep.mubr.f32.mxu0 %v5650
    %6173 = vmatmul.mubr.f32.gmra.mrb[0].mxu0 %v5649
    %v6174 = vpop.f32.mrb[0].mxu0
    %v6175 = vadd.f32 %v5950, %v6174
    %v6176 = vpop.f32.mrb[0].mxu0
    %6177 = vmatprep.mubr.f32.mxu0 %v5658
    %6178 = vmatmul.mubr.f32.gmra.mrb[0].mxu0 %v5657
    %v6179 = vpop.f32.mrb[0].mxu0
    %v6180 = vadd.f32 %v5955, %v6179
    %v6181 = vpop.f32.mrb[0].mxu0
    %6182 = vmatprep.mubr.f32.mxu0 %v5666
    %6183 = vmatmul.mubr.f32.gmra.mrb[0].mxu0 %v5665
    %v6184 = vpop.f32.mrb[0].mxu0
    %v6185 = vadd.f32 %v5960, %v6184
    %v6186 = vpop.f32.mrb[0].mxu0
    %6187 = vmatprep.mubr.f32.mxu0 %v5674
    %6188 = vmatmul.mubr.f32.gmra.mrb[0].mxu0 %v5673
    %v6189 = vpop.f32.mrb[0].mxu0
    %v6190 = vadd.f32 %v5965, %v6189
    %v6191 = vpop.f32.mrb[0].mxu0
    %6192 = vmatprep.mubr.f32.mxu0 %v5682
    %6193 = vmatmul.mubr.f32.gmra.mrb[0].mxu0 %v5681
    %v6194 = vpop.f32.mrb[0].mxu0
    %v6195 = vadd.f32 %v5970, %v6194
    %v6196 = vpop.f32.mrb[0].mxu0
    %6197 = vmatprep.mubr.f32.mxu0 %v5690
    %6198 = vmatmul.mubr.f32.gmra.mrb[0].mxu0 %v5689
    %v6199 = vpop.f32.mrb[0].mxu0
    %v6200 = vadd.f32 %v5975, %v6199
    %v6201 = vpop.f32.mrb[0].mxu0
    %6202 = vmatprep.mubr.f32.mxu0 %v5698
    %6203 = vmatmul.mubr.f32.gmra.mrb[0].mxu0 %v5697
    %v6204 = vpop.f32.mrb[0].mxu0
    %v6205 = vadd.f32 %v5980, %v6204
    %v6206 = vpop.f32.mrb[0].mxu0
    %6207 = vmatprep.mubr.f32.mxu0 %v5706
    %6208 = vmatmul.mubr.f32.gmra.mrb[0].mxu0 %v5705
    %v6209 = vpop.f32.mrb[0].mxu0
    %v6210 = vadd.f32 %v5985, %v6209
    %v6211 = vpop.f32.mrb[0].mxu0
    %6212 = vmatprep.mubr.f32.mxu0 %v5714
    %6213 = vmatmul.mubr.f32.gmra.mrb[0].mxu0 %v5713
    %v6214 = vpop.f32.mrb[0].mxu0
    %v6215 = vadd.f32 %v5990, %v6214
    %v6216 = vpop.f32.mrb[0].mxu0
    %6217 = vmatprep.mubr.f32.mxu0 %v5722
    %6218 = vmatmul.mubr.f32.gmra.mrb[0].mxu0 %v5721
    %v6219 = vpop.f32.mrb[0].mxu0
    %v6220 = vadd.f32 %v5995, %v6219
    %v6221 = vpop.f32.mrb[0].mxu0
    %6222 = vmatprep.mubr.f32.mxu0 %v5730
    %6223 = vmatmul.mubr.f32.gmra.mrb[0].mxu0 %v5729
    %v6224 = vpop.f32.mrb[0].mxu0
    %v6225 = vadd.f32 %v6000, %v6224
    %v6226 = vpop.f32.mrb[0].mxu0
    %6227 = vmatprep.mubr.f32.mxu0 %v5738
    %6228 = vmatmul.mubr.f32.gmra.mrb[0].mxu0 %v5737
    %v6229 = vpop.f32.mrb[0].mxu0
    %v6230 = vadd.f32 %v6005, %v6229
    %v6231 = vpop.f32.mrb[0].mxu0
    %6232 = vmatprep.mubr.f32.mxu0 %v5746
    %6233 = vmatmul.mubr.f32.gmra.mrb[0].mxu0 %v5745
    %v6234 = vpop.f32.mrb[0].mxu0
    %v6235 = vadd.f32 %v6010, %v6234
    %v6236 = vpop.f32.mrb[0].mxu0
    %6237 = vmatprep.mubr.f32.mxu0 %v5754
    %6238 = vmatmul.mubr.f32.gmra.mrb[0].mxu0 %v5753
    %v6239 = vpop.f32.mrb[0].mxu0
    %v6240 = vadd.f32 %v6015, %v6239
    %v6241 = vpop.f32.mrb[0].mxu0
    %6242 = vmatprep.mubr.f32.mxu0 %v5762
    %6243 = vmatmul.mubr.f32.gmra.mrb[0].mxu0 %v5761
    %v6244 = vpop.f32.mrb[0].mxu0
    %v6245 = vadd.f32 %v6020, %v6244
    %v6246 = vpop.f32.mrb[0].mxu0
    %6247 = vmatprep.mubr.f32.mxu0 %v5770
    %6248 = vmatmul.mubr.f32.gmra.mrb[0].mxu0 %v5769
    %v6249 = vpop.f32.mrb[0].mxu0
    %v6250 = vadd.f32 %v6025, %v6249
    %v6251 = vpop.f32.mrb[0].mxu0
    %6252 = vmatprep.mubr.f32.mxu0 %v5778
    %6253 = vmatmul.mubr.f32.gmra.mrb[0].mxu0 %v5777
    %v6254 = vpop.f32.mrb[0].mxu0
    %v6255 = vadd.f32 %v6030, %v6254
    %v6256 = vpop.f32.mrb[0].mxu0
    %6257 = vmatprep.mubr.f32.mxu0 %v5786
    %6258 = vmatmul.mubr.f32.gmra.mrb[0].mxu0 %v5785
    %v6259 = vpop.f32.mrb[0].mxu0
    %v6260 = vadd.f32 %v6035, %v6259
    %v6261 = vpop.f32.mrb[0].mxu0
    %6262 = vmatprep.mubr.f32.mxu0 %v5794
    %6263 = vmatmul.mubr.f32.gmra.mrb[0].mxu0 %v5793
    %v6264 = vpop.f32.mrb[0].mxu0
    %v6265 = vadd.f32 %v6040, %v6264
    %v6266 = vpop.f32.mrb[0].mxu0
    %6267 = vmatprep.mubr.f32.mxu0 %v5802
    %6268 = vmatmul.mubr.f32.gmra.mrb[0].mxu0 %v5801
    %v6269 = vpop.f32.mrb[0].mxu0
    %v6270 = vadd.f32 %v6045, %v6269
    %v6271 = vpop.f32.mrb[0].mxu0
    %6272 = vmatprep.mubr.f32.mxu0 %v5810
    %6273 = vmatmul.mubr.f32.gmra.mrb[0].mxu0 %v5809
    %v6274 = vpop.f32.mrb[0].mxu0
    %v6275 = vadd.f32 %v6050, %v6274
    %v6276 = vpop.f32.mrb[0].mxu0
    %6277 = vmatprep.mubr.f32.mxu0 %v5818
    %6278 = vmatmul.mubr.f32.gmra.mrb[0].mxu0 %v5817
    %v6279 = vpop.f32.mrb[0].mxu0
    %v6280 = vadd.f32 %v6055, %v6279
    %v6281 = vpop.f32.mrb[0].mxu0
    %6282 = vmatprep.mubr.f32.mxu0 %v5826
    %6283 = vmatmul.mubr.f32.gmra.mrb[0].mxu0 %v5825
    %v6284 = vpop.f32.mrb[0].mxu0
    %v6285 = vadd.f32 %v6060, %v6284
    %v6286 = vpop.f32.mrb[0].mxu0
    %6287 = vdwg.mxu0
    %6288 = vmatprep.subr.mxu0 0.0
    %6289 = vmatpush1.msra.mxu0 %v187
    %6290 = vmatprep.subr.mxu0 0.0
    %6291 = vmatpush1.msra.mxu0 %v188
    %6292 = vmatprep.subr.mxu0 0.0
    %6293 = vmatpush1.msra.mxu0 %v189
    %6294 = vmatprep.subr.mxu0 0.0
    %6295 = vmatpush1.msra.mxu0 %v190
    %6296 = vmatprep.subr.mxu0 0.0
    %6297 = vmatpush1.msra.mxu0 %v191
    %6298 = vmatprep.subr.mxu0 0.0
    %6299 = vmatpush1.msra.mxu0 %v192
    %6300 = vmatprep.subr.mxu0 0.0
    %6301 = vmatpush1.msra.mxu0 %v193
    %6302 = vmatprep.subr.mxu0 0.0
    %6303 = vmatpush1.msra.mxu0 %v194
    %6304 = vmatprep.subr.mxu0 0.0
    %6305 = vmatpush1.msra.mxu0 %v195
    %6306 = vmatprep.subr.mxu0 0.0
    %6307 = vmatpush1.msra.mxu0 %v196
    %6308 = vmatprep.subr.mxu0 0.0
    %6309 = vmatpush1.msra.mxu0 %v197
    %6310 = vmatprep.subr.mxu0 0.0
    %6311 = vmatpush1.msra.mxu0 %v198
    %6312 = vmatprep.subr.mxu0 0.0
    %6313 = vmatpush1.msra.mxu0 %v199
    %6314 = vmatprep.subr.mxu0 0.0
    %6315 = vmatpush1.msra.mxu0 %v200
    %6316 = vmatprep.subr.mxu0 0.0
    %6317 = vmatpush1.msra.mxu0 %v201
    %6318 = vmatprep.subr.mxu0 0.0
    %6319 = vmatpush1.msra.mxu0 %v202
    %6320 = vmatprep.subr.mxu0 0.0
    %6321 = vmatpush1.msra.mxu0 %v203
    %6322 = vmatprep.subr.mxu0 0.0
    %6323 = vmatpush1.msra.mxu0 %v204
    %6324 = vmatprep.subr.mxu0 0.0
    %6325 = vmatpush1.msra.mxu0 %v205
    %6326 = vmatprep.subr.mxu0 0.0
    %6327 = vmatpush1.msra.mxu0 %v206
    %6328 = vmatprep.subr.mxu0 0.0
    %6329 = vmatpush1.msra.mxu0 %v207
    %6330 = vmatprep.subr.mxu0 0.0
    %6331 = vmatpush1.msra.mxu0 %v208
    %6332 = vmatprep.subr.mxu0 0.0
    %6333 = vmatpush1.msra.mxu0 %v209
    %6334 = vmatprep.subr.mxu0 0.0
    %6335 = vmatpush1.msra.mxu0 %v210
    %6336 = vmatprep.subr.mxu0 0.0
    %6337 = vmatpush1.msra.mxu0 %v211
    %6338 = vmatprep.subr.mxu0 0.0
    %6339 = vmatpush1.msra.mxu0 %v212
    %6340 = vmatprep.subr.mxu0 0.0
    %6341 = vmatpush1.msra.mxu0 %v213
    %6342 = vmatprep.subr.mxu0 0.0
    %6343 = vmatpush1.msra.mxu0 %v214
    %6344 = vmatprep.subr.mxu0 0.0
    %6345 = vmatpush1.msra.mxu0 %v215
    %6346 = vmatprep.subr.mxu0 0.0
    %6347 = vmatpush1.msra.mxu0 %v216
    %6348 = vmatprep.subr.mxu0 0.0
    %6349 = vmatpush1.msra.mxu0 %v217
    %6350 = vmatprep.subr.mxu0 0.0
    %6351 = vmatpush1.msra.mxu0 %v218
    %6352 = vmatprep.mubr.f32.mxu0 %v5580
    %6353 = vmatmul.mubr.f32.gmra.mrb[0].mxu0 %v5579
    %v6354 = vpop.f32.mrb[0].mxu0
    %v6355 = vadd.f32 %v6130, %v6354
    %v6356 = vpop.f32.mrb[0].mxu0
    %6357 = vmatprep.mubr.f32.mxu0 %v5588
    %6358 = vmatmul.mubr.f32.gmra.mrb[0].mxu0 %v5587
    %v6359 = vpop.f32.mrb[0].mxu0
    %v6360 = vadd.f32 %v6135, %v6359
    %v6361 = vpop.f32.mrb[0].mxu0
    %6362 = vmatprep.mubr.f32.mxu0 %v5596
    %6363 = vmatmul.mubr.f32.gmra.mrb[0].mxu0 %v5595
    %v6364 = vpop.f32.mrb[0].mxu0
    %v6365 = vadd.f32 %v6140, %v6364
    %v6366 = vpop.f32.mrb[0].mxu0
    %6367 = vmatprep.mubr.f32.mxu0 %v5604
    %6368 = vmatmul.mubr.f32.gmra.mrb[0].mxu0 %v5603
    %v6369 = vpop.f32.mrb[0].mxu0
    %v6370 = vadd.f32 %v6145, %v6369
    %v6371 = vpop.f32.mrb[0].mxu0
    %6372 = vmatprep.mubr.f32.mxu0 %v5612
    %6373 = vmatmul.mubr.f32.gmra.mrb[0].mxu0 %v5611
    %v6374 = vpop.f32.mrb[0].mxu0
    %v6375 = vadd.f32 %v6150, %v6374
    %v6376 = vpop.f32.mrb[0].mxu0
    %6377 = vmatprep.mubr.f32.mxu0 %v5620
    %6378 = vmatmul.mubr.f32.gmra.mrb[0].mxu0 %v5619
    %v6379 = vpop.f32.mrb[0].mxu0
    %v6380 = vadd.f32 %v6155, %v6379
    %v6381 = vpop.f32.mrb[0].mxu0
    %6382 = vmatprep.mubr.f32.mxu0 %v5628
    %6383 = vmatmul.mubr.f32.gmra.mrb[0].mxu0 %v5627
    %v6384 = vpop.f32.mrb[0].mxu0
    %v6385 = vadd.f32 %v6160, %v6384
    %v6386 = vpop.f32.mrb[0].mxu0
    %6387 = vmatprep.mubr.f32.mxu0 %v5636
    %6388 = vmatmul.mubr.f32.gmra.mrb[0].mxu0 %v5635
    %v6389 = vpop.f32.mrb[0].mxu0
    %v6390 = vadd.f32 %v6165, %v6389
    %v6391 = vpop.f32.mrb[0].mxu0
    %6392 = vmatprep.mubr.f32.mxu0 %v5644
    %6393 = vmatmul.mubr.f32.gmra.mrb[0].mxu0 %v5643
    %v6394 = vpop.f32.mrb[0].mxu0
    %v6395 = vadd.f32 %v6170, %v6394
    %v6396 = vpop.f32.mrb[0].mxu0
    %6397 = vmatprep.mubr.f32.mxu0 %v5652
    %6398 = vmatmul.mubr.f32.gmra.mrb[0].mxu0 %v5651
    %v6399 = vpop.f32.mrb[0].mxu0
    %v6400 = vadd.f32 %v6175, %v6399
    %v6401 = vpop.f32.mrb[0].mxu0
    %6402 = vmatprep.mubr.f32.mxu0 %v5660
    %6403 = vmatmul.mubr.f32.gmra.mrb[0].mxu0 %v5659
    %v6404 = vpop.f32.mrb[0].mxu0
    %v6405 = vadd.f32 %v6180, %v6404
    %v6406 = vpop.f32.mrb[0].mxu0
    %6407 = vmatprep.mubr.f32.mxu0 %v5668
    %6408 = vmatmul.mubr.f32.gmra.mrb[0].mxu0 %v5667
    %v6409 = vpop.f32.mrb[0].mxu0
    %v6410 = vadd.f32 %v6185, %v6409
    %v6411 = vpop.f32.mrb[0].mxu0
    %6412 = vmatprep.mubr.f32.mxu0 %v5676
    %6413 = vmatmul.mubr.f32.gmra.mrb[0].mxu0 %v5675
    %v6414 = vpop.f32.mrb[0].mxu0
    %v6415 = vadd.f32 %v6190, %v6414
    %v6416 = vpop.f32.mrb[0].mxu0
    %6417 = vmatprep.mubr.f32.mxu0 %v5684
    %6418 = vmatmul.mubr.f32.gmra.mrb[0].mxu0 %v5683
    %v6419 = vpop.f32.mrb[0].mxu0
    %v6420 = vadd.f32 %v6195, %v6419
    %v6421 = vpop.f32.mrb[0].mxu0
    %6422 = vmatprep.mubr.f32.mxu0 %v5692
    %6423 = vmatmul.mubr.f32.gmra.mrb[0].mxu0 %v5691
    %v6424 = vpop.f32.mrb[0].mxu0
    %v6425 = vadd.f32 %v6200, %v6424
    %v6426 = vpop.f32.mrb[0].mxu0
    %6427 = vmatprep.mubr.f32.mxu0 %v5700
    %6428 = vmatmul.mubr.f32.gmra.mrb[0].mxu0 %v5699
    %v6429 = vpop.f32.mrb[0].mxu0
    %v6430 = vadd.f32 %v6205, %v6429
    %v6431 = vpop.f32.mrb[0].mxu0
    %6432 = vmatprep.mubr.f32.mxu0 %v5708
    %6433 = vmatmul.mubr.f32.gmra.mrb[0].mxu0 %v5707
    %v6434 = vpop.f32.mrb[0].mxu0
    %v6435 = vadd.f32 %v6210, %v6434
    %v6436 = vpop.f32.mrb[0].mxu0
    %6437 = vmatprep.mubr.f32.mxu0 %v5716
    %6438 = vmatmul.mubr.f32.gmra.mrb[0].mxu0 %v5715
    %v6439 = vpop.f32.mrb[0].mxu0
    %v6440 = vadd.f32 %v6215, %v6439
    %v6441 = vpop.f32.mrb[0].mxu0
    %6442 = vmatprep.mubr.f32.mxu0 %v5724
    %6443 = vmatmul.mubr.f32.gmra.mrb[0].mxu0 %v5723
    %v6444 = vpop.f32.mrb[0].mxu0
    %v6445 = vadd.f32 %v6220, %v6444
    %v6446 = vpop.f32.mrb[0].mxu0
    %6447 = vmatprep.mubr.f32.mxu0 %v5732
    %6448 = vmatmul.mubr.f32.gmra.mrb[0].mxu0 %v5731
    %v6449 = vpop.f32.mrb[0].mxu0
    %v6450 = vadd.f32 %v6225, %v6449
    %v6451 = vpop.f32.mrb[0].mxu0
    %6452 = vmatprep.mubr.f32.mxu0 %v5740
    %6453 = vmatmul.mubr.f32.gmra.mrb[0].mxu0 %v5739
    %v6454 = vpop.f32.mrb[0].mxu0
    %v6455 = vadd.f32 %v6230, %v6454
    %v6456 = vpop.f32.mrb[0].mxu0
    %6457 = vmatprep.mubr.f32.mxu0 %v5748
    %6458 = vmatmul.mubr.f32.gmra.mrb[0].mxu0 %v5747
    %v6459 = vpop.f32.mrb[0].mxu0
    %v6460 = vadd.f32 %v6235, %v6459
    %v6461 = vpop.f32.mrb[0].mxu0
    %6462 = vmatprep.mubr.f32.mxu0 %v5756
    %6463 = vmatmul.mubr.f32.gmra.mrb[0].mxu0 %v5755
    %v6464 = vpop.f32.mrb[0].mxu0
    %v6465 = vadd.f32 %v6240, %v6464
    %v6466 = vpop.f32.mrb[0].mxu0
    %6467 = vmatprep.mubr.f32.mxu0 %v5764
    %6468 = vmatmul.mubr.f32.gmra.mrb[0].mxu0 %v5763
    %v6469 = vpop.f32.mrb[0].mxu0
    %v6470 = vadd.f32 %v6245, %v6469
    %v6471 = vpop.f32.mrb[0].mxu0
    %6472 = vmatprep.mubr.f32.mxu0 %v5772
    %6473 = vmatmul.mubr.f32.gmra.mrb[0].mxu0 %v5771
    %v6474 = vpop.f32.mrb[0].mxu0
    %v6475 = vadd.f32 %v6250, %v6474
    %v6476 = vpop.f32.mrb[0].mxu0
    %6477 = vmatprep.mubr.f32.mxu0 %v5780
    %6478 = vmatmul.mubr.f32.gmra.mrb[0].mxu0 %v5779
    %v6479 = vpop.f32.mrb[0].mxu0
    %v6480 = vadd.f32 %v6255, %v6479
    %v6481 = vpop.f32.mrb[0].mxu0
    %6482 = vmatprep.mubr.f32.mxu0 %v5788
    %6483 = vmatmul.mubr.f32.gmra.mrb[0].mxu0 %v5787
    %v6484 = vpop.f32.mrb[0].mxu0
    %v6485 = vadd.f32 %v6260, %v6484
    %v6486 = vpop.f32.mrb[0].mxu0
    %6487 = vmatprep.mubr.f32.mxu0 %v5796
    %6488 = vmatmul.mubr.f32.gmra.mrb[0].mxu0 %v5795
    %v6489 = vpop.f32.mrb[0].mxu0
    %v6490 = vadd.f32 %v6265, %v6489
    %v6491 = vpop.f32.mrb[0].mxu0
    %6492 = vmatprep.mubr.f32.mxu0 %v5804
    %6493 = vmatmul.mubr.f32.gmra.mrb[0].mxu0 %v5803
    %v6494 = vpop.f32.mrb[0].mxu0
    %v6495 = vadd.f32 %v6270, %v6494
    %v6496 = vpop.f32.mrb[0].mxu0
    %6497 = vmatprep.mubr.f32.mxu0 %v5812
    %6498 = vmatmul.mubr.f32.gmra.mrb[0].mxu0 %v5811
    %v6499 = vpop.f32.mrb[0].mxu0
    %v6500 = vadd.f32 %v6275, %v6499
    %v6501 = vpop.f32.mrb[0].mxu0
    %6502 = vmatprep.mubr.f32.mxu0 %v5820
    %6503 = vmatmul.mubr.f32.gmra.mrb[0].mxu0 %v5819
    %v6504 = vpop.f32.mrb[0].mxu0
    %v6505 = vadd.f32 %v6280, %v6504
    %v6506 = vpop.f32.mrb[0].mxu0
    %6507 = vmatprep.mubr.f32.mxu0 %v5828
    %6508 = vmatmul.mubr.f32.gmra.mrb[0].mxu0 %v5827
    %v6509 = vpop.f32.mrb[0].mxu0
    %v6510 = vadd.f32 %v6285, %v6509
    %v6511 = vpop.f32.mrb[0].mxu0
    %6512 = vdwg.mxu0
    %6513 = vmatprep.subr.mxu0 0.0
    %6514 = vmatpush1.msra.mxu0 %v219
    %6515 = vmatprep.subr.mxu0 0.0
    %6516 = vmatpush1.msra.mxu0 %v220
    %6517 = vmatprep.subr.mxu0 0.0
    %6518 = vmatpush1.msra.mxu0 %v221
    %6519 = vmatprep.subr.mxu0 0.0
    %6520 = vmatpush1.msra.mxu0 %v222
    %6521 = vmatprep.subr.mxu0 0.0
    %6522 = vmatpush1.msra.mxu0 %v223
    %6523 = vmatprep.subr.mxu0 0.0
    %6524 = vmatpush1.msra.mxu0 %v224
    %6525 = vmatprep.subr.mxu0 0.0
    %6526 = vmatpush1.msra.mxu0 %v225
    %6527 = vmatprep.subr.mxu0 0.0
    %6528 = vmatpush1.msra.mxu0 %v226
    %6529 = vmatprep.subr.mxu0 0.0
    %6530 = vmatpush1.msra.mxu0 %v227
    %6531 = vmatprep.subr.mxu0 0.0
    %6532 = vmatpush1.msra.mxu0 %v228
    %6533 = vmatprep.subr.mxu0 0.0
    %6534 = vmatpush1.msra.mxu0 %v229
    %6535 = vmatprep.subr.mxu0 0.0
    %6536 = vmatpush1.msra.mxu0 %v230
    %6537 = vmatprep.subr.mxu0 0.0
    %6538 = vmatpush1.msra.mxu0 %v231
    %6539 = vmatprep.subr.mxu0 0.0
    %6540 = vmatpush1.msra.mxu0 %v232
    %6541 = vmatprep.subr.mxu0 0.0
    %6542 = vmatpush1.msra.mxu0 %v233
    %6543 = vmatprep.subr.mxu0 0.0
    %6544 = vmatpush1.msra.mxu0 %v234
    %6545 = vmatprep.subr.mxu0 0.0
    %6546 = vmatpush1.msra.mxu0 %v235
    %6547 = vmatprep.subr.mxu0 0.0
    %6548 = vmatpush1.msra.mxu0 %v236
    %6549 = vmatprep.subr.mxu0 0.0
    %6550 = vmatpush1.msra.mxu0 %v237
    %6551 = vmatprep.subr.mxu0 0.0
    %6552 = vmatpush1.msra.mxu0 %v238
    %6553 = vmatprep.subr.mxu0 0.0
    %6554 = vmatpush1.msra.mxu0 %v239
    %6555 = vmatprep.subr.mxu0 0.0
    %6556 = vmatpush1.msra.mxu0 %v240
    %6557 = vmatprep.subr.mxu0 0.0
    %6558 = vmatpush1.msra.mxu0 %v241
    %6559 = vmatprep.subr.mxu0 0.0
    %6560 = vmatpush1.msra.mxu0 %v242
    %6561 = vmatprep.subr.mxu0 0.0
    %6562 = vmatpush1.msra.mxu0 %v243
    %6563 = vmatprep.subr.mxu0 0.0
    %6564 = vmatpush1.msra.mxu0 %v244
    %6565 = vmatprep.subr.mxu0 0.0
    %6566 = vmatpush1.msra.mxu0 %v245
    %6567 = vmatprep.subr.mxu0 0.0
    %6568 = vmatpush1.msra.mxu0 %v246
    %6569 = vmatprep.subr.mxu0 0.0
    %6570 = vmatpush1.msra.mxu0 %v247
    %6571 = vmatprep.subr.mxu0 0.0
    %6572 = vmatpush1.msra.mxu0 %v248
    %6573 = vmatprep.subr.mxu0 0.0
    %6574 = vmatpush1.msra.mxu0 %v249
    %6575 = vmatprep.subr.mxu0 0.0
    %6576 = vmatpush1.msra.mxu0 %v250
    %6577 = vmatprep.mubr.f32.mxu0 %v5582
    %6578 = vmatmul.mubr.f32.gmra.mrb[0].mxu0 %v5581
    %v6579 = vpop.f32.mrb[0].mxu0
    %v6580 = vadd.f32 %v6355, %v6579
    %v6581 = vpop.f32.mrb[0].mxu0
    %6582 = vmatprep.mubr.f32.mxu0 %v5590
    %6583 = vmatmul.mubr.f32.gmra.mrb[0].mxu0 %v5589
    %v6584 = vpop.f32.mrb[0].mxu0
    %v6585 = vadd.f32 %v6360, %v6584
    %v6586 = vpop.f32.mrb[0].mxu0
    %6587 = vmatprep.mubr.f32.mxu0 %v5598
    %6588 = vmatmul.mubr.f32.gmra.mrb[0].mxu0 %v5597
    %v6589 = vpop.f32.mrb[0].mxu0
    %v6590 = vadd.f32 %v6365, %v6589
    %v6591 = vpop.f32.mrb[0].mxu0
    %6592 = vmatprep.mubr.f32.mxu0 %v5606
    %6593 = vmatmul.mubr.f32.gmra.mrb[0].mxu0 %v5605
    %v6594 = vpop.f32.mrb[0].mxu0
    %v6595 = vadd.f32 %v6370, %v6594
    %v6596 = vpop.f32.mrb[0].mxu0
    %6597 = vmatprep.mubr.f32.mxu0 %v5614
    %6598 = vmatmul.mubr.f32.gmra.mrb[0].mxu0 %v5613
    %v6599 = vpop.f32.mrb[0].mxu0
    %v6600 = vadd.f32 %v6375, %v6599
    %v6601 = vpop.f32.mrb[0].mxu0
    %6602 = vmatprep.mubr.f32.mxu0 %v5622
    %6603 = vmatmul.mubr.f32.gmra.mrb[0].mxu0 %v5621
    %v6604 = vpop.f32.mrb[0].mxu0
    %v6605 = vadd.f32 %v6380, %v6604
    %v6606 = vpop.f32.mrb[0].mxu0
    %6607 = vmatprep.mubr.f32.mxu0 %v5630
    %6608 = vmatmul.mubr.f32.gmra.mrb[0].mxu0 %v5629
    %v6609 = vpop.f32.mrb[0].mxu0
    %v6610 = vadd.f32 %v6385, %v6609
    %v6611 = vpop.f32.mrb[0].mxu0
    %6612 = vmatprep.mubr.f32.mxu0 %v5638
    %6613 = vmatmul.mubr.f32.gmra.mrb[0].mxu0 %v5637
    %v6614 = vpop.f32.mrb[0].mxu0
    %v6615 = vadd.f32 %v6390, %v6614
    %v6616 = vpop.f32.mrb[0].mxu0
    %6617 = vmatprep.mubr.f32.mxu0 %v5646
    %6618 = vmatmul.mubr.f32.gmra.mrb[0].mxu0 %v5645
    %v6619 = vpop.f32.mrb[0].mxu0
    %v6620 = vadd.f32 %v6395, %v6619
    %v6621 = vpop.f32.mrb[0].mxu0
    %6622 = vmatprep.mubr.f32.mxu0 %v5654
    %6623 = vmatmul.mubr.f32.gmra.mrb[0].mxu0 %v5653
    %v6624 = vpop.f32.mrb[0].mxu0
    %v6625 = vadd.f32 %v6400, %v6624
    %v6626 = vpop.f32.mrb[0].mxu0
    %6627 = vmatprep.mubr.f32.mxu0 %v5662
    %6628 = vmatmul.mubr.f32.gmra.mrb[0].mxu0 %v5661
    %v6629 = vpop.f32.mrb[0].mxu0
    %v6630 = vadd.f32 %v6405, %v6629
    %v6631 = vpop.f32.mrb[0].mxu0
    %6632 = vmatprep.mubr.f32.mxu0 %v5670
    %6633 = vmatmul.mubr.f32.gmra.mrb[0].mxu0 %v5669
    %v6634 = vpop.f32.mrb[0].mxu0
    %v6635 = vadd.f32 %v6410, %v6634
    %v6636 = vpop.f32.mrb[0].mxu0
    %6637 = vmatprep.mubr.f32.mxu0 %v5678
    %6638 = vmatmul.mubr.f32.gmra.mrb[0].mxu0 %v5677
    %v6639 = vpop.f32.mrb[0].mxu0
    %v6640 = vadd.f32 %v6415, %v6639
    %v6641 = vpop.f32.mrb[0].mxu0
    %6642 = vmatprep.mubr.f32.mxu0 %v5686
    %6643 = vmatmul.mubr.f32.gmra.mrb[0].mxu0 %v5685
    %v6644 = vpop.f32.mrb[0].mxu0
    %v6645 = vadd.f32 %v6420, %v6644
    %v6646 = vpop.f32.mrb[0].mxu0
    %6647 = vmatprep.mubr.f32.mxu0 %v5694
    %6648 = vmatmul.mubr.f32.gmra.mrb[0].mxu0 %v5693
    %v6649 = vpop.f32.mrb[0].mxu0
    %v6650 = vadd.f32 %v6425, %v6649
    %v6651 = vpop.f32.mrb[0].mxu0
    %6652 = vmatprep.mubr.f32.mxu0 %v5702
    %6653 = vmatmul.mubr.f32.gmra.mrb[0].mxu0 %v5701
    %v6654 = vpop.f32.mrb[0].mxu0
    %v6655 = vadd.f32 %v6430, %v6654
    %v6656 = vpop.f32.mrb[0].mxu0
    %6657 = vmatprep.mubr.f32.mxu0 %v5710
    %6658 = vmatmul.mubr.f32.gmra.mrb[0].mxu0 %v5709
    %v6659 = vpop.f32.mrb[0].mxu0
    %v6660 = vadd.f32 %v6435, %v6659
    %v6661 = vpop.f32.mrb[0].mxu0
    %6662 = vmatprep.mubr.f32.mxu0 %v5718
    %6663 = vmatmul.mubr.f32.gmra.mrb[0].mxu0 %v5717
    %v6664 = vpop.f32.mrb[0].mxu0
    %v6665 = vadd.f32 %v6440, %v6664
    %v6666 = vpop.f32.mrb[0].mxu0
    %6667 = vmatprep.mubr.f32.mxu0 %v5726
    %6668 = vmatmul.mubr.f32.gmra.mrb[0].mxu0 %v5725
    %v6669 = vpop.f32.mrb[0].mxu0
    %v6670 = vadd.f32 %v6445, %v6669
    %v6671 = vpop.f32.mrb[0].mxu0
    %6672 = vmatprep.mubr.f32.mxu0 %v5734
    %6673 = vmatmul.mubr.f32.gmra.mrb[0].mxu0 %v5733
    %v6674 = vpop.f32.mrb[0].mxu0
    %v6675 = vadd.f32 %v6450, %v6674
    %v6676 = vpop.f32.mrb[0].mxu0
    %6677 = vmatprep.mubr.f32.mxu0 %v5742
    %6678 = vmatmul.mubr.f32.gmra.mrb[0].mxu0 %v5741
    %v6679 = vpop.f32.mrb[0].mxu0
    %v6680 = vadd.f32 %v6455, %v6679
    %v6681 = vpop.f32.mrb[0].mxu0
    %6682 = vmatprep.mubr.f32.mxu0 %v5750
    %6683 = vmatmul.mubr.f32.gmra.mrb[0].mxu0 %v5749
    %v6684 = vpop.f32.mrb[0].mxu0
    %v6685 = vadd.f32 %v6460, %v6684
    %v6686 = vpop.f32.mrb[0].mxu0
    %6687 = vmatprep.mubr.f32.mxu0 %v5758
    %6688 = vmatmul.mubr.f32.gmra.mrb[0].mxu0 %v5757
    %v6689 = vpop.f32.mrb[0].mxu0
    %v6690 = vadd.f32 %v6465, %v6689
    %v6691 = vpop.f32.mrb[0].mxu0
    %6692 = vmatprep.mubr.f32.mxu0 %v5766
    %6693 = vmatmul.mubr.f32.gmra.mrb[0].mxu0 %v5765
    %v6694 = vpop.f32.mrb[0].mxu0
    %v6695 = vadd.f32 %v6470, %v6694
    %v6696 = vpop.f32.mrb[0].mxu0
    %6697 = vmatprep.mubr.f32.mxu0 %v5774
    %6698 = vmatmul.mubr.f32.gmra.mrb[0].mxu0 %v5773
    %v6699 = vpop.f32.mrb[0].mxu0
    %v6700 = vadd.f32 %v6475, %v6699
    %v6701 = vpop.f32.mrb[0].mxu0
    %6702 = vmatprep.mubr.f32.mxu0 %v5782
    %6703 = vmatmul.mubr.f32.gmra.mrb[0].mxu0 %v5781
    %v6704 = vpop.f32.mrb[0].mxu0
    %v6705 = vadd.f32 %v6480, %v6704
    %v6706 = vpop.f32.mrb[0].mxu0
    %6707 = vmatprep.mubr.f32.mxu0 %v5790
    %6708 = vmatmul.mubr.f32.gmra.mrb[0].mxu0 %v5789
    %v6709 = vpop.f32.mrb[0].mxu0
    %v6710 = vadd.f32 %v6485, %v6709
    %v6711 = vpop.f32.mrb[0].mxu0
    %6712 = vmatprep.mubr.f32.mxu0 %v5798
    %6713 = vmatmul.mubr.f32.gmra.mrb[0].mxu0 %v5797
    %v6714 = vpop.f32.mrb[0].mxu0
    %v6715 = vadd.f32 %v6490, %v6714
    %v6716 = vpop.f32.mrb[0].mxu0
    %6717 = vmatprep.mubr.f32.mxu0 %v5806
    %6718 = vmatmul.mubr.f32.gmra.mrb[0].mxu0 %v5805
    %v6719 = vpop.f32.mrb[0].mxu0
    %v6720 = vadd.f32 %v6495, %v6719
    %v6721 = vpop.f32.mrb[0].mxu0
    %6722 = vmatprep.mubr.f32.mxu0 %v5814
    %6723 = vmatmul.mubr.f32.gmra.mrb[0].mxu0 %v5813
    %v6724 = vpop.f32.mrb[0].mxu0
    %v6725 = vadd.f32 %v6500, %v6724
    %v6726 = vpop.f32.mrb[0].mxu0
    %6727 = vmatprep.mubr.f32.mxu0 %v5822
    %6728 = vmatmul.mubr.f32.gmra.mrb[0].mxu0 %v5821
    %v6729 = vpop.f32.mrb[0].mxu0
    %v6730 = vadd.f32 %v6505, %v6729
    %v6731 = vpop.f32.mrb[0].mxu0
    %6732 = vmatprep.mubr.f32.mxu0 %v5830
    %6733 = vmatmul.mubr.f32.gmra.mrb[0].mxu0 %v5829
    %v6734 = vpop.f32.mrb[0].mxu0
    %v6735 = vadd.f32 %v6510, %v6734
    %v6736 = vpop.f32.mrb[0].mxu0
    %6737 = vdwg.mxu0
    %v6738 = vpack.c.bf16 %v6585, %v6580
    %v6739 = vpack.c.bf16 %v6595, %v6590
    %v6740 = vpack.c.bf16 %v6605, %v6600
    %v6741 = vpack.c.bf16 %v6615, %v6610
    %v6742 = vpack.c.bf16 %v6625, %v6620
    %v6743 = vpack.c.bf16 %v6635, %v6630
    %v6744 = vpack.c.bf16 %v6645, %v6640
    %v6745 = vpack.c.bf16 %v6655, %v6650
    %v6746 = vpack.c.bf16 %v6665, %v6660
    %v6747 = vpack.c.bf16 %v6675, %v6670
    %v6748 = vpack.c.bf16 %v6685, %v6680
    %v6749 = vpack.c.bf16 %v6695, %v6690
    %v6750 = vpack.c.bf16 %v6705, %v6700
    %v6751 = vpack.c.bf16 %v6715, %v6710
    %v6752 = vpack.c.bf16 %v6725, %v6720
    %v6753 = vpack.c.bf16 %v6735, %v6730
    %v6754 = vld [vmem:[%s7] sm:$0xf]
    %v6755 = vld [vmem:[%s7 + $0x4] sm:$0xf]
    %v6756 = vld [vmem:[%s7 + $0x8] sm:$0xf]
    %v6757 = vld [vmem:[%s7 + $0xc] sm:$0xf]
    %v6758 = vld [vmem:[%s8] sm:$0xf]
    %v6759 = vld [vmem:[%s8 + $0x4] sm:$0xf]
    %v6760 = vld [vmem:[%s8 + $0x8] sm:$0xf]
    %v6761 = vld [vmem:[%s8 + $0xc] sm:$0xf]
    %v6762 = vld [vmem:[%s8 + $0x10] sm:$0xf]
    %v6763 = vld [vmem:[%s8 + $0x14] sm:$0xf]
    %v6764 = vld [vmem:[%s8 + $0x18] sm:$0xf]
    %v6765 = vld [vmem:[%s8 + $0x1c] sm:$0xf]
    %v6774 = vunpack.c.l.b16 %v6758
    %v6775 = vunpack.c.l.b16 %v6759
    %v6776 = vunpack.c.l.b16 %v6760
    %v6777 = vunpack.c.l.b16 %v6761
    %v6778 = vunpack.c.l.b16 %v6762
    %v6779 = vunpack.c.l.b16 %v6763
    %v6780 = vunpack.c.l.b16 %v6764
    %v6781 = vunpack.c.l.b16 %v6765
    %v6782 = vpack.c.b16 %v6775, %v6774
    %v6783 = vpack.c.b16 %v6777, %v6776
    %v6784 = vpack.c.b16 %v6779, %v6778
    %v6785 = vpack.c.b16 %v6781, %v6780
    %vm6790 = vcmask 523264
    %v6792 = vsel %vm6790, %v75, 0
    %v6795 = vsel %vm6790, %v76, 0
    %v6798 = vsel %vm6790, %v77, 0
    %v6801 = vsel %vm6790, %v78, 0
    %v6804 = vsel %vm6790, %v79, 0
    %v6807 = vsel %vm6790, %v80, 0
    %v6810 = vsel %vm6790, %v81, 0
    %v6813 = vsel %vm6790, %v82, 0
    %v6816 = vsel %vm6790, %v83, 0
    %v6819 = vsel %vm6790, %v84, 0
    %v6822 = vsel %vm6790, %v85, 0
    %v6825 = vsel %vm6790, %v86, 0
    %v6828 = vsel %vm6790, %v87, 0
    %v6831 = vsel %vm6790, %v88, 0
    %v6834 = vsel %vm6790, %v89, 0
    %v6837 = vsel %vm6790, %v90, 0
    %6839 = vmatprep.subr.bf16.mxu0 0
    %6840 = vmatpush1.bf16.msra.mxu0 %v6782
    %6841 = vmatprep.subr.bf16.mxu0 0
    %6842 = vmatpush1.bf16.msra.mxu0 %v6783
    %6843 = vmatprep.subr.bf16.mxu0 0
    %6844 = vmatpush1.bf16.msra.mxu0 %v6784
    %6845 = vmatprep.subr.bf16.mxu0 0
    %6846 = vmatpush1.bf16.msra.mxu0 %v6785
    %6847 = vmatprep.subr.bf16.mxu0 0
    %6848 = vmatpush1.bf16.msra.mxu0 0
    %6849 = vmatprep.subr.bf16.mxu0 0
    %6850 = vmatpush1.bf16.msra.mxu0 0
    %6851 = vmatprep.subr.bf16.mxu0 0
    %6852 = vmatpush1.bf16.msra.mxu0 0
    %6853 = vmatprep.subr.bf16.mxu0 0
    %6854 = vmatpush1.bf16.msra.mxu0 0
    %6855 = vmatprep.subr.bf16.mxu0 0
    %6856 = vmatpush1.bf16.msra.mxu0 0
    %6857 = vmatprep.subr.bf16.mxu0 0
    %6858 = vmatpush1.bf16.msra.mxu0 0
    %6859 = vmatprep.subr.bf16.mxu0 0
    %6860 = vmatpush1.bf16.msra.mxu0 0
    %6861 = vmatprep.subr.bf16.mxu0 0
    %6862 = vmatpush1.bf16.msra.mxu0 0
    %6863 = vmatprep.subr.bf16.mxu0 0
    %6864 = vmatpush1.bf16.msra.mxu0 0
    %6865 = vmatprep.subr.bf16.mxu0 0
    %6866 = vmatpush1.bf16.msra.mxu0 0
    %6867 = vmatprep.subr.bf16.mxu0 0
    %6868 = vmatpush1.bf16.msra.mxu0 0
    %6869 = vmatprep.subr.bf16.mxu0 0
    %6870 = vmatpush1.bf16.msra.mxu0 0
    %6871 = vmatprep.mubr.bf16.mxu0 0
    %6872 = vmatmul.mubr.bf16.gmra.mrb[0].mxu0 %v6792
    %v6873 = vpop.f32.mrb[0].mxu0
    %v6874 = vadd.f32 0.0, %v6873
    %v6875 = vpop.f32.mrb[0].mxu0
    %v6876 = vpop.f32.mrb[0].mxu0
    %v6877 = vadd.f32 0.0, %v6876
    %v6878 = vpop.f32.mrb[0].mxu0
    %6879 = vmatprep.mubr.bf16.mxu0 0
    %6880 = vmatmul.mubr.bf16.gmra.mrb[0].mxu0 %v6795
    %v6881 = vpop.f32.mrb[0].mxu0
    %v6882 = vadd.f32 0.0, %v6881
    %v6883 = vpop.f32.mrb[0].mxu0
    %v6884 = vpop.f32.mrb[0].mxu0
    %v6885 = vadd.f32 0.0, %v6884
    %v6886 = vpop.f32.mrb[0].mxu0
    %6887 = vmatprep.mubr.bf16.mxu0 0
    %6888 = vmatmul.mubr.bf16.gmra.mrb[0].mxu0 %v6798
    %v6889 = vpop.f32.mrb[0].mxu0
    %v6890 = vadd.f32 0.0, %v6889
    %v6891 = vpop.f32.mrb[0].mxu0
    %v6892 = vpop.f32.mrb[0].mxu0
    %v6893 = vadd.f32 0.0, %v6892
    %v6894 = vpop.f32.mrb[0].mxu0
    %6895 = vmatprep.mubr.bf16.mxu0 0
    %6896 = vmatmul.mubr.bf16.gmra.mrb[0].mxu0 %v6801
    %v6897 = vpop.f32.mrb[0].mxu0
    %v6898 = vadd.f32 0.0, %v6897
    %v6899 = vpop.f32.mrb[0].mxu0
    %v6900 = vpop.f32.mrb[0].mxu0
    %v6901 = vadd.f32 0.0, %v6900
    %v6902 = vpop.f32.mrb[0].mxu0
    %6903 = vmatprep.mubr.bf16.mxu0 0
    %6904 = vmatmul.mubr.bf16.gmra.mrb[0].mxu0 %v6804
    %v6905 = vpop.f32.mrb[0].mxu0
    %v6906 = vadd.f32 0.0, %v6905
    %v6907 = vpop.f32.mrb[0].mxu0
    %v6908 = vpop.f32.mrb[0].mxu0
    %v6909 = vadd.f32 0.0, %v6908
    %v6910 = vpop.f32.mrb[0].mxu0
    %6911 = vmatprep.mubr.bf16.mxu0 0
    %6912 = vmatmul.mubr.bf16.gmra.mrb[0].mxu0 %v6807
    %v6913 = vpop.f32.mrb[0].mxu0
    %v6914 = vadd.f32 0.0, %v6913
    %v6915 = vpop.f32.mrb[0].mxu0
    %v6916 = vpop.f32.mrb[0].mxu0
    %v6917 = vadd.f32 0.0, %v6916
    %v6918 = vpop.f32.mrb[0].mxu0
    %6919 = vmatprep.mubr.bf16.mxu0 0
    %6920 = vmatmul.mubr.bf16.gmra.mrb[0].mxu0 %v6810
    %v6921 = vpop.f32.mrb[0].mxu0
    %v6922 = vadd.f32 0.0, %v6921
    %v6923 = vpop.f32.mrb[0].mxu0
    %v6924 = vpop.f32.mrb[0].mxu0
    %v6925 = vadd.f32 0.0, %v6924
    %v6926 = vpop.f32.mrb[0].mxu0
    %6927 = vmatprep.mubr.bf16.mxu0 0
    %6928 = vmatmul.mubr.bf16.gmra.mrb[0].mxu0 %v6813
    %v6929 = vpop.f32.mrb[0].mxu0
    %v6930 = vadd.f32 0.0, %v6929
    %v6931 = vpop.f32.mrb[0].mxu0
    %v6932 = vpop.f32.mrb[0].mxu0
    %v6933 = vadd.f32 0.0, %v6932
    %v6934 = vpop.f32.mrb[0].mxu0
    %6935 = vmatprep.mubr.bf16.mxu0 0
    %6936 = vmatmul.mubr.bf16.gmra.mrb[0].mxu0 %v6816
    %v6937 = vpop.f32.mrb[0].mxu0
    %v6938 = vadd.f32 0.0, %v6937
    %v6939 = vpop.f32.mrb[0].mxu0
    %v6940 = vpop.f32.mrb[0].mxu0
    %v6941 = vadd.f32 0.0, %v6940
    %v6942 = vpop.f32.mrb[0].mxu0
    %6943 = vmatprep.mubr.bf16.mxu0 0
    %6944 = vmatmul.mubr.bf16.gmra.mrb[0].mxu0 %v6819
    %v6945 = vpop.f32.mrb[0].mxu0
    %v6946 = vadd.f32 0.0, %v6945
    %v6947 = vpop.f32.mrb[0].mxu0
    %v6948 = vpop.f32.mrb[0].mxu0
    %v6949 = vadd.f32 0.0, %v6948
    %v6950 = vpop.f32.mrb[0].mxu0
    %6951 = vmatprep.mubr.bf16.mxu0 0
    %6952 = vmatmul.mubr.bf16.gmra.mrb[0].mxu0 %v6822
    %v6953 = vpop.f32.mrb[0].mxu0
    %v6954 = vadd.f32 0.0, %v6953
    %v6955 = vpop.f32.mrb[0].mxu0
    %v6956 = vpop.f32.mrb[0].mxu0
    %v6957 = vadd.f32 0.0, %v6956
    %v6958 = vpop.f32.mrb[0].mxu0
    %6959 = vmatprep.mubr.bf16.mxu0 0
    %6960 = vmatmul.mubr.bf16.gmra.mrb[0].mxu0 %v6825
    %v6961 = vpop.f32.mrb[0].mxu0
    %v6962 = vadd.f32 0.0, %v6961
    %v6963 = vpop.f32.mrb[0].mxu0
    %v6964 = vpop.f32.mrb[0].mxu0
    %v6965 = vadd.f32 0.0, %v6964
    %v6966 = vpop.f32.mrb[0].mxu0
    %6967 = vmatprep.mubr.bf16.mxu0 0
    %6968 = vmatmul.mubr.bf16.gmra.mrb[0].mxu0 %v6828
    %v6969 = vpop.f32.mrb[0].mxu0
    %v6970 = vadd.f32 0.0, %v6969
    %v6971 = vpop.f32.mrb[0].mxu0
    %v6972 = vpop.f32.mrb[0].mxu0
    %v6973 = vadd.f32 0.0, %v6972
    %v6974 = vpop.f32.mrb[0].mxu0
    %6975 = vmatprep.mubr.bf16.mxu0 0
    %6976 = vmatmul.mubr.bf16.gmra.mrb[0].mxu0 %v6831
    %v6977 = vpop.f32.mrb[0].mxu0
    %v6978 = vadd.f32 0.0, %v6977
    %v6979 = vpop.f32.mrb[0].mxu0
    %v6980 = vpop.f32.mrb[0].mxu0
    %v6981 = vadd.f32 0.0, %v6980
    %v6982 = vpop.f32.mrb[0].mxu0
    %6983 = vmatprep.mubr.bf16.mxu0 0
    %6984 = vmatmul.mubr.bf16.gmra.mrb[0].mxu0 %v6834
    %v6985 = vpop.f32.mrb[0].mxu0
    %v6986 = vadd.f32 0.0, %v6985
    %v6987 = vpop.f32.mrb[0].mxu0
    %v6988 = vpop.f32.mrb[0].mxu0
    %v6989 = vadd.f32 0.0, %v6988
    %v6990 = vpop.f32.mrb[0].mxu0
    %6991 = vmatprep.mubr.bf16.mxu0 0
    %6992 = vmatmul.mubr.bf16.gmra.mrb[0].mxu0 %v6837
    %v6993 = vpop.f32.mrb[0].mxu0
    %v6994 = vadd.f32 0.0, %v6993
    %v6995 = vpop.f32.mrb[0].mxu0
    %v6996 = vpop.f32.mrb[0].mxu0
    %v6997 = vadd.f32 0.0, %v6996
    %v6998 = vpop.f32.mrb[0].mxu0
    %6999 = vdwg.mxu0
    %v7004 = vunpack.c.l.b16 %v6754
    %v7005 = vunpack.c.l.b16 %v6755
    %v7006 = vunpack.c.l.b16 %v6756
    %v7007 = vunpack.c.l.b16 %v6757
    %v7008 = vpack.c.b16 %v7005, %v7004
    %v7009 = vpack.c.b16 %v7007, %v7006
    %v7013 = vsel %vm395, %v6738, 0
    %v7016 = vsel %vm395, %v6739, 0
    %v7019 = vsel %vm395, %v6740, 0
    %v7022 = vsel %vm395, %v6741, 0
    %v7025 = vsel %vm395, %v6742, 0
    %v7028 = vsel %vm395, %v6743, 0
    %v7031 = vsel %vm395, %v6744, 0
    %v7034 = vsel %vm395, %v6745, 0
    %v7037 = vsel %vm395, %v6746, 0
    %v7040 = vsel %vm395, %v6747, 0
    %v7043 = vsel %vm395, %v6748, 0
    %v7046 = vsel %vm395, %v6749, 0
    %v7049 = vsel %vm395, %v6750, 0
    %v7052 = vsel %vm395, %v6751, 0
    %v7055 = vsel %vm395, %v6752, 0
    %v7058 = vsel %vm395, %v6753, 0
    %7060 = vmatprep.subr.bf16.mxu0 0
    %7061 = vmatpush1.bf16.msra.mxu0 %v7008
    %7062 = vmatprep.subr.bf16.mxu0 0
    %7063 = vmatpush1.bf16.msra.mxu0 %v7009
    %7064 = vmatprep.subr.bf16.mxu0 0
    %7065 = vmatpush1.bf16.msra.mxu0 0
    %7066 = vmatprep.subr.bf16.mxu0 0
    %7067 = vmatpush1.bf16.msra.mxu0 0
    %7068 = vmatprep.subr.bf16.mxu0 0
    %7069 = vmatpush1.bf16.msra.mxu0 0
    %7070 = vmatprep.subr.bf16.mxu0 0
    %7071 = vmatpush1.bf16.msra.mxu0 0
    %7072 = vmatprep.subr.bf16.mxu0 0
    %7073 = vmatpush1.bf16.msra.mxu0 0
    %7074 = vmatprep.subr.bf16.mxu0 0
    %7075 = vmatpush1.bf16.msra.mxu0 0
    %7076 = vmatprep.subr.bf16.mxu0 0
    %7077 = vmatpush1.bf16.msra.mxu0 0
    %7078 = vmatprep.subr.bf16.mxu0 0
    %7079 = vmatpush1.bf16.msra.mxu0 0
    %7080 = vmatprep.subr.bf16.mxu0 0
    %7081 = vmatpush1.bf16.msra.mxu0 0
    %7082 = vmatprep.subr.bf16.mxu0 0
    %7083 = vmatpush1.bf16.msra.mxu0 0
    %7084 = vmatprep.subr.bf16.mxu0 0
    %7085 = vmatpush1.bf16.msra.mxu0 0
    %7086 = vmatprep.subr.bf16.mxu0 0
    %7087 = vmatpush1.bf16.msra.mxu0 0
    %7088 = vmatprep.subr.bf16.mxu0 0
    %7089 = vmatpush1.bf16.msra.mxu0 0
    %7090 = vmatprep.subr.bf16.mxu0 0
    %7091 = vmatpush1.bf16.msra.mxu0 0
    %7092 = vmatprep.mubr.bf16.mxu0 0
    %7093 = vmatmul.mubr.bf16.gmra.mrb[0].mxu0 %v7013
    %v7094 = vpop.f32.mrb[0].mxu0
    %v7095 = vadd.f32 %v6874, %v7094
    %v7096 = vpop.f32.mrb[0].mxu0
    %v7097 = vpop.f32.mrb[0].mxu0
    %v7098 = vadd.f32 %v6877, %v7097
    %v7099 = vpop.f32.mrb[0].mxu0
    %7100 = vmatprep.mubr.bf16.mxu0 0
    %7101 = vmatmul.mubr.bf16.gmra.mrb[0].mxu0 %v7016
    %v7102 = vpop.f32.mrb[0].mxu0
    %v7103 = vadd.f32 %v6882, %v7102
    %v7104 = vpop.f32.mrb[0].mxu0
    %v7105 = vpop.f32.mrb[0].mxu0
    %v7106 = vadd.f32 %v6885, %v7105
    %v7107 = vpop.f32.mrb[0].mxu0
    %7108 = vmatprep.mubr.bf16.mxu0 0
    %7109 = vmatmul.mubr.bf16.gmra.mrb[0].mxu0 %v7019
    %v7110 = vpop.f32.mrb[0].mxu0
    %v7111 = vadd.f32 %v6890, %v7110
    %v7112 = vpop.f32.mrb[0].mxu0
    %v7113 = vpop.f32.mrb[0].mxu0
    %v7114 = vadd.f32 %v6893, %v7113
    %v7115 = vpop.f32.mrb[0].mxu0
    %7116 = vmatprep.mubr.bf16.mxu0 0
    %7117 = vmatmul.mubr.bf16.gmra.mrb[0].mxu0 %v7022
    %v7118 = vpop.f32.mrb[0].mxu0
    %v7119 = vadd.f32 %v6898, %v7118
    %v7120 = vpop.f32.mrb[0].mxu0
    %v7121 = vpop.f32.mrb[0].mxu0
    %v7122 = vadd.f32 %v6901, %v7121
    %v7123 = vpop.f32.mrb[0].mxu0
    %7124 = vmatprep.mubr.bf16.mxu0 0
    %7125 = vmatmul.mubr.bf16.gmra.mrb[0].mxu0 %v7025
    %v7126 = vpop.f32.mrb[0].mxu0
    %v7127 = vadd.f32 %v6906, %v7126
    %v7128 = vpop.f32.mrb[0].mxu0
    %v7129 = vpop.f32.mrb[0].mxu0
    %v7130 = vadd.f32 %v6909, %v7129
    %v7131 = vpop.f32.mrb[0].mxu0
    %7132 = vmatprep.mubr.bf16.mxu0 0
    %7133 = vmatmul.mubr.bf16.gmra.mrb[0].mxu0 %v7028
    %v7134 = vpop.f32.mrb[0].mxu0
    %v7135 = vadd.f32 %v6914, %v7134
    %v7136 = vpop.f32.mrb[0].mxu0
    %v7137 = vpop.f32.mrb[0].mxu0
    %v7138 = vadd.f32 %v6917, %v7137
    %v7139 = vpop.f32.mrb[0].mxu0
    %7140 = vmatprep.mubr.bf16.mxu0 0
    %7141 = vmatmul.mubr.bf16.gmra.mrb[0].mxu0 %v7031
    %v7142 = vpop.f32.mrb[0].mxu0
    %v7143 = vadd.f32 %v6922, %v7142
    %v7144 = vpop.f32.mrb[0].mxu0
    %v7145 = vpop.f32.mrb[0].mxu0
    %v7146 = vadd.f32 %v6925, %v7145
    %v7147 = vpop.f32.mrb[0].mxu0
    %7148 = vmatprep.mubr.bf16.mxu0 0
    %7149 = vmatmul.mubr.bf16.gmra.mrb[0].mxu0 %v7034
    %v7150 = vpop.f32.mrb[0].mxu0
    %v7151 = vadd.f32 %v6930, %v7150
    %v7152 = vpop.f32.mrb[0].mxu0
    %v7153 = vpop.f32.mrb[0].mxu0
    %v7154 = vadd.f32 %v6933, %v7153
    %v7155 = vpop.f32.mrb[0].mxu0
    %7156 = vmatprep.mubr.bf16.mxu0 0
    %7157 = vmatmul.mubr.bf16.gmra.mrb[0].mxu0 %v7037
    %v7158 = vpop.f32.mrb[0].mxu0
    %v7159 = vadd.f32 %v6938, %v7158
    %v7160 = vpop.f32.mrb[0].mxu0
    %v7161 = vpop.f32.mrb[0].mxu0
    %v7162 = vadd.f32 %v6941, %v7161
    %v7163 = vpop.f32.mrb[0].mxu0
    %7164 = vmatprep.mubr.bf16.mxu0 0
    %7165 = vmatmul.mubr.bf16.gmra.mrb[0].mxu0 %v7040
    %v7166 = vpop.f32.mrb[0].mxu0
    %v7167 = vadd.f32 %v6946, %v7166
    %v7168 = vpop.f32.mrb[0].mxu0
    %v7169 = vpop.f32.mrb[0].mxu0
    %v7170 = vadd.f32 %v6949, %v7169
    %v7171 = vpop.f32.mrb[0].mxu0
    %7172 = vmatprep.mubr.bf16.mxu0 0
    %7173 = vmatmul.mubr.bf16.gmra.mrb[0].mxu0 %v7043
    %v7174 = vpop.f32.mrb[0].mxu0
    %v7175 = vadd.f32 %v6954, %v7174
    %v7176 = vpop.f32.mrb[0].mxu0
    %v7177 = vpop.f32.mrb[0].mxu0
    %v7178 = vadd.f32 %v6957, %v7177
    %v7179 = vpop.f32.mrb[0].mxu0
    %7180 = vmatprep.mubr.bf16.mxu0 0
    %7181 = vmatmul.mubr.bf16.gmra.mrb[0].mxu0 %v7046
    %v7182 = vpop.f32.mrb[0].mxu0
    %v7183 = vadd.f32 %v6962, %v7182
    %v7184 = vpop.f32.mrb[0].mxu0
    %v7185 = vpop.f32.mrb[0].mxu0
    %v7186 = vadd.f32 %v6965, %v7185
    %v7187 = vpop.f32.mrb[0].mxu0
    %7188 = vmatprep.mubr.bf16.mxu0 0
    %7189 = vmatmul.mubr.bf16.gmra.mrb[0].mxu0 %v7049
    %v7190 = vpop.f32.mrb[0].mxu0
    %v7191 = vadd.f32 %v6970, %v7190
    %v7192 = vpop.f32.mrb[0].mxu0
    %v7193 = vpop.f32.mrb[0].mxu0
    %v7194 = vadd.f32 %v6973, %v7193
    %v7195 = vpop.f32.mrb[0].mxu0
    %7196 = vmatprep.mubr.bf16.mxu0 0
    %7197 = vmatmul.mubr.bf16.gmra.mrb[0].mxu0 %v7052
    %v7198 = vpop.f32.mrb[0].mxu0
    %v7199 = vadd.f32 %v6978, %v7198
    %v7200 = vpop.f32.mrb[0].mxu0
    %v7201 = vpop.f32.mrb[0].mxu0
    %v7202 = vadd.f32 %v6981, %v7201
    %v7203 = vpop.f32.mrb[0].mxu0
    %7204 = vmatprep.mubr.bf16.mxu0 0
    %7205 = vmatmul.mubr.bf16.gmra.mrb[0].mxu0 %v7055
    %v7206 = vpop.f32.mrb[0].mxu0
    %v7207 = vadd.f32 %v6986, %v7206
    %v7208 = vpop.f32.mrb[0].mxu0
    %v7209 = vpop.f32.mrb[0].mxu0
    %v7210 = vadd.f32 %v6989, %v7209
    %v7211 = vpop.f32.mrb[0].mxu0
    %7212 = vmatprep.mubr.bf16.mxu0 0
    %7213 = vmatmul.mubr.bf16.gmra.mrb[0].mxu0 %v7058
    %v7214 = vpop.f32.mrb[0].mxu0
    %v7215 = vadd.f32 %v6994, %v7214
    %v7216 = vpop.f32.mrb[0].mxu0
    %v7217 = vpop.f32.mrb[0].mxu0
    %v7218 = vadd.f32 %v6997, %v7217
    %v7219 = vpop.f32.mrb[0].mxu0
    %7220 = vdwg.mxu0
    %v7221 = vld [vmem:[%s9] sm:$0x1]
    %v7223 = vlaneseq
    %v7224 = vshrl.u32 %v7223, 7
    %v7225 = vsub.s32 0, %v7224
    %v7226 = vrot.slane %v7221, %v7225
    %v7228 = vadd.f32 %v7095, %v7226
    %v7229 = vadd.f32 %v7098, %v7226
    %v7230 = vadd.f32 %v7103, %v7226
    %v7231 = vadd.f32 %v7106, %v7226
    %v7232 = vadd.f32 %v7111, %v7226
    %v7233 = vadd.f32 %v7114, %v7226
    %v7234 = vadd.f32 %v7119, %v7226
    %v7235 = vadd.f32 %v7122, %v7226
    %v7236 = vadd.f32 %v7127, %v7226
    %v7237 = vadd.f32 %v7130, %v7226
    %v7238 = vadd.f32 %v7135, %v7226
    %v7239 = vadd.f32 %v7138, %v7226
    %v7240 = vadd.f32 %v7143, %v7226
    %v7241 = vadd.f32 %v7146, %v7226
    %v7242 = vadd.f32 %v7151, %v7226
    %v7243 = vadd.f32 %v7154, %v7226
    %v7244 = vadd.f32 %v7159, %v7226
    %v7245 = vadd.f32 %v7162, %v7226
    %v7246 = vadd.f32 %v7167, %v7226
    %v7247 = vadd.f32 %v7170, %v7226
    %v7248 = vadd.f32 %v7175, %v7226
    %v7249 = vadd.f32 %v7178, %v7226
    %v7250 = vadd.f32 %v7183, %v7226
    %v7251 = vadd.f32 %v7186, %v7226
    %v7252 = vadd.f32 %v7191, %v7226
    %v7253 = vadd.f32 %v7194, %v7226
    %v7254 = vadd.f32 %v7199, %v7226
    %v7255 = vadd.f32 %v7202, %v7226
    %v7256 = vadd.f32 %v7207, %v7226
    %v7257 = vadd.f32 %v7210, %v7226
    %v7258 = vadd.f32 %v7215, %v7226
    %v7259 = vadd.f32 %v7218, %v7226
    %7260 = vadd.xlane.f32.xlu0 %v7228
    %v7261 = vpop.xlane.xlu0 %7260
    %7262 = vadd.xlane.f32.xlu0 %v7229
    %v7263 = vpop.xlane.xlu0 %7262
    %7264 = vadd.xlane.f32.xlu0 %v7230
    %v7265 = vpop.xlane.xlu0 %7264
    %7266 = vadd.xlane.f32.xlu0 %v7231
    %v7267 = vpop.xlane.xlu0 %7266
    %7268 = vadd.xlane.f32.xlu0 %v7232
    %v7269 = vpop.xlane.xlu0 %7268
    %7270 = vadd.xlane.f32.xlu0 %v7233
    %v7271 = vpop.xlane.xlu0 %7270
    %7272 = vadd.xlane.f32.xlu0 %v7234
    %v7273 = vpop.xlane.xlu0 %7272
    %7274 = vadd.xlane.f32.xlu0 %v7235
    %v7275 = vpop.xlane.xlu0 %7274
    %7276 = vadd.xlane.f32.xlu0 %v7236
    %v7277 = vpop.xlane.xlu0 %7276
    %7278 = vadd.xlane.f32.xlu0 %v7237
    %v7279 = vpop.xlane.xlu0 %7278
    %7280 = vadd.xlane.f32.xlu0 %v7238
    %v7281 = vpop.xlane.xlu0 %7280
    %7282 = vadd.xlane.f32.xlu0 %v7239
    %v7283 = vpop.xlane.xlu0 %7282
    %7284 = vadd.xlane.f32.xlu0 %v7240
    %v7285 = vpop.xlane.xlu0 %7284
    %7286 = vadd.xlane.f32.xlu0 %v7241
    %v7287 = vpop.xlane.xlu0 %7286
    %7288 = vadd.xlane.f32.xlu0 %v7242
    %v7289 = vpop.xlane.xlu0 %7288
    %7290 = vadd.xlane.f32.xlu0 %v7243
    %v7291 = vpop.xlane.xlu0 %7290
    %7292 = vadd.xlane.f32.xlu0 %v7244
    %v7293 = vpop.xlane.xlu0 %7292
    %7294 = vadd.xlane.f32.xlu0 %v7245
    %v7295 = vpop.xlane.xlu0 %7294
    %7296 = vadd.xlane.f32.xlu0 %v7246
    %v7297 = vpop.xlane.xlu0 %7296
    %7298 = vadd.xlane.f32.xlu0 %v7247
    %v7299 = vpop.xlane.xlu0 %7298
    %7300 = vadd.xlane.f32.xlu0 %v7248
    %v7301 = vpop.xlane.xlu0 %7300
    %7302 = vadd.xlane.f32.xlu0 %v7249
    %v7303 = vpop.xlane.xlu0 %7302
    %7304 = vadd.xlane.f32.xlu0 %v7250
    %v7305 = vpop.xlane.xlu0 %7304
    %7306 = vadd.xlane.f32.xlu0 %v7251
    %v7307 = vpop.xlane.xlu0 %7306
    %7308 = vadd.xlane.f32.xlu0 %v7252
    %v7309 = vpop.xlane.xlu0 %7308
    %7310 = vadd.xlane.f32.xlu0 %v7253
    %v7311 = vpop.xlane.xlu0 %7310
    %7312 = vadd.xlane.f32.xlu0 %v7254
    %v7313 = vpop.xlane.xlu0 %7312
    %7314 = vadd.xlane.f32.xlu0 %v7255
    %v7315 = vpop.xlane.xlu0 %7314
    %7316 = vadd.xlane.f32.xlu0 %v7256
    %v7317 = vpop.xlane.xlu0 %7316
    %7318 = vadd.xlane.f32.xlu0 %v7257
    %v7319 = vpop.xlane.xlu0 %7318
    %7320 = vadd.xlane.f32.xlu0 %v7258
    %v7321 = vpop.xlane.xlu0 %7320
    %7322 = vadd.xlane.f32.xlu0 %v7259
    %v7323 = vpop.xlane.xlu0 %7322
    %v7324 = vmul.f32 %v7261, 0.010416667
    %v7325 = vmul.f32 %v7263, 0.010416667
    %v7326 = vmul.f32 %v7265, 0.010416667
    %v7327 = vmul.f32 %v7267, 0.010416667
    %v7328 = vmul.f32 %v7269, 0.010416667
    %v7329 = vmul.f32 %v7271, 0.010416667
    %v7330 = vmul.f32 %v7273, 0.010416667
    %v7331 = vmul.f32 %v7275, 0.010416667
    %v7332 = vmul.f32 %v7277, 0.010416667
    %v7333 = vmul.f32 %v7279, 0.010416667
    %v7334 = vmul.f32 %v7281, 0.010416667
    %v7335 = vmul.f32 %v7283, 0.010416667
    %v7336 = vmul.f32 %v7285, 0.010416667
    %v7337 = vmul.f32 %v7287, 0.010416667
    %v7338 = vmul.f32 %v7289, 0.010416667
    %v7339 = vmul.f32 %v7291, 0.010416667
    %v7340 = vmul.f32 %v7293, 0.010416667
    %v7341 = vmul.f32 %v7295, 0.010416667
    %v7342 = vmul.f32 %v7297, 0.010416667
    %v7343 = vmul.f32 %v7299, 0.010416667
    %v7344 = vmul.f32 %v7301, 0.010416667
    %v7345 = vmul.f32 %v7303, 0.010416667
    %v7346 = vmul.f32 %v7305, 0.010416667
    %v7347 = vmul.f32 %v7307, 0.010416667
    %v7348 = vmul.f32 %v7309, 0.010416667
    %v7349 = vmul.f32 %v7311, 0.010416667
    %v7350 = vmul.f32 %v7313, 0.010416667
    %v7351 = vmul.f32 %v7315, 0.010416667
    %v7352 = vmul.f32 %v7317, 0.010416667
    %v7353 = vmul.f32 %v7319, 0.010416667
    %v7354 = vmul.f32 %v7321, 0.010416667
    %v7355 = vmul.f32 %v7323, 0.010416667
    %v7356 = vmul.f32 %v7228, %v7228
    %v7357 = vmul.f32 %v7229, %v7229
    %v7358 = vmul.f32 %v7230, %v7230
    %v7359 = vmul.f32 %v7231, %v7231
    %v7360 = vmul.f32 %v7232, %v7232
    %v7361 = vmul.f32 %v7233, %v7233
    %v7362 = vmul.f32 %v7234, %v7234
    %v7363 = vmul.f32 %v7235, %v7235
    %v7364 = vmul.f32 %v7236, %v7236
    %v7365 = vmul.f32 %v7237, %v7237
    %v7366 = vmul.f32 %v7238, %v7238
    %v7367 = vmul.f32 %v7239, %v7239
    %v7368 = vmul.f32 %v7240, %v7240
    %v7369 = vmul.f32 %v7241, %v7241
    %v7370 = vmul.f32 %v7242, %v7242
    %v7371 = vmul.f32 %v7243, %v7243
    %v7372 = vmul.f32 %v7244, %v7244
    %v7373 = vmul.f32 %v7245, %v7245
    %v7374 = vmul.f32 %v7246, %v7246
    %v7375 = vmul.f32 %v7247, %v7247
    %v7376 = vmul.f32 %v7248, %v7248
    %v7377 = vmul.f32 %v7249, %v7249
    %v7378 = vmul.f32 %v7250, %v7250
    %v7379 = vmul.f32 %v7251, %v7251
    %v7380 = vmul.f32 %v7252, %v7252
    %v7381 = vmul.f32 %v7253, %v7253
    %v7382 = vmul.f32 %v7254, %v7254
    %v7383 = vmul.f32 %v7255, %v7255
    %v7384 = vmul.f32 %v7256, %v7256
    %v7385 = vmul.f32 %v7257, %v7257
    %v7386 = vmul.f32 %v7258, %v7258
    %v7387 = vmul.f32 %v7259, %v7259
    %7388 = vadd.xlane.f32.xlu0 %v7356
    %v7389 = vpop.xlane.xlu0 %7388
    %7390 = vadd.xlane.f32.xlu0 %v7357
    %v7391 = vpop.xlane.xlu0 %7390
    %7392 = vadd.xlane.f32.xlu0 %v7358
    %v7393 = vpop.xlane.xlu0 %7392
    %7394 = vadd.xlane.f32.xlu0 %v7359
    %v7395 = vpop.xlane.xlu0 %7394
    %7396 = vadd.xlane.f32.xlu0 %v7360
    %v7397 = vpop.xlane.xlu0 %7396
    %7398 = vadd.xlane.f32.xlu0 %v7361
    %v7399 = vpop.xlane.xlu0 %7398
    %7400 = vadd.xlane.f32.xlu0 %v7362
    %v7401 = vpop.xlane.xlu0 %7400
    %7402 = vadd.xlane.f32.xlu0 %v7363
    %v7403 = vpop.xlane.xlu0 %7402
    %7404 = vadd.xlane.f32.xlu0 %v7364
    %v7405 = vpop.xlane.xlu0 %7404
    %7406 = vadd.xlane.f32.xlu0 %v7365
    %v7407 = vpop.xlane.xlu0 %7406
    %7408 = vadd.xlane.f32.xlu0 %v7366
    %v7409 = vpop.xlane.xlu0 %7408
    %7410 = vadd.xlane.f32.xlu0 %v7367
    %v7411 = vpop.xlane.xlu0 %7410
    %7412 = vadd.xlane.f32.xlu0 %v7368
    %v7413 = vpop.xlane.xlu0 %7412
    %7414 = vadd.xlane.f32.xlu0 %v7369
    %v7415 = vpop.xlane.xlu0 %7414
    %7416 = vadd.xlane.f32.xlu0 %v7370
    %v7417 = vpop.xlane.xlu0 %7416
    %7418 = vadd.xlane.f32.xlu0 %v7371
    %v7419 = vpop.xlane.xlu0 %7418
    %7420 = vadd.xlane.f32.xlu0 %v7372
    %v7421 = vpop.xlane.xlu0 %7420
    %7422 = vadd.xlane.f32.xlu0 %v7373
    %v7423 = vpop.xlane.xlu0 %7422
    %7424 = vadd.xlane.f32.xlu0 %v7374
    %v7425 = vpop.xlane.xlu0 %7424
    %7426 = vadd.xlane.f32.xlu0 %v7375
    %v7427 = vpop.xlane.xlu0 %7426
    %7428 = vadd.xlane.f32.xlu0 %v7376
    %v7429 = vpop.xlane.xlu0 %7428
    %7430 = vadd.xlane.f32.xlu0 %v7377
    %v7431 = vpop.xlane.xlu0 %7430
    %7432 = vadd.xlane.f32.xlu0 %v7378
    %v7433 = vpop.xlane.xlu0 %7432
    %7434 = vadd.xlane.f32.xlu0 %v7379
    %v7435 = vpop.xlane.xlu0 %7434
    %7436 = vadd.xlane.f32.xlu0 %v7380
    %v7437 = vpop.xlane.xlu0 %7436
    %7438 = vadd.xlane.f32.xlu0 %v7381
    %v7439 = vpop.xlane.xlu0 %7438
    %7440 = vadd.xlane.f32.xlu0 %v7382
    %v7441 = vpop.xlane.xlu0 %7440
    %7442 = vadd.xlane.f32.xlu0 %v7383
    %v7443 = vpop.xlane.xlu0 %7442
    %7444 = vadd.xlane.f32.xlu0 %v7384
    %v7445 = vpop.xlane.xlu0 %7444
    %7446 = vadd.xlane.f32.xlu0 %v7385
    %v7447 = vpop.xlane.xlu0 %7446
    %7448 = vadd.xlane.f32.xlu0 %v7386
    %v7449 = vpop.xlane.xlu0 %7448
    %7450 = vadd.xlane.f32.xlu0 %v7387
    %v7451 = vpop.xlane.xlu0 %7450
    %v7452 = vmul.f32 %v7389, 0.010416667
    %v7453 = vmul.f32 %v7391, 0.010416667
    %v7454 = vmul.f32 %v7393, 0.010416667
    %v7455 = vmul.f32 %v7395, 0.010416667
    %v7456 = vmul.f32 %v7397, 0.010416667
    %v7457 = vmul.f32 %v7399, 0.010416667
    %v7458 = vmul.f32 %v7401, 0.010416667
    %v7459 = vmul.f32 %v7403, 0.010416667
    %v7460 = vmul.f32 %v7405, 0.010416667
    %v7461 = vmul.f32 %v7407, 0.010416667
    %v7462 = vmul.f32 %v7409, 0.010416667
    %v7463 = vmul.f32 %v7411, 0.010416667
    %v7464 = vmul.f32 %v7413, 0.010416667
    %v7465 = vmul.f32 %v7415, 0.010416667
    %v7466 = vmul.f32 %v7417, 0.010416667
    %v7467 = vmul.f32 %v7419, 0.010416667
    %v7468 = vmul.f32 %v7421, 0.010416667
    %v7469 = vmul.f32 %v7423, 0.010416667
    %v7470 = vmul.f32 %v7425, 0.010416667
    %v7471 = vmul.f32 %v7427, 0.010416667
    %v7472 = vmul.f32 %v7429, 0.010416667
    %v7473 = vmul.f32 %v7431, 0.010416667
    %v7474 = vmul.f32 %v7433, 0.010416667
    %v7475 = vmul.f32 %v7435, 0.010416667
    %v7476 = vmul.f32 %v7437, 0.010416667
    %v7477 = vmul.f32 %v7439, 0.010416667
    %v7478 = vmul.f32 %v7441, 0.010416667
    %v7479 = vmul.f32 %v7443, 0.010416667
    %v7480 = vmul.f32 %v7445, 0.010416667
    %v7481 = vmul.f32 %v7447, 0.010416667
    %v7482 = vmul.f32 %v7449, 0.010416667
    %v7483 = vmul.f32 %v7451, 0.010416667
    %v7484 = vmul.f32 %v7324, %v7324
    %v7485 = vmul.f32 %v7325, %v7325
    %v7486 = vmul.f32 %v7326, %v7326
    %v7487 = vmul.f32 %v7327, %v7327
    %v7488 = vmul.f32 %v7328, %v7328
    %v7489 = vmul.f32 %v7329, %v7329
    %v7490 = vmul.f32 %v7330, %v7330
    %v7491 = vmul.f32 %v7331, %v7331
    %v7492 = vmul.f32 %v7332, %v7332
    %v7493 = vmul.f32 %v7333, %v7333
    %v7494 = vmul.f32 %v7334, %v7334
    %v7495 = vmul.f32 %v7335, %v7335
    %v7496 = vmul.f32 %v7336, %v7336
    %v7497 = vmul.f32 %v7337, %v7337
    %v7498 = vmul.f32 %v7338, %v7338
    %v7499 = vmul.f32 %v7339, %v7339
    %v7500 = vmul.f32 %v7340, %v7340
    %v7501 = vmul.f32 %v7341, %v7341
    %v7502 = vmul.f32 %v7342, %v7342
    %v7503 = vmul.f32 %v7343, %v7343
    %v7504 = vmul.f32 %v7344, %v7344
    %v7505 = vmul.f32 %v7345, %v7345
    %v7506 = vmul.f32 %v7346, %v7346
    %v7507 = vmul.f32 %v7347, %v7347
    %v7508 = vmul.f32 %v7348, %v7348
    %v7509 = vmul.f32 %v7349, %v7349
    %v7510 = vmul.f32 %v7350, %v7350
    %v7511 = vmul.f32 %v7351, %v7351
    %v7512 = vmul.f32 %v7352, %v7352
    %v7513 = vmul.f32 %v7353, %v7353
    %v7514 = vmul.f32 %v7354, %v7354
    %v7515 = vmul.f32 %v7355, %v7355
    %v7516 = vsub.f32 %v7452, %v7484
    %v7517 = vsub.f32 %v7453, %v7485
    %v7518 = vsub.f32 %v7454, %v7486
    %v7519 = vsub.f32 %v7455, %v7487
    %v7520 = vsub.f32 %v7456, %v7488
    %v7521 = vsub.f32 %v7457, %v7489
    %v7522 = vsub.f32 %v7458, %v7490
    %v7523 = vsub.f32 %v7459, %v7491
    %v7524 = vsub.f32 %v7460, %v7492
    %v7525 = vsub.f32 %v7461, %v7493
    %v7526 = vsub.f32 %v7462, %v7494
    %v7527 = vsub.f32 %v7463, %v7495
    %v7528 = vsub.f32 %v7464, %v7496
    %v7529 = vsub.f32 %v7465, %v7497
    %v7530 = vsub.f32 %v7466, %v7498
    %v7531 = vsub.f32 %v7467, %v7499
    %v7532 = vsub.f32 %v7468, %v7500
    %v7533 = vsub.f32 %v7469, %v7501
    %v7534 = vsub.f32 %v7470, %v7502
    %v7535 = vsub.f32 %v7471, %v7503
    %v7536 = vsub.f32 %v7472, %v7504
    %v7537 = vsub.f32 %v7473, %v7505
    %v7538 = vsub.f32 %v7474, %v7506
    %v7539 = vsub.f32 %v7475, %v7507
    %v7540 = vsub.f32 %v7476, %v7508
    %v7541 = vsub.f32 %v7477, %v7509
    %v7542 = vsub.f32 %v7478, %v7510
    %v7543 = vsub.f32 %v7479, %v7511
    %v7544 = vsub.f32 %v7480, %v7512
    %v7545 = vsub.f32 %v7481, %v7513
    %v7546 = vsub.f32 %v7482, %v7514
    %v7547 = vsub.f32 %v7483, %v7515
    %v7548 = vsub.f32 %v7228, %v7324
    %v7549 = vsub.f32 %v7229, %v7325
    %v7550 = vsub.f32 %v7230, %v7326
    %v7551 = vsub.f32 %v7231, %v7327
    %v7552 = vsub.f32 %v7232, %v7328
    %v7553 = vsub.f32 %v7233, %v7329
    %v7554 = vsub.f32 %v7234, %v7330
    %v7555 = vsub.f32 %v7235, %v7331
    %v7556 = vsub.f32 %v7236, %v7332
    %v7557 = vsub.f32 %v7237, %v7333
    %v7558 = vsub.f32 %v7238, %v7334
    %v7559 = vsub.f32 %v7239, %v7335
    %v7560 = vsub.f32 %v7240, %v7336
    %v7561 = vsub.f32 %v7241, %v7337
    %v7562 = vsub.f32 %v7242, %v7338
    %v7563 = vsub.f32 %v7243, %v7339
    %v7564 = vsub.f32 %v7244, %v7340
    %v7565 = vsub.f32 %v7245, %v7341
    %v7566 = vsub.f32 %v7246, %v7342
    %v7567 = vsub.f32 %v7247, %v7343
    %v7568 = vsub.f32 %v7248, %v7344
    %v7569 = vsub.f32 %v7249, %v7345
    %v7570 = vsub.f32 %v7250, %v7346
    %v7571 = vsub.f32 %v7251, %v7347
    %v7572 = vsub.f32 %v7252, %v7348
    %v7573 = vsub.f32 %v7253, %v7349
    %v7574 = vsub.f32 %v7254, %v7350
    %v7575 = vsub.f32 %v7255, %v7351
    %v7576 = vsub.f32 %v7256, %v7352
    %v7577 = vsub.f32 %v7257, %v7353
    %v7578 = vsub.f32 %v7258, %v7354
    %v7579 = vsub.f32 %v7259, %v7355
    %v7580 = vadd.f32 %v7516, 1e-05
    %v7581 = vadd.f32 %v7517, 1e-05
    %v7582 = vadd.f32 %v7518, 1e-05
    %v7583 = vadd.f32 %v7519, 1e-05
    %v7584 = vadd.f32 %v7520, 1e-05
    %v7585 = vadd.f32 %v7521, 1e-05
    %v7586 = vadd.f32 %v7522, 1e-05
    %v7587 = vadd.f32 %v7523, 1e-05
    %v7588 = vadd.f32 %v7524, 1e-05
    %v7589 = vadd.f32 %v7525, 1e-05
    %v7590 = vadd.f32 %v7526, 1e-05
    %v7591 = vadd.f32 %v7527, 1e-05
    %v7592 = vadd.f32 %v7528, 1e-05
    %v7593 = vadd.f32 %v7529, 1e-05
    %v7594 = vadd.f32 %v7530, 1e-05
    %v7595 = vadd.f32 %v7531, 1e-05
    %v7596 = vadd.f32 %v7532, 1e-05
    %v7597 = vadd.f32 %v7533, 1e-05
    %v7598 = vadd.f32 %v7534, 1e-05
    %v7599 = vadd.f32 %v7535, 1e-05
    %v7600 = vadd.f32 %v7536, 1e-05
    %v7601 = vadd.f32 %v7537, 1e-05
    %v7602 = vadd.f32 %v7538, 1e-05
    %v7603 = vadd.f32 %v7539, 1e-05
    %v7604 = vadd.f32 %v7540, 1e-05
    %v7605 = vadd.f32 %v7541, 1e-05
    %v7606 = vadd.f32 %v7542, 1e-05
    %v7607 = vadd.f32 %v7543, 1e-05
    %v7608 = vadd.f32 %v7544, 1e-05
    %v7609 = vadd.f32 %v7545, 1e-05
    %v7610 = vadd.f32 %v7546, 1e-05
    %v7611 = vadd.f32 %v7547, 1e-05
    %v7612 = vrsqrt.pop %v7580
    %v7613 = vrsqrt.pop %v7581
    %v7614 = vrsqrt.pop %v7582
    %v7615 = vrsqrt.pop %v7583
    %v7616 = vrsqrt.pop %v7584
    %v7617 = vrsqrt.pop %v7585
    %v7618 = vrsqrt.pop %v7586
    %v7619 = vrsqrt.pop %v7587
    %v7620 = vrsqrt.pop %v7588
    %v7621 = vrsqrt.pop %v7589
    %v7622 = vrsqrt.pop %v7590
    %v7623 = vrsqrt.pop %v7591
    %v7624 = vrsqrt.pop %v7592
    %v7625 = vrsqrt.pop %v7593
    %v7626 = vrsqrt.pop %v7594
    %v7627 = vrsqrt.pop %v7595
    %v7628 = vrsqrt.pop %v7596
    %v7629 = vrsqrt.pop %v7597
    %v7630 = vrsqrt.pop %v7598
    %v7631 = vrsqrt.pop %v7599
    %v7632 = vrsqrt.pop %v7600
    %v7633 = vrsqrt.pop %v7601
    %v7634 = vrsqrt.pop %v7602
    %v7635 = vrsqrt.pop %v7603
    %v7636 = vrsqrt.pop %v7604
    %v7637 = vrsqrt.pop %v7605
    %v7638 = vrsqrt.pop %v7606
    %v7639 = vrsqrt.pop %v7607
    %v7640 = vrsqrt.pop %v7608
    %v7641 = vrsqrt.pop %v7609
    %v7642 = vrsqrt.pop %v7610
    %v7643 = vrsqrt.pop %v7611
    %v7644 = vmul.f32 %v7548, %v7612
    %v7645 = vmul.f32 %v7549, %v7613
    %v7646 = vmul.f32 %v7550, %v7614
    %v7647 = vmul.f32 %v7551, %v7615
    %v7648 = vmul.f32 %v7552, %v7616
    %v7649 = vmul.f32 %v7553, %v7617
    %v7650 = vmul.f32 %v7554, %v7618
    %v7651 = vmul.f32 %v7555, %v7619
    %v7652 = vmul.f32 %v7556, %v7620
    %v7653 = vmul.f32 %v7557, %v7621
    %v7654 = vmul.f32 %v7558, %v7622
    %v7655 = vmul.f32 %v7559, %v7623
    %v7656 = vmul.f32 %v7560, %v7624
    %v7657 = vmul.f32 %v7561, %v7625
    %v7658 = vmul.f32 %v7562, %v7626
    %v7659 = vmul.f32 %v7563, %v7627
    %v7660 = vmul.f32 %v7564, %v7628
    %v7661 = vmul.f32 %v7565, %v7629
    %v7662 = vmul.f32 %v7566, %v7630
    %v7663 = vmul.f32 %v7567, %v7631
    %v7664 = vmul.f32 %v7568, %v7632
    %v7665 = vmul.f32 %v7569, %v7633
    %v7666 = vmul.f32 %v7570, %v7634
    %v7667 = vmul.f32 %v7571, %v7635
    %v7668 = vmul.f32 %v7572, %v7636
    %v7669 = vmul.f32 %v7573, %v7637
    %v7670 = vmul.f32 %v7574, %v7638
    %v7671 = vmul.f32 %v7575, %v7639
    %v7672 = vmul.f32 %v7576, %v7640
    %v7673 = vmul.f32 %v7577, %v7641
    %v7674 = vmul.f32 %v7578, %v7642
    %v7675 = vmul.f32 %v7579, %v7643
    %v7676 = vld [vmem:[%s10] sm:$0x1]
    %v7678 = vlaneseq
    %v7679 = vshrl.u32 %v7678, 7
    %v7680 = vsub.s32 0, %v7679
    %v7681 = vrot.slane %v7676, %v7680
    %v7683 = vmul.f32 %v7644, %v7681
    %v7684 = vmul.f32 %v7645, %v7681
    %v7685 = vmul.f32 %v7646, %v7681
    %v7686 = vmul.f32 %v7647, %v7681
    %v7687 = vmul.f32 %v7648, %v7681
    %v7688 = vmul.f32 %v7649, %v7681
    %v7689 = vmul.f32 %v7650, %v7681
    %v7690 = vmul.f32 %v7651, %v7681
    %v7691 = vmul.f32 %v7652, %v7681
    %v7692 = vmul.f32 %v7653, %v7681
    %v7693 = vmul.f32 %v7654, %v7681
    %v7694 = vmul.f32 %v7655, %v7681
    %v7695 = vmul.f32 %v7656, %v7681
    %v7696 = vmul.f32 %v7657, %v7681
    %v7697 = vmul.f32 %v7658, %v7681
    %v7698 = vmul.f32 %v7659, %v7681
    %v7699 = vmul.f32 %v7660, %v7681
    %v7700 = vmul.f32 %v7661, %v7681
    %v7701 = vmul.f32 %v7662, %v7681
    %v7702 = vmul.f32 %v7663, %v7681
    %v7703 = vmul.f32 %v7664, %v7681
    %v7704 = vmul.f32 %v7665, %v7681
    %v7705 = vmul.f32 %v7666, %v7681
    %v7706 = vmul.f32 %v7667, %v7681
    %v7707 = vmul.f32 %v7668, %v7681
    %v7708 = vmul.f32 %v7669, %v7681
    %v7709 = vmul.f32 %v7670, %v7681
    %v7710 = vmul.f32 %v7671, %v7681
    %v7711 = vmul.f32 %v7672, %v7681
    %v7712 = vmul.f32 %v7673, %v7681
    %v7713 = vmul.f32 %v7674, %v7681
    %v7714 = vmul.f32 %v7675, %v7681
    %v7715 = vld [vmem:[%s11] sm:$0x1]
    %v7717 = vlaneseq
    %v7718 = vshrl.u32 %v7717, 7
    %v7719 = vsub.s32 0, %v7718
    %v7720 = vrot.slane %v7715, %v7719
    %v7722 = vadd.f32 %v7683, %v7720
    %v7723 = vadd.f32 %v7684, %v7720
    %v7724 = vadd.f32 %v7685, %v7720
    %v7725 = vadd.f32 %v7686, %v7720
    %v7726 = vadd.f32 %v7687, %v7720
    %v7727 = vadd.f32 %v7688, %v7720
    %v7728 = vadd.f32 %v7689, %v7720
    %v7729 = vadd.f32 %v7690, %v7720
    %v7730 = vadd.f32 %v7691, %v7720
    %v7731 = vadd.f32 %v7692, %v7720
    %v7732 = vadd.f32 %v7693, %v7720
    %v7733 = vadd.f32 %v7694, %v7720
    %v7734 = vadd.f32 %v7695, %v7720
    %v7735 = vadd.f32 %v7696, %v7720
    %v7736 = vadd.f32 %v7697, %v7720
    %v7737 = vadd.f32 %v7698, %v7720
    %v7738 = vadd.f32 %v7699, %v7720
    %v7739 = vadd.f32 %v7700, %v7720
    %v7740 = vadd.f32 %v7701, %v7720
    %v7741 = vadd.f32 %v7702, %v7720
    %v7742 = vadd.f32 %v7703, %v7720
    %v7743 = vadd.f32 %v7704, %v7720
    %v7744 = vadd.f32 %v7705, %v7720
    %v7745 = vadd.f32 %v7706, %v7720
    %v7746 = vadd.f32 %v7707, %v7720
    %v7747 = vadd.f32 %v7708, %v7720
    %v7748 = vadd.f32 %v7709, %v7720
    %v7749 = vadd.f32 %v7710, %v7720
    %v7750 = vadd.f32 %v7711, %v7720
    %v7751 = vadd.f32 %v7712, %v7720
    %v7752 = vadd.f32 %v7713, %v7720
    %v7753 = vadd.f32 %v7714, %v7720
    %v7754 = vmax.f32 %v7722, 0.0
    %v7755 = vmax.f32 %v7723, 0.0
    %v7756 = vmax.f32 %v7724, 0.0
    %v7757 = vmax.f32 %v7725, 0.0
    %v7758 = vmax.f32 %v7726, 0.0
    %v7759 = vmax.f32 %v7727, 0.0
    %v7760 = vmax.f32 %v7728, 0.0
    %v7761 = vmax.f32 %v7729, 0.0
    %v7762 = vmax.f32 %v7730, 0.0
    %v7763 = vmax.f32 %v7731, 0.0
    %v7764 = vmax.f32 %v7732, 0.0
    %v7765 = vmax.f32 %v7733, 0.0
    %v7766 = vmax.f32 %v7734, 0.0
    %v7767 = vmax.f32 %v7735, 0.0
    %v7768 = vmax.f32 %v7736, 0.0
    %v7769 = vmax.f32 %v7737, 0.0
    %v7770 = vmax.f32 %v7738, 0.0
    %v7771 = vmax.f32 %v7739, 0.0
    %v7772 = vmax.f32 %v7740, 0.0
    %v7773 = vmax.f32 %v7741, 0.0
    %v7774 = vmax.f32 %v7742, 0.0
    %v7775 = vmax.f32 %v7743, 0.0
    %v7776 = vmax.f32 %v7744, 0.0
    %v7777 = vmax.f32 %v7745, 0.0
    %v7778 = vmax.f32 %v7746, 0.0
    %v7779 = vmax.f32 %v7747, 0.0
    %v7780 = vmax.f32 %v7748, 0.0
    %v7781 = vmax.f32 %v7749, 0.0
    %v7782 = vmax.f32 %v7750, 0.0
    %v7783 = vmax.f32 %v7751, 0.0
    %v7784 = vmax.f32 %v7752, 0.0
    %v7785 = vmax.f32 %v7753, 0.0
    %7786 = vst [vmem:[#allocation2] sm:$0xff] %v7754
    %7787 = vst [vmem:[#allocation2 + $0x8] sm:$0xff] %v7755
    %7788 = vst [vmem:[#allocation2 + $0x10] sm:$0xff] %v7756
    %7789 = vst [vmem:[#allocation2 + $0x18] sm:$0xff] %v7757
    %7790 = vst [vmem:[#allocation2 + $0x20] sm:$0xff] %v7758
    %7791 = vst [vmem:[#allocation2 + $0x28] sm:$0xff] %v7759
    %7792 = vst [vmem:[#allocation2 + $0x30] sm:$0xff] %v7760
    %7793 = vst [vmem:[#allocation2 + $0x38] sm:$0xff] %v7761
    %7794 = vst [vmem:[#allocation2 + $0x40] sm:$0xff] %v7762
    %7795 = vst [vmem:[#allocation2 + $0x48] sm:$0xff] %v7763
    %7796 = vst [vmem:[#allocation2 + $0x50] sm:$0xff] %v7764
    %7797 = vst [vmem:[#allocation2 + $0x58] sm:$0xff] %v7765
    %7798 = vst [vmem:[#allocation2 + $0x60] sm:$0xff] %v7766
    %7799 = vst [vmem:[#allocation2 + $0x68] sm:$0xff] %v7767
    %7800 = vst [vmem:[#allocation2 + $0x70] sm:$0xff] %v7768
    %7801 = vst [vmem:[#allocation2 + $0x78] sm:$0xff] %v7769
    %7802 = vst [vmem:[#allocation2 + $0x80] sm:$0xff] %v7770
    %7803 = vst [vmem:[#allocation2 + $0x88] sm:$0xff] %v7771
    %7804 = vst [vmem:[#allocation2 + $0x90] sm:$0xff] %v7772
    %7805 = vst [vmem:[#allocation2 + $0x98] sm:$0xff] %v7773
    %7806 = vst [vmem:[#allocation2 + $0xa0] sm:$0xff] %v7774
    %7807 = vst [vmem:[#allocation2 + $0xa8] sm:$0xff] %v7775
    %7808 = vst [vmem:[#allocation2 + $0xb0] sm:$0xff] %v7776
    %7809 = vst [vmem:[#allocation2 + $0xb8] sm:$0xff] %v7777
    %7810 = vst [vmem:[#allocation2 + $0xc0] sm:$0xff] %v7778
    %7811 = vst [vmem:[#allocation2 + $0xc8] sm:$0xff] %v7779
    %7812 = vst [vmem:[#allocation2 + $0xd0] sm:$0xff] %v7780
    %7813 = vst [vmem:[#allocation2 + $0xd8] sm:$0xff] %v7781
    %7814 = vst [vmem:[#allocation2 + $0xe0] sm:$0xff] %v7782
    %7815 = vst [vmem:[#allocation2 + $0xe8] sm:$0xff] %v7783
    %7816 = vst [vmem:[#allocation2 + $0xf0] sm:$0xff] %v7784
    %7817 = vst [vmem:[#allocation2 + $0xf8] sm:$0xff] %v7785
    // Predicated region
    $region50: #{tpu_custom_call.1} parent=1 // pred_check
      _
    $region51: #{tpu_custom_call.1} parent=1 // pred_check_branch
      %7819 = sbr.rel (0) target = $region53
    $region52: #{tpu_custom_call.1} parent=1 // pred_region
      %s7821 = ssub.s32 4096, 4096
      %7822 = vsyncadd [#allocation3], %s7821
      %s7823 = sshll.u32 [#allocation2], 4
      %s7824 = int_to_ptr.vmem [resolvable:$true] %s7823
      %7829 = dma.vmem_to_hbm [thread:$0]  %s7824, 4096, %s12, [#allocation3], 128, 128, 8
    $region53: #{tpu_custom_call.1} parent=1 // pred_fallthru
      _
    // Predicated region
    $region54: #{tpu_custom_call.1} parent=1 // pred_check
      _
    $region55: #{tpu_custom_call.1} parent=1 // pred_check_branch
      %7831 = sbr.rel (0) target = $region57
    $region56: #{tpu_custom_call.1} parent=1 // pred_region
      %7832 = dma.done [#allocation3], 4096
    $region57: #{tpu_custom_call.1} parent=1 // pred_fallthru
      _
    %7833 = vsyncpa [#allocation3], 1

</llo_original>
